<compile_context>
chip_gen: v5e
topology: v5e:2x2
jax: 0.10.0
libtpu: 0.0.40
codegen_flags: <defaults>
</compile_context>

<pallas_src>
import math

import jax
import jax.numpy as jnp
from jax.experimental import pallas as pl
from jax.experimental.pallas import tpu as pltpu

# ----------------------------- architecture constants -----------------------------
IMG_C = 3            # VGG input channels
C1 = 8               # surrogate-VGG intermediate channels
FEAT = 128           # VGG feature channels            (module: 512)
HID = 128            # LSTM hidden size per direction  (module: 512)
EMB = 128            # embedding dim / LSTM input dim  (module: 512)
NUM_CHAR = 128       # synthetic vocab: ['<SOS>','<EOS>','<PAD>'] + 125 chars
TEXT_MAX_LEN = 201   # decode steps                    (module: 201)
SOS_IDX = 0          # char2idx['<SOS>'] == 0


# ================================ Pallas kernels ===================================

def feature_kernel(x_ref, w1_ref, b1_ref, w2_ref, b2_ref, o_ref, pad1_ref, pad2_ref):
    """Fused (conv3x3+ReLU) x2 + global average pool for one image, im2col convs.

    x_ref : (1, H, W, IMG_C)  NHWC image tile
    w1_ref: (9*IMG_C, C1)     im2col weight, rows tap-major (dy*3+dx) then channel
    w2_ref: (9*C1, FEAT)
    b*_ref: (1, Cout)
    o_ref : (1, 1, FEAT)      pooled feature
    pad1_ref / pad2_ref : VMEM scratch holding the zero-padded activations.
    """
    H, W = x_ref.shape[1], x_ref.shape[2]
    cin = x_ref.shape[3]
    c1 = pad2_ref.shape[2]

    # ---- conv1: zero-pad into VMEM scratch, build im2col patch matrix, ONE matmul ----
    pad1_ref[...] = jnp.zeros_like(pad1_ref)
    pad1_ref[1:H + 1, 1:W + 1, :] = x_ref[0]

    taps1 = [pad1_ref[dy:dy + H, dx:dx + W, :].reshape(H * W, cin)
             for dy in range(3) for dx in range(3)]
    patch1 = jnp.concatenate(taps1, axis=-1)                       # (H*W, 9*Cin)
    a1 = jnp.maximum(jnp.dot(patch1, w1_ref[...],
                             preferred_element_type=jnp.float32) + b1_ref[...], 0.0)

    # ---- conv2: same scheme on the (H, W, C1) intermediate (never leaves VMEM) ----
    pad2_ref[...] = jnp.zeros_like(pad2_ref)
    pad2_ref[1:H + 1, 1:W + 1, :] = a1.reshape(H, W, c1)

    taps2 = [pad2_ref[dy:dy + H, dx:dx + W, :].reshape(H * W, c1)
             for dy in range(3) for dx in range(3)]
    patch2 = jnp.concatenate(taps2, axis=-1)                       # (H*W, 9*C1)
    a2 = jnp.maximum(jnp.dot(patch2, w2_ref[...],
                             preferred_element_type=jnp.float32) + b2_ref[...], 0.0)

    # ---- AdaptiveAvgPool2d((1,1)) fused: mean over all spatial positions ----
    o_ref[0] = jnp.mean(a2, axis=0, keepdims=True)


def decode_kernel(embed_ref,
                  wx0_ref, wh0_ref, b0_ref,
                  wx1_ref, wh1_ref, b1_ref,
                  wx2_ref, wh2_ref, b2_ref,
                  ln_w_ref, ln_b_ref, proj_w_ref, proj_b_ref,
                  h0_ref, c0_ref, out_ref):
    """Autoregressive greedy decode with a 3-layer bidirectional LSTM (fused gates).

    Per-layer weights (bf16):
        W_x : (Din, 8H)   input  -> gates, gate-major cols [i_f,i_b,f_f,f_b,o_f,o_b,g_f,g_b]
        W_h : (2H, 8H)    [h_fwd|h_bwd] -> gates, zero blocks so each direction only
                          drives its own gates.
    States carried as (B, 2H) = [fwd|bwd].  out_ref: (T, B, NUM_CHAR) per-step f32 logits.
    """
    T, B, NC = out_ref.shape
    H2 = h0_ref.shape[2]          # 2 * hidden
    Hd = H2 // 2

    # Hoist all (1, N) -> (B, N) broadcasts out of the 201-step loop
    # (broadcast_in_dim is not CSE'd inside lax.fori_loop).
    b0 = jnp.broadcast_to(b0_ref[...], (B, 8 * Hd))
    b1 = jnp.broadcast_to(b1_ref[...], (B, 8 * Hd))
    b2 = jnp.broadcast_to(b2_ref[...], (B, 8 * Hd))
    ln_w = jnp.broadcast_to(ln_w_ref[...], (B, H2))
    ln_b = jnp.broadcast_to(ln_b_ref[...], (B, H2))
    proj_b = jnp.broadcast_to(proj_b_ref[...], (B, NC))

    def bilstm_layer(x_bf, h_cat, c_cat, wx_ref, wh_ref, b):
        # Two dots instead of concat+dot: keeps the recurrent dependency chain short.
        # TODO(synk): on v5e (128-wide MXU) split the recurrent matmul per direction
        # ([x|h_fwd]@W_f, [x|h_bwd]@W_b) to avoid streaming the zero hh cross-blocks.
        g = jnp.dot(x_bf, wx_ref[...], preferred_element_type=jnp.float32)
        g = g + jnp.dot(h_cat.astype(wh_ref.dtype), wh_ref[...],
                        preferred_element_type=jnp.float32) + b
        s = jax.nn.sigmoid(g[:, :6 * Hd])      # i, f, o gates for both directions
        gg = jnp.tanh(g[:, 6 * Hd:])           # cell candidate for both directions
        i_g = s[:, 0:2 * Hd]
        f_g = s[:, 2 * Hd:4 * Hd]
        o_g = s[:, 4 * Hd:6 * Hd]
        c_new = f_g * c_cat + i_g * gg
        h_new = o_g * jnp.tanh(c_new)          # == concat([h_fwd, h_bwd], axis=-1)
        return h_new, c_new

    # initial input: <SOS> embedding (bf16) broadcast to the (padded) batch
    sos = embed_ref[SOS_IDX:SOS_IDX + 1, :]
    inp0 = jnp.broadcast_to(sos, (B, sos.shape[1]))

    def step(t, carry):
        inp_bf, h0, c0, h1, c1, h2, c2 = carry

        x0, c0n = bilstm_layer(inp_bf, h0, c0, wx0_ref, wh0_ref, b0)
        # TODO(synk): nn.LSTM inter-layer dropout(0.3) is a no-op in eval mode; not applied.
        x1, c1n = bilstm_layer(x0.astype(jnp.bfloat16), h1, c1, wx1_ref, wh1_ref, b1)
        x2, c2n = bilstm_layer(x1.astype(jnp.bfloat16), h2, c2, wx2_ref, wh2_ref, b2)

        # LayerNorm(2H), eps=1e-5, biased variance (PyTorch semantics) -- f32.
        # var = E[x^2] - mu^2 so the two cross-lane reductions issue back-to-back.
        mu = jnp.mean(x2, axis=-1, keepdims=True)
        ex2 = jnp.mean(x2 * x2, axis=-1, keepdims=True)
        var = ex2 - mu * mu
        xn = (x2 - mu) * jax.lax.rsqrt(var + 1e-5) * ln_w + ln_b

        # projection to vocab (bf16 operands, f32 accumulation -> f32 logits)
        logits = jnp.dot(xn.astype(proj_w_ref.dtype), proj_w_ref[...],
                         preferred_element_type=jnp.float32) + proj_b
        out_ref[t] = logits.astype(out_ref.dtype)

        # greedy argmax (first-max tie-break on f32 logits) -> embedding via one-hot matmul
        # TODO(synk): at real vocab sizes replace the one-hot @ embed feedback with an
        # int32 index + dynamic embedding-row read to avoid streaming (V,EMB) every step.
        mmax = jnp.max(logits, axis=-1, keepdims=True)
        iota = jax.lax.broadcasted_iota(jnp.int32, logits.shape, 1)
        idx = jnp.min(jnp.where(logits == mmax, iota, NC), axis=-1, keepdims=True)
        onehot = (iota == idx).astype(embed_ref.dtype)
        nxt = jnp.dot(onehot, embed_ref[...], preferred_element_type=jnp.float32)

        return (nxt.astype(jnp.bfloat16), x0, c0n, x1, c1n, x2, c2n)

    carry0 = (inp0,
              h0_ref[0], c0_ref[0],
              h0_ref[1], c0_ref[1],
              h0_ref[2], c0_ref[2])
    # TODO(synk): consider unroll=2 on this fori_loop to overlap the argmax/store tail
    # with the next step's first matmul (trip count 201 is odd; verify per generation).
    jax.lax.fori_loop(0, T, step, carry0)


# ================================ wrappers =========================================

def vgg_features(x_nhwc, params):
    """Fused conv1+ReLU+conv2+ReLU+GAP (im2col convs), one kernel invocation per image."""
    B, H, W, _ = x_nhwc.shape
    return pl.pallas_call(
        feature_kernel,
        out_shape=jax.ShapeDtypeStruct((B, 1, FEAT), jnp.float32),
        grid=(B,),
        in_specs=[
            pl.BlockSpec((1, H, W, IMG_C), lambda b: (b, 0, 0, 0)),
            pl.BlockSpec((9 * IMG_C, C1), lambda b: (0, 0)),
            pl.BlockSpec((1, C1), lambda b: (0, 0)),
            pl.BlockSpec((9 * C1, FEAT), lambda b: (0, 0)),
            pl.BlockSpec((1, FEAT), lambda b: (0, 0)),
        ],
        out_specs=pl.BlockSpec((1, 1, FEAT), lambda b: (b, 0, 0)),
        scratch_shapes=[
            pltpu.VMEM((H + 2, W + 2, IMG_C), jnp.float32),
            pltpu.VMEM((H + 2, W + 2, C1), jnp.float32),
        ],
        compiler_params=pltpu.CompilerParams(dimension_semantics=("parallel",)),
    )(x_nhwc, params["conv1_w"], params["conv1_b"],
      params["conv2_w"], params["conv2_b"])


def decode(params, batch_pad):
    """Run the fused 201-step decode at a sublane-padded batch size (>= 8)."""
    # hidden_init / cell_init: (6, 1, H), index = 2*layer + direction (PyTorch layout).
    # Repack per layer as [fwd | bwd] -> (3, B_pad, 2H)  (mirrors .expand().contiguous()).
    h6 = params["hidden_init"]
    c6 = params["cell_init"]
    h0 = jnp.broadcast_to(jnp.concatenate([h6[0::2], h6[1::2]], axis=-1),
                          (3, batch_pad, 2 * HID))
    c0 = jnp.broadcast_to(jnp.concatenate([c6[0::2], c6[1::2]], axis=-1),
                          (3, batch_pad, 2 * HID))

    args = (params["embed"],
            params["lstm_wx0"], params["lstm_wh0"], params["lstm_b0"],
            params["lstm_wx1"], params["lstm_wh1"], params["lstm_b1"],
            params["lstm_wx2"], params["lstm_wh2"], params["lstm_b2"],
            params["ln_w"], params["ln_b"],
            params["proj_w"], params["proj_b"],
            h0, c0)

    # Advisory cost estimate (helps XLA schedule around the long-running custom call).
    flops_step = 2 * batch_pad * ((EMB + 2 * HID) * 8 * HID          # layer 0
                                  + 2 * (2 * HID + 2 * HID) * 8 * HID  # layers 1-2
                                  + 2 * HID * NUM_CHAR                 # projection
                                  + NUM_CHAR * EMB)                    # one-hot embed
    trans_step = batch_pad * 3 * 10 * HID
    bytes_accessed = (sum(int(a.size) * a.dtype.itemsize for a in args)
                      + TEXT_MAX_LEN * batch_pad * NUM_CHAR * 4)

    # TODO(synk): on v7x the decode could be split over batch across the 2 TensorCores
    # (grid=(2,), dimension_semantics=("parallel",)) once B is large enough (~>=16) that
    # per-step cost scales with B; at small B each TC would just repeat the same serial
    # 201-step chain for no gain, so keep a single invocation on 1-TC v5e/v6e.
    # TODO(synk): at full scale (HID=512, real vocab) the fused bf16 weights are ~45-50 MB;
    # on v7x (64 MiB VMEM) keep the 201x-reused LSTM weights resident and stream the
    # write-once (T,B,vocab) logits buffer to HBM in chunks instead.
    vmem = pl.BlockSpec(memory_space=pltpu.MemorySpace.VMEM)
    return pl.pallas_call(
        decode_kernel,
        out_shape=jax.ShapeDtypeStruct((TEXT_MAX_LEN, batch_pad, NUM_CHAR), jnp.float32),
        in_specs=[vmem] * 16,
        out_specs=vmem,
        compiler_params=pltpu.CompilerParams(vmem_limit_bytes=48 * 1024 * 1024),
        cost_estimate=pl.CostEstimate(flops=TEXT_MAX_LEN * flops_step,
                                      transcendentals=TEXT_MAX_LEN * trans_step,
                                      bytes_accessed=bytes_accessed),
    )(*args)


def model_forward(img_nchw, params):
    """Mirrors Model.forward: returns logits of shape (B, NUM_CHAR, TEXT_MAX_LEN)."""
    batch_size = img_nchw.shape[0]

    # --- VGG19-features surrogate + AdaptiveAvgPool2d((1,1)) ---
    # TODO(synk): the full 16-conv pretrained VGG19 stack (+max-pools) is abbreviated to a
    # deterministic 2-conv surrogate; as in the reference forward, `feat` is never consumed
    # by the decoder, so the returned logits are unaffected.
    x = jnp.transpose(img_nchw, (0, 2, 3, 1))                  # NCHW -> NHWC
    pooled = vgg_features(x, params)                           # (B, 1, FEAT)
    feat = pooled.reshape(1, batch_size, FEAT)                 # mirrors feat.view(1, B, 512)

    # --- autoregressive bi-LSTM greedy decode (the hot path), batch padded to >= 8 ---
    # Padding is exact: the decoder never reads the image, so padded rows are valid
    # duplicates and are simply sliced off.
    batch_pad = max(8, ((batch_size + 7) // 8) * 8)
    logits_tbc = decode(params, batch_pad)                     # (T, B_pad, NUM_CHAR)
    outputs = jnp.transpose(logits_tbc[:, :batch_size, :], (1, 2, 0))  # (B, NUM_CHAR, T)
    return outputs, feat


model_forward = jax.jit(model_forward)


# ============================== parameter init =====================================

def fuse_bilstm_layer(w_ih_f, w_hh_f, b_f, w_ih_b, w_hh_b, b_b, hid):
    """Build the fused split weights/bias for one bidirectional LSTM layer.

    Inputs are per-direction matrices in (Din, 4H)/(H, 4H) with PyTorch gate order
    [i, f, g, o]; b_* = b_ih + b_hh (4H,).  Output (gate-major column layout
    [i_f, i_b, f_f, f_b, o_f, o_b, g_f, g_b]):
        W_x : (Din, 8H) bf16   input -> gates for both directions.
        W_h : (2H, 8H)  bf16   rows = [h_fwd ; h_bwd], zero blocks so h_fwd only drives
                               forward gates and h_bwd only backward gates.
        b   : (1, 8H)   f32.
    """
    order = (0, 1, 3, 2)                                   # i, f, o, g
    gcols = lambda m, g: m[:, g * hid:(g + 1) * hid]
    zeros = jnp.zeros((hid, hid), jnp.float32)

    x_cols, hf_cols, hb_cols, b_cols = [], [], [], []
    for g in order:
        x_cols += [gcols(w_ih_f, g), gcols(w_ih_b, g)]
        hf_cols += [gcols(w_hh_f, g), zeros]
        hb_cols += [zeros, gcols(w_hh_b, g)]
        b_cols += [b_f[g * hid:(g + 1) * hid], b_b[g * hid:(g + 1) * hid]]

    w_x = jnp.concatenate(x_cols, axis=1)
    w_h = jnp.concatenate([jnp.concatenate(hf_cols, axis=1),
                           jnp.concatenate(hb_cols, axis=1)], axis=0)
    b = jnp.concatenate(b_cols)[None, :]
    return w_x.astype(jnp.bfloat16), w_h.astype(jnp.bfloat16), b.astype(jnp.float32)


def init_params(key):
    ks = iter(jax.random.split(key, 40))

    def U(shape, scale):
        return jax.random.uniform(next(ks), shape, jnp.float32, -scale, scale)

    s = 1.0 / math.sqrt(HID)                               # PyTorch nn.LSTM init scale
    fused = []
    for layer in range(3):
        din = EMB if layer == 0 else 2 * HID
        per_dir = []
        for _ in range(2):                                 # forward, backward
            w_ih = U((din, 4 * HID), s)
            w_hh = U((HID, 4 * HID), s)
            b = U((4 * HID,), s) + U((4 * HID,), s)        # b_ih + b_hh, independent draws
            per_dir.append((w_ih, w_hh, b))
        (wif, whf, bf), (wib, whb, bb) = per_dir
        fused.append(fuse_bilstm_layer(wif, whf, bf, wib, whb, bb, HID))

    return dict(
        # surrogate-VGG conv weights, im2col layout (9*Cin, Cout), rows tap-major -- f32
        conv1_w=U((9 * IMG_C, C1), 1.0 / math.sqrt(9 * IMG_C)),
        conv1_b=U((1, C1), 1.0 / math.sqrt(9 * IMG_C)),
        conv2_w=U((9 * C1, FEAT), 1.0 / math.sqrt(9 * C1)),
        conv2_b=U((1, FEAT), 1.0 / math.sqrt(9 * C1)),
        # nn.Embedding(NUM_CHAR, EMB): N(0, 1), stored bf16 (MXU-native)
        embed=jax.random.normal(next(ks), (NUM_CHAR, EMB), jnp.float32).astype(jnp.bfloat16),
        # fused bidirectional LSTM layers: (W_x, W_h, b) per layer
        lstm_wx0=fused[0][0], lstm_wh0=fused[0][1], lstm_b0=fused[0][2],
        lstm_wx1=fused[1][0], lstm_wh1=fused[1][1], lstm_b1=fused[1][2],
        lstm_wx2=fused[2][0], lstm_wh2=fused[2][1], lstm_b2=fused[2][2],
        # LayerNorm(2H) -- f32
        ln_w=jnp.ones((1, 2 * HID), jnp.float32),
        ln_b=jnp.zeros((1, 2 * HID), jnp.float32),
        # Linear(2H, NUM_CHAR) -- weight bf16, bias f32
        proj_w=U((2 * HID, NUM_CHAR), 1.0 / math.sqrt(2 * HID)).astype(jnp.bfloat16),
        proj_b=U((1, NUM_CHAR), 1.0 / math.sqrt(2 * HID)),
        # nn.Parameter(torch.zeros(6, 1, 512)) -- kept as zeros, PyTorch state layout
        hidden_init=jnp.zeros((6, 1, HID), jnp.float32),
        cell_init=jnp.zeros((6, 1, HID), jnp.float32),
    )


# ==================================== main ==========================================

if __name__ == "__main__":
    key = jax.random.PRNGKey(0)
    pkey, xkey = jax.random.split(key)
    params = init_params(pkey)

    # small example input, PyTorch NCHW convention
    img = jax.random.normal(xkey, (2, IMG_C, 16, 16), jnp.float32)

    outputs, feat = model_forward(img, params)
    jax.block_until_ready((outputs, feat))

    assert outputs.shape == (2, NUM_CHAR, TEXT_MAX_LEN), outputs.shape
    assert feat.shape == (1, 2, FEAT), feat.shape
    assert bool(jnp.all(jnp.isfinite(outputs)))

    print("KERNEL_OK")
</pallas_src>

<mosaic_0001>
module attributes {stable_mosaic.version = 11 : i64} {
  func.func @feature_kernel(%arg0: i32, %arg1: memref<1x16x16x3xf32, #tpu.memory_space<vmem>>, %arg2: memref<27x8xf32, #tpu.memory_space<vmem>>, %arg3: memref<1x8xf32, #tpu.memory_space<vmem>>, %arg4: memref<72x128xf32, #tpu.memory_space<vmem>>, %arg5: memref<1x128xf32, #tpu.memory_space<vmem>>, %arg6: memref<1x1x128xf32, #tpu.memory_space<vmem>>, %arg7: memref<18x18x3xf32, #tpu.memory_space<vmem>>, %arg8: memref<18x18x8xf32, #tpu.memory_space<vmem>>) attributes {dimension_semantics = [#tpu.dimension_semantics<parallel>], iteration_bounds = array<i64: 2>, scalar_prefetch = 0 : i64, scratch_operands = 2 : i64, tpu.core_type = #tpu.core_type<tc>, window_params = [{transform_indices = @transform_0, window_bounds = array<i64: 1, 16, 16, 3>}, {pipeline_mode = #tpu.pipeline_mode<synchronous>, transform_indices = @transform_1, window_bounds = array<i64: 27, 8>}, {pipeline_mode = #tpu.pipeline_mode<synchronous>, transform_indices = @transform_2, window_bounds = array<i64: 1, 8>}, {pipeline_mode = #tpu.pipeline_mode<synchronous>, transform_indices = @transform_3, window_bounds = array<i64: 72, 128>}, {pipeline_mode = #tpu.pipeline_mode<synchronous>, transform_indices = @transform_4, window_bounds = array<i64: 1, 128>}, {transform_indices = @transform_5, window_bounds = array<i64: 1, 1, 128>}]} {
    %cst = arith.constant 0.000000e+00 : f32
    %0 = vector.broadcast %cst : f32 to vector<18x18x3xf32>
    %c0 = arith.constant 0 : index
    %c0_0 = arith.constant 0 : index
    %c0_1 = arith.constant 0 : index
    %1 = vector.load %arg7[%c0, %c0_0, %c0_1] : memref<18x18x3xf32, #tpu.memory_space<vmem>>, vector<18x18x3xf32>
    tpu.vector_store %arg7[%c0, %c0_0, %c0_1], %0 {strides = array<i32>} : memref<18x18x3xf32, #tpu.memory_space<vmem>>, vector<18x18x3xf32>,
    %c0_2 = arith.constant 0 : index
    %c0_3 = arith.constant 0 : index
    %c0_4 = arith.constant 0 : index
    %c0_5 = arith.constant 0 : index
    %2 = vector.load %arg1[%c0_2, %c0_3, %c0_4, %c0_5] : memref<1x16x16x3xf32, #tpu.memory_space<vmem>>, vector<1x16x16x3xf32>
    %3 = vector.shape_cast %2 : vector<1x16x16x3xf32> to vector<16x16x3xf32>
    %c1 = arith.constant 1 : index
    %c1_6 = arith.constant 1 : index
    %c0_7 = arith.constant 0 : index
    %4 = vector.load %arg7[%c1, %c1_6, %c0_7] : memref<18x18x3xf32, #tpu.memory_space<vmem>>, vector<16x16x3xf32>
    tpu.vector_store %arg7[%c1, %c1_6, %c0_7], %3 {strides = array<i32>} : memref<18x18x3xf32, #tpu.memory_space<vmem>>, vector<16x16x3xf32>,
    %c0_8 = arith.constant 0 : index
    %c0_9 = arith.constant 0 : index
    %c0_10 = arith.constant 0 : index
    %5 = vector.load %arg7[%c0_8, %c0_9, %c0_10] : memref<18x18x3xf32, #tpu.memory_space<vmem>>, vector<16x16x3xf32>
    %6 = vector.shape_cast %5 : vector<16x16x3xf32> to vector<256x3xf32>
    %c0_11 = arith.constant 0 : index
    %c1_12 = arith.constant 1 : index
    %c0_13 = arith.constant 0 : index
    %7 = vector.load %arg7[%c0_11, %c1_12, %c0_13] : memref<18x18x3xf32, #tpu.memory_space<vmem>>, vector<16x16x3xf32>
    %8 = vector.shape_cast %7 : vector<16x16x3xf32> to vector<256x3xf32>
    %c0_14 = arith.constant 0 : index
    %c2 = arith.constant 2 : index
    %c0_15 = arith.constant 0 : index
    %9 = vector.load %arg7[%c0_14, %c2, %c0_15] : memref<18x18x3xf32, #tpu.memory_space<vmem>>, vector<16x16x3xf32>
    %10 = vector.shape_cast %9 : vector<16x16x3xf32> to vector<256x3xf32>
    %c1_16 = arith.constant 1 : index
    %c0_17 = arith.constant 0 : index
    %c0_18 = arith.constant 0 : index
    %11 = vector.load %arg7[%c1_16, %c0_17, %c0_18] : memref<18x18x3xf32, #tpu.memory_space<vmem>>, vector<16x16x3xf32>
    %12 = vector.shape_cast %11 : vector<16x16x3xf32> to vector<256x3xf32>
    %c1_19 = arith.constant 1 : index
    %c1_20 = arith.constant 1 : index
    %c0_21 = arith.constant 0 : index
    %13 = vector.load %arg7[%c1_19, %c1_20, %c0_21] : memref<18x18x3xf32, #tpu.memory_space<vmem>>, vector<16x16x3xf32>
    %14 = vector.shape_cast %13 : vector<16x16x3xf32> to vector<256x3xf32>
    %c1_22 = arith.constant 1 : index
    %c2_23 = arith.constant 2 : index
    %c0_24 = arith.constant 0 : index
    %15 = vector.load %arg7[%c1_22, %c2_23, %c0_24] : memref<18x18x3xf32, #tpu.memory_space<vmem>>, vector<16x16x3xf32>
    %16 = vector.shape_cast %15 : vector<16x16x3xf32> to vector<256x3xf32>
    %c2_25 = arith.constant 2 : index
    %c0_26 = arith.constant 0 : index
    %c0_27 = arith.constant 0 : index
    %17 = vector.load %arg7[%c2_25, %c0_26, %c0_27] : memref<18x18x3xf32, #tpu.memory_space<vmem>>, vector<16x16x3xf32>
    %18 = vector.shape_cast %17 : vector<16x16x3xf32> to vector<256x3xf32>
    %c2_28 = arith.constant 2 : index
    %c1_29 = arith.constant 1 : index
    %c0_30 = arith.constant 0 : index
    %19 = vector.load %arg7[%c2_28, %c1_29, %c0_30] : memref<18x18x3xf32, #tpu.memory_space<vmem>>, vector<16x16x3xf32>
    %20 = vector.shape_cast %19 : vector<16x16x3xf32> to vector<256x3xf32>
    %c2_31 = arith.constant 2 : index
    %c2_32 = arith.constant 2 : index
    %c0_33 = arith.constant 0 : index
    %21 = vector.load %arg7[%c2_31, %c2_32, %c0_33] : memref<18x18x3xf32, #tpu.memory_space<vmem>>, vector<16x16x3xf32>
    %22 = vector.shape_cast %21 : vector<16x16x3xf32> to vector<256x3xf32>
    %23 = tpu.concatenate %6, %8, %10, %12, %14, %16, %18, %20, %22 in 1 : vector<256x3xf32>, vector<256x3xf32>, vector<256x3xf32>, vector<256x3xf32>, vector<256x3xf32>, vector<256x3xf32>, vector<256x3xf32>, vector<256x3xf32>, vector<256x3xf32> -> vector<256x27xf32>
    %c0_34 = arith.constant 0 : index
    %c0_35 = arith.constant 0 : index
    %24 = vector.load %arg2[%c0_34, %c0_35] : memref<27x8xf32, #tpu.memory_space<vmem>>, vector<27x8xf32>
    %cst_36 = arith.constant dense<0.000000e+00> : vector<256x8xf32>
    %25 = tpu.matmul %23, %24, %cst_36 {dimension_numbers = #tpu.dot_dimension_numbers<[1], [0], [0], [1], [0, 0, 1, 1], [], []>} : vector<256x27xf32>, vector<27x8xf32>, vector<256x8xf32> -> vector<256x8xf32>
    %c0_37 = arith.constant 0 : index
    %c0_38 = arith.constant 0 : index
    %26 = vector.load %arg3[%c0_37, %c0_38] : memref<1x8xf32, #tpu.memory_space<vmem>>, vector<1x8xf32>
    %27 = vector.broadcast %26 : vector<1x8xf32> to vector<256x8xf32>
    %28 = arith.addf %25, %27 : vector<256x8xf32>
    %cst_39 = arith.constant 0.000000e+00 : f32
    %29 = vector.broadcast %cst_39 : f32 to vector<256x8xf32>
    %30 = arith.maximumf %28, %29 : vector<256x8xf32>
    %cst_40 = arith.constant 0.000000e+00 : f32
    %31 = vector.broadcast %cst_40 : f32 to vector<18x18x8xf32>
    %c0_41 = arith.constant 0 : index
    %c0_42 = arith.constant 0 : index
    %c0_43 = arith.constant 0 : index
    %32 = vector.load %arg8[%c0_41, %c0_42, %c0_43] : memref<18x18x8xf32, #tpu.memory_space<vmem>>, vector<18x18x8xf32>
    tpu.vector_store %arg8[%c0_41, %c0_42, %c0_43], %31 {strides = array<i32>} : memref<18x18x8xf32, #tpu.memory_space<vmem>>, vector<18x18x8xf32>,
    %33 = vector.shape_cast %30 : vector<256x8xf32> to vector<16x16x8xf32>
    %c1_44 = arith.constant 1 : index
    %c1_45 = arith.constant 1 : index
    %c0_46 = arith.constant 0 : index
    %34 = vector.load %arg8[%c1_44, %c1_45, %c0_46] : memref<18x18x8xf32, #tpu.memory_space<vmem>>, vector<16x16x8xf32>
    tpu.vector_store %arg8[%c1_44, %c1_45, %c0_46], %33 {strides = array<i32>} : memref<18x18x8xf32, #tpu.memory_space<vmem>>, vector<16x16x8xf32>,
    %c0_47 = arith.constant 0 : index
    %c0_48 = arith.constant 0 : index
    %c0_49 = arith.constant 0 : index
    %35 = vector.load %arg8[%c0_47, %c0_48, %c0_49] : memref<18x18x8xf32, #tpu.memory_space<vmem>>, vector<16x16x8xf32>
    %36 = vector.shape_cast %35 : vector<16x16x8xf32> to vector<256x8xf32>
    %c0_50 = arith.constant 0 : index
    %c1_51 = arith.constant 1 : index
    %c0_52 = arith.constant 0 : index
    %37 = vector.load %arg8[%c0_50, %c1_51, %c0_52] : memref<18x18x8xf32, #tpu.memory_space<vmem>>, vector<16x16x8xf32>
    %38 = vector.shape_cast %37 : vector<16x16x8xf32> to vector<256x8xf32>
    %c0_53 = arith.constant 0 : index
    %c2_54 = arith.constant 2 : index
    %c0_55 = arith.constant 0 : index
    %39 = vector.load %arg8[%c0_53, %c2_54, %c0_55] : memref<18x18x8xf32, #tpu.memory_space<vmem>>, vector<16x16x8xf32>
    %40 = vector.shape_cast %39 : vector<16x16x8xf32> to vector<256x8xf32>
    %c1_56 = arith.constant 1 : index
    %c0_57 = arith.constant 0 : index
    %c0_58 = arith.constant 0 : index
    %41 = vector.load %arg8[%c1_56, %c0_57, %c0_58] : memref<18x18x8xf32, #tpu.memory_space<vmem>>, vector<16x16x8xf32>
    %42 = vector.shape_cast %41 : vector<16x16x8xf32> to vector<256x8xf32>
    %c1_59 = arith.constant 1 : index
    %c1_60 = arith.constant 1 : index
    %c0_61 = arith.constant 0 : index
    %43 = vector.load %arg8[%c1_59, %c1_60, %c0_61] : memref<18x18x8xf32, #tpu.memory_space<vmem>>, vector<16x16x8xf32>
    %44 = vector.shape_cast %43 : vector<16x16x8xf32> to vector<256x8xf32>
    %c1_62 = arith.constant 1 : index
    %c2_63 = arith.constant 2 : index
    %c0_64 = arith.constant 0 : index
    %45 = vector.load %arg8[%c1_62, %c2_63, %c0_64] : memref<18x18x8xf32, #tpu.memory_space<vmem>>, vector<16x16x8xf32>
    %46 = vector.shape_cast %45 : vector<16x16x8xf32> to vector<256x8xf32>
    %c2_65 = arith.constant 2 : index
    %c0_66 = arith.constant 0 : index
    %c0_67 = arith.constant 0 : index
    %47 = vector.load %arg8[%c2_65, %c0_66, %c0_67] : memref<18x18x8xf32, #tpu.memory_space<vmem>>, vector<16x16x8xf32>
    %48 = vector.shape_cast %47 : vector<16x16x8xf32> to vector<256x8xf32>
    %c2_68 = arith.constant 2 : index
    %c1_69 = arith.constant 1 : index
    %c0_70 = arith.constant 0 : index
    %49 = vector.load %arg8[%c2_68, %c1_69, %c0_70] : memref<18x18x8xf32, #tpu.memory_space<vmem>>, vector<16x16x8xf32>
    %50 = vector.shape_cast %49 : vector<16x16x8xf32> to vector<256x8xf32>
    %c2_71 = arith.constant 2 : index
    %c2_72 = arith.constant 2 : index
    %c0_73 = arith.constant 0 : index
    %51 = vector.load %arg8[%c2_71, %c2_72, %c0_73] : memref<18x18x8xf32, #tpu.memory_space<vmem>>, vector<16x16x8xf32>
    %52 = vector.shape_cast %51 : vector<16x16x8xf32> to vector<256x8xf32>
    %53 = tpu.concatenate %36, %38, %40, %42, %44, %46, %48, %50, %52 in 1 : vector<256x8xf32>, vector<256x8xf32>, vector<256x8xf32>, vector<256x8xf32>, vector<256x8xf32>, vector<256x8xf32>, vector<256x8xf32>, vector<256x8xf32>, vector<256x8xf32> -> vector<256x72xf32>
    %c0_74 = arith.constant 0 : index
    %c0_75 = arith.constant 0 : index
    %54 = vector.load %arg4[%c0_74, %c0_75] : memref<72x128xf32, #tpu.memory_space<vmem>>, vector<72x128xf32>
    %cst_76 = arith.constant dense<0.000000e+00> : vector<256x128xf32>
    %55 = tpu.matmul %53, %54, %cst_76 {dimension_numbers = #tpu.dot_dimension_numbers<[1], [0], [0], [1], [0, 0, 1, 1], [], []>} : vector<256x72xf32>, vector<72x128xf32>, vector<256x128xf32> -> vector<256x128xf32>
    %c0_77 = arith.constant 0 : index
    %c0_78 = arith.constant 0 : index
    %56 = vector.load %arg5[%c0_77, %c0_78] : memref<1x128xf32, #tpu.memory_space<vmem>>, vector<1x128xf32>
    %57 = vector.broadcast %56 : vector<1x128xf32> to vector<256x128xf32>
    %58 = arith.addf %55, %57 : vector<256x128xf32>
    %cst_79 = arith.constant 0.000000e+00 : f32
    %59 = vector.broadcast %cst_79 : f32 to vector<256x128xf32>
    %60 = arith.maximumf %58, %59 : vector<256x128xf32>
    %cst_80 = arith.constant dense<0.000000e+00> : vector<128xf32>
    %61 = vector.multi_reduction <add>, %60, %cst_80 [0] : vector<256x128xf32> to vector<128xf32>
    %62 = vector.shape_cast %61 : vector<128xf32> to vector<1x128xf32>
    %cst_81 = arith.constant 2.560000e+02 : f32
    %63 = vector.broadcast %cst_81 : f32 to vector<1x128xf32>
    %64 = arith.divf %62, %63 : vector<1x128xf32>
    %c0_82 = arith.constant 0 : index
    %c0_83 = arith.constant 0 : index
    %c0_84 = arith.constant 0 : index
    %65 = vector.load %arg6[%c0_82, %c0_83, %c0_84] : memref<1x1x128xf32, #tpu.memory_space<vmem>>, vector<1x1x128xf32>
    %66 = vector.shape_cast %65 : vector<1x1x128xf32> to vector<1x128xf32>
    %67 = vector.shape_cast %64 : vector<1x128xf32> to vector<1x1x128xf32>
    tpu.vector_store %arg6[%c0_82, %c0_83, %c0_84], %67 {strides = array<i32>} : memref<1x1x128xf32, #tpu.memory_space<vmem>>, vector<1x1x128xf32>,
    return
  }
  func.func @transform_0(%arg0: i32) -> (i32, i32, i32, i32) {
    %c0_i32 = arith.constant 0 : i32
    %c0_i32_0 = arith.constant 0 : i32
    %c0_i32_1 = arith.constant 0 : i32
    %c0_i32_2 = arith.constant 0 : i32
    return %arg0, %c0_i32, %c0_i32_0, %c0_i32_1 : i32, i32, i32, i32
  }
  func.func @transform_1(%arg0: i32) -> (i32, i32) {
    %c0_i32 = arith.constant 0 : i32
    %c0_i32_0 = arith.constant 0 : i32
    %c0_i32_1 = arith.constant 0 : i32
    return %c0_i32, %c0_i32_0 : i32, i32
  }
  func.func @transform_2(%arg0: i32) -> (i32, i32) {
    %c0_i32 = arith.constant 0 : i32
    %c0_i32_0 = arith.constant 0 : i32
    %c0_i32_1 = arith.constant 0 : i32
    return %c0_i32, %c0_i32_0 : i32, i32
  }
  func.func @transform_3(%arg0: i32) -> (i32, i32) {
    %c0_i32 = arith.constant 0 : i32
    %c0_i32_0 = arith.constant 0 : i32
    %c0_i32_1 = arith.constant 0 : i32
    return %c0_i32, %c0_i32_0 : i32, i32
  }
  func.func @transform_4(%arg0: i32) -> (i32, i32) {
    %c0_i32 = arith.constant 0 : i32
    %c0_i32_0 = arith.constant 0 : i32
    %c0_i32_1 = arith.constant 0 : i32
    return %c0_i32, %c0_i32_0 : i32, i32
  }
  func.func @transform_5(%arg0: i32) -> (i32, i32, i32) {
    %c0_i32 = arith.constant 0 : i32
    %c0_i32_0 = arith.constant 0 : i32
    %c0_i32_1 = arith.constant 0 : i32
    return %arg0, %c0_i32, %c0_i32_0 : i32, i32, i32
  }
}

module attributes {stable_mosaic.version = 11 : i64} {
  func.func @decode_kernel(%arg0: memref<128x128xbf16, #tpu.memory_space<vmem>>, %arg1: memref<128x1024xbf16, #tpu.memory_space<vmem>>, %arg2: memref<256x1024xbf16, #tpu.memory_space<vmem>>, %arg3: memref<1x1024xf32, #tpu.memory_space<vmem>>, %arg4: memref<256x1024xbf16, #tpu.memory_space<vmem>>, %arg5: memref<256x1024xbf16, #tpu.memory_space<vmem>>, %arg6: memref<1x1024xf32, #tpu.memory_space<vmem>>, %arg7: memref<256x1024xbf16, #tpu.memory_space<vmem>>, %arg8: memref<256x1024xbf16, #tpu.memory_space<vmem>>, %arg9: memref<1x1024xf32, #tpu.memory_space<vmem>>, %arg10: memref<1x256xf32, #tpu.memory_space<vmem>>, %arg11: memref<1x256xf32, #tpu.memory_space<vmem>>, %arg12: memref<256x128xbf16, #tpu.memory_space<vmem>>, %arg13: memref<1x128xf32, #tpu.memory_space<vmem>>, %arg14: memref<3x8x256xf32, #tpu.memory_space<vmem>>, %arg15: memref<3x8x256xf32, #tpu.memory_space<vmem>>, %arg16: memref<201x8x128xf32, #tpu.memory_space<vmem>>) attributes {dimension_semantics = [], scalar_prefetch = 0 : i64, scratch_operands = 0 : i64, tpu.core_type = #tpu.core_type<tc>} {
    %c0 = arith.constant 0 : index
    %c0_0 = arith.constant 0 : index
    %0 = vector.load %arg3[%c0, %c0_0] : memref<1x1024xf32, #tpu.memory_space<vmem>>, vector<1x1024xf32>
    %1 = vector.shape_cast %0 : vector<1x1024xf32> to vector<1x1024xf32>
    %2 = vector.broadcast %1 : vector<1x1024xf32> to vector<8x1024xf32>
    %c0_1 = arith.constant 0 : index
    %c0_2 = arith.constant 0 : index
    %3 = vector.load %arg6[%c0_1, %c0_2] : memref<1x1024xf32, #tpu.memory_space<vmem>>, vector<1x1024xf32>
    %4 = vector.shape_cast %3 : vector<1x1024xf32> to vector<1x1024xf32>
    %5 = vector.broadcast %4 : vector<1x1024xf32> to vector<8x1024xf32>
    %c0_3 = arith.constant 0 : index
    %c0_4 = arith.constant 0 : index
    %6 = vector.load %arg9[%c0_3, %c0_4] : memref<1x1024xf32, #tpu.memory_space<vmem>>, vector<1x1024xf32>
    %7 = vector.shape_cast %6 : vector<1x1024xf32> to vector<1x1024xf32>
    %8 = vector.broadcast %7 : vector<1x1024xf32> to vector<8x1024xf32>
    %c0_5 = arith.constant 0 : index
    %c0_6 = arith.constant 0 : index
    %9 = vector.load %arg10[%c0_5, %c0_6] : memref<1x256xf32, #tpu.memory_space<vmem>>, vector<1x256xf32>
    %10 = vector.shape_cast %9 : vector<1x256xf32> to vector<1x256xf32>
    %11 = vector.broadcast %10 : vector<1x256xf32> to vector<8x256xf32>
    %c0_7 = arith.constant 0 : index
    %c0_8 = arith.constant 0 : index
    %12 = vector.load %arg11[%c0_7, %c0_8] : memref<1x256xf32, #tpu.memory_space<vmem>>, vector<1x256xf32>
    %13 = vector.shape_cast %12 : vector<1x256xf32> to vector<1x256xf32>
    %14 = vector.broadcast %13 : vector<1x256xf32> to vector<8x256xf32>
    %c0_9 = arith.constant 0 : index
    %c0_10 = arith.constant 0 : index
    %15 = vector.load %arg13[%c0_9, %c0_10] : memref<1x128xf32, #tpu.memory_space<vmem>>, vector<1x128xf32>
    %16 = vector.shape_cast %15 : vector<1x128xf32> to vector<1x128xf32>
    %17 = vector.broadcast %16 : vector<1x128xf32> to vector<8x128xf32>
    %c0_11 = arith.constant 0 : index
    %c0_12 = arith.constant 0 : index
    %18 = vector.load %arg0[%c0_11, %c0_12] : memref<128x128xbf16, #tpu.memory_space<vmem>>, vector<1x128xbf16>
    %19 = vector.shape_cast %18 : vector<1x128xbf16> to vector<1x128xbf16>
    %20 = vector.broadcast %19 : vector<1x128xbf16> to vector<8x128xbf16>
    %c0_13 = arith.constant 0 : index
    %c0_14 = arith.constant 0 : index
    %c0_15 = arith.constant 0 : index
    %21 = vector.load %arg14[%c0_13, %c0_14, %c0_15] : memref<3x8x256xf32, #tpu.memory_space<vmem>>, vector<1x8x256xf32>
    %22 = vector.shape_cast %21 : vector<1x8x256xf32> to vector<8x256xf32>
    %c0_16 = arith.constant 0 : index
    %c0_17 = arith.constant 0 : index
    %c0_18 = arith.constant 0 : index
    %23 = vector.load %arg15[%c0_16, %c0_17, %c0_18] : memref<3x8x256xf32, #tpu.memory_space<vmem>>, vector<1x8x256xf32>
    %24 = vector.shape_cast %23 : vector<1x8x256xf32> to vector<8x256xf32>
    %c1 = arith.constant 1 : index
    %c0_19 = arith.constant 0 : index
    %c0_20 = arith.constant 0 : index
    %25 = vector.load %arg14[%c1, %c0_19, %c0_20] : memref<3x8x256xf32, #tpu.memory_space<vmem>>, vector<1x8x256xf32>
    %26 = vector.shape_cast %25 : vector<1x8x256xf32> to vector<8x256xf32>
    %c1_21 = arith.constant 1 : index
    %c0_22 = arith.constant 0 : index
    %c0_23 = arith.constant 0 : index
    %27 = vector.load %arg15[%c1_21, %c0_22, %c0_23] : memref<3x8x256xf32, #tpu.memory_space<vmem>>, vector<1x8x256xf32>
    %28 = vector.shape_cast %27 : vector<1x8x256xf32> to vector<8x256xf32>
    %c2 = arith.constant 2 : index
    %c0_24 = arith.constant 0 : index
    %c0_25 = arith.constant 0 : index
    %29 = vector.load %arg14[%c2, %c0_24, %c0_25] : memref<3x8x256xf32, #tpu.memory_space<vmem>>, vector<1x8x256xf32>
    %30 = vector.shape_cast %29 : vector<1x8x256xf32> to vector<8x256xf32>
    %c2_26 = arith.constant 2 : index
    %c0_27 = arith.constant 0 : index
    %c0_28 = arith.constant 0 : index
    %31 = vector.load %arg15[%c2_26, %c0_27, %c0_28] : memref<3x8x256xf32, #tpu.memory_space<vmem>>, vector<1x8x256xf32>
    %32 = vector.shape_cast %31 : vector<1x8x256xf32> to vector<8x256xf32>
    %c0_i32 = arith.constant 0 : i32
    %c201_i32 = arith.constant 201 : i32
    %33 = arith.addi %c0_i32, %c201_i32 : i32
    %c1_i32 = arith.constant 1 : i32
    %34:7 = scf.for %arg17 = %c0_i32 to %33 step %c1_i32 iter_args(%arg18 = %20, %arg19 = %22, %arg20 = %24, %arg21 = %26, %arg22 = %28, %arg23 = %30, %arg24 = %32) -> (vector<8x128xbf16>, vector<8x256xf32>, vector<8x256xf32>, vector<8x256xf32>, vector<8x256xf32>, vector<8x256xf32>, vector<8x256xf32>)  : i32 {
      %c0_30 = arith.constant 0 : index
      %c0_31 = arith.constant 0 : index
      %35 = vector.load %arg1[%c0_30, %c0_31] : memref<128x1024xbf16, #tpu.memory_space<vmem>>, vector<128x1024xbf16>
      %cst = arith.constant dense<0.000000e+00> : vector<8x1024xf32>
      %36 = tpu.matmul %arg18, %35, %cst {dimension_numbers = #tpu.dot_dimension_numbers<[1], [0], [0], [1], [0, 0, 1, 1], [], []>} : vector<8x128xbf16>, vector<128x1024xbf16>, vector<8x1024xf32> -> vector<8x1024xf32>
      %37 = arith.truncf %arg19 : vector<8x256xf32> to vector<8x256xbf16>
      %c0_32 = arith.constant 0 : index
      %c0_33 = arith.constant 0 : index
      %38 = vector.load %arg2[%c0_32, %c0_33] : memref<256x1024xbf16, #tpu.memory_space<vmem>>, vector<256x1024xbf16>
      %cst_34 = arith.constant dense<0.000000e+00> : vector<8x1024xf32>
      %39 = tpu.matmul %37, %38, %cst_34 {dimension_numbers = #tpu.dot_dimension_numbers<[1], [0], [0], [1], [0, 0, 1, 1], [], []>} : vector<8x256xbf16>, vector<256x1024xbf16>, vector<8x1024xf32> -> vector<8x1024xf32>
      %40 = arith.addf %36, %39 : vector<8x1024xf32>
      %41 = arith.addf %40, %2 : vector<8x1024xf32>
      %42 = vector.extract_strided_slice %41 {offsets = [0, 0], sizes = [8, 768], strides = [1, 1]} : vector<8x1024xf32> to vector<8x768xf32>
      %43 = arith.negf %42 : vector<8x768xf32>
      %44 = math.exp %43 : vector<8x768xf32>
      %cst_35 = arith.constant 1.000000e+00 : f32
      %45 = vector.broadcast %cst_35 : f32 to vector<8x768xf32>
      %46 = arith.addf %45, %44 : vector<8x768xf32>
      %47 = arith.divf %45, %46 : vector<8x768xf32>
      %48 = vector.extract_strided_slice %41 {offsets = [0, 768], sizes = [8, 256], strides = [1, 1]} : vector<8x1024xf32> to vector<8x256xf32>
      %49 = math.tanh %48 : vector<8x256xf32>
      %50 = vector.extract_strided_slice %47 {offsets = [0, 0], sizes = [8, 256], strides = [1, 1]} : vector<8x768xf32> to vector<8x256xf32>
      %51 = vector.extract_strided_slice %47 {offsets = [0, 256], sizes = [8, 256], strides = [1, 1]} : vector<8x768xf32> to vector<8x256xf32>
      %52 = vector.extract_strided_slice %47 {offsets = [0, 512], sizes = [8, 256], strides = [1, 1]} : vector<8x768xf32> to vector<8x256xf32>
      %53 = arith.mulf %51, %arg20 : vector<8x256xf32>
      %54 = arith.mulf %50, %49 : vector<8x256xf32>
      %55 = arith.addf %53, %54 : vector<8x256xf32>
      %56 = math.tanh %55 : vector<8x256xf32>
      %57 = arith.mulf %52, %56 : vector<8x256xf32>
      %58 = arith.truncf %57 : vector<8x256xf32> to vector<8x256xbf16>
      %c0_36 = arith.constant 0 : index
      %c0_37 = arith.constant 0 : index
      %59 = vector.load %arg4[%c0_36, %c0_37] : memref<256x1024xbf16, #tpu.memory_space<vmem>>, vector<256x1024xbf16>
      %cst_38 = arith.constant dense<0.000000e+00> : vector<8x1024xf32>
      %60 = tpu.matmul %58, %59, %cst_38 {dimension_numbers = #tpu.dot_dimension_numbers<[1], [0], [0], [1], [0, 0, 1, 1], [], []>} : vector<8x256xbf16>, vector<256x1024xbf16>, vector<8x1024xf32> -> vector<8x1024xf32>
      %61 = arith.truncf %arg21 : vector<8x256xf32> to vector<8x256xbf16>
      %c0_39 = arith.constant 0 : index
      %c0_40 = arith.constant 0 : index
      %62 = vector.load %arg5[%c0_39, %c0_40] : memref<256x1024xbf16, #tpu.memory_space<vmem>>, vector<256x1024xbf16>
      %cst_41 = arith.constant dense<0.000000e+00> : vector<8x1024xf32>
      %63 = tpu.matmul %61, %62, %cst_41 {dimension_numbers = #tpu.dot_dimension_numbers<[1], [0], [0], [1], [0, 0, 1, 1], [], []>} : vector<8x256xbf16>, vector<256x1024xbf16>, vector<8x1024xf32> -> vector<8x1024xf32>
      %64 = arith.addf %60, %63 : vector<8x1024xf32>
      %65 = arith.addf %64, %5 : vector<8x1024xf32>
      %66 = vector.extract_strided_slice %65 {offsets = [0, 0], sizes = [8, 768], strides = [1, 1]} : vector<8x1024xf32> to vector<8x768xf32>
      %67 = arith.negf %66 : vector<8x768xf32>
      %68 = math.exp %67 : vector<8x768xf32>
      %cst_42 = arith.constant 1.000000e+00 : f32
      %69 = vector.broadcast %cst_42 : f32 to vector<8x768xf32>
      %70 = arith.addf %69, %68 : vector<8x768xf32>
      %71 = arith.divf %69, %70 : vector<8x768xf32>
      %72 = vector.extract_strided_slice %65 {offsets = [0, 768], sizes = [8, 256], strides = [1, 1]} : vector<8x1024xf32> to vector<8x256xf32>
      %73 = math.tanh %72 : vector<8x256xf32>
      %74 = vector.extract_strided_slice %71 {offsets = [0, 0], sizes = [8, 256], strides = [1, 1]} : vector<8x768xf32> to vector<8x256xf32>
      %75 = vector.extract_strided_slice %71 {offsets = [0, 256], sizes = [8, 256], strides = [1, 1]} : vector<8x768xf32> to vector<8x256xf32>
      %76 = vector.extract_strided_slice %71 {offsets = [0, 512], sizes = [8, 256], strides = [1, 1]} : vector<8x768xf32> to vector<8x256xf32>
      %77 = arith.mulf %75, %arg22 : vector<8x256xf32>
      %78 = arith.mulf %74, %73 : vector<8x256xf32>
      %79 = arith.addf %77, %78 : vector<8x256xf32>
      %80 = math.tanh %79 : vector<8x256xf32>
      %81 = arith.mulf %76, %80 : vector<8x256xf32>
      %82 = arith.truncf %81 : vector<8x256xf32> to vector<8x256xbf16>
      %c0_43 = arith.constant 0 : index
      %c0_44 = arith.constant 0 : index
      %83 = vector.load %arg7[%c0_43, %c0_44] : memref<256x1024xbf16, #tpu.memory_space<vmem>>, vector<256x1024xbf16>
      %cst_45 = arith.constant dense<0.000000e+00> : vector<8x1024xf32>
      %84 = tpu.matmul %82, %83, %cst_45 {dimension_numbers = #tpu.dot_dimension_numbers<[1], [0], [0], [1], [0, 0, 1, 1], [], []>} : vector<8x256xbf16>, vector<256x1024xbf16>, vector<8x1024xf32> -> vector<8x1024xf32>
      %85 = arith.truncf %arg23 : vector<8x256xf32> to vector<8x256xbf16>
      %c0_46 = arith.constant 0 : index
      %c0_47 = arith.constant 0 : index
      %86 = vector.load %arg8[%c0_46, %c0_47] : memref<256x1024xbf16, #tpu.memory_space<vmem>>, vector<256x1024xbf16>
      %cst_48 = arith.constant dense<0.000000e+00> : vector<8x1024xf32>
      %87 = tpu.matmul %85, %86, %cst_48 {dimension_numbers = #tpu.dot_dimension_numbers<[1], [0], [0], [1], [0, 0, 1, 1], [], []>} : vector<8x256xbf16>, vector<256x1024xbf16>, vector<8x1024xf32> -> vector<8x1024xf32>
      %88 = arith.addf %84, %87 : vector<8x1024xf32>
      %89 = arith.addf %88, %8 : vector<8x1024xf32>
      %90 = vector.extract_strided_slice %89 {offsets = [0, 0], sizes = [8, 768], strides = [1, 1]} : vector<8x1024xf32> to vector<8x768xf32>
      %91 = arith.negf %90 : vector<8x768xf32>
      %92 = math.exp %91 : vector<8x768xf32>
      %cst_49 = arith.constant 1.000000e+00 : f32
      %93 = vector.broadcast %cst_49 : f32 to vector<8x768xf32>
      %94 = arith.addf %93, %92 : vector<8x768xf32>
      %95 = arith.divf %93, %94 : vector<8x768xf32>
      %96 = vector.extract_strided_slice %89 {offsets = [0, 768], sizes = [8, 256], strides = [1, 1]} : vector<8x1024xf32> to vector<8x256xf32>
      %97 = math.tanh %96 : vector<8x256xf32>
      %98 = vector.extract_strided_slice %95 {offsets = [0, 0], sizes = [8, 256], strides = [1, 1]} : vector<8x768xf32> to vector<8x256xf32>
      %99 = vector.extract_strided_slice %95 {offsets = [0, 256], sizes = [8, 256], strides = [1, 1]} : vector<8x768xf32> to vector<8x256xf32>
      %100 = vector.extract_strided_slice %95 {offsets = [0, 512], sizes = [8, 256], strides = [1, 1]} : vector<8x768xf32> to vector<8x256xf32>
      %101 = arith.mulf %99, %arg24 : vector<8x256xf32>
      %102 = arith.mulf %98, %97 : vector<8x256xf32>
      %103 = arith.addf %101, %102 : vector<8x256xf32>
      %104 = math.tanh %103 : vector<8x256xf32>
      %105 = arith.mulf %100, %104 : vector<8x256xf32>
      %cst_50 = arith.constant dense<0.000000e+00> : vector<8xf32>
      %106 = vector.multi_reduction <add>, %105, %cst_50 [1] : vector<8x256xf32> to vector<8xf32>
      %107 = vector.shape_cast %106 : vector<8xf32> to vector<8x1xf32>
      %cst_51 = arith.constant 2.560000e+02 : f32
      %108 = vector.broadcast %cst_51 : f32 to vector<8x1xf32>
      %109 = arith.divf %107, %108 : vector<8x1xf32>
      %110 = arith.mulf %105, %105 : vector<8x256xf32>
      %cst_52 = arith.constant dense<0.000000e+00> : vector<8xf32>
      %111 = vector.multi_reduction <add>, %110, %cst_52 [1] : vector<8x256xf32> to vector<8xf32>
      %112 = vector.shape_cast %111 : vector<8xf32> to vector<8x1xf32>
      %cst_53 = arith.constant 2.560000e+02 : f32
      %113 = vector.broadcast %cst_53 : f32 to vector<8x1xf32>
      %114 = arith.divf %112, %113 : vector<8x1xf32>
      %115 = arith.mulf %109, %109 : vector<8x1xf32>
      %116 = arith.subf %114, %115 : vector<8x1xf32>
      %117 = vector.broadcast %109 : vector<8x1xf32> to vector<8x256xf32>
      %118 = arith.subf %105, %117 : vector<8x256xf32>
      %cst_54 = arith.constant 9.99999974E-6 : f32
      %119 = vector.broadcast %cst_54 : f32 to vector<8x1xf32>
      %120 = arith.addf %116, %119 : vector<8x1xf32>
      %121 = math.rsqrt %120 : vector<8x1xf32>
      %122 = vector.broadcast %121 : vector<8x1xf32> to vector<8x256xf32>
      %123 = arith.mulf %118, %122 : vector<8x256xf32>
      %124 = arith.mulf %123, %11 : vector<8x256xf32>
      %125 = arith.addf %124, %14 : vector<8x256xf32>
      %126 = arith.truncf %125 : vector<8x256xf32> to vector<8x256xbf16>
      %c0_55 = arith.constant 0 : index
      %c0_56 = arith.constant 0 : index
      %127 = vector.load %arg12[%c0_55, %c0_56] : memref<256x128xbf16, #tpu.memory_space<vmem>>, vector<256x128xbf16>
      %cst_57 = arith.constant dense<0.000000e+00> : vector<8x128xf32>
      %128 = tpu.matmul %126, %127, %cst_57 {dimension_numbers = #tpu.dot_dimension_numbers<[1], [0], [0], [1], [0, 0, 1, 1], [], []>} : vector<8x256xbf16>, vector<256x128xbf16>, vector<8x128xf32> -> vector<8x128xf32>
      %129 = arith.addf %128, %17 : vector<8x128xf32>
      %130 = arith.index_cast %arg17 : i32 to index
      %c0_58 = arith.constant 0 : index
      %c0_59 = arith.constant 0 : index
      %131 = vector.load %arg16[%130, %c0_58, %c0_59] : memref<201x8x128xf32, #tpu.memory_space<vmem>>, vector<1x8x128xf32>
      %132 = vector.shape_cast %131 : vector<1x8x128xf32> to vector<8x128xf32>
      %133 = vector.shape_cast %129 : vector<8x128xf32> to vector<1x8x128xf32>
      tpu.vector_store %arg16[%130, %c0_58, %c0_59], %133 {strides = array<i32>} : memref<201x8x128xf32, #tpu.memory_space<vmem>>, vector<1x8x128xf32>,
      %cst_60 = arith.constant dense<0xFF800000> : vector<8xf32>
      %134 = vector.multi_reduction <maximumf>, %129, %cst_60 [1] : vector<8x128xf32> to vector<8xf32>
      %135 = vector.shape_cast %134 : vector<8xf32> to vector<8x1xf32>
      %136 = tpu.iota {dimensions = array<i32: 1>} : vector<8x128xi32>
      %137 = vector.broadcast %135 : vector<8x1xf32> to vector<8x128xf32>
      %138 = arith.cmpf oeq, %129, %137 : vector<8x128xf32>
      %c128_i32 = arith.constant 128 : i32
      %139 = vector.broadcast %c128_i32 : i32 to vector<8x128xi32>
      %140 = arith.select %138, %136, %139 : vector<8x128xi1>, vector<8x128xi32>
      %cst_61 = arith.constant dense<2147483647> : vector<8xi32>
      %141 = vector.multi_reduction <minsi>, %140, %cst_61 [1] : vector<8x128xi32> to vector<8xi32>
      %142 = vector.shape_cast %141 : vector<8xi32> to vector<8x1xi32>
      %143 = vector.broadcast %142 : vector<8x1xi32> to vector<8x128xi32>
      %144 = arith.cmpi eq, %136, %143 : vector<8x128xi32>
      %145 = arith.extui %144 : vector<8x128xi1> to vector<8x128xi32>
      %146 = arith.sitofp %145 : vector<8x128xi32> to vector<8x128xf32>
      %147 = arith.truncf %146 : vector<8x128xf32> to vector<8x128xbf16>
      %c0_62 = arith.constant 0 : index
      %c0_63 = arith.constant 0 : index
      %148 = vector.load %arg0[%c0_62, %c0_63] : memref<128x128xbf16, #tpu.memory_space<vmem>>, vector<128x128xbf16>
      %cst_64 = arith.constant dense<0.000000e+00> : vector<8x128xf32>
      %149 = tpu.matmul %147, %148, %cst_64 {dimension_numbers = #tpu.dot_dimension_numbers<[1], [0], [0], [1], [0, 0, 1, 1], [], []>} : vector<8x128xbf16>, vector<128x128xbf16>, vector<8x128xf32> -> vector<8x128xf32>
      %150 = arith.truncf %149 : vector<8x128xf32> to vector<8x128xbf16>
      scf.yield %150, %57, %55, %81, %79, %105, %103 : vector<8x128xbf16>, vector<8x256xf32>, vector<8x256xf32>, vector<8x256xf32>, vector<8x256xf32>, vector<8x256xf32>, vector<8x256xf32>
    }
    %c201_i32_29 = arith.constant 201 : i32
    return
  }
}

</mosaic_0001>

<llo_original>
// kernel: model_forward.2
$region0: #{model_forward.2}
  #allocation0 [shape = 'u32[]', space=smem, size = 0x4, offset = 0x4, fixed_abs, tag = 'smem constant byte address 0x4 - core index']
  #allocation1 [shape = 'u32[72,128]{1,0:T(1,128)}', space=vmem, size = 0x9000, scoped, tag = 'internal scratch']
  #allocation2 [shape = 'f32[18,18,3]{2,1,0:T(8,128)}', space=vmem, size = 0x36000, scoped, tag = 'scratch operand']
  #allocation3 [shape = 'f32[18,18,8]{2,1,0:T(8,128)}', space=vmem, size = 0x36000, scoped, tag = 'scratch operand']
  %s0 = inlined_call_operand.vmem [shape: f32[2,16,16,3], index: 0, kind: input, shape index: {}]
  %s1 = inlined_call_operand.vmem [shape: f32[27,8], index: 1, kind: input, shape index: {}]
  %s2 = inlined_call_operand.vmem [shape: f32[1,8], index: 2, kind: input, shape index: {}]
  %s3 = inlined_call_operand.vmem [shape: f32[72,128], index: 3, kind: input, shape index: {}]
  %s4 = inlined_call_operand.vmem [shape: f32[1,128], index: 4, kind: input, shape index: {}]
  %s5 = inlined_call_operand.hbm [shape: f32[2,1,128], index: 5, kind: output, shape index: {}]
  %s6 = sld [smem:[#allocation0]]
  $region53: #{model_forward.2} parent=0
    _
  %s8 = ssub.s32 1, %s6
  %s9 = scalar_select 0, %s8, %s6
  $region1: #{model_forward.2} parent=0
    #allocation4 [shape = 'u8[1024]{0}', space=vmem, size = 0x400, scoped, tag = 'output window, operand 0']
    #allocation5 [shape = 's32[2]{0}', space=sflag, size = 0x8, scoped, tag = 'scoped memory for model_forward.2']
    %10 = vsyncpa [#allocation5], 0
    %s11 = scalar_lea.sflag [#allocation5], 1
    %12 = vsyncpa %s11, 0
    loop: start=0, step=1, limit=4
    $region2: #{model_forward.2} parent=1 // loop_pre_header
      _
    $region3: #{model_forward.2} parent=1 // loop_header
      %s14 = sphi 0, %s18
      %p15 = scmp.ge.s32.totalorder %s14, 4
      %s24 = sphi 0, %s26
      %s27 = sphi 0, %s24
      %s28 = sphi 0, %s27
      %s44 = sphi 0, %s28
      %s48 = sphi 0, %s48
      %s50 = sphi 0, %s48
      %s51 = sphi 0, %s50
      %s65 = sphi 0, %s51
      %s69 = sphi 0, %s69
      %s71 = sphi 0, %s69
      %s72 = sphi 0, %s71
      %s86 = sphi 0, %s72
      %s90 = sphi 0, %s90
      %s92 = sphi 0, %s90
      %s93 = sphi 0, %s92
      %s107 = sphi 0, %s93
      %s111 = sphi 0, %s111
      %s113 = sphi 0, %s111
      %s114 = sphi 0, %s113
      %s128 = sphi 0, %s114
      %s134 = sphi 0, %s136
      %s137 = sphi 0, %s134
      %s138 = sphi 0, %s137
      %s154 = sphi 0, %s138
    $region4: #{model_forward.2} parent=1 // loop_header_branch
      %17 = sbr.rel (%p15) target = $region8
    $region5: #{model_forward.2} parent=1 // loop_body
      %s19 = ssub.s32 %s14, 1
      %s20 = ssub.s32 %s14, 2
      %s21 = sadd.s32 %s14, 1
      %s22 = ssub.s32 %s14, %s21
      %p23 = scmp.eq.s32.totalorder %s22, 0
      %s25 = sadd.s32 %s24, 1
      %s26 = scalar_select %p23, %s24, %s25
      %p29 = pneg %p23
      %p30 = scmp.eq.s32.totalorder %s14, 1
      %p31 = por %p29, %p30
      %p32 = scmp.ne.s32.totalorder %s24, %s27
      %p33 = scmp.eq.s32.totalorder %s14, 0
      %p34 = por %p32, %p33
      %p35 = scmp.ne.s32.totalorder %s24, %s27
      %p36 = scmp.eq.s32.totalorder %s19, 1
      %p37 = por %p35, %p36
      %p38 = scmp.ne.s32.totalorder %s27, %s28
      %p39 = scmp.eq.s32.totalorder %s19, 0
      %p40 = por %p38, %p39
      %p41 = scmp.ne.s32.totalorder %s27, %s28
      %p42 = scmp.eq.s32.totalorder %s20, 1
      %p43 = por %p41, %p42
      %p45 = scmp.ne.s32.totalorder %s28, %s44
      %p46 = scmp.eq.s32.totalorder %s20, 0
      %p47 = por %p45, %p46
      %s49 = sadd.s32 %s48, 1
      %p52 = scmp.eq.s32.totalorder %s14, 1
      %p53 = scmp.ne.s32.totalorder %s48, %s50
      %p54 = scmp.eq.s32.totalorder %s14, 0
      %p55 = por %p53, %p54
      %p56 = scmp.ne.s32.totalorder %s48, %s50
      %p57 = scmp.eq.s32.totalorder %s19, 1
      %p58 = por %p56, %p57
      %p59 = scmp.ne.s32.totalorder %s50, %s51
      %p60 = scmp.eq.s32.totalorder %s19, 0
      %p61 = por %p59, %p60
      %p62 = scmp.ne.s32.totalorder %s50, %s51
      %p63 = scmp.eq.s32.totalorder %s20, 1
      %p64 = por %p62, %p63
      %p66 = scmp.ne.s32.totalorder %s51, %s65
      %p67 = scmp.eq.s32.totalorder %s20, 0
      %p68 = por %p66, %p67
      %s70 = sadd.s32 %s69, 1
      %p73 = scmp.eq.s32.totalorder %s14, 1
      %p74 = scmp.ne.s32.totalorder %s69, %s71
      %p75 = scmp.eq.s32.totalorder %s14, 0
      %p76 = por %p74, %p75
      %p77 = scmp.ne.s32.totalorder %s69, %s71
      %p78 = scmp.eq.s32.totalorder %s19, 1
      %p79 = por %p77, %p78
      %p80 = scmp.ne.s32.totalorder %s71, %s72
      %p81 = scmp.eq.s32.totalorder %s19, 0
      %p82 = por %p80, %p81
      %p83 = scmp.ne.s32.totalorder %s71, %s72
      %p84 = scmp.eq.s32.totalorder %s20, 1
      %p85 = por %p83, %p84
      %p87 = scmp.ne.s32.totalorder %s72, %s86
      %p88 = scmp.eq.s32.totalorder %s20, 0
      %p89 = por %p87, %p88
      %s91 = sadd.s32 %s90, 1
      %p94 = scmp.eq.s32.totalorder %s14, 1
      %p95 = scmp.ne.s32.totalorder %s90, %s92
      %p96 = scmp.eq.s32.totalorder %s14, 0
      %p97 = por %p95, %p96
      %p98 = scmp.ne.s32.totalorder %s90, %s92
      %p99 = scmp.eq.s32.totalorder %s19, 1
      %p100 = por %p98, %p99
      %p101 = scmp.ne.s32.totalorder %s92, %s93
      %p102 = scmp.eq.s32.totalorder %s19, 0
      %p103 = por %p101, %p102
      %p104 = scmp.ne.s32.totalorder %s92, %s93
      %p105 = scmp.eq.s32.totalorder %s20, 1
      %p106 = por %p104, %p105
      %p108 = scmp.ne.s32.totalorder %s93, %s107
      %p109 = scmp.eq.s32.totalorder %s20, 0
      %p110 = por %p108, %p109
      %s112 = sadd.s32 %s111, 1
      %p115 = scmp.eq.s32.totalorder %s14, 1
      %p116 = scmp.ne.s32.totalorder %s111, %s113
      %p117 = scmp.eq.s32.totalorder %s14, 0
      %p118 = por %p116, %p117
      %p119 = scmp.ne.s32.totalorder %s111, %s113
      %p120 = scmp.eq.s32.totalorder %s19, 1
      %p121 = por %p119, %p120
      %p122 = scmp.ne.s32.totalorder %s113, %s114
      %p123 = scmp.eq.s32.totalorder %s19, 0
      %p124 = por %p122, %p123
      %p125 = scmp.ne.s32.totalorder %s113, %s114
      %p126 = scmp.eq.s32.totalorder %s20, 1
      %p127 = por %p125, %p126
      %p129 = scmp.ne.s32.totalorder %s114, %s128
      %p130 = scmp.eq.s32.totalorder %s20, 0
      %p131 = por %p129, %p130
      %s132 = ssub.s32 %s14, %s21
      %p133 = scmp.eq.s32.totalorder %s132, 0
      %s135 = sadd.s32 %s134, 1
      %s136 = scalar_select %p133, %s134, %s135
      %p139 = pneg %p133
      %p140 = scmp.eq.s32.totalorder %s14, 1
      %p141 = por %p139, %p140
      %p142 = scmp.ne.s32.totalorder %s134, %s137
      %p143 = scmp.eq.s32.totalorder %s14, 0
      %p144 = por %p142, %p143
      %p145 = scmp.ne.s32.totalorder %s134, %s137
      %p146 = scmp.eq.s32.totalorder %s19, 1
      %p147 = por %p145, %p146
      %p148 = scmp.ne.s32.totalorder %s137, %s138
      %p149 = scmp.eq.s32.totalorder %s19, 0
      %p150 = por %p148, %p149
      %p151 = scmp.ne.s32.totalorder %s137, %s138
      %p152 = scmp.eq.s32.totalorder %s20, 1
      %p153 = por %p151, %p152
      %p155 = scmp.ne.s32.totalorder %s138, %s154
      %p156 = scmp.eq.s32.totalorder %s20, 0
      %p157 = por %p155, %p156
      %p158 = scmp.le.s32.totalorder 1, %s14
      %p159 = scmp.lt.s32.totalorder %s14, 3
      %p160 = pnand %p158, %p159
      %p161 = pneg %p160
      // Predicated region
      $region9: #{model_forward.2} parent=5 // pred_check
        _
      $region10: #{model_forward.2} parent=5 // pred_check_branch
        %163 = sbr.rel (%p160) target = $region12
      $region11: #{model_forward.2} parent=5 // pred_region
        %s164 = ssub.s32 %s14, 1
        // Predicated region
        $region13: #{model_forward.2} parent=11 // pred_check
          %p165 = pneg %p61
        $region14: #{model_forward.2} parent=11 // pred_check_branch
          %167 = sbr.rel (%p165) target = $region16
        $region15: #{model_forward.2} parent=11 // pred_region
          _
        $region16: #{model_forward.2} parent=11 // pred_fallthru
          _
        // Predicated region
        $region17: #{model_forward.2} parent=11 // pred_check
          %p168 = pneg %p82
        $region18: #{model_forward.2} parent=11 // pred_check_branch
          %170 = sbr.rel (%p168) target = $region20
        $region19: #{model_forward.2} parent=11 // pred_region
          _
        $region20: #{model_forward.2} parent=11 // pred_fallthru
          _
        // Predicated region
        $region21: #{model_forward.2} parent=11 // pred_check
          %p171 = pneg %p103
        $region22: #{model_forward.2} parent=11 // pred_check_branch
          %173 = sbr.rel (%p171) target = $region24
        $region23: #{model_forward.2} parent=11 // pred_region
          _
        $region24: #{model_forward.2} parent=11 // pred_fallthru
          _
        // Predicated region
        $region25: #{model_forward.2} parent=11 // pred_check
          %p174 = pneg %p124
        $region26: #{model_forward.2} parent=11 // pred_check_branch
          %176 = sbr.rel (%p174) target = $region28
        $region27: #{model_forward.2} parent=11 // pred_region
          _
        $region28: #{model_forward.2} parent=11 // pred_fallthru
          _
      $region12: #{model_forward.2} parent=5 // pred_fallthru
        _
      %p177 = scmp.lt.s32.totalorder %s14, 2
      // Predicated region
      $region29: #{model_forward.2} parent=5 // pred_check
        %p178 = pneg %p177
      $region30: #{model_forward.2} parent=5 // pred_check_branch
        %180 = sbr.rel (%p178) target = $region32
      $region31: #{model_forward.2} parent=5 // pred_region
        // Predicated region
        $region33: #{model_forward.2} parent=31 // pred_check
          %p181 = pneg %p34
        $region34: #{model_forward.2} parent=31 // pred_check_branch
          %183 = sbr.rel (%p181) target = $region36
        $region35: #{model_forward.2} parent=31 // pred_region
          %p184 = scmp.lt.s32.totalorder %s14, 1
          %s185 = scalar_select %p184, %s14, 1
          %s186 = smul.addr %s185, 32
          %s187 = smul.addr %s186, 8
          %s188 = scalar_lea.vmem %s0, %s187
        $region36: #{model_forward.2} parent=31 // pred_fallthru
          _
      $region32: #{model_forward.2} parent=5 // pred_fallthru
        _
      %p189 = scmp.le.s32.totalorder 1, %s14
      %p190 = scmp.lt.s32.totalorder %s14, 3
      %p191 = pnand %p189, %p190
      %p192 = pneg %p191
      // Predicated region
      $region37: #{model_forward.2} parent=5 // pred_check
        _
      $region38: #{model_forward.2} parent=5 // pred_check_branch
        %194 = sbr.rel (%p191) target = $region40
      $region39: #{model_forward.2} parent=5 // pred_region
        %s195 = ssub.s32 %s14, 1
        %p196 = scmp.lt.s32.totalorder %s19, 1
        %s197 = scalar_select %p196, %s19, 1
        %s198 = smul.addr %s197, 32
        %s199 = smul.addr %s198, 8
        %s200 = scalar_lea.vmem %s0, %s199
        %p201 = pneg %p40
        %p202 = pneg %p37
        %p203 = pneg %p61
        %p204 = pneg %p58
        %p205 = pneg %p82
        %p206 = pneg %p79
        %p207 = pneg %p103
        %p208 = pneg %p100
        %p209 = pneg %p124
        %p210 = pneg %p121
        %p211 = pneg %p150
        %p212 = pneg %p147
        %s213 = sand.u32 %s137, 1
        %s214 = scalar_lea.sflag [#allocation5], %s213
        %s215 = sand.u32 %s137, 1
        %s216 = scalar_lea.vmem [#allocation4], %s215
        %p217 = scmp.lt.s32.totalorder %s19, 1
        %s218 = scalar_select %p217, %s19, 1
        %s219 = smul.addr %s218, 32
        %s220 = smul.addr %s219, 8
        %s221 = scalar_lea.vmem %s0, %s220
        %vm222 = vcmask 23552
        %223 = vst.msk [vmem:[#allocation2] sm:$0xff] %vm222, 0.0
        %224 = vst.msk [vmem:[#allocation2 + $0x8] sm:$0xff] %vm222, 0.0
        %vm225 = vcmask 17408
        %226 = vst.msk [vmem:[#allocation2 + $0x10] sm:$0x3] %vm225, 0.0
        %227 = vst.msk [vmem:[#allocation2 + $0x18] sm:$0xff] %vm222, 0.0
        %228 = vst.msk [vmem:[#allocation2 + $0x20] sm:$0xff] %vm222, 0.0
        %229 = vst.msk [vmem:[#allocation2 + $0x28] sm:$0x3] %vm225, 0.0
        %230 = vst.msk [vmem:[#allocation2 + $0x30] sm:$0xff] %vm222, 0.0
        %231 = vst.msk [vmem:[#allocation2 + $0x38] sm:$0xff] %vm222, 0.0
        %232 = vst.msk [vmem:[#allocation2 + $0x40] sm:$0x3] %vm225, 0.0
        %233 = vst.msk [vmem:[#allocation2 + $0x48] sm:$0xff] %vm222, 0.0
        %234 = vst.msk [vmem:[#allocation2 + $0x50] sm:$0xff] %vm222, 0.0
        %235 = vst.msk [vmem:[#allocation2 + $0x58] sm:$0x3] %vm225, 0.0
        %236 = vst.msk [vmem:[#allocation2 + $0x60] sm:$0xff] %vm222, 0.0
        %237 = vst.msk [vmem:[#allocation2 + $0x68] sm:$0xff] %vm222, 0.0
        %238 = vst.msk [vmem:[#allocation2 + $0x70] sm:$0x3] %vm225, 0.0
        %239 = vst.msk [vmem:[#allocation2 + $0x78] sm:$0xff] %vm222, 0.0
        %240 = vst.msk [vmem:[#allocation2 + $0x80] sm:$0xff] %vm222, 0.0
        %241 = vst.msk [vmem:[#allocation2 + $0x88] sm:$0x3] %vm225, 0.0
        %242 = vst.msk [vmem:[#allocation2 + $0x90] sm:$0xff] %vm222, 0.0
        %243 = vst.msk [vmem:[#allocation2 + $0x98] sm:$0xff] %vm222, 0.0
        %244 = vst.msk [vmem:[#allocation2 + $0xa0] sm:$0x3] %vm225, 0.0
        %245 = vst.msk [vmem:[#allocation2 + $0xa8] sm:$0xff] %vm222, 0.0
        %246 = vst.msk [vmem:[#allocation2 + $0xb0] sm:$0xff] %vm222, 0.0
        %247 = vst.msk [vmem:[#allocation2 + $0xb8] sm:$0x3] %vm225, 0.0
        %248 = vst.msk [vmem:[#allocation2 + $0xc0] sm:$0xff] %vm222, 0.0
        %249 = vst.msk [vmem:[#allocation2 + $0xc8] sm:$0xff] %vm222, 0.0
        %250 = vst.msk [vmem:[#allocation2 + $0xd0] sm:$0x3] %vm225, 0.0
        %251 = vst.msk [vmem:[#allocation2 + $0xd8] sm:$0xff] %vm222, 0.0
        %252 = vst.msk [vmem:[#allocation2 + $0xe0] sm:$0xff] %vm222, 0.0
        %253 = vst.msk [vmem:[#allocation2 + $0xe8] sm:$0x3] %vm225, 0.0
        %254 = vst.msk [vmem:[#allocation2 + $0xf0] sm:$0xff] %vm222, 0.0
        %255 = vst.msk [vmem:[#allocation2 + $0xf8] sm:$0xff] %vm222, 0.0
        %256 = vst.msk [vmem:[#allocation2 + $0x100] sm:$0x3] %vm225, 0.0
        %257 = vst.msk [vmem:[#allocation2 + $0x108] sm:$0xff] %vm222, 0.0
        %258 = vst.msk [vmem:[#allocation2 + $0x110] sm:$0xff] %vm222, 0.0
        %259 = vst.msk [vmem:[#allocation2 + $0x118] sm:$0x3] %vm225, 0.0
        %260 = vst.msk [vmem:[#allocation2 + $0x120] sm:$0xff] %vm222, 0.0
        %261 = vst.msk [vmem:[#allocation2 + $0x128] sm:$0xff] %vm222, 0.0
        %262 = vst.msk [vmem:[#allocation2 + $0x130] sm:$0x3] %vm225, 0.0
        %263 = vst.msk [vmem:[#allocation2 + $0x138] sm:$0xff] %vm222, 0.0
        %264 = vst.msk [vmem:[#allocation2 + $0x140] sm:$0xff] %vm222, 0.0
        %265 = vst.msk [vmem:[#allocation2 + $0x148] sm:$0x3] %vm225, 0.0
        %266 = vst.msk [vmem:[#allocation2 + $0x150] sm:$0xff] %vm222, 0.0
        %267 = vst.msk [vmem:[#allocation2 + $0x158] sm:$0xff] %vm222, 0.0
        %268 = vst.msk [vmem:[#allocation2 + $0x160] sm:$0x3] %vm225, 0.0
        %269 = vst.msk [vmem:[#allocation2 + $0x168] sm:$0xff] %vm222, 0.0
        %270 = vst.msk [vmem:[#allocation2 + $0x170] sm:$0xff] %vm222, 0.0
        %271 = vst.msk [vmem:[#allocation2 + $0x178] sm:$0x3] %vm225, 0.0
        %272 = vst.msk [vmem:[#allocation2 + $0x180] sm:$0xff] %vm222, 0.0
        %273 = vst.msk [vmem:[#allocation2 + $0x188] sm:$0xff] %vm222, 0.0
        %274 = vst.msk [vmem:[#allocation2 + $0x190] sm:$0x3] %vm225, 0.0
        %275 = vst.msk [vmem:[#allocation2 + $0x198] sm:$0xff] %vm222, 0.0
        %276 = vst.msk [vmem:[#allocation2 + $0x1a0] sm:$0xff] %vm222, 0.0
        %277 = vst.msk [vmem:[#allocation2 + $0x1a8] sm:$0x3] %vm225, 0.0
        %v278 = vld [vmem:[%s221] sm:$0xff]
        %v279 = vld [vmem:[%s221 + $0x8] sm:$0xff]
        %v280 = vld [vmem:[%s221 + $0x10] sm:$0xff]
        %v281 = vld [vmem:[%s221 + $0x18] sm:$0xff]
        %v282 = vld [vmem:[%s221 + $0x20] sm:$0xff]
        %v283 = vld [vmem:[%s221 + $0x28] sm:$0xff]
        %v284 = vld [vmem:[%s221 + $0x30] sm:$0xff]
        %v285 = vld [vmem:[%s221 + $0x38] sm:$0xff]
        %v286 = vld [vmem:[%s221 + $0x40] sm:$0xff]
        %v287 = vld [vmem:[%s221 + $0x48] sm:$0xff]
        %v288 = vld [vmem:[%s221 + $0x50] sm:$0xff]
        %v289 = vld [vmem:[%s221 + $0x58] sm:$0xff]
        %v290 = vld [vmem:[%s221 + $0x60] sm:$0xff]
        %v291 = vld [vmem:[%s221 + $0x68] sm:$0xff]
        %v292 = vld [vmem:[%s221 + $0x70] sm:$0xff]
        %v293 = vld [vmem:[%s221 + $0x78] sm:$0xff]
        %v294 = vld [vmem:[%s221 + $0x80] sm:$0xff]
        %v295 = vld [vmem:[%s221 + $0x88] sm:$0xff]
        %v296 = vld [vmem:[%s221 + $0x90] sm:$0xff]
        %v297 = vld [vmem:[%s221 + $0x98] sm:$0xff]
        %v298 = vld [vmem:[%s221 + $0xa0] sm:$0xff]
        %v299 = vld [vmem:[%s221 + $0xa8] sm:$0xff]
        %v300 = vld [vmem:[%s221 + $0xb0] sm:$0xff]
        %v301 = vld [vmem:[%s221 + $0xb8] sm:$0xff]
        %v302 = vld [vmem:[%s221 + $0xc0] sm:$0xff]
        %v303 = vld [vmem:[%s221 + $0xc8] sm:$0xff]
        %v304 = vld [vmem:[%s221 + $0xd0] sm:$0xff]
        %v305 = vld [vmem:[%s221 + $0xd8] sm:$0xff]
        %v306 = vld [vmem:[%s221 + $0xe0] sm:$0xff]
        %v307 = vld [vmem:[%s221 + $0xe8] sm:$0xff]
        %v308 = vld [vmem:[%s221 + $0xf0] sm:$0xff]
        %v309 = vld [vmem:[%s221 + $0xf8] sm:$0xff]
        %s310 = scalar_lea.vmem [#allocation2], 24
        %311 = vst.msk [vmem:[%s310 + $0x1] sm:$0xff] %vm222, %v278
        %312 = vst.msk [vmem:[%s310 + $0x9] sm:$0xff] %vm222, %v279
        %313 = vst.msk [vmem:[%s310 + $0x19] sm:$0xff] %vm222, %v280
        %314 = vst.msk [vmem:[%s310 + $0x21] sm:$0xff] %vm222, %v281
        %315 = vst.msk [vmem:[%s310 + $0x31] sm:$0xff] %vm222, %v282
        %316 = vst.msk [vmem:[%s310 + $0x39] sm:$0xff] %vm222, %v283
        %317 = vst.msk [vmem:[%s310 + $0x49] sm:$0xff] %vm222, %v284
        %318 = vst.msk [vmem:[%s310 + $0x51] sm:$0xff] %vm222, %v285
        %319 = vst.msk [vmem:[%s310 + $0x61] sm:$0xff] %vm222, %v286
        %320 = vst.msk [vmem:[%s310 + $0x69] sm:$0xff] %vm222, %v287
        %321 = vst.msk [vmem:[%s310 + $0x79] sm:$0xff] %vm222, %v288
        %322 = vst.msk [vmem:[%s310 + $0x81] sm:$0xff] %vm222, %v289
        %323 = vst.msk [vmem:[%s310 + $0x91] sm:$0xff] %vm222, %v290
        %324 = vst.msk [vmem:[%s310 + $0x99] sm:$0xff] %vm222, %v291
        %325 = vst.msk [vmem:[%s310 + $0xa9] sm:$0xff] %vm222, %v292
        %326 = vst.msk [vmem:[%s310 + $0xb1] sm:$0xff] %vm222, %v293
        %327 = vst.msk [vmem:[%s310 + $0xc1] sm:$0xff] %vm222, %v294
        %328 = vst.msk [vmem:[%s310 + $0xc9] sm:$0xff] %vm222, %v295
        %329 = vst.msk [vmem:[%s310 + $0xd9] sm:$0xff] %vm222, %v296
        %330 = vst.msk [vmem:[%s310 + $0xe1] sm:$0xff] %vm222, %v297
        %331 = vst.msk [vmem:[%s310 + $0xf1] sm:$0xff] %vm222, %v298
        %332 = vst.msk [vmem:[%s310 + $0xf9] sm:$0xff] %vm222, %v299
        %333 = vst.msk [vmem:[%s310 + $0x109] sm:$0xff] %vm222, %v300
        %334 = vst.msk [vmem:[%s310 + $0x111] sm:$0xff] %vm222, %v301
        %335 = vst.msk [vmem:[%s310 + $0x121] sm:$0xff] %vm222, %v302
        %336 = vst.msk [vmem:[%s310 + $0x129] sm:$0xff] %vm222, %v303
        %337 = vst.msk [vmem:[%s310 + $0x139] sm:$0xff] %vm222, %v304
        %338 = vst.msk [vmem:[%s310 + $0x141] sm:$0xff] %vm222, %v305
        %339 = vst.msk [vmem:[%s310 + $0x151] sm:$0xff] %vm222, %v306
        %340 = vst.msk [vmem:[%s310 + $0x159] sm:$0xff] %vm222, %v307
        %341 = vst.msk [vmem:[%s310 + $0x169] sm:$0xff] %vm222, %v308
        %342 = vst.msk [vmem:[%s310 + $0x171] sm:$0xff] %vm222, %v309
        %v343 = vld [vmem:[#allocation2] sm:$0xff]
        %v344 = vld [vmem:[#allocation2 + $0x8] sm:$0xff]
        %v345 = vld [vmem:[#allocation2 + $0x18] sm:$0xff]
        %v346 = vld [vmem:[#allocation2 + $0x20] sm:$0xff]
        %v347 = vld [vmem:[#allocation2 + $0x30] sm:$0xff]
        %v348 = vld [vmem:[#allocation2 + $0x38] sm:$0xff]
        %v349 = vld [vmem:[#allocation2 + $0x48] sm:$0xff]
        %v350 = vld [vmem:[#allocation2 + $0x50] sm:$0xff]
        %v351 = vld [vmem:[#allocation2 + $0x60] sm:$0xff]
        %v352 = vld [vmem:[#allocation2 + $0x68] sm:$0xff]
        %v353 = vld [vmem:[#allocation2 + $0x78] sm:$0xff]
        %v354 = vld [vmem:[#allocation2 + $0x80] sm:$0xff]
        %v355 = vld [vmem:[#allocation2 + $0x90] sm:$0xff]
        %v356 = vld [vmem:[#allocation2 + $0x98] sm:$0xff]
        %v357 = vld [vmem:[#allocation2 + $0xa8] sm:$0xff]
        %v358 = vld [vmem:[#allocation2 + $0xb0] sm:$0xff]
        %v359 = vld [vmem:[#allocation2 + $0xc0] sm:$0xff]
        %v360 = vld [vmem:[#allocation2 + $0xc8] sm:$0xff]
        %v361 = vld [vmem:[#allocation2 + $0xd8] sm:$0xff]
        %v362 = vld [vmem:[#allocation2 + $0xe0] sm:$0xff]
        %v363 = vld [vmem:[#allocation2 + $0xf0] sm:$0xff]
        %v364 = vld [vmem:[#allocation2 + $0xf8] sm:$0xff]
        %v365 = vld [vmem:[#allocation2 + $0x108] sm:$0xff]
        %v366 = vld [vmem:[#allocation2 + $0x110] sm:$0xff]
        %v367 = vld [vmem:[#allocation2 + $0x120] sm:$0xff]
        %v368 = vld [vmem:[#allocation2 + $0x128] sm:$0xff]
        %v369 = vld [vmem:[#allocation2 + $0x138] sm:$0xff]
        %v370 = vld [vmem:[#allocation2 + $0x140] sm:$0xff]
        %v371 = vld [vmem:[#allocation2 + $0x150] sm:$0xff]
        %v372 = vld [vmem:[#allocation2 + $0x158] sm:$0xff]
        %v373 = vld [vmem:[#allocation2 + $0x168] sm:$0xff]
        %v374 = vld [vmem:[#allocation2 + $0x170] sm:$0xff]
        %v375 = vld [vmem:[#allocation2 + $0x1] sm:$0xff]
        %v376 = vld [vmem:[#allocation2 + $0x9] sm:$0xff]
        %v377 = vld [vmem:[#allocation2 + $0x19] sm:$0xff]
        %v378 = vld [vmem:[#allocation2 + $0x21] sm:$0xff]
        %v379 = vld [vmem:[#allocation2 + $0x31] sm:$0xff]
        %v380 = vld [vmem:[#allocation2 + $0x39] sm:$0xff]
        %v381 = vld [vmem:[#allocation2 + $0x49] sm:$0xff]
        %v382 = vld [vmem:[#allocation2 + $0x51] sm:$0xff]
        %v383 = vld [vmem:[#allocation2 + $0x61] sm:$0xff]
        %v384 = vld [vmem:[#allocation2 + $0x69] sm:$0xff]
        %v385 = vld [vmem:[#allocation2 + $0x79] sm:$0xff]
        %v386 = vld [vmem:[#allocation2 + $0x81] sm:$0xff]
        %v387 = vld [vmem:[#allocation2 + $0x91] sm:$0xff]
        %v388 = vld [vmem:[#allocation2 + $0x99] sm:$0xff]
        %v389 = vld [vmem:[#allocation2 + $0xa9] sm:$0xff]
        %v390 = vld [vmem:[#allocation2 + $0xb1] sm:$0xff]
        %v391 = vld [vmem:[#allocation2 + $0xc1] sm:$0xff]
        %v392 = vld [vmem:[#allocation2 + $0xc9] sm:$0xff]
        %v393 = vld [vmem:[#allocation2 + $0xd9] sm:$0xff]
        %v394 = vld [vmem:[#allocation2 + $0xe1] sm:$0xff]
        %v395 = vld [vmem:[#allocation2 + $0xf1] sm:$0xff]
        %v396 = vld [vmem:[#allocation2 + $0xf9] sm:$0xff]
        %v397 = vld [vmem:[#allocation2 + $0x109] sm:$0xff]
        %v398 = vld [vmem:[#allocation2 + $0x111] sm:$0xff]
        %v399 = vld [vmem:[#allocation2 + $0x121] sm:$0xff]
        %v400 = vld [vmem:[#allocation2 + $0x129] sm:$0xff]
        %v401 = vld [vmem:[#allocation2 + $0x139] sm:$0xff]
        %v402 = vld [vmem:[#allocation2 + $0x141] sm:$0xff]
        %v403 = vld [vmem:[#allocation2 + $0x151] sm:$0xff]
        %v404 = vld [vmem:[#allocation2 + $0x159] sm:$0xff]
        %v405 = vld [vmem:[#allocation2 + $0x169] sm:$0xff]
        %v406 = vld [vmem:[#allocation2 + $0x171] sm:$0xff]
        %v407 = vld [vmem:[#allocation2 + $0x2] sm:$0xff]
        %v408 = vld [vmem:[#allocation2 + $0xa] sm:$0xff]
        %v409 = vld [vmem:[#allocation2 + $0x1a] sm:$0xff]
        %v410 = vld [vmem:[#allocation2 + $0x22] sm:$0xff]
        %v411 = vld [vmem:[#allocation2 + $0x32] sm:$0xff]
        %v412 = vld [vmem:[#allocation2 + $0x3a] sm:$0xff]
        %v413 = vld [vmem:[#allocation2 + $0x4a] sm:$0xff]
        %v414 = vld [vmem:[#allocation2 + $0x52] sm:$0xff]
        %v415 = vld [vmem:[#allocation2 + $0x62] sm:$0xff]
        %v416 = vld [vmem:[#allocation2 + $0x6a] sm:$0xff]
        %v417 = vld [vmem:[#allocation2 + $0x7a] sm:$0xff]
        %v418 = vld [vmem:[#allocation2 + $0x82] sm:$0xff]
        %v419 = vld [vmem:[#allocation2 + $0x92] sm:$0xff]
        %v420 = vld [vmem:[#allocation2 + $0x9a] sm:$0xff]
        %v421 = vld [vmem:[#allocation2 + $0xaa] sm:$0xff]
        %v422 = vld [vmem:[#allocation2 + $0xb2] sm:$0xff]
        %v423 = vld [vmem:[#allocation2 + $0xc2] sm:$0xff]
        %v424 = vld [vmem:[#allocation2 + $0xca] sm:$0xff]
        %v425 = vld [vmem:[#allocation2 + $0xda] sm:$0xff]
        %v426 = vld [vmem:[#allocation2 + $0xe2] sm:$0xff]
        %v427 = vld [vmem:[#allocation2 + $0xf2] sm:$0xff]
        %v428 = vld [vmem:[#allocation2 + $0xfa] sm:$0xff]
        %v429 = vld [vmem:[#allocation2 + $0x10a] sm:$0xff]
        %v430 = vld [vmem:[#allocation2 + $0x112] sm:$0xff]
        %v431 = vld [vmem:[#allocation2 + $0x122] sm:$0xff]
        %v432 = vld [vmem:[#allocation2 + $0x12a] sm:$0xff]
        %v433 = vld [vmem:[#allocation2 + $0x13a] sm:$0xff]
        %v434 = vld [vmem:[#allocation2 + $0x142] sm:$0xff]
        %v435 = vld [vmem:[#allocation2 + $0x152] sm:$0xff]
        %v436 = vld [vmem:[#allocation2 + $0x15a] sm:$0xff]
        %v437 = vld [vmem:[#allocation2 + $0x16a] sm:$0xff]
        %v438 = vld [vmem:[#allocation2 + $0x172] sm:$0xff]
        %v439 = vld [vmem:[%s310] sm:$0xff]
        %v440 = vld [vmem:[%s310 + $0x8] sm:$0xff]
        %v441 = vld [vmem:[%s310 + $0x18] sm:$0xff]
        %v442 = vld [vmem:[%s310 + $0x20] sm:$0xff]
        %v443 = vld [vmem:[%s310 + $0x30] sm:$0xff]
        %v444 = vld [vmem:[%s310 + $0x38] sm:$0xff]
        %v445 = vld [vmem:[%s310 + $0x48] sm:$0xff]
        %v446 = vld [vmem:[%s310 + $0x50] sm:$0xff]
        %v447 = vld [vmem:[%s310 + $0x60] sm:$0xff]
        %v448 = vld [vmem:[%s310 + $0x68] sm:$0xff]
        %v449 = vld [vmem:[%s310 + $0x78] sm:$0xff]
        %v450 = vld [vmem:[%s310 + $0x80] sm:$0xff]
        %v451 = vld [vmem:[%s310 + $0x90] sm:$0xff]
        %v452 = vld [vmem:[%s310 + $0x98] sm:$0xff]
        %v453 = vld [vmem:[%s310 + $0xa8] sm:$0xff]
        %v454 = vld [vmem:[%s310 + $0xb0] sm:$0xff]
        %v455 = vld [vmem:[%s310 + $0xc0] sm:$0xff]
        %v456 = vld [vmem:[%s310 + $0xc8] sm:$0xff]
        %v457 = vld [vmem:[%s310 + $0xd8] sm:$0xff]
        %v458 = vld [vmem:[%s310 + $0xe0] sm:$0xff]
        %v459 = vld [vmem:[%s310 + $0xf0] sm:$0xff]
        %v460 = vld [vmem:[%s310 + $0xf8] sm:$0xff]
        %v461 = vld [vmem:[%s310 + $0x108] sm:$0xff]
        %v462 = vld [vmem:[%s310 + $0x110] sm:$0xff]
        %v463 = vld [vmem:[%s310 + $0x120] sm:$0xff]
        %v464 = vld [vmem:[%s310 + $0x128] sm:$0xff]
        %v465 = vld [vmem:[%s310 + $0x138] sm:$0xff]
        %v466 = vld [vmem:[%s310 + $0x140] sm:$0xff]
        %v467 = vld [vmem:[%s310 + $0x150] sm:$0xff]
        %v468 = vld [vmem:[%s310 + $0x158] sm:$0xff]
        %v469 = vld [vmem:[%s310 + $0x168] sm:$0xff]
        %v470 = vld [vmem:[%s310 + $0x170] sm:$0xff]
        %v471 = vld [vmem:[%s310 + $0x1] sm:$0xff]
        %v472 = vld [vmem:[%s310 + $0x9] sm:$0xff]
        %v473 = vld [vmem:[%s310 + $0x19] sm:$0xff]
        %v474 = vld [vmem:[%s310 + $0x21] sm:$0xff]
        %v475 = vld [vmem:[%s310 + $0x31] sm:$0xff]
        %v476 = vld [vmem:[%s310 + $0x39] sm:$0xff]
        %v477 = vld [vmem:[%s310 + $0x49] sm:$0xff]
        %v478 = vld [vmem:[%s310 + $0x51] sm:$0xff]
        %v479 = vld [vmem:[%s310 + $0x61] sm:$0xff]
        %v480 = vld [vmem:[%s310 + $0x69] sm:$0xff]
        %v481 = vld [vmem:[%s310 + $0x79] sm:$0xff]
        %v482 = vld [vmem:[%s310 + $0x81] sm:$0xff]
        %v483 = vld [vmem:[%s310 + $0x91] sm:$0xff]
        %v484 = vld [vmem:[%s310 + $0x99] sm:$0xff]
        %v485 = vld [vmem:[%s310 + $0xa9] sm:$0xff]
        %v486 = vld [vmem:[%s310 + $0xb1] sm:$0xff]
        %v487 = vld [vmem:[%s310 + $0xc1] sm:$0xff]
        %v488 = vld [vmem:[%s310 + $0xc9] sm:$0xff]
        %v489 = vld [vmem:[%s310 + $0xd9] sm:$0xff]
        %v490 = vld [vmem:[%s310 + $0xe1] sm:$0xff]
        %v491 = vld [vmem:[%s310 + $0xf1] sm:$0xff]
        %v492 = vld [vmem:[%s310 + $0xf9] sm:$0xff]
        %v493 = vld [vmem:[%s310 + $0x109] sm:$0xff]
        %v494 = vld [vmem:[%s310 + $0x111] sm:$0xff]
        %v495 = vld [vmem:[%s310 + $0x121] sm:$0xff]
        %v496 = vld [vmem:[%s310 + $0x129] sm:$0xff]
        %v497 = vld [vmem:[%s310 + $0x139] sm:$0xff]
        %v498 = vld [vmem:[%s310 + $0x141] sm:$0xff]
        %v499 = vld [vmem:[%s310 + $0x151] sm:$0xff]
        %v500 = vld [vmem:[%s310 + $0x159] sm:$0xff]
        %v501 = vld [vmem:[%s310 + $0x169] sm:$0xff]
        %v502 = vld [vmem:[%s310 + $0x171] sm:$0xff]
        %v503 = vld [vmem:[%s310 + $0x2] sm:$0xff]
        %v504 = vld [vmem:[%s310 + $0xa] sm:$0xff]
        %v505 = vld [vmem:[%s310 + $0x1a] sm:$0xff]
        %v506 = vld [vmem:[%s310 + $0x22] sm:$0xff]
        %v507 = vld [vmem:[%s310 + $0x32] sm:$0xff]
        %v508 = vld [vmem:[%s310 + $0x3a] sm:$0xff]
        %v509 = vld [vmem:[%s310 + $0x4a] sm:$0xff]
        %v510 = vld [vmem:[%s310 + $0x52] sm:$0xff]
        %v511 = vld [vmem:[%s310 + $0x62] sm:$0xff]
        %v512 = vld [vmem:[%s310 + $0x6a] sm:$0xff]
        %v513 = vld [vmem:[%s310 + $0x7a] sm:$0xff]
        %v514 = vld [vmem:[%s310 + $0x82] sm:$0xff]
        %v515 = vld [vmem:[%s310 + $0x92] sm:$0xff]
        %v516 = vld [vmem:[%s310 + $0x9a] sm:$0xff]
        %v517 = vld [vmem:[%s310 + $0xaa] sm:$0xff]
        %v518 = vld [vmem:[%s310 + $0xb2] sm:$0xff]
        %v519 = vld [vmem:[%s310 + $0xc2] sm:$0xff]
        %v520 = vld [vmem:[%s310 + $0xca] sm:$0xff]
        %v521 = vld [vmem:[%s310 + $0xda] sm:$0xff]
        %v522 = vld [vmem:[%s310 + $0xe2] sm:$0xff]
        %v523 = vld [vmem:[%s310 + $0xf2] sm:$0xff]
        %v524 = vld [vmem:[%s310 + $0xfa] sm:$0xff]
        %v525 = vld [vmem:[%s310 + $0x10a] sm:$0xff]
        %v526 = vld [vmem:[%s310 + $0x112] sm:$0xff]
        %v527 = vld [vmem:[%s310 + $0x122] sm:$0xff]
        %v528 = vld [vmem:[%s310 + $0x12a] sm:$0xff]
        %v529 = vld [vmem:[%s310 + $0x13a] sm:$0xff]
        %v530 = vld [vmem:[%s310 + $0x142] sm:$0xff]
        %v531 = vld [vmem:[%s310 + $0x152] sm:$0xff]
        %v532 = vld [vmem:[%s310 + $0x15a] sm:$0xff]
        %v533 = vld [vmem:[%s310 + $0x16a] sm:$0xff]
        %v534 = vld [vmem:[%s310 + $0x172] sm:$0xff]
        %s535 = scalar_lea.vmem [#allocation2], 48
        %v536 = vld [vmem:[%s535] sm:$0xff]
        %v537 = vld [vmem:[%s535 + $0x8] sm:$0xff]
        %v538 = vld [vmem:[%s535 + $0x18] sm:$0xff]
        %v539 = vld [vmem:[%s535 + $0x20] sm:$0xff]
        %v540 = vld [vmem:[%s535 + $0x30] sm:$0xff]
        %v541 = vld [vmem:[%s535 + $0x38] sm:$0xff]
        %v542 = vld [vmem:[%s535 + $0x48] sm:$0xff]
        %v543 = vld [vmem:[%s535 + $0x50] sm:$0xff]
        %v544 = vld [vmem:[%s535 + $0x60] sm:$0xff]
        %v545 = vld [vmem:[%s535 + $0x68] sm:$0xff]
        %v546 = vld [vmem:[%s535 + $0x78] sm:$0xff]
        %v547 = vld [vmem:[%s535 + $0x80] sm:$0xff]
        %v548 = vld [vmem:[%s535 + $0x90] sm:$0xff]
        %v549 = vld [vmem:[%s535 + $0x98] sm:$0xff]
        %v550 = vld [vmem:[%s535 + $0xa8] sm:$0xff]
        %v551 = vld [vmem:[%s535 + $0xb0] sm:$0xff]
        %v552 = vld [vmem:[%s535 + $0xc0] sm:$0xff]
        %v553 = vld [vmem:[%s535 + $0xc8] sm:$0xff]
        %v554 = vld [vmem:[%s535 + $0xd8] sm:$0xff]
        %v555 = vld [vmem:[%s535 + $0xe0] sm:$0xff]
        %v556 = vld [vmem:[%s535 + $0xf0] sm:$0xff]
        %v557 = vld [vmem:[%s535 + $0xf8] sm:$0xff]
        %v558 = vld [vmem:[%s535 + $0x108] sm:$0xff]
        %v559 = vld [vmem:[%s535 + $0x110] sm:$0xff]
        %v560 = vld [vmem:[%s535 + $0x120] sm:$0xff]
        %v561 = vld [vmem:[%s535 + $0x128] sm:$0xff]
        %v562 = vld [vmem:[%s535 + $0x138] sm:$0xff]
        %v563 = vld [vmem:[%s535 + $0x140] sm:$0xff]
        %v564 = vld [vmem:[%s535 + $0x150] sm:$0xff]
        %v565 = vld [vmem:[%s535 + $0x158] sm:$0xff]
        %v566 = vld [vmem:[%s535 + $0x168] sm:$0xff]
        %v567 = vld [vmem:[%s535 + $0x170] sm:$0xff]
        %v568 = vld [vmem:[%s535 + $0x1] sm:$0xff]
        %v569 = vld [vmem:[%s535 + $0x9] sm:$0xff]
        %v570 = vld [vmem:[%s535 + $0x19] sm:$0xff]
        %v571 = vld [vmem:[%s535 + $0x21] sm:$0xff]
        %v572 = vld [vmem:[%s535 + $0x31] sm:$0xff]
        %v573 = vld [vmem:[%s535 + $0x39] sm:$0xff]
        %v574 = vld [vmem:[%s535 + $0x49] sm:$0xff]
        %v575 = vld [vmem:[%s535 + $0x51] sm:$0xff]
        %v576 = vld [vmem:[%s535 + $0x61] sm:$0xff]
        %v577 = vld [vmem:[%s535 + $0x69] sm:$0xff]
        %v578 = vld [vmem:[%s535 + $0x79] sm:$0xff]
        %v579 = vld [vmem:[%s535 + $0x81] sm:$0xff]
        %v580 = vld [vmem:[%s535 + $0x91] sm:$0xff]
        %v581 = vld [vmem:[%s535 + $0x99] sm:$0xff]
        %v582 = vld [vmem:[%s535 + $0xa9] sm:$0xff]
        %v583 = vld [vmem:[%s535 + $0xb1] sm:$0xff]
        %v584 = vld [vmem:[%s535 + $0xc1] sm:$0xff]
        %v585 = vld [vmem:[%s535 + $0xc9] sm:$0xff]
        %v586 = vld [vmem:[%s535 + $0xd9] sm:$0xff]
        %v587 = vld [vmem:[%s535 + $0xe1] sm:$0xff]
        %v588 = vld [vmem:[%s535 + $0xf1] sm:$0xff]
        %v589 = vld [vmem:[%s535 + $0xf9] sm:$0xff]
        %v590 = vld [vmem:[%s535 + $0x109] sm:$0xff]
        %v591 = vld [vmem:[%s535 + $0x111] sm:$0xff]
        %v592 = vld [vmem:[%s535 + $0x121] sm:$0xff]
        %v593 = vld [vmem:[%s535 + $0x129] sm:$0xff]
        %v594 = vld [vmem:[%s535 + $0x139] sm:$0xff]
        %v595 = vld [vmem:[%s535 + $0x141] sm:$0xff]
        %v596 = vld [vmem:[%s535 + $0x151] sm:$0xff]
        %v597 = vld [vmem:[%s535 + $0x159] sm:$0xff]
        %v598 = vld [vmem:[%s535 + $0x169] sm:$0xff]
        %v599 = vld [vmem:[%s535 + $0x171] sm:$0xff]
        %v600 = vld [vmem:[%s535 + $0x2] sm:$0xff]
        %v601 = vld [vmem:[%s535 + $0xa] sm:$0xff]
        %v602 = vld [vmem:[%s535 + $0x1a] sm:$0xff]
        %v603 = vld [vmem:[%s535 + $0x22] sm:$0xff]
        %v604 = vld [vmem:[%s535 + $0x32] sm:$0xff]
        %v605 = vld [vmem:[%s535 + $0x3a] sm:$0xff]
        %v606 = vld [vmem:[%s535 + $0x4a] sm:$0xff]
        %v607 = vld [vmem:[%s535 + $0x52] sm:$0xff]
        %v608 = vld [vmem:[%s535 + $0x62] sm:$0xff]
        %v609 = vld [vmem:[%s535 + $0x6a] sm:$0xff]
        %v610 = vld [vmem:[%s535 + $0x7a] sm:$0xff]
        %v611 = vld [vmem:[%s535 + $0x82] sm:$0xff]
        %v612 = vld [vmem:[%s535 + $0x92] sm:$0xff]
        %v613 = vld [vmem:[%s535 + $0x9a] sm:$0xff]
        %v614 = vld [vmem:[%s535 + $0xaa] sm:$0xff]
        %v615 = vld [vmem:[%s535 + $0xb2] sm:$0xff]
        %v616 = vld [vmem:[%s535 + $0xc2] sm:$0xff]
        %v617 = vld [vmem:[%s535 + $0xca] sm:$0xff]
        %v618 = vld [vmem:[%s535 + $0xda] sm:$0xff]
        %v619 = vld [vmem:[%s535 + $0xe2] sm:$0xff]
        %v620 = vld [vmem:[%s535 + $0xf2] sm:$0xff]
        %v621 = vld [vmem:[%s535 + $0xfa] sm:$0xff]
        %v622 = vld [vmem:[%s535 + $0x10a] sm:$0xff]
        %v623 = vld [vmem:[%s535 + $0x112] sm:$0xff]
        %v624 = vld [vmem:[%s535 + $0x122] sm:$0xff]
        %v625 = vld [vmem:[%s535 + $0x12a] sm:$0xff]
        %v626 = vld [vmem:[%s535 + $0x13a] sm:$0xff]
        %v627 = vld [vmem:[%s535 + $0x142] sm:$0xff]
        %v628 = vld [vmem:[%s535 + $0x152] sm:$0xff]
        %v629 = vld [vmem:[%s535 + $0x15a] sm:$0xff]
        %v630 = vld [vmem:[%s535 + $0x16a] sm:$0xff]
        %v631 = vld [vmem:[%s535 + $0x172] sm:$0xff]
        %664 = vrot.lane.b32.xlu0 %v375, 3
        %v665 = vpop.permute.xlu0 %664
        %666 = vrot.lane.b32.xlu0 %v376, 3
        %v667 = vpop.permute.xlu0 %666
        %668 = vrot.lane.b32.xlu0 %v377, 3
        %v669 = vpop.permute.xlu0 %668
        %670 = vrot.lane.b32.xlu0 %v378, 3
        %v671 = vpop.permute.xlu0 %670
        %672 = vrot.lane.b32.xlu0 %v379, 3
        %v673 = vpop.permute.xlu0 %672
        %674 = vrot.lane.b32.xlu0 %v380, 3
        %v675 = vpop.permute.xlu0 %674
        %676 = vrot.lane.b32.xlu0 %v381, 3
        %v677 = vpop.permute.xlu0 %676
        %678 = vrot.lane.b32.xlu0 %v382, 3
        %v679 = vpop.permute.xlu0 %678
        %680 = vrot.lane.b32.xlu0 %v383, 3
        %v681 = vpop.permute.xlu0 %680
        %682 = vrot.lane.b32.xlu0 %v384, 3
        %v683 = vpop.permute.xlu0 %682
        %684 = vrot.lane.b32.xlu0 %v385, 3
        %v685 = vpop.permute.xlu0 %684
        %686 = vrot.lane.b32.xlu0 %v386, 3
        %v687 = vpop.permute.xlu0 %686
        %688 = vrot.lane.b32.xlu0 %v387, 3
        %v689 = vpop.permute.xlu0 %688
        %690 = vrot.lane.b32.xlu0 %v388, 3
        %v691 = vpop.permute.xlu0 %690
        %692 = vrot.lane.b32.xlu0 %v389, 3
        %v693 = vpop.permute.xlu0 %692
        %694 = vrot.lane.b32.xlu0 %v390, 3
        %v695 = vpop.permute.xlu0 %694
        %696 = vrot.lane.b32.xlu0 %v391, 3
        %v697 = vpop.permute.xlu0 %696
        %698 = vrot.lane.b32.xlu0 %v392, 3
        %v699 = vpop.permute.xlu0 %698
        %700 = vrot.lane.b32.xlu0 %v393, 3
        %v701 = vpop.permute.xlu0 %700
        %702 = vrot.lane.b32.xlu0 %v394, 3
        %v703 = vpop.permute.xlu0 %702
        %704 = vrot.lane.b32.xlu0 %v395, 3
        %v705 = vpop.permute.xlu0 %704
        %706 = vrot.lane.b32.xlu0 %v396, 3
        %v707 = vpop.permute.xlu0 %706
        %708 = vrot.lane.b32.xlu0 %v397, 3
        %v709 = vpop.permute.xlu0 %708
        %710 = vrot.lane.b32.xlu0 %v398, 3
        %v711 = vpop.permute.xlu0 %710
        %712 = vrot.lane.b32.xlu0 %v399, 3
        %v713 = vpop.permute.xlu0 %712
        %714 = vrot.lane.b32.xlu0 %v400, 3
        %v715 = vpop.permute.xlu0 %714
        %716 = vrot.lane.b32.xlu0 %v401, 3
        %v717 = vpop.permute.xlu0 %716
        %718 = vrot.lane.b32.xlu0 %v402, 3
        %v719 = vpop.permute.xlu0 %718
        %720 = vrot.lane.b32.xlu0 %v403, 3
        %v721 = vpop.permute.xlu0 %720
        %722 = vrot.lane.b32.xlu0 %v404, 3
        %v723 = vpop.permute.xlu0 %722
        %724 = vrot.lane.b32.xlu0 %v405, 3
        %v725 = vpop.permute.xlu0 %724
        %726 = vrot.lane.b32.xlu0 %v406, 3
        %v727 = vpop.permute.xlu0 %726
        %792 = vrot.lane.b32.xlu0 %v407, 6
        %v793 = vpop.permute.xlu0 %792
        %794 = vrot.lane.b32.xlu0 %v408, 6
        %v795 = vpop.permute.xlu0 %794
        %796 = vrot.lane.b32.xlu0 %v409, 6
        %v797 = vpop.permute.xlu0 %796
        %798 = vrot.lane.b32.xlu0 %v410, 6
        %v799 = vpop.permute.xlu0 %798
        %800 = vrot.lane.b32.xlu0 %v411, 6
        %v801 = vpop.permute.xlu0 %800
        %802 = vrot.lane.b32.xlu0 %v412, 6
        %v803 = vpop.permute.xlu0 %802
        %804 = vrot.lane.b32.xlu0 %v413, 6
        %v805 = vpop.permute.xlu0 %804
        %806 = vrot.lane.b32.xlu0 %v414, 6
        %v807 = vpop.permute.xlu0 %806
        %808 = vrot.lane.b32.xlu0 %v415, 6
        %v809 = vpop.permute.xlu0 %808
        %810 = vrot.lane.b32.xlu0 %v416, 6
        %v811 = vpop.permute.xlu0 %810
        %812 = vrot.lane.b32.xlu0 %v417, 6
        %v813 = vpop.permute.xlu0 %812
        %814 = vrot.lane.b32.xlu0 %v418, 6
        %v815 = vpop.permute.xlu0 %814
        %816 = vrot.lane.b32.xlu0 %v419, 6
        %v817 = vpop.permute.xlu0 %816
        %818 = vrot.lane.b32.xlu0 %v420, 6
        %v819 = vpop.permute.xlu0 %818
        %820 = vrot.lane.b32.xlu0 %v421, 6
        %v821 = vpop.permute.xlu0 %820
        %822 = vrot.lane.b32.xlu0 %v422, 6
        %v823 = vpop.permute.xlu0 %822
        %824 = vrot.lane.b32.xlu0 %v423, 6
        %v825 = vpop.permute.xlu0 %824
        %826 = vrot.lane.b32.xlu0 %v424, 6
        %v827 = vpop.permute.xlu0 %826
        %828 = vrot.lane.b32.xlu0 %v425, 6
        %v829 = vpop.permute.xlu0 %828
        %830 = vrot.lane.b32.xlu0 %v426, 6
        %v831 = vpop.permute.xlu0 %830
        %832 = vrot.lane.b32.xlu0 %v427, 6
        %v833 = vpop.permute.xlu0 %832
        %834 = vrot.lane.b32.xlu0 %v428, 6
        %v835 = vpop.permute.xlu0 %834
        %836 = vrot.lane.b32.xlu0 %v429, 6
        %v837 = vpop.permute.xlu0 %836
        %838 = vrot.lane.b32.xlu0 %v430, 6
        %v839 = vpop.permute.xlu0 %838
        %840 = vrot.lane.b32.xlu0 %v431, 6
        %v841 = vpop.permute.xlu0 %840
        %842 = vrot.lane.b32.xlu0 %v432, 6
        %v843 = vpop.permute.xlu0 %842
        %844 = vrot.lane.b32.xlu0 %v433, 6
        %v845 = vpop.permute.xlu0 %844
        %846 = vrot.lane.b32.xlu0 %v434, 6
        %v847 = vpop.permute.xlu0 %846
        %848 = vrot.lane.b32.xlu0 %v435, 6
        %v849 = vpop.permute.xlu0 %848
        %850 = vrot.lane.b32.xlu0 %v436, 6
        %v851 = vpop.permute.xlu0 %850
        %852 = vrot.lane.b32.xlu0 %v437, 6
        %v853 = vpop.permute.xlu0 %852
        %854 = vrot.lane.b32.xlu0 %v438, 6
        %v855 = vpop.permute.xlu0 %854
        %920 = vrot.lane.b32.xlu0 %v439, 9
        %v921 = vpop.permute.xlu0 %920
        %922 = vrot.lane.b32.xlu0 %v440, 9
        %v923 = vpop.permute.xlu0 %922
        %924 = vrot.lane.b32.xlu0 %v441, 9
        %v925 = vpop.permute.xlu0 %924
        %926 = vrot.lane.b32.xlu0 %v442, 9
        %v927 = vpop.permute.xlu0 %926
        %928 = vrot.lane.b32.xlu0 %v443, 9
        %v929 = vpop.permute.xlu0 %928
        %930 = vrot.lane.b32.xlu0 %v444, 9
        %v931 = vpop.permute.xlu0 %930
        %932 = vrot.lane.b32.xlu0 %v445, 9
        %v933 = vpop.permute.xlu0 %932
        %934 = vrot.lane.b32.xlu0 %v446, 9
        %v935 = vpop.permute.xlu0 %934
        %936 = vrot.lane.b32.xlu0 %v447, 9
        %v937 = vpop.permute.xlu0 %936
        %938 = vrot.lane.b32.xlu0 %v448, 9
        %v939 = vpop.permute.xlu0 %938
        %940 = vrot.lane.b32.xlu0 %v449, 9
        %v941 = vpop.permute.xlu0 %940
        %942 = vrot.lane.b32.xlu0 %v450, 9
        %v943 = vpop.permute.xlu0 %942
        %944 = vrot.lane.b32.xlu0 %v451, 9
        %v945 = vpop.permute.xlu0 %944
        %946 = vrot.lane.b32.xlu0 %v452, 9
        %v947 = vpop.permute.xlu0 %946
        %948 = vrot.lane.b32.xlu0 %v453, 9
        %v949 = vpop.permute.xlu0 %948
        %950 = vrot.lane.b32.xlu0 %v454, 9
        %v951 = vpop.permute.xlu0 %950
        %952 = vrot.lane.b32.xlu0 %v455, 9
        %v953 = vpop.permute.xlu0 %952
        %954 = vrot.lane.b32.xlu0 %v456, 9
        %v955 = vpop.permute.xlu0 %954
        %956 = vrot.lane.b32.xlu0 %v457, 9
        %v957 = vpop.permute.xlu0 %956
        %958 = vrot.lane.b32.xlu0 %v458, 9
        %v959 = vpop.permute.xlu0 %958
        %960 = vrot.lane.b32.xlu0 %v459, 9
        %v961 = vpop.permute.xlu0 %960
        %962 = vrot.lane.b32.xlu0 %v460, 9
        %v963 = vpop.permute.xlu0 %962
        %964 = vrot.lane.b32.xlu0 %v461, 9
        %v965 = vpop.permute.xlu0 %964
        %966 = vrot.lane.b32.xlu0 %v462, 9
        %v967 = vpop.permute.xlu0 %966
        %968 = vrot.lane.b32.xlu0 %v463, 9
        %v969 = vpop.permute.xlu0 %968
        %970 = vrot.lane.b32.xlu0 %v464, 9
        %v971 = vpop.permute.xlu0 %970
        %972 = vrot.lane.b32.xlu0 %v465, 9
        %v973 = vpop.permute.xlu0 %972
        %974 = vrot.lane.b32.xlu0 %v466, 9
        %v975 = vpop.permute.xlu0 %974
        %976 = vrot.lane.b32.xlu0 %v467, 9
        %v977 = vpop.permute.xlu0 %976
        %978 = vrot.lane.b32.xlu0 %v468, 9
        %v979 = vpop.permute.xlu0 %978
        %980 = vrot.lane.b32.xlu0 %v469, 9
        %v981 = vpop.permute.xlu0 %980
        %982 = vrot.lane.b32.xlu0 %v470, 9
        %v983 = vpop.permute.xlu0 %982
        %1048 = vrot.lane.b32.xlu0 %v471, 12
        %v1049 = vpop.permute.xlu0 %1048
        %1050 = vrot.lane.b32.xlu0 %v472, 12
        %v1051 = vpop.permute.xlu0 %1050
        %1052 = vrot.lane.b32.xlu0 %v473, 12
        %v1053 = vpop.permute.xlu0 %1052
        %1054 = vrot.lane.b32.xlu0 %v474, 12
        %v1055 = vpop.permute.xlu0 %1054
        %1056 = vrot.lane.b32.xlu0 %v475, 12
        %v1057 = vpop.permute.xlu0 %1056
        %1058 = vrot.lane.b32.xlu0 %v476, 12
        %v1059 = vpop.permute.xlu0 %1058
        %1060 = vrot.lane.b32.xlu0 %v477, 12
        %v1061 = vpop.permute.xlu0 %1060
        %1062 = vrot.lane.b32.xlu0 %v478, 12
        %v1063 = vpop.permute.xlu0 %1062
        %1064 = vrot.lane.b32.xlu0 %v479, 12
        %v1065 = vpop.permute.xlu0 %1064
        %1066 = vrot.lane.b32.xlu0 %v480, 12
        %v1067 = vpop.permute.xlu0 %1066
        %1068 = vrot.lane.b32.xlu0 %v481, 12
        %v1069 = vpop.permute.xlu0 %1068
        %1070 = vrot.lane.b32.xlu0 %v482, 12
        %v1071 = vpop.permute.xlu0 %1070
        %1072 = vrot.lane.b32.xlu0 %v483, 12
        %v1073 = vpop.permute.xlu0 %1072
        %1074 = vrot.lane.b32.xlu0 %v484, 12
        %v1075 = vpop.permute.xlu0 %1074
        %1076 = vrot.lane.b32.xlu0 %v485, 12
        %v1077 = vpop.permute.xlu0 %1076
        %1078 = vrot.lane.b32.xlu0 %v486, 12
        %v1079 = vpop.permute.xlu0 %1078
        %1080 = vrot.lane.b32.xlu0 %v487, 12
        %v1081 = vpop.permute.xlu0 %1080
        %1082 = vrot.lane.b32.xlu0 %v488, 12
        %v1083 = vpop.permute.xlu0 %1082
        %1084 = vrot.lane.b32.xlu0 %v489, 12
        %v1085 = vpop.permute.xlu0 %1084
        %1086 = vrot.lane.b32.xlu0 %v490, 12
        %v1087 = vpop.permute.xlu0 %1086
        %1088 = vrot.lane.b32.xlu0 %v491, 12
        %v1089 = vpop.permute.xlu0 %1088
        %1090 = vrot.lane.b32.xlu0 %v492, 12
        %v1091 = vpop.permute.xlu0 %1090
        %1092 = vrot.lane.b32.xlu0 %v493, 12
        %v1093 = vpop.permute.xlu0 %1092
        %1094 = vrot.lane.b32.xlu0 %v494, 12
        %v1095 = vpop.permute.xlu0 %1094
        %1096 = vrot.lane.b32.xlu0 %v495, 12
        %v1097 = vpop.permute.xlu0 %1096
        %1098 = vrot.lane.b32.xlu0 %v496, 12
        %v1099 = vpop.permute.xlu0 %1098
        %1100 = vrot.lane.b32.xlu0 %v497, 12
        %v1101 = vpop.permute.xlu0 %1100
        %1102 = vrot.lane.b32.xlu0 %v498, 12
        %v1103 = vpop.permute.xlu0 %1102
        %1104 = vrot.lane.b32.xlu0 %v499, 12
        %v1105 = vpop.permute.xlu0 %1104
        %1106 = vrot.lane.b32.xlu0 %v500, 12
        %v1107 = vpop.permute.xlu0 %1106
        %1108 = vrot.lane.b32.xlu0 %v501, 12
        %v1109 = vpop.permute.xlu0 %1108
        %1110 = vrot.lane.b32.xlu0 %v502, 12
        %v1111 = vpop.permute.xlu0 %1110
        %1176 = vrot.lane.b32.xlu0 %v503, 15
        %v1177 = vpop.permute.xlu0 %1176
        %1178 = vrot.lane.b32.xlu0 %v504, 15
        %v1179 = vpop.permute.xlu0 %1178
        %1180 = vrot.lane.b32.xlu0 %v505, 15
        %v1181 = vpop.permute.xlu0 %1180
        %1182 = vrot.lane.b32.xlu0 %v506, 15
        %v1183 = vpop.permute.xlu0 %1182
        %1184 = vrot.lane.b32.xlu0 %v507, 15
        %v1185 = vpop.permute.xlu0 %1184
        %1186 = vrot.lane.b32.xlu0 %v508, 15
        %v1187 = vpop.permute.xlu0 %1186
        %1188 = vrot.lane.b32.xlu0 %v509, 15
        %v1189 = vpop.permute.xlu0 %1188
        %1190 = vrot.lane.b32.xlu0 %v510, 15
        %v1191 = vpop.permute.xlu0 %1190
        %1192 = vrot.lane.b32.xlu0 %v511, 15
        %v1193 = vpop.permute.xlu0 %1192
        %1194 = vrot.lane.b32.xlu0 %v512, 15
        %v1195 = vpop.permute.xlu0 %1194
        %1196 = vrot.lane.b32.xlu0 %v513, 15
        %v1197 = vpop.permute.xlu0 %1196
        %1198 = vrot.lane.b32.xlu0 %v514, 15
        %v1199 = vpop.permute.xlu0 %1198
        %1200 = vrot.lane.b32.xlu0 %v515, 15
        %v1201 = vpop.permute.xlu0 %1200
        %1202 = vrot.lane.b32.xlu0 %v516, 15
        %v1203 = vpop.permute.xlu0 %1202
        %1204 = vrot.lane.b32.xlu0 %v517, 15
        %v1205 = vpop.permute.xlu0 %1204
        %1206 = vrot.lane.b32.xlu0 %v518, 15
        %v1207 = vpop.permute.xlu0 %1206
        %1208 = vrot.lane.b32.xlu0 %v519, 15
        %v1209 = vpop.permute.xlu0 %1208
        %1210 = vrot.lane.b32.xlu0 %v520, 15
        %v1211 = vpop.permute.xlu0 %1210
        %1212 = vrot.lane.b32.xlu0 %v521, 15
        %v1213 = vpop.permute.xlu0 %1212
        %1214 = vrot.lane.b32.xlu0 %v522, 15
        %v1215 = vpop.permute.xlu0 %1214
        %1216 = vrot.lane.b32.xlu0 %v523, 15
        %v1217 = vpop.permute.xlu0 %1216
        %1218 = vrot.lane.b32.xlu0 %v524, 15
        %v1219 = vpop.permute.xlu0 %1218
        %1220 = vrot.lane.b32.xlu0 %v525, 15
        %v1221 = vpop.permute.xlu0 %1220
        %1222 = vrot.lane.b32.xlu0 %v526, 15
        %v1223 = vpop.permute.xlu0 %1222
        %1224 = vrot.lane.b32.xlu0 %v527, 15
        %v1225 = vpop.permute.xlu0 %1224
        %1226 = vrot.lane.b32.xlu0 %v528, 15
        %v1227 = vpop.permute.xlu0 %1226
        %1228 = vrot.lane.b32.xlu0 %v529, 15
        %v1229 = vpop.permute.xlu0 %1228
        %1230 = vrot.lane.b32.xlu0 %v530, 15
        %v1231 = vpop.permute.xlu0 %1230
        %1232 = vrot.lane.b32.xlu0 %v531, 15
        %v1233 = vpop.permute.xlu0 %1232
        %1234 = vrot.lane.b32.xlu0 %v532, 15
        %v1235 = vpop.permute.xlu0 %1234
        %1236 = vrot.lane.b32.xlu0 %v533, 15
        %v1237 = vpop.permute.xlu0 %1236
        %1238 = vrot.lane.b32.xlu0 %v534, 15
        %v1239 = vpop.permute.xlu0 %1238
        %1304 = vrot.lane.b32.xlu0 %v536, 18
        %v1305 = vpop.permute.xlu0 %1304
        %1306 = vrot.lane.b32.xlu0 %v537, 18
        %v1307 = vpop.permute.xlu0 %1306
        %1308 = vrot.lane.b32.xlu0 %v538, 18
        %v1309 = vpop.permute.xlu0 %1308
        %1310 = vrot.lane.b32.xlu0 %v539, 18
        %v1311 = vpop.permute.xlu0 %1310
        %1312 = vrot.lane.b32.xlu0 %v540, 18
        %v1313 = vpop.permute.xlu0 %1312
        %1314 = vrot.lane.b32.xlu0 %v541, 18
        %v1315 = vpop.permute.xlu0 %1314
        %1316 = vrot.lane.b32.xlu0 %v542, 18
        %v1317 = vpop.permute.xlu0 %1316
        %1318 = vrot.lane.b32.xlu0 %v543, 18
        %v1319 = vpop.permute.xlu0 %1318
        %1320 = vrot.lane.b32.xlu0 %v544, 18
        %v1321 = vpop.permute.xlu0 %1320
        %1322 = vrot.lane.b32.xlu0 %v545, 18
        %v1323 = vpop.permute.xlu0 %1322
        %1324 = vrot.lane.b32.xlu0 %v546, 18
        %v1325 = vpop.permute.xlu0 %1324
        %1326 = vrot.lane.b32.xlu0 %v547, 18
        %v1327 = vpop.permute.xlu0 %1326
        %1328 = vrot.lane.b32.xlu0 %v548, 18
        %v1329 = vpop.permute.xlu0 %1328
        %1330 = vrot.lane.b32.xlu0 %v549, 18
        %v1331 = vpop.permute.xlu0 %1330
        %1332 = vrot.lane.b32.xlu0 %v550, 18
        %v1333 = vpop.permute.xlu0 %1332
        %1334 = vrot.lane.b32.xlu0 %v551, 18
        %v1335 = vpop.permute.xlu0 %1334
        %1336 = vrot.lane.b32.xlu0 %v552, 18
        %v1337 = vpop.permute.xlu0 %1336
        %1338 = vrot.lane.b32.xlu0 %v553, 18
        %v1339 = vpop.permute.xlu0 %1338
        %1340 = vrot.lane.b32.xlu0 %v554, 18
        %v1341 = vpop.permute.xlu0 %1340
        %1342 = vrot.lane.b32.xlu0 %v555, 18
        %v1343 = vpop.permute.xlu0 %1342
        %1344 = vrot.lane.b32.xlu0 %v556, 18
        %v1345 = vpop.permute.xlu0 %1344
        %1346 = vrot.lane.b32.xlu0 %v557, 18
        %v1347 = vpop.permute.xlu0 %1346
        %1348 = vrot.lane.b32.xlu0 %v558, 18
        %v1349 = vpop.permute.xlu0 %1348
        %1350 = vrot.lane.b32.xlu0 %v559, 18
        %v1351 = vpop.permute.xlu0 %1350
        %1352 = vrot.lane.b32.xlu0 %v560, 18
        %v1353 = vpop.permute.xlu0 %1352
        %1354 = vrot.lane.b32.xlu0 %v561, 18
        %v1355 = vpop.permute.xlu0 %1354
        %1356 = vrot.lane.b32.xlu0 %v562, 18
        %v1357 = vpop.permute.xlu0 %1356
        %1358 = vrot.lane.b32.xlu0 %v563, 18
        %v1359 = vpop.permute.xlu0 %1358
        %1360 = vrot.lane.b32.xlu0 %v564, 18
        %v1361 = vpop.permute.xlu0 %1360
        %1362 = vrot.lane.b32.xlu0 %v565, 18
        %v1363 = vpop.permute.xlu0 %1362
        %1364 = vrot.lane.b32.xlu0 %v566, 18
        %v1365 = vpop.permute.xlu0 %1364
        %1366 = vrot.lane.b32.xlu0 %v567, 18
        %v1367 = vpop.permute.xlu0 %1366
        %1432 = vrot.lane.b32.xlu0 %v568, 21
        %v1433 = vpop.permute.xlu0 %1432
        %1434 = vrot.lane.b32.xlu0 %v569, 21
        %v1435 = vpop.permute.xlu0 %1434
        %1436 = vrot.lane.b32.xlu0 %v570, 21
        %v1437 = vpop.permute.xlu0 %1436
        %1438 = vrot.lane.b32.xlu0 %v571, 21
        %v1439 = vpop.permute.xlu0 %1438
        %1440 = vrot.lane.b32.xlu0 %v572, 21
        %v1441 = vpop.permute.xlu0 %1440
        %1442 = vrot.lane.b32.xlu0 %v573, 21
        %v1443 = vpop.permute.xlu0 %1442
        %1444 = vrot.lane.b32.xlu0 %v574, 21
        %v1445 = vpop.permute.xlu0 %1444
        %1446 = vrot.lane.b32.xlu0 %v575, 21
        %v1447 = vpop.permute.xlu0 %1446
        %1448 = vrot.lane.b32.xlu0 %v576, 21
        %v1449 = vpop.permute.xlu0 %1448
        %1450 = vrot.lane.b32.xlu0 %v577, 21
        %v1451 = vpop.permute.xlu0 %1450
        %1452 = vrot.lane.b32.xlu0 %v578, 21
        %v1453 = vpop.permute.xlu0 %1452
        %1454 = vrot.lane.b32.xlu0 %v579, 21
        %v1455 = vpop.permute.xlu0 %1454
        %1456 = vrot.lane.b32.xlu0 %v580, 21
        %v1457 = vpop.permute.xlu0 %1456
        %1458 = vrot.lane.b32.xlu0 %v581, 21
        %v1459 = vpop.permute.xlu0 %1458
        %1460 = vrot.lane.b32.xlu0 %v582, 21
        %v1461 = vpop.permute.xlu0 %1460
        %1462 = vrot.lane.b32.xlu0 %v583, 21
        %v1463 = vpop.permute.xlu0 %1462
        %1464 = vrot.lane.b32.xlu0 %v584, 21
        %v1465 = vpop.permute.xlu0 %1464
        %1466 = vrot.lane.b32.xlu0 %v585, 21
        %v1467 = vpop.permute.xlu0 %1466
        %1468 = vrot.lane.b32.xlu0 %v586, 21
        %v1469 = vpop.permute.xlu0 %1468
        %1470 = vrot.lane.b32.xlu0 %v587, 21
        %v1471 = vpop.permute.xlu0 %1470
        %1472 = vrot.lane.b32.xlu0 %v588, 21
        %v1473 = vpop.permute.xlu0 %1472
        %1474 = vrot.lane.b32.xlu0 %v589, 21
        %v1475 = vpop.permute.xlu0 %1474
        %1476 = vrot.lane.b32.xlu0 %v590, 21
        %v1477 = vpop.permute.xlu0 %1476
        %1478 = vrot.lane.b32.xlu0 %v591, 21
        %v1479 = vpop.permute.xlu0 %1478
        %1480 = vrot.lane.b32.xlu0 %v592, 21
        %v1481 = vpop.permute.xlu0 %1480
        %1482 = vrot.lane.b32.xlu0 %v593, 21
        %v1483 = vpop.permute.xlu0 %1482
        %1484 = vrot.lane.b32.xlu0 %v594, 21
        %v1485 = vpop.permute.xlu0 %1484
        %1486 = vrot.lane.b32.xlu0 %v595, 21
        %v1487 = vpop.permute.xlu0 %1486
        %1488 = vrot.lane.b32.xlu0 %v596, 21
        %v1489 = vpop.permute.xlu0 %1488
        %1490 = vrot.lane.b32.xlu0 %v597, 21
        %v1491 = vpop.permute.xlu0 %1490
        %1492 = vrot.lane.b32.xlu0 %v598, 21
        %v1493 = vpop.permute.xlu0 %1492
        %1494 = vrot.lane.b32.xlu0 %v599, 21
        %v1495 = vpop.permute.xlu0 %1494
        %1560 = vrot.lane.b32.xlu0 %v600, 24
        %v1561 = vpop.permute.xlu0 %1560
        %1562 = vrot.lane.b32.xlu0 %v601, 24
        %v1563 = vpop.permute.xlu0 %1562
        %1564 = vrot.lane.b32.xlu0 %v602, 24
        %v1565 = vpop.permute.xlu0 %1564
        %1566 = vrot.lane.b32.xlu0 %v603, 24
        %v1567 = vpop.permute.xlu0 %1566
        %1568 = vrot.lane.b32.xlu0 %v604, 24
        %v1569 = vpop.permute.xlu0 %1568
        %1570 = vrot.lane.b32.xlu0 %v605, 24
        %v1571 = vpop.permute.xlu0 %1570
        %1572 = vrot.lane.b32.xlu0 %v606, 24
        %v1573 = vpop.permute.xlu0 %1572
        %1574 = vrot.lane.b32.xlu0 %v607, 24
        %v1575 = vpop.permute.xlu0 %1574
        %1576 = vrot.lane.b32.xlu0 %v608, 24
        %v1577 = vpop.permute.xlu0 %1576
        %1578 = vrot.lane.b32.xlu0 %v609, 24
        %v1579 = vpop.permute.xlu0 %1578
        %1580 = vrot.lane.b32.xlu0 %v610, 24
        %v1581 = vpop.permute.xlu0 %1580
        %1582 = vrot.lane.b32.xlu0 %v611, 24
        %v1583 = vpop.permute.xlu0 %1582
        %1584 = vrot.lane.b32.xlu0 %v612, 24
        %v1585 = vpop.permute.xlu0 %1584
        %1586 = vrot.lane.b32.xlu0 %v613, 24
        %v1587 = vpop.permute.xlu0 %1586
        %1588 = vrot.lane.b32.xlu0 %v614, 24
        %v1589 = vpop.permute.xlu0 %1588
        %1590 = vrot.lane.b32.xlu0 %v615, 24
        %v1591 = vpop.permute.xlu0 %1590
        %1592 = vrot.lane.b32.xlu0 %v616, 24
        %v1593 = vpop.permute.xlu0 %1592
        %1594 = vrot.lane.b32.xlu0 %v617, 24
        %v1595 = vpop.permute.xlu0 %1594
        %1596 = vrot.lane.b32.xlu0 %v618, 24
        %v1597 = vpop.permute.xlu0 %1596
        %1598 = vrot.lane.b32.xlu0 %v619, 24
        %v1599 = vpop.permute.xlu0 %1598
        %1600 = vrot.lane.b32.xlu0 %v620, 24
        %v1601 = vpop.permute.xlu0 %1600
        %1602 = vrot.lane.b32.xlu0 %v621, 24
        %v1603 = vpop.permute.xlu0 %1602
        %1604 = vrot.lane.b32.xlu0 %v622, 24
        %v1605 = vpop.permute.xlu0 %1604
        %1606 = vrot.lane.b32.xlu0 %v623, 24
        %v1607 = vpop.permute.xlu0 %1606
        %1608 = vrot.lane.b32.xlu0 %v624, 24
        %v1609 = vpop.permute.xlu0 %1608
        %1610 = vrot.lane.b32.xlu0 %v625, 24
        %v1611 = vpop.permute.xlu0 %1610
        %1612 = vrot.lane.b32.xlu0 %v626, 24
        %v1613 = vpop.permute.xlu0 %1612
        %1614 = vrot.lane.b32.xlu0 %v627, 24
        %v1615 = vpop.permute.xlu0 %1614
        %1616 = vrot.lane.b32.xlu0 %v628, 24
        %v1617 = vpop.permute.xlu0 %1616
        %1618 = vrot.lane.b32.xlu0 %v629, 24
        %v1619 = vpop.permute.xlu0 %1618
        %1620 = vrot.lane.b32.xlu0 %v630, 24
        %v1621 = vpop.permute.xlu0 %1620
        %1622 = vrot.lane.b32.xlu0 %v631, 24
        %v1623 = vpop.permute.xlu0 %1622
        %v1656 = vsel %vm222, %v343, %v665
        %v1657 = vsel %vm222, %v344, %v667
        %v1658 = vsel %vm222, %v345, %v669
        %v1659 = vsel %vm222, %v346, %v671
        %v1660 = vsel %vm222, %v347, %v673
        %v1661 = vsel %vm222, %v348, %v675
        %v1662 = vsel %vm222, %v349, %v677
        %v1663 = vsel %vm222, %v350, %v679
        %v1664 = vsel %vm222, %v351, %v681
        %v1665 = vsel %vm222, %v352, %v683
        %v1666 = vsel %vm222, %v353, %v685
        %v1667 = vsel %vm222, %v354, %v687
        %v1668 = vsel %vm222, %v355, %v689
        %v1669 = vsel %vm222, %v356, %v691
        %v1670 = vsel %vm222, %v357, %v693
        %v1671 = vsel %vm222, %v358, %v695
        %v1672 = vsel %vm222, %v359, %v697
        %v1673 = vsel %vm222, %v360, %v699
        %v1674 = vsel %vm222, %v361, %v701
        %v1675 = vsel %vm222, %v362, %v703
        %v1676 = vsel %vm222, %v363, %v705
        %v1677 = vsel %vm222, %v364, %v707
        %v1678 = vsel %vm222, %v365, %v709
        %v1679 = vsel %vm222, %v366, %v711
        %v1680 = vsel %vm222, %v367, %v713
        %v1681 = vsel %vm222, %v368, %v715
        %v1682 = vsel %vm222, %v369, %v717
        %v1683 = vsel %vm222, %v370, %v719
        %v1684 = vsel %vm222, %v371, %v721
        %v1685 = vsel %vm222, %v372, %v723
        %v1686 = vsel %vm222, %v373, %v725
        %v1687 = vsel %vm222, %v374, %v727
        %vm1688 = vcmask 48128
        %v1689 = vsel %vm1688, %v1656, %v793
        %v1690 = vsel %vm1688, %v1657, %v795
        %v1691 = vsel %vm1688, %v1658, %v797
        %v1692 = vsel %vm1688, %v1659, %v799
        %v1693 = vsel %vm1688, %v1660, %v801
        %v1694 = vsel %vm1688, %v1661, %v803
        %v1695 = vsel %vm1688, %v1662, %v805
        %v1696 = vsel %vm1688, %v1663, %v807
        %v1697 = vsel %vm1688, %v1664, %v809
        %v1698 = vsel %vm1688, %v1665, %v811
        %v1699 = vsel %vm1688, %v1666, %v813
        %v1700 = vsel %vm1688, %v1667, %v815
        %v1701 = vsel %vm1688, %v1668, %v817
        %v1702 = vsel %vm1688, %v1669, %v819
        %v1703 = vsel %vm1688, %v1670, %v821
        %v1704 = vsel %vm1688, %v1671, %v823
        %v1705 = vsel %vm1688, %v1672, %v825
        %v1706 = vsel %vm1688, %v1673, %v827
        %v1707 = vsel %vm1688, %v1674, %v829
        %v1708 = vsel %vm1688, %v1675, %v831
        %v1709 = vsel %vm1688, %v1676, %v833
        %v1710 = vsel %vm1688, %v1677, %v835
        %v1711 = vsel %vm1688, %v1678, %v837
        %v1712 = vsel %vm1688, %v1679, %v839
        %v1713 = vsel %vm1688, %v1680, %v841
        %v1714 = vsel %vm1688, %v1681, %v843
        %v1715 = vsel %vm1688, %v1682, %v845
        %v1716 = vsel %vm1688, %v1683, %v847
        %v1717 = vsel %vm1688, %v1684, %v849
        %v1718 = vsel %vm1688, %v1685, %v851
        %v1719 = vsel %vm1688, %v1686, %v853
        %v1720 = vsel %vm1688, %v1687, %v855
        %vm1721 = vcmask 72704
        %v1722 = vsel %vm1721, %v1689, %v921
        %v1723 = vsel %vm1721, %v1690, %v923
        %v1724 = vsel %vm1721, %v1691, %v925
        %v1725 = vsel %vm1721, %v1692, %v927
        %v1726 = vsel %vm1721, %v1693, %v929
        %v1727 = vsel %vm1721, %v1694, %v931
        %v1728 = vsel %vm1721, %v1695, %v933
        %v1729 = vsel %vm1721, %v1696, %v935
        %v1730 = vsel %vm1721, %v1697, %v937
        %v1731 = vsel %vm1721, %v1698, %v939
        %v1732 = vsel %vm1721, %v1699, %v941
        %v1733 = vsel %vm1721, %v1700, %v943
        %v1734 = vsel %vm1721, %v1701, %v945
        %v1735 = vsel %vm1721, %v1702, %v947
        %v1736 = vsel %vm1721, %v1703, %v949
        %v1737 = vsel %vm1721, %v1704, %v951
        %v1738 = vsel %vm1721, %v1705, %v953
        %v1739 = vsel %vm1721, %v1706, %v955
        %v1740 = vsel %vm1721, %v1707, %v957
        %v1741 = vsel %vm1721, %v1708, %v959
        %v1742 = vsel %vm1721, %v1709, %v961
        %v1743 = vsel %vm1721, %v1710, %v963
        %v1744 = vsel %vm1721, %v1711, %v965
        %v1745 = vsel %vm1721, %v1712, %v967
        %v1746 = vsel %vm1721, %v1713, %v969
        %v1747 = vsel %vm1721, %v1714, %v971
        %v1748 = vsel %vm1721, %v1715, %v973
        %v1749 = vsel %vm1721, %v1716, %v975
        %v1750 = vsel %vm1721, %v1717, %v977
        %v1751 = vsel %vm1721, %v1718, %v979
        %v1752 = vsel %vm1721, %v1719, %v981
        %v1753 = vsel %vm1721, %v1720, %v983
        %vm1754 = vcmask 97280
        %v1755 = vsel %vm1754, %v1722, %v1049
        %v1756 = vsel %vm1754, %v1723, %v1051
        %v1757 = vsel %vm1754, %v1724, %v1053
        %v1758 = vsel %vm1754, %v1725, %v1055
        %v1759 = vsel %vm1754, %v1726, %v1057
        %v1760 = vsel %vm1754, %v1727, %v1059
        %v1761 = vsel %vm1754, %v1728, %v1061
        %v1762 = vsel %vm1754, %v1729, %v1063
        %v1763 = vsel %vm1754, %v1730, %v1065
        %v1764 = vsel %vm1754, %v1731, %v1067
        %v1765 = vsel %vm1754, %v1732, %v1069
        %v1766 = vsel %vm1754, %v1733, %v1071
        %v1767 = vsel %vm1754, %v1734, %v1073
        %v1768 = vsel %vm1754, %v1735, %v1075
        %v1769 = vsel %vm1754, %v1736, %v1077
        %v1770 = vsel %vm1754, %v1737, %v1079
        %v1771 = vsel %vm1754, %v1738, %v1081
        %v1772 = vsel %vm1754, %v1739, %v1083
        %v1773 = vsel %vm1754, %v1740, %v1085
        %v1774 = vsel %vm1754, %v1741, %v1087
        %v1775 = vsel %vm1754, %v1742, %v1089
        %v1776 = vsel %vm1754, %v1743, %v1091
        %v1777 = vsel %vm1754, %v1744, %v1093
        %v1778 = vsel %vm1754, %v1745, %v1095
        %v1779 = vsel %vm1754, %v1746, %v1097
        %v1780 = vsel %vm1754, %v1747, %v1099
        %v1781 = vsel %vm1754, %v1748, %v1101
        %v1782 = vsel %vm1754, %v1749, %v1103
        %v1783 = vsel %vm1754, %v1750, %v1105
        %v1784 = vsel %vm1754, %v1751, %v1107
        %v1785 = vsel %vm1754, %v1752, %v1109
        %v1786 = vsel %vm1754, %v1753, %v1111
        %vm1787 = vcmask 121856
        %v1788 = vsel %vm1787, %v1755, %v1177
        %v1789 = vsel %vm1787, %v1756, %v1179
        %v1790 = vsel %vm1787, %v1757, %v1181
        %v1791 = vsel %vm1787, %v1758, %v1183
        %v1792 = vsel %vm1787, %v1759, %v1185
        %v1793 = vsel %vm1787, %v1760, %v1187
        %v1794 = vsel %vm1787, %v1761, %v1189
        %v1795 = vsel %vm1787, %v1762, %v1191
        %v1796 = vsel %vm1787, %v1763, %v1193
        %v1797 = vsel %vm1787, %v1764, %v1195
        %v1798 = vsel %vm1787, %v1765, %v1197
        %v1799 = vsel %vm1787, %v1766, %v1199
        %v1800 = vsel %vm1787, %v1767, %v1201
        %v1801 = vsel %vm1787, %v1768, %v1203
        %v1802 = vsel %vm1787, %v1769, %v1205
        %v1803 = vsel %vm1787, %v1770, %v1207
        %v1804 = vsel %vm1787, %v1771, %v1209
        %v1805 = vsel %vm1787, %v1772, %v1211
        %v1806 = vsel %vm1787, %v1773, %v1213
        %v1807 = vsel %vm1787, %v1774, %v1215
        %v1808 = vsel %vm1787, %v1775, %v1217
        %v1809 = vsel %vm1787, %v1776, %v1219
        %v1810 = vsel %vm1787, %v1777, %v1221
        %v1811 = vsel %vm1787, %v1778, %v1223
        %v1812 = vsel %vm1787, %v1779, %v1225
        %v1813 = vsel %vm1787, %v1780, %v1227
        %v1814 = vsel %vm1787, %v1781, %v1229
        %v1815 = vsel %vm1787, %v1782, %v1231
        %v1816 = vsel %vm1787, %v1783, %v1233
        %v1817 = vsel %vm1787, %v1784, %v1235
        %v1818 = vsel %vm1787, %v1785, %v1237
        %v1819 = vsel %vm1787, %v1786, %v1239
        %vm1820 = vcmask 146432
        %v1821 = vsel %vm1820, %v1788, %v1305
        %v1822 = vsel %vm1820, %v1789, %v1307
        %v1823 = vsel %vm1820, %v1790, %v1309
        %v1824 = vsel %vm1820, %v1791, %v1311
        %v1825 = vsel %vm1820, %v1792, %v1313
        %v1826 = vsel %vm1820, %v1793, %v1315
        %v1827 = vsel %vm1820, %v1794, %v1317
        %v1828 = vsel %vm1820, %v1795, %v1319
        %v1829 = vsel %vm1820, %v1796, %v1321
        %v1830 = vsel %vm1820, %v1797, %v1323
        %v1831 = vsel %vm1820, %v1798, %v1325
        %v1832 = vsel %vm1820, %v1799, %v1327
        %v1833 = vsel %vm1820, %v1800, %v1329
        %v1834 = vsel %vm1820, %v1801, %v1331
        %v1835 = vsel %vm1820, %v1802, %v1333
        %v1836 = vsel %vm1820, %v1803, %v1335
        %v1837 = vsel %vm1820, %v1804, %v1337
        %v1838 = vsel %vm1820, %v1805, %v1339
        %v1839 = vsel %vm1820, %v1806, %v1341
        %v1840 = vsel %vm1820, %v1807, %v1343
        %v1841 = vsel %vm1820, %v1808, %v1345
        %v1842 = vsel %vm1820, %v1809, %v1347
        %v1843 = vsel %vm1820, %v1810, %v1349
        %v1844 = vsel %vm1820, %v1811, %v1351
        %v1845 = vsel %vm1820, %v1812, %v1353
        %v1846 = vsel %vm1820, %v1813, %v1355
        %v1847 = vsel %vm1820, %v1814, %v1357
        %v1848 = vsel %vm1820, %v1815, %v1359
        %v1849 = vsel %vm1820, %v1816, %v1361
        %v1850 = vsel %vm1820, %v1817, %v1363
        %v1851 = vsel %vm1820, %v1818, %v1365
        %v1852 = vsel %vm1820, %v1819, %v1367
        %vm1853 = vcmask 171008
        %v1854 = vsel %vm1853, %v1821, %v1433
        %v1855 = vsel %vm1853, %v1822, %v1435
        %v1856 = vsel %vm1853, %v1823, %v1437
        %v1857 = vsel %vm1853, %v1824, %v1439
        %v1858 = vsel %vm1853, %v1825, %v1441
        %v1859 = vsel %vm1853, %v1826, %v1443
        %v1860 = vsel %vm1853, %v1827, %v1445
        %v1861 = vsel %vm1853, %v1828, %v1447
        %v1862 = vsel %vm1853, %v1829, %v1449
        %v1863 = vsel %vm1853, %v1830, %v1451
        %v1864 = vsel %vm1853, %v1831, %v1453
        %v1865 = vsel %vm1853, %v1832, %v1455
        %v1866 = vsel %vm1853, %v1833, %v1457
        %v1867 = vsel %vm1853, %v1834, %v1459
        %v1868 = vsel %vm1853, %v1835, %v1461
        %v1869 = vsel %vm1853, %v1836, %v1463
        %v1870 = vsel %vm1853, %v1837, %v1465
        %v1871 = vsel %vm1853, %v1838, %v1467
        %v1872 = vsel %vm1853, %v1839, %v1469
        %v1873 = vsel %vm1853, %v1840, %v1471
        %v1874 = vsel %vm1853, %v1841, %v1473
        %v1875 = vsel %vm1853, %v1842, %v1475
        %v1876 = vsel %vm1853, %v1843, %v1477
        %v1877 = vsel %vm1853, %v1844, %v1479
        %v1878 = vsel %vm1853, %v1845, %v1481
        %v1879 = vsel %vm1853, %v1846, %v1483
        %v1880 = vsel %vm1853, %v1847, %v1485
        %v1881 = vsel %vm1853, %v1848, %v1487
        %v1882 = vsel %vm1853, %v1849, %v1489
        %v1883 = vsel %vm1853, %v1850, %v1491
        %v1884 = vsel %vm1853, %v1851, %v1493
        %v1885 = vsel %vm1853, %v1852, %v1495
        %vm1886 = vcmask 195584
        %v1887 = vsel %vm1886, %v1854, %v1561
        %v1888 = vsel %vm1886, %v1855, %v1563
        %v1889 = vsel %vm1886, %v1856, %v1565
        %v1890 = vsel %vm1886, %v1857, %v1567
        %v1891 = vsel %vm1886, %v1858, %v1569
        %v1892 = vsel %vm1886, %v1859, %v1571
        %v1893 = vsel %vm1886, %v1860, %v1573
        %v1894 = vsel %vm1886, %v1861, %v1575
        %v1895 = vsel %vm1886, %v1862, %v1577
        %v1896 = vsel %vm1886, %v1863, %v1579
        %v1897 = vsel %vm1886, %v1864, %v1581
        %v1898 = vsel %vm1886, %v1865, %v1583
        %v1899 = vsel %vm1886, %v1866, %v1585
        %v1900 = vsel %vm1886, %v1867, %v1587
        %v1901 = vsel %vm1886, %v1868, %v1589
        %v1902 = vsel %vm1886, %v1869, %v1591
        %v1903 = vsel %vm1886, %v1870, %v1593
        %v1904 = vsel %vm1886, %v1871, %v1595
        %v1905 = vsel %vm1886, %v1872, %v1597
        %v1906 = vsel %vm1886, %v1873, %v1599
        %v1907 = vsel %vm1886, %v1874, %v1601
        %v1908 = vsel %vm1886, %v1875, %v1603
        %v1909 = vsel %vm1886, %v1876, %v1605
        %v1910 = vsel %vm1886, %v1877, %v1607
        %v1911 = vsel %vm1886, %v1878, %v1609
        %v1912 = vsel %vm1886, %v1879, %v1611
        %v1913 = vsel %vm1886, %v1880, %v1613
        %v1914 = vsel %vm1886, %v1881, %v1615
        %v1915 = vsel %vm1886, %v1882, %v1617
        %v1916 = vsel %vm1886, %v1883, %v1619
        %v1917 = vsel %vm1886, %v1884, %v1621
        %v1918 = vsel %vm1886, %v1885, %v1623
        %v1919 = vld [vmem:[%s1] sm:$0xff]
        %v1920 = vld [vmem:[%s1 + $0x8] sm:$0xff]
        %v1921 = vld [vmem:[%s1 + $0x10] sm:$0xff]
        %v1922 = vld [vmem:[%s1 + $0x18] sm:$0x7]
        %v1923 = vld [vmem:[%s2] sm:$0x1]
        %v1925 = vperm.slane %v1923, 0
        %vm1927 = vcmask 220160
        %v1929 = vsel %vm1927, %v1887, 0
        %v1932 = vsel %vm1927, %v1888, 0
        %v1935 = vsel %vm1927, %v1889, 0
        %v1938 = vsel %vm1927, %v1890, 0
        %v1941 = vsel %vm1927, %v1891, 0
        %v1944 = vsel %vm1927, %v1892, 0
        %v1947 = vsel %vm1927, %v1893, 0
        %v1950 = vsel %vm1927, %v1894, 0
        %v1953 = vsel %vm1927, %v1895, 0
        %v1956 = vsel %vm1927, %v1896, 0
        %v1959 = vsel %vm1927, %v1897, 0
        %v1962 = vsel %vm1927, %v1898, 0
        %v1965 = vsel %vm1927, %v1899, 0
        %v1968 = vsel %vm1927, %v1900, 0
        %v1971 = vsel %vm1927, %v1901, 0
        %v1974 = vsel %vm1927, %v1902, 0
        %v1977 = vsel %vm1927, %v1903, 0
        %v1980 = vsel %vm1927, %v1904, 0
        %v1983 = vsel %vm1927, %v1905, 0
        %v1986 = vsel %vm1927, %v1906, 0
        %v1989 = vsel %vm1927, %v1907, 0
        %v1992 = vsel %vm1927, %v1908, 0
        %v1995 = vsel %vm1927, %v1909, 0
        %v1998 = vsel %vm1927, %v1910, 0
        %v2001 = vsel %vm1927, %v1911, 0
        %v2004 = vsel %vm1927, %v1912, 0
        %v2007 = vsel %vm1927, %v1913, 0
        %v2010 = vsel %vm1927, %v1914, 0
        %v2013 = vsel %vm1927, %v1915, 0
        %v2016 = vsel %vm1927, %v1916, 0
        %v2019 = vsel %vm1927, %v1917, 0
        %v2022 = vsel %vm1927, %v1918, 0
        %vm2024 = vcmask 1042432
        %v2026 = vsel %vm2024, %v1922, 0
        %2028 = vmatpush.msra.mxu0 0.0
        %2029 = vmatpush.msra.mxu0 0.0
        %2030 = vmatpush.msra.mxu0 0.0
        %2031 = vmatpush.msra.mxu0 0.0
        %2032 = vmatpush.msra.mxu0 0.0
        %2033 = vmatpush.msra.mxu0 0.0
        %2034 = vmatpush.msra.mxu0 0.0
        %2035 = vmatpush.msra.mxu0 0.0
        %2036 = vmatpush.msra.mxu0 0.0
        %2037 = vmatpush.msra.mxu0 0.0
        %2038 = vmatpush.msra.mxu0 0.0
        %2039 = vmatpush.msra.mxu0 0.0
        %2040 = vmatpush.msra.mxu0 %v2026
        %2041 = vmatpush.msra.mxu0 %v1921
        %2042 = vmatpush.msra.mxu0 %v1920
        %2043 = vmatpush.msra.mxu0 %v1919
        %2044 = vmatmul.f32.gmra.mxu0 %v1929
        %v2045 = vpop.f32.mrf.mxu0
        %v2046 = vadd.f32 %v1925, %v2045
        %2047 = vmatmul.f32.gmra.mxu0 %v1932
        %v2048 = vpop.f32.mrf.mxu0
        %v2049 = vadd.f32 %v1925, %v2048
        %2050 = vmatmul.f32.gmra.mxu0 %v1935
        %v2051 = vpop.f32.mrf.mxu0
        %v2052 = vadd.f32 %v1925, %v2051
        %2053 = vmatmul.f32.gmra.mxu0 %v1938
        %v2054 = vpop.f32.mrf.mxu0
        %v2055 = vadd.f32 %v1925, %v2054
        %2056 = vmatmul.f32.gmra.mxu0 %v1941
        %v2057 = vpop.f32.mrf.mxu0
        %v2058 = vadd.f32 %v1925, %v2057
        %2059 = vmatmul.f32.gmra.mxu0 %v1944
        %v2060 = vpop.f32.mrf.mxu0
        %v2061 = vadd.f32 %v1925, %v2060
        %2062 = vmatmul.f32.gmra.mxu0 %v1947
        %v2063 = vpop.f32.mrf.mxu0
        %v2064 = vadd.f32 %v1925, %v2063
        %2065 = vmatmul.f32.gmra.mxu0 %v1950
        %v2066 = vpop.f32.mrf.mxu0
        %v2067 = vadd.f32 %v1925, %v2066
        %2068 = vmatmul.f32.gmra.mxu0 %v1953
        %v2069 = vpop.f32.mrf.mxu0
        %v2070 = vadd.f32 %v1925, %v2069
        %2071 = vmatmul.f32.gmra.mxu0 %v1956
        %v2072 = vpop.f32.mrf.mxu0
        %v2073 = vadd.f32 %v1925, %v2072
        %2074 = vmatmul.f32.gmra.mxu0 %v1959
        %v2075 = vpop.f32.mrf.mxu0
        %v2076 = vadd.f32 %v1925, %v2075
        %2077 = vmatmul.f32.gmra.mxu0 %v1962
        %v2078 = vpop.f32.mrf.mxu0
        %v2079 = vadd.f32 %v1925, %v2078
        %2080 = vmatmul.f32.gmra.mxu0 %v1965
        %v2081 = vpop.f32.mrf.mxu0
        %v2082 = vadd.f32 %v1925, %v2081
        %2083 = vmatmul.f32.gmra.mxu0 %v1968
        %v2084 = vpop.f32.mrf.mxu0
        %v2085 = vadd.f32 %v1925, %v2084
        %2086 = vmatmul.f32.gmra.mxu0 %v1971
        %v2087 = vpop.f32.mrf.mxu0
        %v2088 = vadd.f32 %v1925, %v2087
        %2089 = vmatmul.f32.gmra.mxu0 %v1974
        %v2090 = vpop.f32.mrf.mxu0
        %v2091 = vadd.f32 %v1925, %v2090
        %2092 = vmatmul.f32.gmra.mxu0 %v1977
        %v2093 = vpop.f32.mrf.mxu0
        %v2094 = vadd.f32 %v1925, %v2093
        %2095 = vmatmul.f32.gmra.mxu0 %v1980
        %v2096 = vpop.f32.mrf.mxu0
        %v2097 = vadd.f32 %v1925, %v2096
        %2098 = vmatmul.f32.gmra.mxu0 %v1983
        %v2099 = vpop.f32.mrf.mxu0
        %v2100 = vadd.f32 %v1925, %v2099
        %2101 = vmatmul.f32.gmra.mxu0 %v1986
        %v2102 = vpop.f32.mrf.mxu0
        %v2103 = vadd.f32 %v1925, %v2102
        %2104 = vmatmul.f32.gmra.mxu0 %v1989
        %v2105 = vpop.f32.mrf.mxu0
        %v2106 = vadd.f32 %v1925, %v2105
        %2107 = vmatmul.f32.gmra.mxu0 %v1992
        %v2108 = vpop.f32.mrf.mxu0
        %v2109 = vadd.f32 %v1925, %v2108
        %2110 = vmatmul.f32.gmra.mxu0 %v1995
        %v2111 = vpop.f32.mrf.mxu0
        %v2112 = vadd.f32 %v1925, %v2111
        %2113 = vmatmul.f32.gmra.mxu0 %v1998
        %v2114 = vpop.f32.mrf.mxu0
        %v2115 = vadd.f32 %v1925, %v2114
        %2116 = vmatmul.f32.gmra.mxu0 %v2001
        %v2117 = vpop.f32.mrf.mxu0
        %v2118 = vadd.f32 %v1925, %v2117
        %2119 = vmatmul.f32.gmra.mxu0 %v2004
        %v2120 = vpop.f32.mrf.mxu0
        %v2121 = vadd.f32 %v1925, %v2120
        %2122 = vmatmul.f32.gmra.mxu0 %v2007
        %v2123 = vpop.f32.mrf.mxu0
        %v2124 = vadd.f32 %v1925, %v2123
        %2125 = vmatmul.f32.gmra.mxu0 %v2010
        %v2126 = vpop.f32.mrf.mxu0
        %v2127 = vadd.f32 %v1925, %v2126
        %2128 = vmatmul.f32.gmra.mxu0 %v2013
        %v2129 = vpop.f32.mrf.mxu0
        %v2130 = vadd.f32 %v1925, %v2129
        %2131 = vmatmul.f32.gmra.mxu0 %v2016
        %v2132 = vpop.f32.mrf.mxu0
        %v2133 = vadd.f32 %v1925, %v2132
        %2134 = vmatmul.f32.gmra.mxu0 %v2019
        %v2135 = vpop.f32.mrf.mxu0
        %v2136 = vadd.f32 %v1925, %v2135
        %2137 = vmatmul.f32.gmra.mxu0 %v2022
        %v2138 = vpop.f32.mrf.mxu0
        %v2139 = vadd.f32 %v1925, %v2138
        %2140 = vdwg.mxu0
        %v2141 = vmax.f32 %v2046, 0.0
        %v2142 = vmax.f32 %v2049, 0.0
        %v2143 = vmax.f32 %v2052, 0.0
        %v2144 = vmax.f32 %v2055, 0.0
        %v2145 = vmax.f32 %v2058, 0.0
        %v2146 = vmax.f32 %v2061, 0.0
        %v2147 = vmax.f32 %v2064, 0.0
        %v2148 = vmax.f32 %v2067, 0.0
        %v2149 = vmax.f32 %v2070, 0.0
        %v2150 = vmax.f32 %v2073, 0.0
        %v2151 = vmax.f32 %v2076, 0.0
        %v2152 = vmax.f32 %v2079, 0.0
        %v2153 = vmax.f32 %v2082, 0.0
        %v2154 = vmax.f32 %v2085, 0.0
        %v2155 = vmax.f32 %v2088, 0.0
        %v2156 = vmax.f32 %v2091, 0.0
        %v2157 = vmax.f32 %v2094, 0.0
        %v2158 = vmax.f32 %v2097, 0.0
        %v2159 = vmax.f32 %v2100, 0.0
        %v2160 = vmax.f32 %v2103, 0.0
        %v2161 = vmax.f32 %v2106, 0.0
        %v2162 = vmax.f32 %v2109, 0.0
        %v2163 = vmax.f32 %v2112, 0.0
        %v2164 = vmax.f32 %v2115, 0.0
        %v2165 = vmax.f32 %v2118, 0.0
        %v2166 = vmax.f32 %v2121, 0.0
        %v2167 = vmax.f32 %v2124, 0.0
        %v2168 = vmax.f32 %v2127, 0.0
        %v2169 = vmax.f32 %v2130, 0.0
        %v2170 = vmax.f32 %v2133, 0.0
        %v2171 = vmax.f32 %v2136, 0.0
        %v2172 = vmax.f32 %v2139, 0.0
        %vm2173 = vcmask 64512
        %2174 = vst.msk [vmem:[#allocation3] sm:$0xff] %vm2173, 0.0
        %2175 = vst.msk [vmem:[#allocation3 + $0x8] sm:$0xff] %vm2173, 0.0
        %vm2176 = vcmask 58368
        %2177 = vst.msk [vmem:[#allocation3 + $0x10] sm:$0x3] %vm2176, 0.0
        %2178 = vst.msk [vmem:[#allocation3 + $0x18] sm:$0xff] %vm2173, 0.0
        %2179 = vst.msk [vmem:[#allocation3 + $0x20] sm:$0xff] %vm2173, 0.0
        %2180 = vst.msk [vmem:[#allocation3 + $0x28] sm:$0x3] %vm2176, 0.0
        %2181 = vst.msk [vmem:[#allocation3 + $0x30] sm:$0xff] %vm2173, 0.0
        %2182 = vst.msk [vmem:[#allocation3 + $0x38] sm:$0xff] %vm2173, 0.0
        %2183 = vst.msk [vmem:[#allocation3 + $0x40] sm:$0x3] %vm2176, 0.0
        %2184 = vst.msk [vmem:[#allocation3 + $0x48] sm:$0xff] %vm2173, 0.0
        %2185 = vst.msk [vmem:[#allocation3 + $0x50] sm:$0xff] %vm2173, 0.0
        %2186 = vst.msk [vmem:[#allocation3 + $0x58] sm:$0x3] %vm2176, 0.0
        %2187 = vst.msk [vmem:[#allocation3 + $0x60] sm:$0xff] %vm2173, 0.0
        %2188 = vst.msk [vmem:[#allocation3 + $0x68] sm:$0xff] %vm2173, 0.0
        %2189 = vst.msk [vmem:[#allocation3 + $0x70] sm:$0x3] %vm2176, 0.0
        %2190 = vst.msk [vmem:[#allocation3 + $0x78] sm:$0xff] %vm2173, 0.0
        %2191 = vst.msk [vmem:[#allocation3 + $0x80] sm:$0xff] %vm2173, 0.0
        %2192 = vst.msk [vmem:[#allocation3 + $0x88] sm:$0x3] %vm2176, 0.0
        %2193 = vst.msk [vmem:[#allocation3 + $0x90] sm:$0xff] %vm2173, 0.0
        %2194 = vst.msk [vmem:[#allocation3 + $0x98] sm:$0xff] %vm2173, 0.0
        %2195 = vst.msk [vmem:[#allocation3 + $0xa0] sm:$0x3] %vm2176, 0.0
        %2196 = vst.msk [vmem:[#allocation3 + $0xa8] sm:$0xff] %vm2173, 0.0
        %2197 = vst.msk [vmem:[#allocation3 + $0xb0] sm:$0xff] %vm2173, 0.0
        %2198 = vst.msk [vmem:[#allocation3 + $0xb8] sm:$0x3] %vm2176, 0.0
        %2199 = vst.msk [vmem:[#allocation3 + $0xc0] sm:$0xff] %vm2173, 0.0
        %2200 = vst.msk [vmem:[#allocation3 + $0xc8] sm:$0xff] %vm2173, 0.0
        %2201 = vst.msk [vmem:[#allocation3 + $0xd0] sm:$0x3] %vm2176, 0.0
        %2202 = vst.msk [vmem:[#allocation3 + $0xd8] sm:$0xff] %vm2173, 0.0
        %2203 = vst.msk [vmem:[#allocation3 + $0xe0] sm:$0xff] %vm2173, 0.0
        %2204 = vst.msk [vmem:[#allocation3 + $0xe8] sm:$0x3] %vm2176, 0.0
        %2205 = vst.msk [vmem:[#allocation3 + $0xf0] sm:$0xff] %vm2173, 0.0
        %2206 = vst.msk [vmem:[#allocation3 + $0xf8] sm:$0xff] %vm2173, 0.0
        %2207 = vst.msk [vmem:[#allocation3 + $0x100] sm:$0x3] %vm2176, 0.0
        %2208 = vst.msk [vmem:[#allocation3 + $0x108] sm:$0xff] %vm2173, 0.0
        %2209 = vst.msk [vmem:[#allocation3 + $0x110] sm:$0xff] %vm2173, 0.0
        %2210 = vst.msk [vmem:[#allocation3 + $0x118] sm:$0x3] %vm2176, 0.0
        %2211 = vst.msk [vmem:[#allocation3 + $0x120] sm:$0xff] %vm2173, 0.0
        %2212 = vst.msk [vmem:[#allocation3 + $0x128] sm:$0xff] %vm2173, 0.0
        %2213 = vst.msk [vmem:[#allocation3 + $0x130] sm:$0x3] %vm2176, 0.0
        %2214 = vst.msk [vmem:[#allocation3 + $0x138] sm:$0xff] %vm2173, 0.0
        %2215 = vst.msk [vmem:[#allocation3 + $0x140] sm:$0xff] %vm2173, 0.0
        %2216 = vst.msk [vmem:[#allocation3 + $0x148] sm:$0x3] %vm2176, 0.0
        %2217 = vst.msk [vmem:[#allocation3 + $0x150] sm:$0xff] %vm2173, 0.0
        %2218 = vst.msk [vmem:[#allocation3 + $0x158] sm:$0xff] %vm2173, 0.0
        %2219 = vst.msk [vmem:[#allocation3 + $0x160] sm:$0x3] %vm2176, 0.0
        %2220 = vst.msk [vmem:[#allocation3 + $0x168] sm:$0xff] %vm2173, 0.0
        %2221 = vst.msk [vmem:[#allocation3 + $0x170] sm:$0xff] %vm2173, 0.0
        %2222 = vst.msk [vmem:[#allocation3 + $0x178] sm:$0x3] %vm2176, 0.0
        %2223 = vst.msk [vmem:[#allocation3 + $0x180] sm:$0xff] %vm2173, 0.0
        %2224 = vst.msk [vmem:[#allocation3 + $0x188] sm:$0xff] %vm2173, 0.0
        %2225 = vst.msk [vmem:[#allocation3 + $0x190] sm:$0x3] %vm2176, 0.0
        %2226 = vst.msk [vmem:[#allocation3 + $0x198] sm:$0xff] %vm2173, 0.0
        %2227 = vst.msk [vmem:[#allocation3 + $0x1a0] sm:$0xff] %vm2173, 0.0
        %2228 = vst.msk [vmem:[#allocation3 + $0x1a8] sm:$0x3] %vm2176, 0.0
        %s2229 = scalar_lea.vmem [#allocation3], 24
        %2230 = vst.msk [vmem:[%s2229 + $0x1] sm:$0xff] %vm2173, %v2141
        %2231 = vst.msk [vmem:[%s2229 + $0x9] sm:$0xff] %vm2173, %v2142
        %2232 = vst.msk [vmem:[%s2229 + $0x19] sm:$0xff] %vm2173, %v2143
        %2233 = vst.msk [vmem:[%s2229 + $0x21] sm:$0xff] %vm2173, %v2144
        %2234 = vst.msk [vmem:[%s2229 + $0x31] sm:$0xff] %vm2173, %v2145
        %2235 = vst.msk [vmem:[%s2229 + $0x39] sm:$0xff] %vm2173, %v2146
        %2236 = vst.msk [vmem:[%s2229 + $0x49] sm:$0xff] %vm2173, %v2147
        %2237 = vst.msk [vmem:[%s2229 + $0x51] sm:$0xff] %vm2173, %v2148
        %2238 = vst.msk [vmem:[%s2229 + $0x61] sm:$0xff] %vm2173, %v2149
        %2239 = vst.msk [vmem:[%s2229 + $0x69] sm:$0xff] %vm2173, %v2150
        %2240 = vst.msk [vmem:[%s2229 + $0x79] sm:$0xff] %vm2173, %v2151
        %2241 = vst.msk [vmem:[%s2229 + $0x81] sm:$0xff] %vm2173, %v2152
        %2242 = vst.msk [vmem:[%s2229 + $0x91] sm:$0xff] %vm2173, %v2153
        %2243 = vst.msk [vmem:[%s2229 + $0x99] sm:$0xff] %vm2173, %v2154
        %2244 = vst.msk [vmem:[%s2229 + $0xa9] sm:$0xff] %vm2173, %v2155
        %2245 = vst.msk [vmem:[%s2229 + $0xb1] sm:$0xff] %vm2173, %v2156
        %2246 = vst.msk [vmem:[%s2229 + $0xc1] sm:$0xff] %vm2173, %v2157
        %2247 = vst.msk [vmem:[%s2229 + $0xc9] sm:$0xff] %vm2173, %v2158
        %2248 = vst.msk [vmem:[%s2229 + $0xd9] sm:$0xff] %vm2173, %v2159
        %2249 = vst.msk [vmem:[%s2229 + $0xe1] sm:$0xff] %vm2173, %v2160
        %2250 = vst.msk [vmem:[%s2229 + $0xf1] sm:$0xff] %vm2173, %v2161
        %2251 = vst.msk [vmem:[%s2229 + $0xf9] sm:$0xff] %vm2173, %v2162
        %2252 = vst.msk [vmem:[%s2229 + $0x109] sm:$0xff] %vm2173, %v2163
        %2253 = vst.msk [vmem:[%s2229 + $0x111] sm:$0xff] %vm2173, %v2164
        %2254 = vst.msk [vmem:[%s2229 + $0x121] sm:$0xff] %vm2173, %v2165
        %2255 = vst.msk [vmem:[%s2229 + $0x129] sm:$0xff] %vm2173, %v2166
        %2256 = vst.msk [vmem:[%s2229 + $0x139] sm:$0xff] %vm2173, %v2167
        %2257 = vst.msk [vmem:[%s2229 + $0x141] sm:$0xff] %vm2173, %v2168
        %2258 = vst.msk [vmem:[%s2229 + $0x151] sm:$0xff] %vm2173, %v2169
        %2259 = vst.msk [vmem:[%s2229 + $0x159] sm:$0xff] %vm2173, %v2170
        %2260 = vst.msk [vmem:[%s2229 + $0x169] sm:$0xff] %vm2173, %v2171
        %2261 = vst.msk [vmem:[%s2229 + $0x171] sm:$0xff] %vm2173, %v2172
        %v2262 = vld [vmem:[#allocation3] sm:$0xff]
        %v2263 = vld [vmem:[#allocation3 + $0x8] sm:$0xff]
        %v2264 = vld [vmem:[#allocation3 + $0x18] sm:$0xff]
        %v2265 = vld [vmem:[#allocation3 + $0x20] sm:$0xff]
        %v2266 = vld [vmem:[#allocation3 + $0x30] sm:$0xff]
        %v2267 = vld [vmem:[#allocation3 + $0x38] sm:$0xff]
        %v2268 = vld [vmem:[#allocation3 + $0x48] sm:$0xff]
        %v2269 = vld [vmem:[#allocation3 + $0x50] sm:$0xff]
        %v2270 = vld [vmem:[#allocation3 + $0x60] sm:$0xff]
        %v2271 = vld [vmem:[#allocation3 + $0x68] sm:$0xff]
        %v2272 = vld [vmem:[#allocation3 + $0x78] sm:$0xff]
        %v2273 = vld [vmem:[#allocation3 + $0x80] sm:$0xff]
        %v2274 = vld [vmem:[#allocation3 + $0x90] sm:$0xff]
        %v2275 = vld [vmem:[#allocation3 + $0x98] sm:$0xff]
        %v2276 = vld [vmem:[#allocation3 + $0xa8] sm:$0xff]
        %v2277 = vld [vmem:[#allocation3 + $0xb0] sm:$0xff]
        %v2278 = vld [vmem:[#allocation3 + $0xc0] sm:$0xff]
        %v2279 = vld [vmem:[#allocation3 + $0xc8] sm:$0xff]
        %v2280 = vld [vmem:[#allocation3 + $0xd8] sm:$0xff]
        %v2281 = vld [vmem:[#allocation3 + $0xe0] sm:$0xff]
        %v2282 = vld [vmem:[#allocation3 + $0xf0] sm:$0xff]
        %v2283 = vld [vmem:[#allocation3 + $0xf8] sm:$0xff]
        %v2284 = vld [vmem:[#allocation3 + $0x108] sm:$0xff]
        %v2285 = vld [vmem:[#allocation3 + $0x110] sm:$0xff]
        %v2286 = vld [vmem:[#allocation3 + $0x120] sm:$0xff]
        %v2287 = vld [vmem:[#allocation3 + $0x128] sm:$0xff]
        %v2288 = vld [vmem:[#allocation3 + $0x138] sm:$0xff]
        %v2289 = vld [vmem:[#allocation3 + $0x140] sm:$0xff]
        %v2290 = vld [vmem:[#allocation3 + $0x150] sm:$0xff]
        %v2291 = vld [vmem:[#allocation3 + $0x158] sm:$0xff]
        %v2292 = vld [vmem:[#allocation3 + $0x168] sm:$0xff]
        %v2293 = vld [vmem:[#allocation3 + $0x170] sm:$0xff]
        %v2294 = vld [vmem:[#allocation3 + $0x1] sm:$0xff]
        %v2295 = vld [vmem:[#allocation3 + $0x9] sm:$0xff]
        %v2296 = vld [vmem:[#allocation3 + $0x19] sm:$0xff]
        %v2297 = vld [vmem:[#allocation3 + $0x21] sm:$0xff]
        %v2298 = vld [vmem:[#allocation3 + $0x31] sm:$0xff]
        %v2299 = vld [vmem:[#allocation3 + $0x39] sm:$0xff]
        %v2300 = vld [vmem:[#allocation3 + $0x49] sm:$0xff]
        %v2301 = vld [vmem:[#allocation3 + $0x51] sm:$0xff]
        %v2302 = vld [vmem:[#allocation3 + $0x61] sm:$0xff]
        %v2303 = vld [vmem:[#allocation3 + $0x69] sm:$0xff]
        %v2304 = vld [vmem:[#allocation3 + $0x79] sm:$0xff]
        %v2305 = vld [vmem:[#allocation3 + $0x81] sm:$0xff]
        %v2306 = vld [vmem:[#allocation3 + $0x91] sm:$0xff]
        %v2307 = vld [vmem:[#allocation3 + $0x99] sm:$0xff]
        %v2308 = vld [vmem:[#allocation3 + $0xa9] sm:$0xff]
        %v2309 = vld [vmem:[#allocation3 + $0xb1] sm:$0xff]
        %v2310 = vld [vmem:[#allocation3 + $0xc1] sm:$0xff]
        %v2311 = vld [vmem:[#allocation3 + $0xc9] sm:$0xff]
        %v2312 = vld [vmem:[#allocation3 + $0xd9] sm:$0xff]
        %v2313 = vld [vmem:[#allocation3 + $0xe1] sm:$0xff]
        %v2314 = vld [vmem:[#allocation3 + $0xf1] sm:$0xff]
        %v2315 = vld [vmem:[#allocation3 + $0xf9] sm:$0xff]
        %v2316 = vld [vmem:[#allocation3 + $0x109] sm:$0xff]
        %v2317 = vld [vmem:[#allocation3 + $0x111] sm:$0xff]
        %v2318 = vld [vmem:[#allocation3 + $0x121] sm:$0xff]
        %v2319 = vld [vmem:[#allocation3 + $0x129] sm:$0xff]
        %v2320 = vld [vmem:[#allocation3 + $0x139] sm:$0xff]
        %v2321 = vld [vmem:[#allocation3 + $0x141] sm:$0xff]
        %v2322 = vld [vmem:[#allocation3 + $0x151] sm:$0xff]
        %v2323 = vld [vmem:[#allocation3 + $0x159] sm:$0xff]
        %v2324 = vld [vmem:[#allocation3 + $0x169] sm:$0xff]
        %v2325 = vld [vmem:[#allocation3 + $0x171] sm:$0xff]
        %v2326 = vld [vmem:[#allocation3 + $0x2] sm:$0xff]
        %v2327 = vld [vmem:[#allocation3 + $0xa] sm:$0xff]
        %v2328 = vld [vmem:[#allocation3 + $0x1a] sm:$0xff]
        %v2329 = vld [vmem:[#allocation3 + $0x22] sm:$0xff]
        %v2330 = vld [vmem:[#allocation3 + $0x32] sm:$0xff]
        %v2331 = vld [vmem:[#allocation3 + $0x3a] sm:$0xff]
        %v2332 = vld [vmem:[#allocation3 + $0x4a] sm:$0xff]
        %v2333 = vld [vmem:[#allocation3 + $0x52] sm:$0xff]
        %v2334 = vld [vmem:[#allocation3 + $0x62] sm:$0xff]
        %v2335 = vld [vmem:[#allocation3 + $0x6a] sm:$0xff]
        %v2336 = vld [vmem:[#allocation3 + $0x7a] sm:$0xff]
        %v2337 = vld [vmem:[#allocation3 + $0x82] sm:$0xff]
        %v2338 = vld [vmem:[#allocation3 + $0x92] sm:$0xff]
        %v2339 = vld [vmem:[#allocation3 + $0x9a] sm:$0xff]
        %v2340 = vld [vmem:[#allocation3 + $0xaa] sm:$0xff]
        %v2341 = vld [vmem:[#allocation3 + $0xb2] sm:$0xff]
        %v2342 = vld [vmem:[#allocation3 + $0xc2] sm:$0xff]
        %v2343 = vld [vmem:[#allocation3 + $0xca] sm:$0xff]
        %v2344 = vld [vmem:[#allocation3 + $0xda] sm:$0xff]
        %v2345 = vld [vmem:[#allocation3 + $0xe2] sm:$0xff]
        %v2346 = vld [vmem:[#allocation3 + $0xf2] sm:$0xff]
        %v2347 = vld [vmem:[#allocation3 + $0xfa] sm:$0xff]
        %v2348 = vld [vmem:[#allocation3 + $0x10a] sm:$0xff]
        %v2349 = vld [vmem:[#allocation3 + $0x112] sm:$0xff]
        %v2350 = vld [vmem:[#allocation3 + $0x122] sm:$0xff]
        %v2351 = vld [vmem:[#allocation3 + $0x12a] sm:$0xff]
        %v2352 = vld [vmem:[#allocation3 + $0x13a] sm:$0xff]
        %v2353 = vld [vmem:[#allocation3 + $0x142] sm:$0xff]
        %v2354 = vld [vmem:[#allocation3 + $0x152] sm:$0xff]
        %v2355 = vld [vmem:[#allocation3 + $0x15a] sm:$0xff]
        %v2356 = vld [vmem:[#allocation3 + $0x16a] sm:$0xff]
        %v2357 = vld [vmem:[#allocation3 + $0x172] sm:$0xff]
        %v2358 = vld [vmem:[%s2229] sm:$0xff]
        %v2359 = vld [vmem:[%s2229 + $0x8] sm:$0xff]
        %v2360 = vld [vmem:[%s2229 + $0x18] sm:$0xff]
        %v2361 = vld [vmem:[%s2229 + $0x20] sm:$0xff]
        %v2362 = vld [vmem:[%s2229 + $0x30] sm:$0xff]
        %v2363 = vld [vmem:[%s2229 + $0x38] sm:$0xff]
        %v2364 = vld [vmem:[%s2229 + $0x48] sm:$0xff]
        %v2365 = vld [vmem:[%s2229 + $0x50] sm:$0xff]
        %v2366 = vld [vmem:[%s2229 + $0x60] sm:$0xff]
        %v2367 = vld [vmem:[%s2229 + $0x68] sm:$0xff]
        %v2368 = vld [vmem:[%s2229 + $0x78] sm:$0xff]
        %v2369 = vld [vmem:[%s2229 + $0x80] sm:$0xff]
        %v2370 = vld [vmem:[%s2229 + $0x90] sm:$0xff]
        %v2371 = vld [vmem:[%s2229 + $0x98] sm:$0xff]
        %v2372 = vld [vmem:[%s2229 + $0xa8] sm:$0xff]
        %v2373 = vld [vmem:[%s2229 + $0xb0] sm:$0xff]
        %v2374 = vld [vmem:[%s2229 + $0xc0] sm:$0xff]
        %v2375 = vld [vmem:[%s2229 + $0xc8] sm:$0xff]
        %v2376 = vld [vmem:[%s2229 + $0xd8] sm:$0xff]
        %v2377 = vld [vmem:[%s2229 + $0xe0] sm:$0xff]
        %v2378 = vld [vmem:[%s2229 + $0xf0] sm:$0xff]
        %v2379 = vld [vmem:[%s2229 + $0xf8] sm:$0xff]
        %v2380 = vld [vmem:[%s2229 + $0x108] sm:$0xff]
        %v2381 = vld [vmem:[%s2229 + $0x110] sm:$0xff]
        %v2382 = vld [vmem:[%s2229 + $0x120] sm:$0xff]
        %v2383 = vld [vmem:[%s2229 + $0x128] sm:$0xff]
        %v2384 = vld [vmem:[%s2229 + $0x138] sm:$0xff]
        %v2385 = vld [vmem:[%s2229 + $0x140] sm:$0xff]
        %v2386 = vld [vmem:[%s2229 + $0x150] sm:$0xff]
        %v2387 = vld [vmem:[%s2229 + $0x158] sm:$0xff]
        %v2388 = vld [vmem:[%s2229 + $0x168] sm:$0xff]
        %v2389 = vld [vmem:[%s2229 + $0x170] sm:$0xff]
        %v2390 = vld [vmem:[%s2229 + $0x1] sm:$0xff]
        %v2391 = vld [vmem:[%s2229 + $0x9] sm:$0xff]
        %v2392 = vld [vmem:[%s2229 + $0x19] sm:$0xff]
        %v2393 = vld [vmem:[%s2229 + $0x21] sm:$0xff]
        %v2394 = vld [vmem:[%s2229 + $0x31] sm:$0xff]
        %v2395 = vld [vmem:[%s2229 + $0x39] sm:$0xff]
        %v2396 = vld [vmem:[%s2229 + $0x49] sm:$0xff]
        %v2397 = vld [vmem:[%s2229 + $0x51] sm:$0xff]
        %v2398 = vld [vmem:[%s2229 + $0x61] sm:$0xff]
        %v2399 = vld [vmem:[%s2229 + $0x69] sm:$0xff]
        %v2400 = vld [vmem:[%s2229 + $0x79] sm:$0xff]
        %v2401 = vld [vmem:[%s2229 + $0x81] sm:$0xff]
        %v2402 = vld [vmem:[%s2229 + $0x91] sm:$0xff]
        %v2403 = vld [vmem:[%s2229 + $0x99] sm:$0xff]
        %v2404 = vld [vmem:[%s2229 + $0xa9] sm:$0xff]
        %v2405 = vld [vmem:[%s2229 + $0xb1] sm:$0xff]
        %v2406 = vld [vmem:[%s2229 + $0xc1] sm:$0xff]
        %v2407 = vld [vmem:[%s2229 + $0xc9] sm:$0xff]
        %v2408 = vld [vmem:[%s2229 + $0xd9] sm:$0xff]
        %v2409 = vld [vmem:[%s2229 + $0xe1] sm:$0xff]
        %v2410 = vld [vmem:[%s2229 + $0xf1] sm:$0xff]
        %v2411 = vld [vmem:[%s2229 + $0xf9] sm:$0xff]
        %v2412 = vld [vmem:[%s2229 + $0x109] sm:$0xff]
        %v2413 = vld [vmem:[%s2229 + $0x111] sm:$0xff]
        %v2414 = vld [vmem:[%s2229 + $0x121] sm:$0xff]
        %v2415 = vld [vmem:[%s2229 + $0x129] sm:$0xff]
        %v2416 = vld [vmem:[%s2229 + $0x139] sm:$0xff]
        %v2417 = vld [vmem:[%s2229 + $0x141] sm:$0xff]
        %v2418 = vld [vmem:[%s2229 + $0x151] sm:$0xff]
        %v2419 = vld [vmem:[%s2229 + $0x159] sm:$0xff]
        %v2420 = vld [vmem:[%s2229 + $0x169] sm:$0xff]
        %v2421 = vld [vmem:[%s2229 + $0x171] sm:$0xff]
        %v2422 = vld [vmem:[%s2229 + $0x2] sm:$0xff]
        %v2423 = vld [vmem:[%s2229 + $0xa] sm:$0xff]
        %v2424 = vld [vmem:[%s2229 + $0x1a] sm:$0xff]
        %v2425 = vld [vmem:[%s2229 + $0x22] sm:$0xff]
        %v2426 = vld [vmem:[%s2229 + $0x32] sm:$0xff]
        %v2427 = vld [vmem:[%s2229 + $0x3a] sm:$0xff]
        %v2428 = vld [vmem:[%s2229 + $0x4a] sm:$0xff]
        %v2429 = vld [vmem:[%s2229 + $0x52] sm:$0xff]
        %v2430 = vld [vmem:[%s2229 + $0x62] sm:$0xff]
        %v2431 = vld [vmem:[%s2229 + $0x6a] sm:$0xff]
        %v2432 = vld [vmem:[%s2229 + $0x7a] sm:$0xff]
        %v2433 = vld [vmem:[%s2229 + $0x82] sm:$0xff]
        %v2434 = vld [vmem:[%s2229 + $0x92] sm:$0xff]
        %v2435 = vld [vmem:[%s2229 + $0x9a] sm:$0xff]
        %v2436 = vld [vmem:[%s2229 + $0xaa] sm:$0xff]
        %v2437 = vld [vmem:[%s2229 + $0xb2] sm:$0xff]
        %v2438 = vld [vmem:[%s2229 + $0xc2] sm:$0xff]
        %v2439 = vld [vmem:[%s2229 + $0xca] sm:$0xff]
        %v2440 = vld [vmem:[%s2229 + $0xda] sm:$0xff]
        %v2441 = vld [vmem:[%s2229 + $0xe2] sm:$0xff]
        %v2442 = vld [vmem:[%s2229 + $0xf2] sm:$0xff]
        %v2443 = vld [vmem:[%s2229 + $0xfa] sm:$0xff]
        %v2444 = vld [vmem:[%s2229 + $0x10a] sm:$0xff]
        %v2445 = vld [vmem:[%s2229 + $0x112] sm:$0xff]
        %v2446 = vld [vmem:[%s2229 + $0x122] sm:$0xff]
        %v2447 = vld [vmem:[%s2229 + $0x12a] sm:$0xff]
        %v2448 = vld [vmem:[%s2229 + $0x13a] sm:$0xff]
        %v2449 = vld [vmem:[%s2229 + $0x142] sm:$0xff]
        %v2450 = vld [vmem:[%s2229 + $0x152] sm:$0xff]
        %v2451 = vld [vmem:[%s2229 + $0x15a] sm:$0xff]
        %v2452 = vld [vmem:[%s2229 + $0x16a] sm:$0xff]
        %v2453 = vld [vmem:[%s2229 + $0x172] sm:$0xff]
        %s2454 = scalar_lea.vmem [#allocation3], 48
        %v2455 = vld [vmem:[%s2454] sm:$0xff]
        %v2456 = vld [vmem:[%s2454 + $0x8] sm:$0xff]
        %v2457 = vld [vmem:[%s2454 + $0x18] sm:$0xff]
        %v2458 = vld [vmem:[%s2454 + $0x20] sm:$0xff]
        %v2459 = vld [vmem:[%s2454 + $0x30] sm:$0xff]
        %v2460 = vld [vmem:[%s2454 + $0x38] sm:$0xff]
        %v2461 = vld [vmem:[%s2454 + $0x48] sm:$0xff]
        %v2462 = vld [vmem:[%s2454 + $0x50] sm:$0xff]
        %v2463 = vld [vmem:[%s2454 + $0x60] sm:$0xff]
        %v2464 = vld [vmem:[%s2454 + $0x68] sm:$0xff]
        %v2465 = vld [vmem:[%s2454 + $0x78] sm:$0xff]
        %v2466 = vld [vmem:[%s2454 + $0x80] sm:$0xff]
        %v2467 = vld [vmem:[%s2454 + $0x90] sm:$0xff]
        %v2468 = vld [vmem:[%s2454 + $0x98] sm:$0xff]
        %v2469 = vld [vmem:[%s2454 + $0xa8] sm:$0xff]
        %v2470 = vld [vmem:[%s2454 + $0xb0] sm:$0xff]
        %v2471 = vld [vmem:[%s2454 + $0xc0] sm:$0xff]
        %v2472 = vld [vmem:[%s2454 + $0xc8] sm:$0xff]
        %v2473 = vld [vmem:[%s2454 + $0xd8] sm:$0xff]
        %v2474 = vld [vmem:[%s2454 + $0xe0] sm:$0xff]
        %v2475 = vld [vmem:[%s2454 + $0xf0] sm:$0xff]
        %v2476 = vld [vmem:[%s2454 + $0xf8] sm:$0xff]
        %v2477 = vld [vmem:[%s2454 + $0x108] sm:$0xff]
        %v2478 = vld [vmem:[%s2454 + $0x110] sm:$0xff]
        %v2479 = vld [vmem:[%s2454 + $0x120] sm:$0xff]
        %v2480 = vld [vmem:[%s2454 + $0x128] sm:$0xff]
        %v2481 = vld [vmem:[%s2454 + $0x138] sm:$0xff]
        %v2482 = vld [vmem:[%s2454 + $0x140] sm:$0xff]
        %v2483 = vld [vmem:[%s2454 + $0x150] sm:$0xff]
        %v2484 = vld [vmem:[%s2454 + $0x158] sm:$0xff]
        %v2485 = vld [vmem:[%s2454 + $0x168] sm:$0xff]
        %v2486 = vld [vmem:[%s2454 + $0x170] sm:$0xff]
        %v2487 = vld [vmem:[%s2454 + $0x1] sm:$0xff]
        %v2488 = vld [vmem:[%s2454 + $0x9] sm:$0xff]
        %v2489 = vld [vmem:[%s2454 + $0x19] sm:$0xff]
        %v2490 = vld [vmem:[%s2454 + $0x21] sm:$0xff]
        %v2491 = vld [vmem:[%s2454 + $0x31] sm:$0xff]
        %v2492 = vld [vmem:[%s2454 + $0x39] sm:$0xff]
        %v2493 = vld [vmem:[%s2454 + $0x49] sm:$0xff]
        %v2494 = vld [vmem:[%s2454 + $0x51] sm:$0xff]
        %v2495 = vld [vmem:[%s2454 + $0x61] sm:$0xff]
        %v2496 = vld [vmem:[%s2454 + $0x69] sm:$0xff]
        %v2497 = vld [vmem:[%s2454 + $0x79] sm:$0xff]
        %v2498 = vld [vmem:[%s2454 + $0x81] sm:$0xff]
        %v2499 = vld [vmem:[%s2454 + $0x91] sm:$0xff]
        %v2500 = vld [vmem:[%s2454 + $0x99] sm:$0xff]
        %v2501 = vld [vmem:[%s2454 + $0xa9] sm:$0xff]
        %v2502 = vld [vmem:[%s2454 + $0xb1] sm:$0xff]
        %v2503 = vld [vmem:[%s2454 + $0xc1] sm:$0xff]
        %v2504 = vld [vmem:[%s2454 + $0xc9] sm:$0xff]
        %v2505 = vld [vmem:[%s2454 + $0xd9] sm:$0xff]
        %v2506 = vld [vmem:[%s2454 + $0xe1] sm:$0xff]
        %v2507 = vld [vmem:[%s2454 + $0xf1] sm:$0xff]
        %v2508 = vld [vmem:[%s2454 + $0xf9] sm:$0xff]
        %v2509 = vld [vmem:[%s2454 + $0x109] sm:$0xff]
        %v2510 = vld [vmem:[%s2454 + $0x111] sm:$0xff]
        %v2511 = vld [vmem:[%s2454 + $0x121] sm:$0xff]
        %v2512 = vld [vmem:[%s2454 + $0x129] sm:$0xff]
        %v2513 = vld [vmem:[%s2454 + $0x139] sm:$0xff]
        %v2514 = vld [vmem:[%s2454 + $0x141] sm:$0xff]
        %v2515 = vld [vmem:[%s2454 + $0x151] sm:$0xff]
        %v2516 = vld [vmem:[%s2454 + $0x159] sm:$0xff]
        %v2517 = vld [vmem:[%s2454 + $0x169] sm:$0xff]
        %v2518 = vld [vmem:[%s2454 + $0x171] sm:$0xff]
        %v2519 = vld [vmem:[%s2454 + $0x2] sm:$0xff]
        %v2520 = vld [vmem:[%s2454 + $0xa] sm:$0xff]
        %v2521 = vld [vmem:[%s2454 + $0x1a] sm:$0xff]
        %v2522 = vld [vmem:[%s2454 + $0x22] sm:$0xff]
        %v2523 = vld [vmem:[%s2454 + $0x32] sm:$0xff]
        %v2524 = vld [vmem:[%s2454 + $0x3a] sm:$0xff]
        %v2525 = vld [vmem:[%s2454 + $0x4a] sm:$0xff]
        %v2526 = vld [vmem:[%s2454 + $0x52] sm:$0xff]
        %v2527 = vld [vmem:[%s2454 + $0x62] sm:$0xff]
        %v2528 = vld [vmem:[%s2454 + $0x6a] sm:$0xff]
        %v2529 = vld [vmem:[%s2454 + $0x7a] sm:$0xff]
        %v2530 = vld [vmem:[%s2454 + $0x82] sm:$0xff]
        %v2531 = vld [vmem:[%s2454 + $0x92] sm:$0xff]
        %v2532 = vld [vmem:[%s2454 + $0x9a] sm:$0xff]
        %v2533 = vld [vmem:[%s2454 + $0xaa] sm:$0xff]
        %v2534 = vld [vmem:[%s2454 + $0xb2] sm:$0xff]
        %v2535 = vld [vmem:[%s2454 + $0xc2] sm:$0xff]
        %v2536 = vld [vmem:[%s2454 + $0xca] sm:$0xff]
        %v2537 = vld [vmem:[%s2454 + $0xda] sm:$0xff]
        %v2538 = vld [vmem:[%s2454 + $0xe2] sm:$0xff]
        %v2539 = vld [vmem:[%s2454 + $0xf2] sm:$0xff]
        %v2540 = vld [vmem:[%s2454 + $0xfa] sm:$0xff]
        %v2541 = vld [vmem:[%s2454 + $0x10a] sm:$0xff]
        %v2542 = vld [vmem:[%s2454 + $0x112] sm:$0xff]
        %v2543 = vld [vmem:[%s2454 + $0x122] sm:$0xff]
        %v2544 = vld [vmem:[%s2454 + $0x12a] sm:$0xff]
        %v2545 = vld [vmem:[%s2454 + $0x13a] sm:$0xff]
        %v2546 = vld [vmem:[%s2454 + $0x142] sm:$0xff]
        %v2547 = vld [vmem:[%s2454 + $0x152] sm:$0xff]
        %v2548 = vld [vmem:[%s2454 + $0x15a] sm:$0xff]
        %v2549 = vld [vmem:[%s2454 + $0x16a] sm:$0xff]
        %v2550 = vld [vmem:[%s2454 + $0x172] sm:$0xff]
        %2583 = vrot.lane.b32.xlu0 %v2294, 8
        %v2584 = vpop.permute.xlu0 %2583
        %2585 = vrot.lane.b32.xlu0 %v2295, 8
        %v2586 = vpop.permute.xlu0 %2585
        %2587 = vrot.lane.b32.xlu0 %v2296, 8
        %v2588 = vpop.permute.xlu0 %2587
        %2589 = vrot.lane.b32.xlu0 %v2297, 8
        %v2590 = vpop.permute.xlu0 %2589
        %2591 = vrot.lane.b32.xlu0 %v2298, 8
        %v2592 = vpop.permute.xlu0 %2591
        %2593 = vrot.lane.b32.xlu0 %v2299, 8
        %v2594 = vpop.permute.xlu0 %2593
        %2595 = vrot.lane.b32.xlu0 %v2300, 8
        %v2596 = vpop.permute.xlu0 %2595
        %2597 = vrot.lane.b32.xlu0 %v2301, 8
        %v2598 = vpop.permute.xlu0 %2597
        %2599 = vrot.lane.b32.xlu0 %v2302, 8
        %v2600 = vpop.permute.xlu0 %2599
        %2601 = vrot.lane.b32.xlu0 %v2303, 8
        %v2602 = vpop.permute.xlu0 %2601
        %2603 = vrot.lane.b32.xlu0 %v2304, 8
        %v2604 = vpop.permute.xlu0 %2603
        %2605 = vrot.lane.b32.xlu0 %v2305, 8
        %v2606 = vpop.permute.xlu0 %2605
        %2607 = vrot.lane.b32.xlu0 %v2306, 8
        %v2608 = vpop.permute.xlu0 %2607
        %2609 = vrot.lane.b32.xlu0 %v2307, 8
        %v2610 = vpop.permute.xlu0 %2609
        %2611 = vrot.lane.b32.xlu0 %v2308, 8
        %v2612 = vpop.permute.xlu0 %2611
        %2613 = vrot.lane.b32.xlu0 %v2309, 8
        %v2614 = vpop.permute.xlu0 %2613
        %2615 = vrot.lane.b32.xlu0 %v2310, 8
        %v2616 = vpop.permute.xlu0 %2615
        %2617 = vrot.lane.b32.xlu0 %v2311, 8
        %v2618 = vpop.permute.xlu0 %2617
        %2619 = vrot.lane.b32.xlu0 %v2312, 8
        %v2620 = vpop.permute.xlu0 %2619
        %2621 = vrot.lane.b32.xlu0 %v2313, 8
        %v2622 = vpop.permute.xlu0 %2621
        %2623 = vrot.lane.b32.xlu0 %v2314, 8
        %v2624 = vpop.permute.xlu0 %2623
        %2625 = vrot.lane.b32.xlu0 %v2315, 8
        %v2626 = vpop.permute.xlu0 %2625
        %2627 = vrot.lane.b32.xlu0 %v2316, 8
        %v2628 = vpop.permute.xlu0 %2627
        %2629 = vrot.lane.b32.xlu0 %v2317, 8
        %v2630 = vpop.permute.xlu0 %2629
        %2631 = vrot.lane.b32.xlu0 %v2318, 8
        %v2632 = vpop.permute.xlu0 %2631
        %2633 = vrot.lane.b32.xlu0 %v2319, 8
        %v2634 = vpop.permute.xlu0 %2633
        %2635 = vrot.lane.b32.xlu0 %v2320, 8
        %v2636 = vpop.permute.xlu0 %2635
        %2637 = vrot.lane.b32.xlu0 %v2321, 8
        %v2638 = vpop.permute.xlu0 %2637
        %2639 = vrot.lane.b32.xlu0 %v2322, 8
        %v2640 = vpop.permute.xlu0 %2639
        %2641 = vrot.lane.b32.xlu0 %v2323, 8
        %v2642 = vpop.permute.xlu0 %2641
        %2643 = vrot.lane.b32.xlu0 %v2324, 8
        %v2644 = vpop.permute.xlu0 %2643
        %2645 = vrot.lane.b32.xlu0 %v2325, 8
        %v2646 = vpop.permute.xlu0 %2645
        %2711 = vrot.lane.b32.xlu0 %v2326, 16
        %v2712 = vpop.permute.xlu0 %2711
        %2713 = vrot.lane.b32.xlu0 %v2327, 16
        %v2714 = vpop.permute.xlu0 %2713
        %2715 = vrot.lane.b32.xlu0 %v2328, 16
        %v2716 = vpop.permute.xlu0 %2715
        %2717 = vrot.lane.b32.xlu0 %v2329, 16
        %v2718 = vpop.permute.xlu0 %2717
        %2719 = vrot.lane.b32.xlu0 %v2330, 16
        %v2720 = vpop.permute.xlu0 %2719
        %2721 = vrot.lane.b32.xlu0 %v2331, 16
        %v2722 = vpop.permute.xlu0 %2721
        %2723 = vrot.lane.b32.xlu0 %v2332, 16
        %v2724 = vpop.permute.xlu0 %2723
        %2725 = vrot.lane.b32.xlu0 %v2333, 16
        %v2726 = vpop.permute.xlu0 %2725
        %2727 = vrot.lane.b32.xlu0 %v2334, 16
        %v2728 = vpop.permute.xlu0 %2727
        %2729 = vrot.lane.b32.xlu0 %v2335, 16
        %v2730 = vpop.permute.xlu0 %2729
        %2731 = vrot.lane.b32.xlu0 %v2336, 16
        %v2732 = vpop.permute.xlu0 %2731
        %2733 = vrot.lane.b32.xlu0 %v2337, 16
        %v2734 = vpop.permute.xlu0 %2733
        %2735 = vrot.lane.b32.xlu0 %v2338, 16
        %v2736 = vpop.permute.xlu0 %2735
        %2737 = vrot.lane.b32.xlu0 %v2339, 16
        %v2738 = vpop.permute.xlu0 %2737
        %2739 = vrot.lane.b32.xlu0 %v2340, 16
        %v2740 = vpop.permute.xlu0 %2739
        %2741 = vrot.lane.b32.xlu0 %v2341, 16
        %v2742 = vpop.permute.xlu0 %2741
        %2743 = vrot.lane.b32.xlu0 %v2342, 16
        %v2744 = vpop.permute.xlu0 %2743
        %2745 = vrot.lane.b32.xlu0 %v2343, 16
        %v2746 = vpop.permute.xlu0 %2745
        %2747 = vrot.lane.b32.xlu0 %v2344, 16
        %v2748 = vpop.permute.xlu0 %2747
        %2749 = vrot.lane.b32.xlu0 %v2345, 16
        %v2750 = vpop.permute.xlu0 %2749
        %2751 = vrot.lane.b32.xlu0 %v2346, 16
        %v2752 = vpop.permute.xlu0 %2751
        %2753 = vrot.lane.b32.xlu0 %v2347, 16
        %v2754 = vpop.permute.xlu0 %2753
        %2755 = vrot.lane.b32.xlu0 %v2348, 16
        %v2756 = vpop.permute.xlu0 %2755
        %2757 = vrot.lane.b32.xlu0 %v2349, 16
        %v2758 = vpop.permute.xlu0 %2757
        %2759 = vrot.lane.b32.xlu0 %v2350, 16
        %v2760 = vpop.permute.xlu0 %2759
        %2761 = vrot.lane.b32.xlu0 %v2351, 16
        %v2762 = vpop.permute.xlu0 %2761
        %2763 = vrot.lane.b32.xlu0 %v2352, 16
        %v2764 = vpop.permute.xlu0 %2763
        %2765 = vrot.lane.b32.xlu0 %v2353, 16
        %v2766 = vpop.permute.xlu0 %2765
        %2767 = vrot.lane.b32.xlu0 %v2354, 16
        %v2768 = vpop.permute.xlu0 %2767
        %2769 = vrot.lane.b32.xlu0 %v2355, 16
        %v2770 = vpop.permute.xlu0 %2769
        %2771 = vrot.lane.b32.xlu0 %v2356, 16
        %v2772 = vpop.permute.xlu0 %2771
        %2773 = vrot.lane.b32.xlu0 %v2357, 16
        %v2774 = vpop.permute.xlu0 %2773
        %2839 = vrot.lane.b32.xlu0 %v2358, 24
        %v2840 = vpop.permute.xlu0 %2839
        %2841 = vrot.lane.b32.xlu0 %v2359, 24
        %v2842 = vpop.permute.xlu0 %2841
        %2843 = vrot.lane.b32.xlu0 %v2360, 24
        %v2844 = vpop.permute.xlu0 %2843
        %2845 = vrot.lane.b32.xlu0 %v2361, 24
        %v2846 = vpop.permute.xlu0 %2845
        %2847 = vrot.lane.b32.xlu0 %v2362, 24
        %v2848 = vpop.permute.xlu0 %2847
        %2849 = vrot.lane.b32.xlu0 %v2363, 24
        %v2850 = vpop.permute.xlu0 %2849
        %2851 = vrot.lane.b32.xlu0 %v2364, 24
        %v2852 = vpop.permute.xlu0 %2851
        %2853 = vrot.lane.b32.xlu0 %v2365, 24
        %v2854 = vpop.permute.xlu0 %2853
        %2855 = vrot.lane.b32.xlu0 %v2366, 24
        %v2856 = vpop.permute.xlu0 %2855
        %2857 = vrot.lane.b32.xlu0 %v2367, 24
        %v2858 = vpop.permute.xlu0 %2857
        %2859 = vrot.lane.b32.xlu0 %v2368, 24
        %v2860 = vpop.permute.xlu0 %2859
        %2861 = vrot.lane.b32.xlu0 %v2369, 24
        %v2862 = vpop.permute.xlu0 %2861
        %2863 = vrot.lane.b32.xlu0 %v2370, 24
        %v2864 = vpop.permute.xlu0 %2863
        %2865 = vrot.lane.b32.xlu0 %v2371, 24
        %v2866 = vpop.permute.xlu0 %2865
        %2867 = vrot.lane.b32.xlu0 %v2372, 24
        %v2868 = vpop.permute.xlu0 %2867
        %2869 = vrot.lane.b32.xlu0 %v2373, 24
        %v2870 = vpop.permute.xlu0 %2869
        %2871 = vrot.lane.b32.xlu0 %v2374, 24
        %v2872 = vpop.permute.xlu0 %2871
        %2873 = vrot.lane.b32.xlu0 %v2375, 24
        %v2874 = vpop.permute.xlu0 %2873
        %2875 = vrot.lane.b32.xlu0 %v2376, 24
        %v2876 = vpop.permute.xlu0 %2875
        %2877 = vrot.lane.b32.xlu0 %v2377, 24
        %v2878 = vpop.permute.xlu0 %2877
        %2879 = vrot.lane.b32.xlu0 %v2378, 24
        %v2880 = vpop.permute.xlu0 %2879
        %2881 = vrot.lane.b32.xlu0 %v2379, 24
        %v2882 = vpop.permute.xlu0 %2881
        %2883 = vrot.lane.b32.xlu0 %v2380, 24
        %v2884 = vpop.permute.xlu0 %2883
        %2885 = vrot.lane.b32.xlu0 %v2381, 24
        %v2886 = vpop.permute.xlu0 %2885
        %2887 = vrot.lane.b32.xlu0 %v2382, 24
        %v2888 = vpop.permute.xlu0 %2887
        %2889 = vrot.lane.b32.xlu0 %v2383, 24
        %v2890 = vpop.permute.xlu0 %2889
        %2891 = vrot.lane.b32.xlu0 %v2384, 24
        %v2892 = vpop.permute.xlu0 %2891
        %2893 = vrot.lane.b32.xlu0 %v2385, 24
        %v2894 = vpop.permute.xlu0 %2893
        %2895 = vrot.lane.b32.xlu0 %v2386, 24
        %v2896 = vpop.permute.xlu0 %2895
        %2897 = vrot.lane.b32.xlu0 %v2387, 24
        %v2898 = vpop.permute.xlu0 %2897
        %2899 = vrot.lane.b32.xlu0 %v2388, 24
        %v2900 = vpop.permute.xlu0 %2899
        %2901 = vrot.lane.b32.xlu0 %v2389, 24
        %v2902 = vpop.permute.xlu0 %2901
        %2967 = vrot.lane.b32.xlu0 %v2390, 32
        %v2968 = vpop.permute.xlu0 %2967
        %2969 = vrot.lane.b32.xlu0 %v2391, 32
        %v2970 = vpop.permute.xlu0 %2969
        %2971 = vrot.lane.b32.xlu0 %v2392, 32
        %v2972 = vpop.permute.xlu0 %2971
        %2973 = vrot.lane.b32.xlu0 %v2393, 32
        %v2974 = vpop.permute.xlu0 %2973
        %2975 = vrot.lane.b32.xlu0 %v2394, 32
        %v2976 = vpop.permute.xlu0 %2975
        %2977 = vrot.lane.b32.xlu0 %v2395, 32
        %v2978 = vpop.permute.xlu0 %2977
        %2979 = vrot.lane.b32.xlu0 %v2396, 32
        %v2980 = vpop.permute.xlu0 %2979
        %2981 = vrot.lane.b32.xlu0 %v2397, 32
        %v2982 = vpop.permute.xlu0 %2981
        %2983 = vrot.lane.b32.xlu0 %v2398, 32
        %v2984 = vpop.permute.xlu0 %2983
        %2985 = vrot.lane.b32.xlu0 %v2399, 32
        %v2986 = vpop.permute.xlu0 %2985
        %2987 = vrot.lane.b32.xlu0 %v2400, 32
        %v2988 = vpop.permute.xlu0 %2987
        %2989 = vrot.lane.b32.xlu0 %v2401, 32
        %v2990 = vpop.permute.xlu0 %2989
        %2991 = vrot.lane.b32.xlu0 %v2402, 32
        %v2992 = vpop.permute.xlu0 %2991
        %2993 = vrot.lane.b32.xlu0 %v2403, 32
        %v2994 = vpop.permute.xlu0 %2993
        %2995 = vrot.lane.b32.xlu0 %v2404, 32
        %v2996 = vpop.permute.xlu0 %2995
        %2997 = vrot.lane.b32.xlu0 %v2405, 32
        %v2998 = vpop.permute.xlu0 %2997
        %2999 = vrot.lane.b32.xlu0 %v2406, 32
        %v3000 = vpop.permute.xlu0 %2999
        %3001 = vrot.lane.b32.xlu0 %v2407, 32
        %v3002 = vpop.permute.xlu0 %3001
        %3003 = vrot.lane.b32.xlu0 %v2408, 32
        %v3004 = vpop.permute.xlu0 %3003
        %3005 = vrot.lane.b32.xlu0 %v2409, 32
        %v3006 = vpop.permute.xlu0 %3005
        %3007 = vrot.lane.b32.xlu0 %v2410, 32
        %v3008 = vpop.permute.xlu0 %3007
        %3009 = vrot.lane.b32.xlu0 %v2411, 32
        %v3010 = vpop.permute.xlu0 %3009
        %3011 = vrot.lane.b32.xlu0 %v2412, 32
        %v3012 = vpop.permute.xlu0 %3011
        %3013 = vrot.lane.b32.xlu0 %v2413, 32
        %v3014 = vpop.permute.xlu0 %3013
        %3015 = vrot.lane.b32.xlu0 %v2414, 32
        %v3016 = vpop.permute.xlu0 %3015
        %3017 = vrot.lane.b32.xlu0 %v2415, 32
        %v3018 = vpop.permute.xlu0 %3017
        %3019 = vrot.lane.b32.xlu0 %v2416, 32
        %v3020 = vpop.permute.xlu0 %3019
        %3021 = vrot.lane.b32.xlu0 %v2417, 32
        %v3022 = vpop.permute.xlu0 %3021
        %3023 = vrot.lane.b32.xlu0 %v2418, 32
        %v3024 = vpop.permute.xlu0 %3023
        %3025 = vrot.lane.b32.xlu0 %v2419, 32
        %v3026 = vpop.permute.xlu0 %3025
        %3027 = vrot.lane.b32.xlu0 %v2420, 32
        %v3028 = vpop.permute.xlu0 %3027
        %3029 = vrot.lane.b32.xlu0 %v2421, 32
        %v3030 = vpop.permute.xlu0 %3029
        %3095 = vrot.lane.b32.xlu0 %v2422, 40
        %v3096 = vpop.permute.xlu0 %3095
        %3097 = vrot.lane.b32.xlu0 %v2423, 40
        %v3098 = vpop.permute.xlu0 %3097
        %3099 = vrot.lane.b32.xlu0 %v2424, 40
        %v3100 = vpop.permute.xlu0 %3099
        %3101 = vrot.lane.b32.xlu0 %v2425, 40
        %v3102 = vpop.permute.xlu0 %3101
        %3103 = vrot.lane.b32.xlu0 %v2426, 40
        %v3104 = vpop.permute.xlu0 %3103
        %3105 = vrot.lane.b32.xlu0 %v2427, 40
        %v3106 = vpop.permute.xlu0 %3105
        %3107 = vrot.lane.b32.xlu0 %v2428, 40
        %v3108 = vpop.permute.xlu0 %3107
        %3109 = vrot.lane.b32.xlu0 %v2429, 40
        %v3110 = vpop.permute.xlu0 %3109
        %3111 = vrot.lane.b32.xlu0 %v2430, 40
        %v3112 = vpop.permute.xlu0 %3111
        %3113 = vrot.lane.b32.xlu0 %v2431, 40
        %v3114 = vpop.permute.xlu0 %3113
        %3115 = vrot.lane.b32.xlu0 %v2432, 40
        %v3116 = vpop.permute.xlu0 %3115
        %3117 = vrot.lane.b32.xlu0 %v2433, 40
        %v3118 = vpop.permute.xlu0 %3117
        %3119 = vrot.lane.b32.xlu0 %v2434, 40
        %v3120 = vpop.permute.xlu0 %3119
        %3121 = vrot.lane.b32.xlu0 %v2435, 40
        %v3122 = vpop.permute.xlu0 %3121
        %3123 = vrot.lane.b32.xlu0 %v2436, 40
        %v3124 = vpop.permute.xlu0 %3123
        %3125 = vrot.lane.b32.xlu0 %v2437, 40
        %v3126 = vpop.permute.xlu0 %3125
        %3127 = vrot.lane.b32.xlu0 %v2438, 40
        %v3128 = vpop.permute.xlu0 %3127
        %3129 = vrot.lane.b32.xlu0 %v2439, 40
        %v3130 = vpop.permute.xlu0 %3129
        %3131 = vrot.lane.b32.xlu0 %v2440, 40
        %v3132 = vpop.permute.xlu0 %3131
        %3133 = vrot.lane.b32.xlu0 %v2441, 40
        %v3134 = vpop.permute.xlu0 %3133
        %3135 = vrot.lane.b32.xlu0 %v2442, 40
        %v3136 = vpop.permute.xlu0 %3135
        %3137 = vrot.lane.b32.xlu0 %v2443, 40
        %v3138 = vpop.permute.xlu0 %3137
        %3139 = vrot.lane.b32.xlu0 %v2444, 40
        %v3140 = vpop.permute.xlu0 %3139
        %3141 = vrot.lane.b32.xlu0 %v2445, 40
        %v3142 = vpop.permute.xlu0 %3141
        %3143 = vrot.lane.b32.xlu0 %v2446, 40
        %v3144 = vpop.permute.xlu0 %3143
        %3145 = vrot.lane.b32.xlu0 %v2447, 40
        %v3146 = vpop.permute.xlu0 %3145
        %3147 = vrot.lane.b32.xlu0 %v2448, 40
        %v3148 = vpop.permute.xlu0 %3147
        %3149 = vrot.lane.b32.xlu0 %v2449, 40
        %v3150 = vpop.permute.xlu0 %3149
        %3151 = vrot.lane.b32.xlu0 %v2450, 40
        %v3152 = vpop.permute.xlu0 %3151
        %3153 = vrot.lane.b32.xlu0 %v2451, 40
        %v3154 = vpop.permute.xlu0 %3153
        %3155 = vrot.lane.b32.xlu0 %v2452, 40
        %v3156 = vpop.permute.xlu0 %3155
        %3157 = vrot.lane.b32.xlu0 %v2453, 40
        %v3158 = vpop.permute.xlu0 %3157
        %3223 = vrot.lane.b32.xlu0 %v2455, 48
        %v3224 = vpop.permute.xlu0 %3223
        %3225 = vrot.lane.b32.xlu0 %v2456, 48
        %v3226 = vpop.permute.xlu0 %3225
        %3227 = vrot.lane.b32.xlu0 %v2457, 48
        %v3228 = vpop.permute.xlu0 %3227
        %3229 = vrot.lane.b32.xlu0 %v2458, 48
        %v3230 = vpop.permute.xlu0 %3229
        %3231 = vrot.lane.b32.xlu0 %v2459, 48
        %v3232 = vpop.permute.xlu0 %3231
        %3233 = vrot.lane.b32.xlu0 %v2460, 48
        %v3234 = vpop.permute.xlu0 %3233
        %3235 = vrot.lane.b32.xlu0 %v2461, 48
        %v3236 = vpop.permute.xlu0 %3235
        %3237 = vrot.lane.b32.xlu0 %v2462, 48
        %v3238 = vpop.permute.xlu0 %3237
        %3239 = vrot.lane.b32.xlu0 %v2463, 48
        %v3240 = vpop.permute.xlu0 %3239
        %3241 = vrot.lane.b32.xlu0 %v2464, 48
        %v3242 = vpop.permute.xlu0 %3241
        %3243 = vrot.lane.b32.xlu0 %v2465, 48
        %v3244 = vpop.permute.xlu0 %3243
        %3245 = vrot.lane.b32.xlu0 %v2466, 48
        %v3246 = vpop.permute.xlu0 %3245
        %3247 = vrot.lane.b32.xlu0 %v2467, 48
        %v3248 = vpop.permute.xlu0 %3247
        %3249 = vrot.lane.b32.xlu0 %v2468, 48
        %v3250 = vpop.permute.xlu0 %3249
        %3251 = vrot.lane.b32.xlu0 %v2469, 48
        %v3252 = vpop.permute.xlu0 %3251
        %3253 = vrot.lane.b32.xlu0 %v2470, 48
        %v3254 = vpop.permute.xlu0 %3253
        %3255 = vrot.lane.b32.xlu0 %v2471, 48
        %v3256 = vpop.permute.xlu0 %3255
        %3257 = vrot.lane.b32.xlu0 %v2472, 48
        %v3258 = vpop.permute.xlu0 %3257
        %3259 = vrot.lane.b32.xlu0 %v2473, 48
        %v3260 = vpop.permute.xlu0 %3259
        %3261 = vrot.lane.b32.xlu0 %v2474, 48
        %v3262 = vpop.permute.xlu0 %3261
        %3263 = vrot.lane.b32.xlu0 %v2475, 48
        %v3264 = vpop.permute.xlu0 %3263
        %3265 = vrot.lane.b32.xlu0 %v2476, 48
        %v3266 = vpop.permute.xlu0 %3265
        %3267 = vrot.lane.b32.xlu0 %v2477, 48
        %v3268 = vpop.permute.xlu0 %3267
        %3269 = vrot.lane.b32.xlu0 %v2478, 48
        %v3270 = vpop.permute.xlu0 %3269
        %3271 = vrot.lane.b32.xlu0 %v2479, 48
        %v3272 = vpop.permute.xlu0 %3271
        %3273 = vrot.lane.b32.xlu0 %v2480, 48
        %v3274 = vpop.permute.xlu0 %3273
        %3275 = vrot.lane.b32.xlu0 %v2481, 48
        %v3276 = vpop.permute.xlu0 %3275
        %3277 = vrot.lane.b32.xlu0 %v2482, 48
        %v3278 = vpop.permute.xlu0 %3277
        %3279 = vrot.lane.b32.xlu0 %v2483, 48
        %v3280 = vpop.permute.xlu0 %3279
        %3281 = vrot.lane.b32.xlu0 %v2484, 48
        %v3282 = vpop.permute.xlu0 %3281
        %3283 = vrot.lane.b32.xlu0 %v2485, 48
        %v3284 = vpop.permute.xlu0 %3283
        %3285 = vrot.lane.b32.xlu0 %v2486, 48
        %v3286 = vpop.permute.xlu0 %3285
        %3351 = vrot.lane.b32.xlu0 %v2487, 56
        %v3352 = vpop.permute.xlu0 %3351
        %3353 = vrot.lane.b32.xlu0 %v2488, 56
        %v3354 = vpop.permute.xlu0 %3353
        %3355 = vrot.lane.b32.xlu0 %v2489, 56
        %v3356 = vpop.permute.xlu0 %3355
        %3357 = vrot.lane.b32.xlu0 %v2490, 56
        %v3358 = vpop.permute.xlu0 %3357
        %3359 = vrot.lane.b32.xlu0 %v2491, 56
        %v3360 = vpop.permute.xlu0 %3359
        %3361 = vrot.lane.b32.xlu0 %v2492, 56
        %v3362 = vpop.permute.xlu0 %3361
        %3363 = vrot.lane.b32.xlu0 %v2493, 56
        %v3364 = vpop.permute.xlu0 %3363
        %3365 = vrot.lane.b32.xlu0 %v2494, 56
        %v3366 = vpop.permute.xlu0 %3365
        %3367 = vrot.lane.b32.xlu0 %v2495, 56
        %v3368 = vpop.permute.xlu0 %3367
        %3369 = vrot.lane.b32.xlu0 %v2496, 56
        %v3370 = vpop.permute.xlu0 %3369
        %3371 = vrot.lane.b32.xlu0 %v2497, 56
        %v3372 = vpop.permute.xlu0 %3371
        %3373 = vrot.lane.b32.xlu0 %v2498, 56
        %v3374 = vpop.permute.xlu0 %3373
        %3375 = vrot.lane.b32.xlu0 %v2499, 56
        %v3376 = vpop.permute.xlu0 %3375
        %3377 = vrot.lane.b32.xlu0 %v2500, 56
        %v3378 = vpop.permute.xlu0 %3377
        %3379 = vrot.lane.b32.xlu0 %v2501, 56
        %v3380 = vpop.permute.xlu0 %3379
        %3381 = vrot.lane.b32.xlu0 %v2502, 56
        %v3382 = vpop.permute.xlu0 %3381
        %3383 = vrot.lane.b32.xlu0 %v2503, 56
        %v3384 = vpop.permute.xlu0 %3383
        %3385 = vrot.lane.b32.xlu0 %v2504, 56
        %v3386 = vpop.permute.xlu0 %3385
        %3387 = vrot.lane.b32.xlu0 %v2505, 56
        %v3388 = vpop.permute.xlu0 %3387
        %3389 = vrot.lane.b32.xlu0 %v2506, 56
        %v3390 = vpop.permute.xlu0 %3389
        %3391 = vrot.lane.b32.xlu0 %v2507, 56
        %v3392 = vpop.permute.xlu0 %3391
        %3393 = vrot.lane.b32.xlu0 %v2508, 56
        %v3394 = vpop.permute.xlu0 %3393
        %3395 = vrot.lane.b32.xlu0 %v2509, 56
        %v3396 = vpop.permute.xlu0 %3395
        %3397 = vrot.lane.b32.xlu0 %v2510, 56
        %v3398 = vpop.permute.xlu0 %3397
        %3399 = vrot.lane.b32.xlu0 %v2511, 56
        %v3400 = vpop.permute.xlu0 %3399
        %3401 = vrot.lane.b32.xlu0 %v2512, 56
        %v3402 = vpop.permute.xlu0 %3401
        %3403 = vrot.lane.b32.xlu0 %v2513, 56
        %v3404 = vpop.permute.xlu0 %3403
        %3405 = vrot.lane.b32.xlu0 %v2514, 56
        %v3406 = vpop.permute.xlu0 %3405
        %3407 = vrot.lane.b32.xlu0 %v2515, 56
        %v3408 = vpop.permute.xlu0 %3407
        %3409 = vrot.lane.b32.xlu0 %v2516, 56
        %v3410 = vpop.permute.xlu0 %3409
        %3411 = vrot.lane.b32.xlu0 %v2517, 56
        %v3412 = vpop.permute.xlu0 %3411
        %3413 = vrot.lane.b32.xlu0 %v2518, 56
        %v3414 = vpop.permute.xlu0 %3413
        %3479 = vrot.lane.b32.xlu0 %v2519, 64
        %v3480 = vpop.permute.xlu0 %3479
        %3481 = vrot.lane.b32.xlu0 %v2520, 64
        %v3482 = vpop.permute.xlu0 %3481
        %3483 = vrot.lane.b32.xlu0 %v2521, 64
        %v3484 = vpop.permute.xlu0 %3483
        %3485 = vrot.lane.b32.xlu0 %v2522, 64
        %v3486 = vpop.permute.xlu0 %3485
        %3487 = vrot.lane.b32.xlu0 %v2523, 64
        %v3488 = vpop.permute.xlu0 %3487
        %3489 = vrot.lane.b32.xlu0 %v2524, 64
        %v3490 = vpop.permute.xlu0 %3489
        %3491 = vrot.lane.b32.xlu0 %v2525, 64
        %v3492 = vpop.permute.xlu0 %3491
        %3493 = vrot.lane.b32.xlu0 %v2526, 64
        %v3494 = vpop.permute.xlu0 %3493
        %3495 = vrot.lane.b32.xlu0 %v2527, 64
        %v3496 = vpop.permute.xlu0 %3495
        %3497 = vrot.lane.b32.xlu0 %v2528, 64
        %v3498 = vpop.permute.xlu0 %3497
        %3499 = vrot.lane.b32.xlu0 %v2529, 64
        %v3500 = vpop.permute.xlu0 %3499
        %3501 = vrot.lane.b32.xlu0 %v2530, 64
        %v3502 = vpop.permute.xlu0 %3501
        %3503 = vrot.lane.b32.xlu0 %v2531, 64
        %v3504 = vpop.permute.xlu0 %3503
        %3505 = vrot.lane.b32.xlu0 %v2532, 64
        %v3506 = vpop.permute.xlu0 %3505
        %3507 = vrot.lane.b32.xlu0 %v2533, 64
        %v3508 = vpop.permute.xlu0 %3507
        %3509 = vrot.lane.b32.xlu0 %v2534, 64
        %v3510 = vpop.permute.xlu0 %3509
        %3511 = vrot.lane.b32.xlu0 %v2535, 64
        %v3512 = vpop.permute.xlu0 %3511
        %3513 = vrot.lane.b32.xlu0 %v2536, 64
        %v3514 = vpop.permute.xlu0 %3513
        %3515 = vrot.lane.b32.xlu0 %v2537, 64
        %v3516 = vpop.permute.xlu0 %3515
        %3517 = vrot.lane.b32.xlu0 %v2538, 64
        %v3518 = vpop.permute.xlu0 %3517
        %3519 = vrot.lane.b32.xlu0 %v2539, 64
        %v3520 = vpop.permute.xlu0 %3519
        %3521 = vrot.lane.b32.xlu0 %v2540, 64
        %v3522 = vpop.permute.xlu0 %3521
        %3523 = vrot.lane.b32.xlu0 %v2541, 64
        %v3524 = vpop.permute.xlu0 %3523
        %3525 = vrot.lane.b32.xlu0 %v2542, 64
        %v3526 = vpop.permute.xlu0 %3525
        %3527 = vrot.lane.b32.xlu0 %v2543, 64
        %v3528 = vpop.permute.xlu0 %3527
        %3529 = vrot.lane.b32.xlu0 %v2544, 64
        %v3530 = vpop.permute.xlu0 %3529
        %3531 = vrot.lane.b32.xlu0 %v2545, 64
        %v3532 = vpop.permute.xlu0 %3531
        %3533 = vrot.lane.b32.xlu0 %v2546, 64
        %v3534 = vpop.permute.xlu0 %3533
        %3535 = vrot.lane.b32.xlu0 %v2547, 64
        %v3536 = vpop.permute.xlu0 %3535
        %3537 = vrot.lane.b32.xlu0 %v2548, 64
        %v3538 = vpop.permute.xlu0 %3537
        %3539 = vrot.lane.b32.xlu0 %v2549, 64
        %v3540 = vpop.permute.xlu0 %3539
        %3541 = vrot.lane.b32.xlu0 %v2550, 64
        %v3542 = vpop.permute.xlu0 %3541
        %v3575 = vsel %vm2173, %v2262, %v2584
        %v3576 = vsel %vm2173, %v2263, %v2586
        %v3577 = vsel %vm2173, %v2264, %v2588
        %v3578 = vsel %vm2173, %v2265, %v2590
        %v3579 = vsel %vm2173, %v2266, %v2592
        %v3580 = vsel %vm2173, %v2267, %v2594
        %v3581 = vsel %vm2173, %v2268, %v2596
        %v3582 = vsel %vm2173, %v2269, %v2598
        %v3583 = vsel %vm2173, %v2270, %v2600
        %v3584 = vsel %vm2173, %v2271, %v2602
        %v3585 = vsel %vm2173, %v2272, %v2604
        %v3586 = vsel %vm2173, %v2273, %v2606
        %v3587 = vsel %vm2173, %v2274, %v2608
        %v3588 = vsel %vm2173, %v2275, %v2610
        %v3589 = vsel %vm2173, %v2276, %v2612
        %v3590 = vsel %vm2173, %v2277, %v2614
        %v3591 = vsel %vm2173, %v2278, %v2616
        %v3592 = vsel %vm2173, %v2279, %v2618
        %v3593 = vsel %vm2173, %v2280, %v2620
        %v3594 = vsel %vm2173, %v2281, %v2622
        %v3595 = vsel %vm2173, %v2282, %v2624
        %v3596 = vsel %vm2173, %v2283, %v2626
        %v3597 = vsel %vm2173, %v2284, %v2628
        %v3598 = vsel %vm2173, %v2285, %v2630
        %v3599 = vsel %vm2173, %v2286, %v2632
        %v3600 = vsel %vm2173, %v2287, %v2634
        %v3601 = vsel %vm2173, %v2288, %v2636
        %v3602 = vsel %vm2173, %v2289, %v2638
        %v3603 = vsel %vm2173, %v2290, %v2640
        %v3604 = vsel %vm2173, %v2291, %v2642
        %v3605 = vsel %vm2173, %v2292, %v2644
        %v3606 = vsel %vm2173, %v2293, %v2646
        %vm3607 = vcmask 130048
        %v3608 = vsel %vm3607, %v3575, %v2712
        %v3609 = vsel %vm3607, %v3576, %v2714
        %v3610 = vsel %vm3607, %v3577, %v2716
        %v3611 = vsel %vm3607, %v3578, %v2718
        %v3612 = vsel %vm3607, %v3579, %v2720
        %v3613 = vsel %vm3607, %v3580, %v2722
        %v3614 = vsel %vm3607, %v3581, %v2724
        %v3615 = vsel %vm3607, %v3582, %v2726
        %v3616 = vsel %vm3607, %v3583, %v2728
        %v3617 = vsel %vm3607, %v3584, %v2730
        %v3618 = vsel %vm3607, %v3585, %v2732
        %v3619 = vsel %vm3607, %v3586, %v2734
        %v3620 = vsel %vm3607, %v3587, %v2736
        %v3621 = vsel %vm3607, %v3588, %v2738
        %v3622 = vsel %vm3607, %v3589, %v2740
        %v3623 = vsel %vm3607, %v3590, %v2742
        %v3624 = vsel %vm3607, %v3591, %v2744
        %v3625 = vsel %vm3607, %v3592, %v2746
        %v3626 = vsel %vm3607, %v3593, %v2748
        %v3627 = vsel %vm3607, %v3594, %v2750
        %v3628 = vsel %vm3607, %v3595, %v2752
        %v3629 = vsel %vm3607, %v3596, %v2754
        %v3630 = vsel %vm3607, %v3597, %v2756
        %v3631 = vsel %vm3607, %v3598, %v2758
        %v3632 = vsel %vm3607, %v3599, %v2760
        %v3633 = vsel %vm3607, %v3600, %v2762
        %v3634 = vsel %vm3607, %v3601, %v2764
        %v3635 = vsel %vm3607, %v3602, %v2766
        %v3636 = vsel %vm3607, %v3603, %v2768
        %v3637 = vsel %vm3607, %v3604, %v2770
        %v3638 = vsel %vm3607, %v3605, %v2772
        %v3639 = vsel %vm3607, %v3606, %v2774
        %v3640 = vsel %vm1886, %v3608, %v2840
        %v3641 = vsel %vm1886, %v3609, %v2842
        %v3642 = vsel %vm1886, %v3610, %v2844
        %v3643 = vsel %vm1886, %v3611, %v2846
        %v3644 = vsel %vm1886, %v3612, %v2848
        %v3645 = vsel %vm1886, %v3613, %v2850
        %v3646 = vsel %vm1886, %v3614, %v2852
        %v3647 = vsel %vm1886, %v3615, %v2854
        %v3648 = vsel %vm1886, %v3616, %v2856
        %v3649 = vsel %vm1886, %v3617, %v2858
        %v3650 = vsel %vm1886, %v3618, %v2860
        %v3651 = vsel %vm1886, %v3619, %v2862
        %v3652 = vsel %vm1886, %v3620, %v2864
        %v3653 = vsel %vm1886, %v3621, %v2866
        %v3654 = vsel %vm1886, %v3622, %v2868
        %v3655 = vsel %vm1886, %v3623, %v2870
        %v3656 = vsel %vm1886, %v3624, %v2872
        %v3657 = vsel %vm1886, %v3625, %v2874
        %v3658 = vsel %vm1886, %v3626, %v2876
        %v3659 = vsel %vm1886, %v3627, %v2878
        %v3660 = vsel %vm1886, %v3628, %v2880
        %v3661 = vsel %vm1886, %v3629, %v2882
        %v3662 = vsel %vm1886, %v3630, %v2884
        %v3663 = vsel %vm1886, %v3631, %v2886
        %v3664 = vsel %vm1886, %v3632, %v2888
        %v3665 = vsel %vm1886, %v3633, %v2890
        %v3666 = vsel %vm1886, %v3634, %v2892
        %v3667 = vsel %vm1886, %v3635, %v2894
        %v3668 = vsel %vm1886, %v3636, %v2896
        %v3669 = vsel %vm1886, %v3637, %v2898
        %v3670 = vsel %vm1886, %v3638, %v2900
        %v3671 = vsel %vm1886, %v3639, %v2902
        %vm3672 = vcmask 261120
        %v3673 = vsel %vm3672, %v3640, %v2968
        %v3674 = vsel %vm3672, %v3641, %v2970
        %v3675 = vsel %vm3672, %v3642, %v2972
        %v3676 = vsel %vm3672, %v3643, %v2974
        %v3677 = vsel %vm3672, %v3644, %v2976
        %v3678 = vsel %vm3672, %v3645, %v2978
        %v3679 = vsel %vm3672, %v3646, %v2980
        %v3680 = vsel %vm3672, %v3647, %v2982
        %v3681 = vsel %vm3672, %v3648, %v2984
        %v3682 = vsel %vm3672, %v3649, %v2986
        %v3683 = vsel %vm3672, %v3650, %v2988
        %v3684 = vsel %vm3672, %v3651, %v2990
        %v3685 = vsel %vm3672, %v3652, %v2992
        %v3686 = vsel %vm3672, %v3653, %v2994
        %v3687 = vsel %vm3672, %v3654, %v2996
        %v3688 = vsel %vm3672, %v3655, %v2998
        %v3689 = vsel %vm3672, %v3656, %v3000
        %v3690 = vsel %vm3672, %v3657, %v3002
        %v3691 = vsel %vm3672, %v3658, %v3004
        %v3692 = vsel %vm3672, %v3659, %v3006
        %v3693 = vsel %vm3672, %v3660, %v3008
        %v3694 = vsel %vm3672, %v3661, %v3010
        %v3695 = vsel %vm3672, %v3662, %v3012
        %v3696 = vsel %vm3672, %v3663, %v3014
        %v3697 = vsel %vm3672, %v3664, %v3016
        %v3698 = vsel %vm3672, %v3665, %v3018
        %v3699 = vsel %vm3672, %v3666, %v3020
        %v3700 = vsel %vm3672, %v3667, %v3022
        %v3701 = vsel %vm3672, %v3668, %v3024
        %v3702 = vsel %vm3672, %v3669, %v3026
        %v3703 = vsel %vm3672, %v3670, %v3028
        %v3704 = vsel %vm3672, %v3671, %v3030
        %vm3705 = vcmask 326656
        %v3706 = vsel %vm3705, %v3673, %v3096
        %v3707 = vsel %vm3705, %v3674, %v3098
        %v3708 = vsel %vm3705, %v3675, %v3100
        %v3709 = vsel %vm3705, %v3676, %v3102
        %v3710 = vsel %vm3705, %v3677, %v3104
        %v3711 = vsel %vm3705, %v3678, %v3106
        %v3712 = vsel %vm3705, %v3679, %v3108
        %v3713 = vsel %vm3705, %v3680, %v3110
        %v3714 = vsel %vm3705, %v3681, %v3112
        %v3715 = vsel %vm3705, %v3682, %v3114
        %v3716 = vsel %vm3705, %v3683, %v3116
        %v3717 = vsel %vm3705, %v3684, %v3118
        %v3718 = vsel %vm3705, %v3685, %v3120
        %v3719 = vsel %vm3705, %v3686, %v3122
        %v3720 = vsel %vm3705, %v3687, %v3124
        %v3721 = vsel %vm3705, %v3688, %v3126
        %v3722 = vsel %vm3705, %v3689, %v3128
        %v3723 = vsel %vm3705, %v3690, %v3130
        %v3724 = vsel %vm3705, %v3691, %v3132
        %v3725 = vsel %vm3705, %v3692, %v3134
        %v3726 = vsel %vm3705, %v3693, %v3136
        %v3727 = vsel %vm3705, %v3694, %v3138
        %v3728 = vsel %vm3705, %v3695, %v3140
        %v3729 = vsel %vm3705, %v3696, %v3142
        %v3730 = vsel %vm3705, %v3697, %v3144
        %v3731 = vsel %vm3705, %v3698, %v3146
        %v3732 = vsel %vm3705, %v3699, %v3148
        %v3733 = vsel %vm3705, %v3700, %v3150
        %v3734 = vsel %vm3705, %v3701, %v3152
        %v3735 = vsel %vm3705, %v3702, %v3154
        %v3736 = vsel %vm3705, %v3703, %v3156
        %v3737 = vsel %vm3705, %v3704, %v3158
        %vm3738 = vcmask 392192
        %v3739 = vsel %vm3738, %v3706, %v3224
        %v3740 = vsel %vm3738, %v3707, %v3226
        %v3741 = vsel %vm3738, %v3708, %v3228
        %v3742 = vsel %vm3738, %v3709, %v3230
        %v3743 = vsel %vm3738, %v3710, %v3232
        %v3744 = vsel %vm3738, %v3711, %v3234
        %v3745 = vsel %vm3738, %v3712, %v3236
        %v3746 = vsel %vm3738, %v3713, %v3238
        %v3747 = vsel %vm3738, %v3714, %v3240
        %v3748 = vsel %vm3738, %v3715, %v3242
        %v3749 = vsel %vm3738, %v3716, %v3244
        %v3750 = vsel %vm3738, %v3717, %v3246
        %v3751 = vsel %vm3738, %v3718, %v3248
        %v3752 = vsel %vm3738, %v3719, %v3250
        %v3753 = vsel %vm3738, %v3720, %v3252
        %v3754 = vsel %vm3738, %v3721, %v3254
        %v3755 = vsel %vm3738, %v3722, %v3256
        %v3756 = vsel %vm3738, %v3723, %v3258
        %v3757 = vsel %vm3738, %v3724, %v3260
        %v3758 = vsel %vm3738, %v3725, %v3262
        %v3759 = vsel %vm3738, %v3726, %v3264
        %v3760 = vsel %vm3738, %v3727, %v3266
        %v3761 = vsel %vm3738, %v3728, %v3268
        %v3762 = vsel %vm3738, %v3729, %v3270
        %v3763 = vsel %vm3738, %v3730, %v3272
        %v3764 = vsel %vm3738, %v3731, %v3274
        %v3765 = vsel %vm3738, %v3732, %v3276
        %v3766 = vsel %vm3738, %v3733, %v3278
        %v3767 = vsel %vm3738, %v3734, %v3280
        %v3768 = vsel %vm3738, %v3735, %v3282
        %v3769 = vsel %vm3738, %v3736, %v3284
        %v3770 = vsel %vm3738, %v3737, %v3286
        %vm3771 = vcmask 457728
        %v3772 = vsel %vm3771, %v3739, %v3352
        %v3773 = vsel %vm3771, %v3740, %v3354
        %v3774 = vsel %vm3771, %v3741, %v3356
        %v3775 = vsel %vm3771, %v3742, %v3358
        %v3776 = vsel %vm3771, %v3743, %v3360
        %v3777 = vsel %vm3771, %v3744, %v3362
        %v3778 = vsel %vm3771, %v3745, %v3364
        %v3779 = vsel %vm3771, %v3746, %v3366
        %v3780 = vsel %vm3771, %v3747, %v3368
        %v3781 = vsel %vm3771, %v3748, %v3370
        %v3782 = vsel %vm3771, %v3749, %v3372
        %v3783 = vsel %vm3771, %v3750, %v3374
        %v3784 = vsel %vm3771, %v3751, %v3376
        %v3785 = vsel %vm3771, %v3752, %v3378
        %v3786 = vsel %vm3771, %v3753, %v3380
        %v3787 = vsel %vm3771, %v3754, %v3382
        %v3788 = vsel %vm3771, %v3755, %v3384
        %v3789 = vsel %vm3771, %v3756, %v3386
        %v3790 = vsel %vm3771, %v3757, %v3388
        %v3791 = vsel %vm3771, %v3758, %v3390
        %v3792 = vsel %vm3771, %v3759, %v3392
        %v3793 = vsel %vm3771, %v3760, %v3394
        %v3794 = vsel %vm3771, %v3761, %v3396
        %v3795 = vsel %vm3771, %v3762, %v3398
        %v3796 = vsel %vm3771, %v3763, %v3400
        %v3797 = vsel %vm3771, %v3764, %v3402
        %v3798 = vsel %vm3771, %v3765, %v3404
        %v3799 = vsel %vm3771, %v3766, %v3406
        %v3800 = vsel %vm3771, %v3767, %v3408
        %v3801 = vsel %vm3771, %v3768, %v3410
        %v3802 = vsel %vm3771, %v3769, %v3412
        %v3803 = vsel %vm3771, %v3770, %v3414
        %vm3804 = vcmask 523264
        %v3805 = vsel %vm3804, %v3772, %v3480
        %v3806 = vsel %vm3804, %v3773, %v3482
        %v3807 = vsel %vm3804, %v3774, %v3484
        %v3808 = vsel %vm3804, %v3775, %v3486
        %v3809 = vsel %vm3804, %v3776, %v3488
        %v3810 = vsel %vm3804, %v3777, %v3490
        %v3811 = vsel %vm3804, %v3778, %v3492
        %v3812 = vsel %vm3804, %v3779, %v3494
        %v3813 = vsel %vm3804, %v3780, %v3496
        %v3814 = vsel %vm3804, %v3781, %v3498
        %v3815 = vsel %vm3804, %v3782, %v3500
        %v3816 = vsel %vm3804, %v3783, %v3502
        %v3817 = vsel %vm3804, %v3784, %v3504
        %v3818 = vsel %vm3804, %v3785, %v3506
        %v3819 = vsel %vm3804, %v3786, %v3508
        %v3820 = vsel %vm3804, %v3787, %v3510
        %v3821 = vsel %vm3804, %v3788, %v3512
        %v3822 = vsel %vm3804, %v3789, %v3514
        %v3823 = vsel %vm3804, %v3790, %v3516
        %v3824 = vsel %vm3804, %v3791, %v3518
        %v3825 = vsel %vm3804, %v3792, %v3520
        %v3826 = vsel %vm3804, %v3793, %v3522
        %v3827 = vsel %vm3804, %v3794, %v3524
        %v3828 = vsel %vm3804, %v3795, %v3526
        %v3829 = vsel %vm3804, %v3796, %v3528
        %v3830 = vsel %vm3804, %v3797, %v3530
        %v3831 = vsel %vm3804, %v3798, %v3532
        %v3832 = vsel %vm3804, %v3799, %v3534
        %v3833 = vsel %vm3804, %v3800, %v3536
        %v3834 = vsel %vm3804, %v3801, %v3538
        %v3835 = vsel %vm3804, %v3802, %v3540
        %v3836 = vsel %vm3804, %v3803, %v3542
        %v3837 = vld [vmem:[%s3] sm:$0xff]
        %v3838 = vld [vmem:[%s3 + $0x8] sm:$0xff]
        %v3839 = vld [vmem:[%s3 + $0x10] sm:$0xff]
        %v3840 = vld [vmem:[%s3 + $0x18] sm:$0xff]
        %v3841 = vld [vmem:[%s3 + $0x20] sm:$0xff]
        %v3842 = vld [vmem:[%s3 + $0x28] sm:$0xff]
        %v3843 = vld [vmem:[%s3 + $0x30] sm:$0xff]
        %v3844 = vld [vmem:[%s3 + $0x38] sm:$0xff]
        %v3845 = vld [vmem:[%s3 + $0x40] sm:$0xff]
        %v3846 = vld [vmem:[%s4] sm:$0x1]
        %v3848 = vperm.slane %v3846, 0
        %vm3850 = vcmask 588800
        %v3852 = vsel %vm3850, %v3805, 0
        %v3855 = vsel %vm3850, %v3806, 0
        %v3858 = vsel %vm3850, %v3807, 0
        %v3861 = vsel %vm3850, %v3808, 0
        %v3864 = vsel %vm3850, %v3809, 0
        %v3867 = vsel %vm3850, %v3810, 0
        %v3870 = vsel %vm3850, %v3811, 0
        %v3873 = vsel %vm3850, %v3812, 0
        %v3876 = vsel %vm3850, %v3813, 0
        %v3879 = vsel %vm3850, %v3814, 0
        %v3882 = vsel %vm3850, %v3815, 0
        %v3885 = vsel %vm3850, %v3816, 0
        %v3888 = vsel %vm3850, %v3817, 0
        %v3891 = vsel %vm3850, %v3818, 0
        %v3894 = vsel %vm3850, %v3819, 0
        %v3897 = vsel %vm3850, %v3820, 0
        %v3900 = vsel %vm3850, %v3821, 0
        %v3903 = vsel %vm3850, %v3822, 0
        %v3906 = vsel %vm3850, %v3823, 0
        %v3909 = vsel %vm3850, %v3824, 0
        %v3912 = vsel %vm3850, %v3825, 0
        %v3915 = vsel %vm3850, %v3826, 0
        %v3918 = vsel %vm3850, %v3827, 0
        %v3921 = vsel %vm3850, %v3828, 0
        %v3924 = vsel %vm3850, %v3829, 0
        %v3927 = vsel %vm3850, %v3830, 0
        %v3930 = vsel %vm3850, %v3831, 0
        %v3933 = vsel %vm3850, %v3832, 0
        %v3936 = vsel %vm3850, %v3833, 0
        %v3939 = vsel %vm3850, %v3834, 0
        %v3942 = vsel %vm3850, %v3835, 0
        %v3945 = vsel %vm3850, %v3836, 0
        %3947 = vmatpush.msra.mxu0 0.0
        %3948 = vmatpush.msra.mxu0 0.0
        %3949 = vmatpush.msra.mxu0 0.0
        %3950 = vmatpush.msra.mxu0 0.0
        %3951 = vmatpush.msra.mxu0 0.0
        %3952 = vmatpush.msra.mxu0 0.0
        %3953 = vmatpush.msra.mxu0 0.0
        %3954 = vmatpush.msra.mxu0 %v3845
        %3955 = vmatpush.msra.mxu0 %v3844
        %3956 = vmatpush.msra.mxu0 %v3843
        %3957 = vmatpush.msra.mxu0 %v3842
        %3958 = vmatpush.msra.mxu0 %v3841
        %3959 = vmatpush.msra.mxu0 %v3840
        %3960 = vmatpush.msra.mxu0 %v3839
        %3961 = vmatpush.msra.mxu0 %v3838
        %3962 = vmatpush.msra.mxu0 %v3837
        %3963 = vmatmul.f32.gmra.mxu0 %v3852
        %v3964 = vpop.f32.mrf.mxu0
        %v3965 = vadd.f32 %v3848, %v3964
        %3966 = vmatmul.f32.gmra.mxu0 %v3855
        %v3967 = vpop.f32.mrf.mxu0
        %v3968 = vadd.f32 %v3848, %v3967
        %3969 = vmatmul.f32.gmra.mxu0 %v3858
        %v3970 = vpop.f32.mrf.mxu0
        %v3971 = vadd.f32 %v3848, %v3970
        %3972 = vmatmul.f32.gmra.mxu0 %v3861
        %v3973 = vpop.f32.mrf.mxu0
        %v3974 = vadd.f32 %v3848, %v3973
        %3975 = vmatmul.f32.gmra.mxu0 %v3864
        %v3976 = vpop.f32.mrf.mxu0
        %v3977 = vadd.f32 %v3848, %v3976
        %3978 = vmatmul.f32.gmra.mxu0 %v3867
        %v3979 = vpop.f32.mrf.mxu0
        %v3980 = vadd.f32 %v3848, %v3979
        %3981 = vmatmul.f32.gmra.mxu0 %v3870
        %v3982 = vpop.f32.mrf.mxu0
        %v3983 = vadd.f32 %v3848, %v3982
        %3984 = vmatmul.f32.gmra.mxu0 %v3873
        %v3985 = vpop.f32.mrf.mxu0
        %v3986 = vadd.f32 %v3848, %v3985
        %3987 = vmatmul.f32.gmra.mxu0 %v3876
        %v3988 = vpop.f32.mrf.mxu0
        %v3989 = vadd.f32 %v3848, %v3988
        %3990 = vmatmul.f32.gmra.mxu0 %v3879
        %v3991 = vpop.f32.mrf.mxu0
        %v3992 = vadd.f32 %v3848, %v3991
        %3993 = vmatmul.f32.gmra.mxu0 %v3882
        %v3994 = vpop.f32.mrf.mxu0
        %v3995 = vadd.f32 %v3848, %v3994
        %3996 = vmatmul.f32.gmra.mxu0 %v3885
        %v3997 = vpop.f32.mrf.mxu0
        %v3998 = vadd.f32 %v3848, %v3997
        %3999 = vmatmul.f32.gmra.mxu0 %v3888
        %v4000 = vpop.f32.mrf.mxu0
        %v4001 = vadd.f32 %v3848, %v4000
        %4002 = vmatmul.f32.gmra.mxu0 %v3891
        %v4003 = vpop.f32.mrf.mxu0
        %v4004 = vadd.f32 %v3848, %v4003
        %4005 = vmatmul.f32.gmra.mxu0 %v3894
        %v4006 = vpop.f32.mrf.mxu0
        %v4007 = vadd.f32 %v3848, %v4006
        %4008 = vmatmul.f32.gmra.mxu0 %v3897
        %v4009 = vpop.f32.mrf.mxu0
        %v4010 = vadd.f32 %v3848, %v4009
        %4011 = vmatmul.f32.gmra.mxu0 %v3900
        %v4012 = vpop.f32.mrf.mxu0
        %v4013 = vadd.f32 %v3848, %v4012
        %4014 = vmatmul.f32.gmra.mxu0 %v3903
        %v4015 = vpop.f32.mrf.mxu0
        %v4016 = vadd.f32 %v3848, %v4015
        %4017 = vmatmul.f32.gmra.mxu0 %v3906
        %v4018 = vpop.f32.mrf.mxu0
        %v4019 = vadd.f32 %v3848, %v4018
        %4020 = vmatmul.f32.gmra.mxu0 %v3909
        %v4021 = vpop.f32.mrf.mxu0
        %v4022 = vadd.f32 %v3848, %v4021
        %4023 = vmatmul.f32.gmra.mxu0 %v3912
        %v4024 = vpop.f32.mrf.mxu0
        %v4025 = vadd.f32 %v3848, %v4024
        %4026 = vmatmul.f32.gmra.mxu0 %v3915
        %v4027 = vpop.f32.mrf.mxu0
        %v4028 = vadd.f32 %v3848, %v4027
        %4029 = vmatmul.f32.gmra.mxu0 %v3918
        %v4030 = vpop.f32.mrf.mxu0
        %v4031 = vadd.f32 %v3848, %v4030
        %4032 = vmatmul.f32.gmra.mxu0 %v3921
        %v4033 = vpop.f32.mrf.mxu0
        %v4034 = vadd.f32 %v3848, %v4033
        %4035 = vmatmul.f32.gmra.mxu0 %v3924
        %v4036 = vpop.f32.mrf.mxu0
        %v4037 = vadd.f32 %v3848, %v4036
        %4038 = vmatmul.f32.gmra.mxu0 %v3927
        %v4039 = vpop.f32.mrf.mxu0
        %v4040 = vadd.f32 %v3848, %v4039
        %4041 = vmatmul.f32.gmra.mxu0 %v3930
        %v4042 = vpop.f32.mrf.mxu0
        %v4043 = vadd.f32 %v3848, %v4042
        %4044 = vmatmul.f32.gmra.mxu0 %v3933
        %v4045 = vpop.f32.mrf.mxu0
        %v4046 = vadd.f32 %v3848, %v4045
        %4047 = vmatmul.f32.gmra.mxu0 %v3936
        %v4048 = vpop.f32.mrf.mxu0
        %v4049 = vadd.f32 %v3848, %v4048
        %4050 = vmatmul.f32.gmra.mxu0 %v3939
        %v4051 = vpop.f32.mrf.mxu0
        %v4052 = vadd.f32 %v3848, %v4051
        %4053 = vmatmul.f32.gmra.mxu0 %v3942
        %v4054 = vpop.f32.mrf.mxu0
        %v4055 = vadd.f32 %v3848, %v4054
        %4056 = vmatmul.f32.gmra.mxu0 %v3945
        %v4057 = vpop.f32.mrf.mxu0
        %v4058 = vadd.f32 %v3848, %v4057
        %4059 = vdwg.mxu0
        %v4060 = vmax.f32 %v3965, 0.0
        %v4061 = vmax.f32 %v3968, 0.0
        %v4062 = vmax.f32 %v3971, 0.0
        %v4063 = vmax.f32 %v3974, 0.0
        %v4064 = vmax.f32 %v3977, 0.0
        %v4065 = vmax.f32 %v3980, 0.0
        %v4066 = vmax.f32 %v3983, 0.0
        %v4067 = vmax.f32 %v3986, 0.0
        %v4068 = vmax.f32 %v3989, 0.0
        %v4069 = vmax.f32 %v3992, 0.0
        %v4070 = vmax.f32 %v3995, 0.0
        %v4071 = vmax.f32 %v3998, 0.0
        %v4072 = vmax.f32 %v4001, 0.0
        %v4073 = vmax.f32 %v4004, 0.0
        %v4074 = vmax.f32 %v4007, 0.0
        %v4075 = vmax.f32 %v4010, 0.0
        %v4076 = vmax.f32 %v4013, 0.0
        %v4077 = vmax.f32 %v4016, 0.0
        %v4078 = vmax.f32 %v4019, 0.0
        %v4079 = vmax.f32 %v4022, 0.0
        %v4080 = vmax.f32 %v4025, 0.0
        %v4081 = vmax.f32 %v4028, 0.0
        %v4082 = vmax.f32 %v4031, 0.0
        %v4083 = vmax.f32 %v4034, 0.0
        %v4084 = vmax.f32 %v4037, 0.0
        %v4085 = vmax.f32 %v4040, 0.0
        %v4086 = vmax.f32 %v4043, 0.0
        %v4087 = vmax.f32 %v4046, 0.0
        %v4088 = vmax.f32 %v4049, 0.0
        %v4089 = vmax.f32 %v4052, 0.0
        %v4090 = vmax.f32 %v4055, 0.0
        %v4091 = vmax.f32 %v4058, 0.0
        %v4092 = vadd.f32 %v4060, %v4061
        %v4093 = vadd.f32 %v4092, %v4062
        %v4094 = vadd.f32 %v4093, %v4063
        %v4095 = vadd.f32 %v4094, %v4064
        %v4096 = vadd.f32 %v4095, %v4065
        %v4097 = vadd.f32 %v4096, %v4066
        %v4098 = vadd.f32 %v4097, %v4067
        %v4099 = vadd.f32 %v4098, %v4068
        %v4100 = vadd.f32 %v4099, %v4069
        %v4101 = vadd.f32 %v4100, %v4070
        %v4102 = vadd.f32 %v4101, %v4071
        %v4103 = vadd.f32 %v4102, %v4072
        %v4104 = vadd.f32 %v4103, %v4073
        %v4105 = vadd.f32 %v4104, %v4074
        %v4106 = vadd.f32 %v4105, %v4075
        %v4107 = vadd.f32 %v4106, %v4076
        %v4108 = vadd.f32 %v4107, %v4077
        %v4109 = vadd.f32 %v4108, %v4078
        %v4110 = vadd.f32 %v4109, %v4079
        %v4111 = vadd.f32 %v4110, %v4080
        %v4112 = vadd.f32 %v4111, %v4081
        %v4113 = vadd.f32 %v4112, %v4082
        %v4114 = vadd.f32 %v4113, %v4083
        %v4115 = vadd.f32 %v4114, %v4084
        %v4116 = vadd.f32 %v4115, %v4085
        %v4117 = vadd.f32 %v4116, %v4086
        %v4118 = vadd.f32 %v4117, %v4087
        %v4119 = vadd.f32 %v4118, %v4088
        %v4120 = vadd.f32 %v4119, %v4089
        %v4121 = vadd.f32 %v4120, %v4090
        %v4122 = vadd.f32 %v4121, %v4091
        %v4123 = vrot.slane %v4122, 4
        %v4124 = vadd.f32 %v4122, %v4123
        %v4125 = vrot.slane %v4124, 2
        %v4126 = vadd.f32 %v4124, %v4125
        %v4127 = vrot.slane %v4126, 1
        %v4128 = vadd.f32 %v4126, %v4127
        %v4129 = vrcp.pop 256.0
        %v4130 = vmul.f32 256.0, %v4129
        %v4131 = vsub.f32 1.0, %v4130
        %v4132 = vmul.f32 %v4129, %v4131
        %v4133 = vadd.f32 %v4129, %v4132
        %vm4134 = vweird.f32 %v4129
        %v4135 = vsel %vm4134, %v4129, %v4133
        %v4136 = vmul.f32 %v4128, %v4135
        %4137 = vst [vmem:[%s216] sm:$0x1] %v4136
        %s4138 = sand.u32 %s137, 1
        %s4139 = scalar_lea.sflag [#allocation5], %s4138
        %s4140 = sand.u32 %s137, 1
        %s4141 = scalar_lea.vmem [#allocation4], %s4140
        // Predicated region
        $region41: #{model_forward.2} parent=39 // pred_check
          %p4142 = pneg %p147
        $region42: #{model_forward.2} parent=39 // pred_check_branch
          %4144 = sbr.rel (%p4142) target = $region44
        $region43: #{model_forward.2} parent=39 // pred_region
          %4146 = vsyncadd %s4139, 0
          %s4147 = scalar_lea.hbm %s5, %s19
          %s4149 = sshll.u32 %s4141, 4
          %s4150 = int_to_ptr.vmem [resolvable:$true] %s4149
          %s4151 = sshll.u32 %s4147, 4
          %s4152 = int_to_ptr.hbm [resolvable:$true] %s4151
          %4154 = dma.vmem_to_hbm [thread:$0]  %s4150, 16, %s4152, %s4139
        $region44: #{model_forward.2} parent=39 // pred_fallthru
          _
      $region40: #{model_forward.2} parent=5 // pred_fallthru
        _
      %p4155 = scmp.le.s32.totalorder 2, %s14
      // Predicated region
      $region45: #{model_forward.2} parent=5 // pred_check
        %p4156 = pneg %p4155
      $region46: #{model_forward.2} parent=5 // pred_check_branch
        %4158 = sbr.rel (%p4156) target = $region48
      $region47: #{model_forward.2} parent=5 // pred_region
        %s4159 = ssub.s32 %s14, 2
        // Predicated region
        $region49: #{model_forward.2} parent=47 // pred_check
          %p4160 = pneg %p153
        $region50: #{model_forward.2} parent=47 // pred_check_branch
          %4162 = sbr.rel (%p4160) target = $region52
        $region51: #{model_forward.2} parent=47 // pred_region
          %s4163 = sand.u32 %s138, 1
          %s4164 = scalar_lea.sflag [#allocation5], %s4163
          %s4165 = sand.u32 %s138, 1
          %s4166 = scalar_lea.vmem [#allocation4], %s4165
          %4168 = dma.done %s4164, 16
        $region52: #{model_forward.2} parent=47 // pred_fallthru
          _
      $region48: #{model_forward.2} parent=5 // pred_fallthru
        _
    $region6: #{model_forward.2} parent=1 // loop_footer
      %s18 = sadd.s32 1, %s14
    $region7: #{model_forward.2} parent=1 // loop_footer_branch
      %13 = sbr.rel target = $region3
    $region8: #{model_forward.2} parent=1 // loop_exit
      _
    %4169 = vsyncpa [#allocation5], 1
    %s4170 = scalar_lea.sflag [#allocation5], 1
    %4171 = vsyncpa %s4170, 1

// kernel: model_forward.3
$region0: #{model_forward.3}
  #allocation0 [shape = 'u32[]', space=smem, size = 0x4, offset = 0x4, fixed_abs, tag = 'smem constant byte address 0x4 - core index']
  #allocation1 [shape = 'u32[72,128]{1,0:T(1,128)}', space=vmem, size = 0x9000, scoped, tag = 'internal scratch']
  %s0 = inlined_call_operand.hbm [shape: bf16[128,128], index: 0, kind: input, shape index: {}]
  %s1 = inlined_call_operand.hbm [shape: bf16[128,1024], index: 1, kind: input, shape index: {}]
  %s2 = inlined_call_operand.hbm [shape: bf16[256,1024], index: 2, kind: input, shape index: {}]
  %s3 = inlined_call_operand.vmem [shape: f32[1,1024], index: 3, kind: input, shape index: {}]
  %s4 = inlined_call_operand.hbm [shape: bf16[256,1024], index: 4, kind: input, shape index: {}]
  %s5 = inlined_call_operand.hbm [shape: bf16[256,1024], index: 5, kind: input, shape index: {}]
  %s6 = inlined_call_operand.vmem [shape: f32[1,1024], index: 6, kind: input, shape index: {}]
  %s7 = inlined_call_operand.hbm [shape: bf16[256,1024], index: 7, kind: input, shape index: {}]
  %s8 = inlined_call_operand.hbm [shape: bf16[256,1024], index: 8, kind: input, shape index: {}]
  %s9 = inlined_call_operand.vmem [shape: f32[1,1024], index: 9, kind: input, shape index: {}]
  %s10 = inlined_call_operand.vmem [shape: f32[1,256], index: 10, kind: input, shape index: {}]
  %s11 = inlined_call_operand.vmem [shape: f32[1,256], index: 11, kind: input, shape index: {}]
  %s12 = inlined_call_operand.vmem [shape: bf16[256,128], index: 12, kind: input, shape index: {}]
  %s13 = inlined_call_operand.vmem [shape: f32[1,128], index: 13, kind: input, shape index: {}]
  %s14 = inlined_call_operand.vmem [shape: f32[3,8,256], index: 14, kind: input, shape index: {}]
  %s15 = inlined_call_operand.vmem [shape: f32[3,8,256], index: 15, kind: input, shape index: {}]
  %s16 = inlined_call_operand.vmem [shape: f32[201,8,128], index: 16, kind: output, shape index: {}]
  %s17 = sld [smem:[#allocation0]]
  $region109: #{model_forward.3} parent=0
    _
  %s19 = ssub.s32 1, %s17
  %s20 = scalar_select 0, %s19, %s17
  $region1: #{model_forward.3} parent=0
    #allocation2 [shape = 'u8[32768]{0}', space=vmem, size = 0x8000, scoped, tag = 'input window, operand 0, single buffered']
    #allocation3 [shape = 's32[1]{0}', space=sflag, size = 0x4, scoped, tag = 'scoped memory for model_forward.3']
    #allocation4 [shape = 'u8[262144]{0}', space=vmem, size = 0x40000, scoped, tag = 'input window, operand 1, single buffered']
    #allocation5 [shape = 's32[1]{0}', space=sflag, size = 0x4, scoped, tag = 'scoped memory for model_forward.3']
    #allocation6 [shape = 'u8[524288]{0}', space=vmem, size = 0x80000, scoped, tag = 'input window, operand 2, single buffered']
    #allocation7 [shape = 'u8[524288]{0}', space=vmem, size = 0x80000, scoped, tag = 'input window, operand 4, single buffered']
    #allocation8 [shape = 's32[1]{0}', space=sflag, size = 0x4, scoped, tag = 'scoped memory for model_forward.3']
    #allocation9 [shape = 'u8[524288]{0}', space=vmem, size = 0x80000, scoped, tag = 'input window, operand 5, single buffered']
    #allocation10 [shape = 'u8[524288]{0}', space=vmem, size = 0x80000, scoped, tag = 'input window, operand 7, single buffered']
    #allocation11 [shape = 's32[1]{0}', space=sflag, size = 0x4, scoped, tag = 'scoped memory for model_forward.3']
    #allocation12 [shape = 'u8[524288]{0}', space=vmem, size = 0x80000, scoped, tag = 'input window, operand 8, single buffered']
    %21 = vsyncpa [#allocation3], 0
    %22 = vsyncpa [#allocation5], 0
    %23 = vsyncpa [#allocation8], 0
    %24 = vsyncpa [#allocation11], 0
    // Predicated region
    $region2: #{model_forward.3} parent=1 // pred_check
      _
    $region3: #{model_forward.3} parent=1 // pred_check_branch
      %26 = sbr.rel (0) target = $region5
    $region4: #{model_forward.3} parent=1 // pred_region
      %28 = vsyncadd [#allocation3], 0
      %s29 = sshll.u32 %s0, 4
      %s30 = int_to_ptr.hbm [resolvable:$true] %s29
      %s31 = sshll.u32 [#allocation2], 4
      %s32 = int_to_ptr.vmem [resolvable:$true] %s31
      %37 = dma.hbm_to_vmem [thread:$0]  %s30, 1024, %s32, [#allocation3], 64, 64, 4
    $region5: #{model_forward.3} parent=1 // pred_fallthru
      _
    // Predicated region
    $region6: #{model_forward.3} parent=1 // pred_check
      _
    $region7: #{model_forward.3} parent=1 // pred_check_branch
      %39 = sbr.rel (0) target = $region9
    $region8: #{model_forward.3} parent=1 // pred_region
      %41 = vsyncadd [#allocation5], 0
      %s42 = sshll.u32 %s1, 4
      %s43 = int_to_ptr.hbm [resolvable:$true] %s42
      %s44 = sshll.u32 [#allocation4], 4
      %s45 = int_to_ptr.vmem [resolvable:$true] %s44
      %50 = dma.hbm_to_vmem [thread:$0]  %s43, 8192, %s45, [#allocation5], 512, 512, 32
    $region9: #{model_forward.3} parent=1 // pred_fallthru
      _
    // Predicated region
    $region10: #{model_forward.3} parent=1 // pred_check
      _
    $region11: #{model_forward.3} parent=1 // pred_check_branch
      %52 = sbr.rel (0) target = $region13
    $region12: #{model_forward.3} parent=1 // pred_region
      %54 = vsyncadd [#allocation5], 0
      %s55 = sshll.u32 %s2, 4
      %s56 = int_to_ptr.hbm [resolvable:$true] %s55
      %s57 = sshll.u32 [#allocation6], 4
      %s58 = int_to_ptr.vmem [resolvable:$true] %s57
      %63 = dma.hbm_to_vmem [thread:$0]  %s56, 16384, %s58, [#allocation5], 512, 512, 32
    $region13: #{model_forward.3} parent=1 // pred_fallthru
      _
    // Predicated region
    $region14: #{model_forward.3} parent=1 // pred_check
      _
    $region15: #{model_forward.3} parent=1 // pred_check_branch
      %65 = sbr.rel (0) target = $region17
    $region16: #{model_forward.3} parent=1 // pred_region
      _
    $region17: #{model_forward.3} parent=1 // pred_fallthru
      _
    // Predicated region
    $region18: #{model_forward.3} parent=1 // pred_check
      _
    $region19: #{model_forward.3} parent=1 // pred_check_branch
      %67 = sbr.rel (0) target = $region21
    $region20: #{model_forward.3} parent=1 // pred_region
      %69 = vsyncadd [#allocation8], 0
      %s70 = sshll.u32 %s4, 4
      %s71 = int_to_ptr.hbm [resolvable:$true] %s70
      %s72 = sshll.u32 [#allocation7], 4
      %s73 = int_to_ptr.vmem [resolvable:$true] %s72
      %78 = dma.hbm_to_vmem [thread:$0]  %s71, 16384, %s73, [#allocation8], 512, 512, 32
    $region21: #{model_forward.3} parent=1 // pred_fallthru
      _
    // Predicated region
    $region22: #{model_forward.3} parent=1 // pred_check
      _
    $region23: #{model_forward.3} parent=1 // pred_check_branch
      %80 = sbr.rel (0) target = $region25
    $region24: #{model_forward.3} parent=1 // pred_region
      %82 = vsyncadd [#allocation8], 0
      %s83 = sshll.u32 %s5, 4
      %s84 = int_to_ptr.hbm [resolvable:$true] %s83
      %s85 = sshll.u32 [#allocation9], 4
      %s86 = int_to_ptr.vmem [resolvable:$true] %s85
      %91 = dma.hbm_to_vmem [thread:$0]  %s84, 16384, %s86, [#allocation8], 512, 512, 32
    $region25: #{model_forward.3} parent=1 // pred_fallthru
      _
    // Predicated region
    $region26: #{model_forward.3} parent=1 // pred_check
      _
    $region27: #{model_forward.3} parent=1 // pred_check_branch
      %93 = sbr.rel (0) target = $region29
    $region28: #{model_forward.3} parent=1 // pred_region
      _
    $region29: #{model_forward.3} parent=1 // pred_fallthru
      _
    // Predicated region
    $region30: #{model_forward.3} parent=1 // pred_check
      _
    $region31: #{model_forward.3} parent=1 // pred_check_branch
      %95 = sbr.rel (0) target = $region33
    $region32: #{model_forward.3} parent=1 // pred_region
      %97 = vsyncadd [#allocation11], 0
      %s98 = sshll.u32 %s7, 4
      %s99 = int_to_ptr.hbm [resolvable:$true] %s98
      %s100 = sshll.u32 [#allocation10], 4
      %s101 = int_to_ptr.vmem [resolvable:$true] %s100
      %106 = dma.hbm_to_vmem [thread:$0]  %s99, 16384, %s101, [#allocation11], 512, 512, 32
    $region33: #{model_forward.3} parent=1 // pred_fallthru
      _
    // Predicated region
    $region34: #{model_forward.3} parent=1 // pred_check
      _
    $region35: #{model_forward.3} parent=1 // pred_check_branch
      %108 = sbr.rel (0) target = $region37
    $region36: #{model_forward.3} parent=1 // pred_region
      %110 = vsyncadd [#allocation11], 0
      %s111 = sshll.u32 %s8, 4
      %s112 = int_to_ptr.hbm [resolvable:$true] %s111
      %s113 = sshll.u32 [#allocation12], 4
      %s114 = int_to_ptr.vmem [resolvable:$true] %s113
      %119 = dma.hbm_to_vmem [thread:$0]  %s112, 16384, %s114, [#allocation11], 512, 512, 32
    $region37: #{model_forward.3} parent=1 // pred_fallthru
      _
    // Predicated region
    $region38: #{model_forward.3} parent=1 // pred_check
      _
    $region39: #{model_forward.3} parent=1 // pred_check_branch
      %121 = sbr.rel (0) target = $region41
    $region40: #{model_forward.3} parent=1 // pred_region
      _
    $region41: #{model_forward.3} parent=1 // pred_fallthru
      _
    // Predicated region
    $region42: #{model_forward.3} parent=1 // pred_check
      _
    $region43: #{model_forward.3} parent=1 // pred_check_branch
      %123 = sbr.rel (0) target = $region45
    $region44: #{model_forward.3} parent=1 // pred_region
      _
    $region45: #{model_forward.3} parent=1 // pred_fallthru
      _
    // Predicated region
    $region46: #{model_forward.3} parent=1 // pred_check
      _
    $region47: #{model_forward.3} parent=1 // pred_check_branch
      %125 = sbr.rel (0) target = $region49
    $region48: #{model_forward.3} parent=1 // pred_region
      _
    $region49: #{model_forward.3} parent=1 // pred_fallthru
      _
    // Predicated region
    $region50: #{model_forward.3} parent=1 // pred_check
      _
    $region51: #{model_forward.3} parent=1 // pred_check_branch
      %127 = sbr.rel (0) target = $region53
    $region52: #{model_forward.3} parent=1 // pred_region
      _
    $region53: #{model_forward.3} parent=1 // pred_fallthru
      _
    // Predicated region
    $region54: #{model_forward.3} parent=1 // pred_check
      _
    $region55: #{model_forward.3} parent=1 // pred_check_branch
      %129 = sbr.rel (0) target = $region57
    $region56: #{model_forward.3} parent=1 // pred_region
      _
    $region57: #{model_forward.3} parent=1 // pred_fallthru
      _
    // Predicated region
    $region58: #{model_forward.3} parent=1 // pred_check
      _
    $region59: #{model_forward.3} parent=1 // pred_check_branch
      %131 = sbr.rel (0) target = $region61
    $region60: #{model_forward.3} parent=1 // pred_region
      _
    $region61: #{model_forward.3} parent=1 // pred_fallthru
      _
    // Predicated region
    $region62: #{model_forward.3} parent=1 // pred_check
      _
    $region63: #{model_forward.3} parent=1 // pred_check_branch
      %133 = sbr.rel (0) target = $region65
    $region64: #{model_forward.3} parent=1 // pred_region
      _
    $region65: #{model_forward.3} parent=1 // pred_fallthru
      _
    // Predicated region
    $region66: #{model_forward.3} parent=1 // pred_check
      _
    $region67: #{model_forward.3} parent=1 // pred_check_branch
      %135 = sbr.rel (0) target = $region69
    $region68: #{model_forward.3} parent=1 // pred_region
      %137 = dma.done [#allocation3], 1024
    $region69: #{model_forward.3} parent=1 // pred_fallthru
      _
    // Predicated region
    $region70: #{model_forward.3} parent=1 // pred_check
      _
    $region71: #{model_forward.3} parent=1 // pred_check_branch
      %139 = sbr.rel (0) target = $region73
    $region72: #{model_forward.3} parent=1 // pred_region
      %141 = dma.done [#allocation5], 8192
    $region73: #{model_forward.3} parent=1 // pred_fallthru
      _
    // Predicated region
    $region74: #{model_forward.3} parent=1 // pred_check
      _
    $region75: #{model_forward.3} parent=1 // pred_check_branch
      %143 = sbr.rel (0) target = $region77
    $region76: #{model_forward.3} parent=1 // pred_region
      %145 = dma.done [#allocation5], 16384
    $region77: #{model_forward.3} parent=1 // pred_fallthru
      _
    // Predicated region
    $region78: #{model_forward.3} parent=1 // pred_check
      _
    $region79: #{model_forward.3} parent=1 // pred_check_branch
      %147 = sbr.rel (0) target = $region81
    $region80: #{model_forward.3} parent=1 // pred_region
      %149 = dma.done [#allocation8], 16384
    $region81: #{model_forward.3} parent=1 // pred_fallthru
      _
    // Predicated region
    $region82: #{model_forward.3} parent=1 // pred_check
      _
    $region83: #{model_forward.3} parent=1 // pred_check_branch
      %151 = sbr.rel (0) target = $region85
    $region84: #{model_forward.3} parent=1 // pred_region
      %153 = dma.done [#allocation8], 16384
    $region85: #{model_forward.3} parent=1 // pred_fallthru
      _
    // Predicated region
    $region86: #{model_forward.3} parent=1 // pred_check
      _
    $region87: #{model_forward.3} parent=1 // pred_check_branch
      %155 = sbr.rel (0) target = $region89
    $region88: #{model_forward.3} parent=1 // pred_region
      %157 = dma.done [#allocation11], 16384
    $region89: #{model_forward.3} parent=1 // pred_fallthru
      _
    // Predicated region
    $region90: #{model_forward.3} parent=1 // pred_check
      _
    $region91: #{model_forward.3} parent=1 // pred_check_branch
      %159 = sbr.rel (0) target = $region93
    $region92: #{model_forward.3} parent=1 // pred_region
      %161 = dma.done [#allocation11], 16384
    $region93: #{model_forward.3} parent=1 // pred_fallthru
      _
    %v162 = vld [vmem:[%s3] sm:$0xff]
    %v164 = vperm.slane %v162, 0
    %v165 = vperm.slane %v162, 1
    %v166 = vperm.slane %v162, 2
    %v167 = vperm.slane %v162, 3
    %v168 = vperm.slane %v162, 4
    %v169 = vperm.slane %v162, 5
    %v170 = vperm.slane %v162, 6
    %v171 = vperm.slane %v162, 7
    %v180 = vld [vmem:[%s6] sm:$0xff]
    %v182 = vperm.slane %v180, 0
    %v183 = vperm.slane %v180, 1
    %v184 = vperm.slane %v180, 2
    %v185 = vperm.slane %v180, 3
    %v186 = vperm.slane %v180, 4
    %v187 = vperm.slane %v180, 5
    %v188 = vperm.slane %v180, 6
    %v189 = vperm.slane %v180, 7
    %v198 = vld [vmem:[%s9] sm:$0xff]
    %v200 = vperm.slane %v198, 0
    %v201 = vperm.slane %v198, 1
    %v202 = vperm.slane %v198, 2
    %v203 = vperm.slane %v198, 3
    %v204 = vperm.slane %v198, 4
    %v205 = vperm.slane %v198, 5
    %v206 = vperm.slane %v198, 6
    %v207 = vperm.slane %v198, 7
    %v216 = vld [vmem:[%s10] sm:$0x3]
    %v218 = vperm.slane %v216, 0
    %v219 = vperm.slane %v216, 1
    %v222 = vld [vmem:[%s11] sm:$0x3]
    %v224 = vperm.slane %v222, 0
    %v225 = vperm.slane %v222, 1
    %v228 = vld [vmem:[%s13] sm:$0x1]
    %v230 = vperm.slane %v228, 0
    %v232 = vld [vmem:[#allocation2] sm:$0x1]
    %v234 = vpack.i.b16 %v232, %v232
    %v236 = vperm.slane %v234, 0
    %v237 = vld [vmem:[%s14] sm:$0xff]
    %v238 = vld [vmem:[%s14 + $0x8] sm:$0xff]
    %v239 = vld [vmem:[%s15] sm:$0xff]
    %v240 = vld [vmem:[%s15 + $0x8] sm:$0xff]
    %s241 = scalar_lea.vmem %s14, 16
    %v242 = vld [vmem:[%s241] sm:$0xff]
    %v243 = vld [vmem:[%s241 + $0x8] sm:$0xff]
    %s244 = scalar_lea.vmem %s15, 16
    %v245 = vld [vmem:[%s244] sm:$0xff]
    %v246 = vld [vmem:[%s244 + $0x8] sm:$0xff]
    %s247 = scalar_lea.vmem %s14, 32
    %v248 = vld [vmem:[%s247] sm:$0xff]
    %v249 = vld [vmem:[%s247 + $0x8] sm:$0xff]
    %s250 = scalar_lea.vmem %s15, 32
    %v251 = vld [vmem:[%s250] sm:$0xff]
    %v252 = vld [vmem:[%s250 + $0x8] sm:$0xff]
    loop: start=0, step=1, limit=201
    $region94: #{model_forward.3} parent=1 // loop_pre_header
      _
    $region95: #{model_forward.3} parent=1 // loop_header
      %s254 = sphi 0, %s258
      %p255 = scmp.ge.s32.totalorder %s254, 201
      %v259 = vphi %v236, %v6350
      %v260 = vphi %v237, %v1870
      %v261 = vphi %v238, %v1871
      %v262 = vphi %v239, %v1866
      %v263 = vphi %v240, %v1867
      %v264 = vphi %v242, %v3960
      %v265 = vphi %v243, %v3961
      %v266 = vphi %v245, %v3956
      %v267 = vphi %v246, %v3957
      %v268 = vphi %v248, %v6050
      %v269 = vphi %v249, %v6051
      %v270 = vphi %v251, %v6046
      %v271 = vphi %v252, %v6047
    $region96: #{model_forward.3} parent=1 // loop_header_branch
      %257 = sbr.rel (%p255) target = $region100
    $region97: #{model_forward.3} parent=1 // loop_body
      %v272 = vld [vmem:[#allocation4] sm:$0xff]
      %v273 = vld [vmem:[#allocation4 + $0x8] sm:$0xff]
      %v274 = vld [vmem:[#allocation4 + $0x10] sm:$0xff]
      %v275 = vld [vmem:[#allocation4 + $0x18] sm:$0xff]
      %v276 = vld [vmem:[#allocation4 + $0x20] sm:$0xff]
      %v277 = vld [vmem:[#allocation4 + $0x28] sm:$0xff]
      %v278 = vld [vmem:[#allocation4 + $0x30] sm:$0xff]
      %v279 = vld [vmem:[#allocation4 + $0x38] sm:$0xff]
      %v280 = vld [vmem:[#allocation4 + $0x40] sm:$0xff]
      %v281 = vld [vmem:[#allocation4 + $0x48] sm:$0xff]
      %v282 = vld [vmem:[#allocation4 + $0x50] sm:$0xff]
      %v283 = vld [vmem:[#allocation4 + $0x58] sm:$0xff]
      %v284 = vld [vmem:[#allocation4 + $0x60] sm:$0xff]
      %v285 = vld [vmem:[#allocation4 + $0x68] sm:$0xff]
      %v286 = vld [vmem:[#allocation4 + $0x70] sm:$0xff]
      %v287 = vld [vmem:[#allocation4 + $0x78] sm:$0xff]
      %v288 = vld [vmem:[#allocation4 + $0x80] sm:$0xff]
      %v289 = vld [vmem:[#allocation4 + $0x88] sm:$0xff]
      %v290 = vld [vmem:[#allocation4 + $0x90] sm:$0xff]
      %v291 = vld [vmem:[#allocation4 + $0x98] sm:$0xff]
      %v292 = vld [vmem:[#allocation4 + $0xa0] sm:$0xff]
      %v293 = vld [vmem:[#allocation4 + $0xa8] sm:$0xff]
      %v294 = vld [vmem:[#allocation4 + $0xb0] sm:$0xff]
      %v295 = vld [vmem:[#allocation4 + $0xb8] sm:$0xff]
      %v296 = vld [vmem:[#allocation4 + $0xc0] sm:$0xff]
      %v297 = vld [vmem:[#allocation4 + $0xc8] sm:$0xff]
      %v298 = vld [vmem:[#allocation4 + $0xd0] sm:$0xff]
      %v299 = vld [vmem:[#allocation4 + $0xd8] sm:$0xff]
      %v300 = vld [vmem:[#allocation4 + $0xe0] sm:$0xff]
      %v301 = vld [vmem:[#allocation4 + $0xe8] sm:$0xff]
      %v302 = vld [vmem:[#allocation4 + $0xf0] sm:$0xff]
      %v303 = vld [vmem:[#allocation4 + $0xf8] sm:$0xff]
      %v304 = vld [vmem:[#allocation4 + $0x100] sm:$0xff]
      %v305 = vld [vmem:[#allocation4 + $0x108] sm:$0xff]
      %v306 = vld [vmem:[#allocation4 + $0x110] sm:$0xff]
      %v307 = vld [vmem:[#allocation4 + $0x118] sm:$0xff]
      %v308 = vld [vmem:[#allocation4 + $0x120] sm:$0xff]
      %v309 = vld [vmem:[#allocation4 + $0x128] sm:$0xff]
      %v310 = vld [vmem:[#allocation4 + $0x130] sm:$0xff]
      %v311 = vld [vmem:[#allocation4 + $0x138] sm:$0xff]
      %v312 = vld [vmem:[#allocation4 + $0x140] sm:$0xff]
      %v313 = vld [vmem:[#allocation4 + $0x148] sm:$0xff]
      %v314 = vld [vmem:[#allocation4 + $0x150] sm:$0xff]
      %v315 = vld [vmem:[#allocation4 + $0x158] sm:$0xff]
      %v316 = vld [vmem:[#allocation4 + $0x160] sm:$0xff]
      %v317 = vld [vmem:[#allocation4 + $0x168] sm:$0xff]
      %v318 = vld [vmem:[#allocation4 + $0x170] sm:$0xff]
      %v319 = vld [vmem:[#allocation4 + $0x178] sm:$0xff]
      %v320 = vld [vmem:[#allocation4 + $0x180] sm:$0xff]
      %v321 = vld [vmem:[#allocation4 + $0x188] sm:$0xff]
      %v322 = vld [vmem:[#allocation4 + $0x190] sm:$0xff]
      %v323 = vld [vmem:[#allocation4 + $0x198] sm:$0xff]
      %v324 = vld [vmem:[#allocation4 + $0x1a0] sm:$0xff]
      %v325 = vld [vmem:[#allocation4 + $0x1a8] sm:$0xff]
      %v326 = vld [vmem:[#allocation4 + $0x1b0] sm:$0xff]
      %v327 = vld [vmem:[#allocation4 + $0x1b8] sm:$0xff]
      %v328 = vld [vmem:[#allocation4 + $0x1c0] sm:$0xff]
      %v329 = vld [vmem:[#allocation4 + $0x1c8] sm:$0xff]
      %v330 = vld [vmem:[#allocation4 + $0x1d0] sm:$0xff]
      %v331 = vld [vmem:[#allocation4 + $0x1d8] sm:$0xff]
      %v332 = vld [vmem:[#allocation4 + $0x1e0] sm:$0xff]
      %v333 = vld [vmem:[#allocation4 + $0x1e8] sm:$0xff]
      %v334 = vld [vmem:[#allocation4 + $0x1f0] sm:$0xff]
      %v335 = vld [vmem:[#allocation4 + $0x1f8] sm:$0xff]
      %v336 = vpack.c.bf16 %v260, %v260
      %v337 = vpack.c.bf16 %v261, %v261
      %v338 = vld [vmem:[#allocation6] sm:$0xff]
      %v339 = vld [vmem:[#allocation6 + $0x8] sm:$0xff]
      %v340 = vld [vmem:[#allocation6 + $0x10] sm:$0xff]
      %v341 = vld [vmem:[#allocation6 + $0x18] sm:$0xff]
      %v342 = vld [vmem:[#allocation6 + $0x20] sm:$0xff]
      %v343 = vld [vmem:[#allocation6 + $0x28] sm:$0xff]
      %v344 = vld [vmem:[#allocation6 + $0x30] sm:$0xff]
      %v345 = vld [vmem:[#allocation6 + $0x38] sm:$0xff]
      %v346 = vld [vmem:[#allocation6 + $0x40] sm:$0xff]
      %v347 = vld [vmem:[#allocation6 + $0x48] sm:$0xff]
      %v348 = vld [vmem:[#allocation6 + $0x50] sm:$0xff]
      %v349 = vld [vmem:[#allocation6 + $0x58] sm:$0xff]
      %v350 = vld [vmem:[#allocation6 + $0x60] sm:$0xff]
      %v351 = vld [vmem:[#allocation6 + $0x68] sm:$0xff]
      %v352 = vld [vmem:[#allocation6 + $0x70] sm:$0xff]
      %v353 = vld [vmem:[#allocation6 + $0x78] sm:$0xff]
      %v354 = vld [vmem:[#allocation6 + $0x80] sm:$0xff]
      %v355 = vld [vmem:[#allocation6 + $0x88] sm:$0xff]
      %v356 = vld [vmem:[#allocation6 + $0x90] sm:$0xff]
      %v357 = vld [vmem:[#allocation6 + $0x98] sm:$0xff]
      %v358 = vld [vmem:[#allocation6 + $0xa0] sm:$0xff]
      %v359 = vld [vmem:[#allocation6 + $0xa8] sm:$0xff]
      %v360 = vld [vmem:[#allocation6 + $0xb0] sm:$0xff]
      %v361 = vld [vmem:[#allocation6 + $0xb8] sm:$0xff]
      %v362 = vld [vmem:[#allocation6 + $0xc0] sm:$0xff]
      %v363 = vld [vmem:[#allocation6 + $0xc8] sm:$0xff]
      %v364 = vld [vmem:[#allocation6 + $0xd0] sm:$0xff]
      %v365 = vld [vmem:[#allocation6 + $0xd8] sm:$0xff]
      %v366 = vld [vmem:[#allocation6 + $0xe0] sm:$0xff]
      %v367 = vld [vmem:[#allocation6 + $0xe8] sm:$0xff]
      %v368 = vld [vmem:[#allocation6 + $0xf0] sm:$0xff]
      %v369 = vld [vmem:[#allocation6 + $0xf8] sm:$0xff]
      %v370 = vld [vmem:[#allocation6 + $0x100] sm:$0xff]
      %v371 = vld [vmem:[#allocation6 + $0x108] sm:$0xff]
      %v372 = vld [vmem:[#allocation6 + $0x110] sm:$0xff]
      %v373 = vld [vmem:[#allocation6 + $0x118] sm:$0xff]
      %v374 = vld [vmem:[#allocation6 + $0x120] sm:$0xff]
      %v375 = vld [vmem:[#allocation6 + $0x128] sm:$0xff]
      %v376 = vld [vmem:[#allocation6 + $0x130] sm:$0xff]
      %v377 = vld [vmem:[#allocation6 + $0x138] sm:$0xff]
      %v378 = vld [vmem:[#allocation6 + $0x140] sm:$0xff]
      %v379 = vld [vmem:[#allocation6 + $0x148] sm:$0xff]
      %v380 = vld [vmem:[#allocation6 + $0x150] sm:$0xff]
      %v381 = vld [vmem:[#allocation6 + $0x158] sm:$0xff]
      %v382 = vld [vmem:[#allocation6 + $0x160] sm:$0xff]
      %v383 = vld [vmem:[#allocation6 + $0x168] sm:$0xff]
      %v384 = vld [vmem:[#allocation6 + $0x170] sm:$0xff]
      %v385 = vld [vmem:[#allocation6 + $0x178] sm:$0xff]
      %v386 = vld [vmem:[#allocation6 + $0x180] sm:$0xff]
      %v387 = vld [vmem:[#allocation6 + $0x188] sm:$0xff]
      %v388 = vld [vmem:[#allocation6 + $0x190] sm:$0xff]
      %v389 = vld [vmem:[#allocation6 + $0x198] sm:$0xff]
      %v390 = vld [vmem:[#allocation6 + $0x1a0] sm:$0xff]
      %v391 = vld [vmem:[#allocation6 + $0x1a8] sm:$0xff]
      %v392 = vld [vmem:[#allocation6 + $0x1b0] sm:$0xff]
      %v393 = vld [vmem:[#allocation6 + $0x1b8] sm:$0xff]
      %v394 = vld [vmem:[#allocation6 + $0x1c0] sm:$0xff]
      %v395 = vld [vmem:[#allocation6 + $0x1c8] sm:$0xff]
      %v396 = vld [vmem:[#allocation6 + $0x1d0] sm:$0xff]
      %v397 = vld [vmem:[#allocation6 + $0x1d8] sm:$0xff]
      %v398 = vld [vmem:[#allocation6 + $0x1e0] sm:$0xff]
      %v399 = vld [vmem:[#allocation6 + $0x1e8] sm:$0xff]
      %v400 = vld [vmem:[#allocation6 + $0x1f0] sm:$0xff]
      %v401 = vld [vmem:[#allocation6 + $0x1f8] sm:$0xff]
      %v402 = vld [vmem:[#allocation6 + $0x200] sm:$0xff]
      %v403 = vld [vmem:[#allocation6 + $0x208] sm:$0xff]
      %v404 = vld [vmem:[#allocation6 + $0x210] sm:$0xff]
      %v405 = vld [vmem:[#allocation6 + $0x218] sm:$0xff]
      %v406 = vld [vmem:[#allocation6 + $0x220] sm:$0xff]
      %v407 = vld [vmem:[#allocation6 + $0x228] sm:$0xff]
      %v408 = vld [vmem:[#allocation6 + $0x230] sm:$0xff]
      %v409 = vld [vmem:[#allocation6 + $0x238] sm:$0xff]
      %v410 = vld [vmem:[#allocation6 + $0x240] sm:$0xff]
      %v411 = vld [vmem:[#allocation6 + $0x248] sm:$0xff]
      %v412 = vld [vmem:[#allocation6 + $0x250] sm:$0xff]
      %v413 = vld [vmem:[#allocation6 + $0x258] sm:$0xff]
      %v414 = vld [vmem:[#allocation6 + $0x260] sm:$0xff]
      %v415 = vld [vmem:[#allocation6 + $0x268] sm:$0xff]
      %v416 = vld [vmem:[#allocation6 + $0x270] sm:$0xff]
      %v417 = vld [vmem:[#allocation6 + $0x278] sm:$0xff]
      %v418 = vld [vmem:[#allocation6 + $0x280] sm:$0xff]
      %v419 = vld [vmem:[#allocation6 + $0x288] sm:$0xff]
      %v420 = vld [vmem:[#allocation6 + $0x290] sm:$0xff]
      %v421 = vld [vmem:[#allocation6 + $0x298] sm:$0xff]
      %v422 = vld [vmem:[#allocation6 + $0x2a0] sm:$0xff]
      %v423 = vld [vmem:[#allocation6 + $0x2a8] sm:$0xff]
      %v424 = vld [vmem:[#allocation6 + $0x2b0] sm:$0xff]
      %v425 = vld [vmem:[#allocation6 + $0x2b8] sm:$0xff]
      %v426 = vld [vmem:[#allocation6 + $0x2c0] sm:$0xff]
      %v427 = vld [vmem:[#allocation6 + $0x2c8] sm:$0xff]
      %v428 = vld [vmem:[#allocation6 + $0x2d0] sm:$0xff]
      %v429 = vld [vmem:[#allocation6 + $0x2d8] sm:$0xff]
      %v430 = vld [vmem:[#allocation6 + $0x2e0] sm:$0xff]
      %v431 = vld [vmem:[#allocation6 + $0x2e8] sm:$0xff]
      %v432 = vld [vmem:[#allocation6 + $0x2f0] sm:$0xff]
      %v433 = vld [vmem:[#allocation6 + $0x2f8] sm:$0xff]
      %v434 = vld [vmem:[#allocation6 + $0x300] sm:$0xff]
      %v435 = vld [vmem:[#allocation6 + $0x308] sm:$0xff]
      %v436 = vld [vmem:[#allocation6 + $0x310] sm:$0xff]
      %v437 = vld [vmem:[#allocation6 + $0x318] sm:$0xff]
      %v438 = vld [vmem:[#allocation6 + $0x320] sm:$0xff]
      %v439 = vld [vmem:[#allocation6 + $0x328] sm:$0xff]
      %v440 = vld [vmem:[#allocation6 + $0x330] sm:$0xff]
      %v441 = vld [vmem:[#allocation6 + $0x338] sm:$0xff]
      %v442 = vld [vmem:[#allocation6 + $0x340] sm:$0xff]
      %v443 = vld [vmem:[#allocation6 + $0x348] sm:$0xff]
      %v444 = vld [vmem:[#allocation6 + $0x350] sm:$0xff]
      %v445 = vld [vmem:[#allocation6 + $0x358] sm:$0xff]
      %v446 = vld [vmem:[#allocation6 + $0x360] sm:$0xff]
      %v447 = vld [vmem:[#allocation6 + $0x368] sm:$0xff]
      %v448 = vld [vmem:[#allocation6 + $0x370] sm:$0xff]
      %v449 = vld [vmem:[#allocation6 + $0x378] sm:$0xff]
      %v450 = vld [vmem:[#allocation6 + $0x380] sm:$0xff]
      %v451 = vld [vmem:[#allocation6 + $0x388] sm:$0xff]
      %v452 = vld [vmem:[#allocation6 + $0x390] sm:$0xff]
      %v453 = vld [vmem:[#allocation6 + $0x398] sm:$0xff]
      %v454 = vld [vmem:[#allocation6 + $0x3a0] sm:$0xff]
      %v455 = vld [vmem:[#allocation6 + $0x3a8] sm:$0xff]
      %v456 = vld [vmem:[#allocation6 + $0x3b0] sm:$0xff]
      %v457 = vld [vmem:[#allocation6 + $0x3b8] sm:$0xff]
      %v458 = vld [vmem:[#allocation6 + $0x3c0] sm:$0xff]
      %v459 = vld [vmem:[#allocation6 + $0x3c8] sm:$0xff]
      %v460 = vld [vmem:[#allocation6 + $0x3d0] sm:$0xff]
      %v461 = vld [vmem:[#allocation6 + $0x3d8] sm:$0xff]
      %v462 = vld [vmem:[#allocation6 + $0x3e0] sm:$0xff]
      %v463 = vld [vmem:[#allocation6 + $0x3e8] sm:$0xff]
      %v464 = vld [vmem:[#allocation6 + $0x3f0] sm:$0xff]
      %v465 = vld [vmem:[#allocation6 + $0x3f8] sm:$0xff]
      %v594 = vunpack.c.l.b16 %v338
      %v595 = vunpack.c.h.b16 %v338
      %v596 = vunpack.c.l.b16 %v339
      %v597 = vunpack.c.h.b16 %v339
      %v598 = vunpack.c.l.b16 %v340
      %v599 = vunpack.c.h.b16 %v340
      %v600 = vunpack.c.l.b16 %v341
      %v601 = vunpack.c.h.b16 %v341
      %v602 = vunpack.c.l.b16 %v342
      %v603 = vunpack.c.h.b16 %v342
      %v604 = vunpack.c.l.b16 %v343
      %v605 = vunpack.c.h.b16 %v343
      %v606 = vunpack.c.l.b16 %v344
      %v607 = vunpack.c.h.b16 %v344
      %v608 = vunpack.c.l.b16 %v345
      %v609 = vunpack.c.h.b16 %v345
      %v610 = vunpack.c.l.b16 %v346
      %v611 = vunpack.c.h.b16 %v346
      %v612 = vunpack.c.l.b16 %v347
      %v613 = vunpack.c.h.b16 %v347
      %v614 = vunpack.c.l.b16 %v348
      %v615 = vunpack.c.h.b16 %v348
      %v616 = vunpack.c.l.b16 %v349
      %v617 = vunpack.c.h.b16 %v349
      %v618 = vunpack.c.l.b16 %v350
      %v619 = vunpack.c.h.b16 %v350
      %v620 = vunpack.c.l.b16 %v351
      %v621 = vunpack.c.h.b16 %v351
      %v622 = vunpack.c.l.b16 %v352
      %v623 = vunpack.c.h.b16 %v352
      %v624 = vunpack.c.l.b16 %v353
      %v625 = vunpack.c.h.b16 %v353
      %v626 = vunpack.c.l.b16 %v354
      %v627 = vunpack.c.h.b16 %v354
      %v628 = vunpack.c.l.b16 %v355
      %v629 = vunpack.c.h.b16 %v355
      %v630 = vunpack.c.l.b16 %v356
      %v631 = vunpack.c.h.b16 %v356
      %v632 = vunpack.c.l.b16 %v357
      %v633 = vunpack.c.h.b16 %v357
      %v634 = vunpack.c.l.b16 %v358
      %v635 = vunpack.c.h.b16 %v358
      %v636 = vunpack.c.l.b16 %v359
      %v637 = vunpack.c.h.b16 %v359
      %v638 = vunpack.c.l.b16 %v360
      %v639 = vunpack.c.h.b16 %v360
      %v640 = vunpack.c.l.b16 %v361
      %v641 = vunpack.c.h.b16 %v361
      %v642 = vunpack.c.l.b16 %v362
      %v643 = vunpack.c.h.b16 %v362
      %v644 = vunpack.c.l.b16 %v363
      %v645 = vunpack.c.h.b16 %v363
      %v646 = vunpack.c.l.b16 %v364
      %v647 = vunpack.c.h.b16 %v364
      %v648 = vunpack.c.l.b16 %v365
      %v649 = vunpack.c.h.b16 %v365
      %v650 = vunpack.c.l.b16 %v366
      %v651 = vunpack.c.h.b16 %v366
      %v652 = vunpack.c.l.b16 %v367
      %v653 = vunpack.c.h.b16 %v367
      %v654 = vunpack.c.l.b16 %v368
      %v655 = vunpack.c.h.b16 %v368
      %v656 = vunpack.c.l.b16 %v369
      %v657 = vunpack.c.h.b16 %v369
      %v658 = vunpack.c.l.b16 %v370
      %v659 = vunpack.c.h.b16 %v370
      %v660 = vunpack.c.l.b16 %v371
      %v661 = vunpack.c.h.b16 %v371
      %v662 = vunpack.c.l.b16 %v372
      %v663 = vunpack.c.h.b16 %v372
      %v664 = vunpack.c.l.b16 %v373
      %v665 = vunpack.c.h.b16 %v373
      %v666 = vunpack.c.l.b16 %v374
      %v667 = vunpack.c.h.b16 %v374
      %v668 = vunpack.c.l.b16 %v375
      %v669 = vunpack.c.h.b16 %v375
      %v670 = vunpack.c.l.b16 %v376
      %v671 = vunpack.c.h.b16 %v376
      %v672 = vunpack.c.l.b16 %v377
      %v673 = vunpack.c.h.b16 %v377
      %v674 = vunpack.c.l.b16 %v378
      %v675 = vunpack.c.h.b16 %v378
      %v676 = vunpack.c.l.b16 %v379
      %v677 = vunpack.c.h.b16 %v379
      %v678 = vunpack.c.l.b16 %v380
      %v679 = vunpack.c.h.b16 %v380
      %v680 = vunpack.c.l.b16 %v381
      %v681 = vunpack.c.h.b16 %v381
      %v682 = vunpack.c.l.b16 %v382
      %v683 = vunpack.c.h.b16 %v382
      %v684 = vunpack.c.l.b16 %v383
      %v685 = vunpack.c.h.b16 %v383
      %v686 = vunpack.c.l.b16 %v384
      %v687 = vunpack.c.h.b16 %v384
      %v688 = vunpack.c.l.b16 %v385
      %v689 = vunpack.c.h.b16 %v385
      %v690 = vunpack.c.l.b16 %v386
      %v691 = vunpack.c.h.b16 %v386
      %v692 = vunpack.c.l.b16 %v387
      %v693 = vunpack.c.h.b16 %v387
      %v694 = vunpack.c.l.b16 %v388
      %v695 = vunpack.c.h.b16 %v388
      %v696 = vunpack.c.l.b16 %v389
      %v697 = vunpack.c.h.b16 %v389
      %v698 = vunpack.c.l.b16 %v390
      %v699 = vunpack.c.h.b16 %v390
      %v700 = vunpack.c.l.b16 %v391
      %v701 = vunpack.c.h.b16 %v391
      %v702 = vunpack.c.l.b16 %v392
      %v703 = vunpack.c.h.b16 %v392
      %v704 = vunpack.c.l.b16 %v393
      %v705 = vunpack.c.h.b16 %v393
      %v706 = vunpack.c.l.b16 %v394
      %v707 = vunpack.c.h.b16 %v394
      %v708 = vunpack.c.l.b16 %v395
      %v709 = vunpack.c.h.b16 %v395
      %v710 = vunpack.c.l.b16 %v396
      %v711 = vunpack.c.h.b16 %v396
      %v712 = vunpack.c.l.b16 %v397
      %v713 = vunpack.c.h.b16 %v397
      %v714 = vunpack.c.l.b16 %v398
      %v715 = vunpack.c.h.b16 %v398
      %v716 = vunpack.c.l.b16 %v399
      %v717 = vunpack.c.h.b16 %v399
      %v718 = vunpack.c.l.b16 %v400
      %v719 = vunpack.c.h.b16 %v400
      %v720 = vunpack.c.l.b16 %v401
      %v721 = vunpack.c.h.b16 %v401
      %v722 = vunpack.c.l.b16 %v402
      %v723 = vunpack.c.h.b16 %v402
      %v724 = vunpack.c.l.b16 %v403
      %v725 = vunpack.c.h.b16 %v403
      %v726 = vunpack.c.l.b16 %v404
      %v727 = vunpack.c.h.b16 %v404
      %v728 = vunpack.c.l.b16 %v405
      %v729 = vunpack.c.h.b16 %v405
      %v730 = vunpack.c.l.b16 %v406
      %v731 = vunpack.c.h.b16 %v406
      %v732 = vunpack.c.l.b16 %v407
      %v733 = vunpack.c.h.b16 %v407
      %v734 = vunpack.c.l.b16 %v408
      %v735 = vunpack.c.h.b16 %v408
      %v736 = vunpack.c.l.b16 %v409
      %v737 = vunpack.c.h.b16 %v409
      %v738 = vunpack.c.l.b16 %v410
      %v739 = vunpack.c.h.b16 %v410
      %v740 = vunpack.c.l.b16 %v411
      %v741 = vunpack.c.h.b16 %v411
      %v742 = vunpack.c.l.b16 %v412
      %v743 = vunpack.c.h.b16 %v412
      %v744 = vunpack.c.l.b16 %v413
      %v745 = vunpack.c.h.b16 %v413
      %v746 = vunpack.c.l.b16 %v414
      %v747 = vunpack.c.h.b16 %v414
      %v748 = vunpack.c.l.b16 %v415
      %v749 = vunpack.c.h.b16 %v415
      %v750 = vunpack.c.l.b16 %v416
      %v751 = vunpack.c.h.b16 %v416
      %v752 = vunpack.c.l.b16 %v417
      %v753 = vunpack.c.h.b16 %v417
      %v754 = vunpack.c.l.b16 %v418
      %v755 = vunpack.c.h.b16 %v418
      %v756 = vunpack.c.l.b16 %v419
      %v757 = vunpack.c.h.b16 %v419
      %v758 = vunpack.c.l.b16 %v420
      %v759 = vunpack.c.h.b16 %v420
      %v760 = vunpack.c.l.b16 %v421
      %v761 = vunpack.c.h.b16 %v421
      %v762 = vunpack.c.l.b16 %v422
      %v763 = vunpack.c.h.b16 %v422
      %v764 = vunpack.c.l.b16 %v423
      %v765 = vunpack.c.h.b16 %v423
      %v766 = vunpack.c.l.b16 %v424
      %v767 = vunpack.c.h.b16 %v424
      %v768 = vunpack.c.l.b16 %v425
      %v769 = vunpack.c.h.b16 %v425
      %v770 = vunpack.c.l.b16 %v426
      %v771 = vunpack.c.h.b16 %v426
      %v772 = vunpack.c.l.b16 %v427
      %v773 = vunpack.c.h.b16 %v427
      %v774 = vunpack.c.l.b16 %v428
      %v775 = vunpack.c.h.b16 %v428
      %v776 = vunpack.c.l.b16 %v429
      %v777 = vunpack.c.h.b16 %v429
      %v778 = vunpack.c.l.b16 %v430
      %v779 = vunpack.c.h.b16 %v430
      %v780 = vunpack.c.l.b16 %v431
      %v781 = vunpack.c.h.b16 %v431
      %v782 = vunpack.c.l.b16 %v432
      %v783 = vunpack.c.h.b16 %v432
      %v784 = vunpack.c.l.b16 %v433
      %v785 = vunpack.c.h.b16 %v433
      %v786 = vunpack.c.l.b16 %v434
      %v787 = vunpack.c.h.b16 %v434
      %v788 = vunpack.c.l.b16 %v435
      %v789 = vunpack.c.h.b16 %v435
      %v790 = vunpack.c.l.b16 %v436
      %v791 = vunpack.c.h.b16 %v436
      %v792 = vunpack.c.l.b16 %v437
      %v793 = vunpack.c.h.b16 %v437
      %v794 = vunpack.c.l.b16 %v438
      %v795 = vunpack.c.h.b16 %v438
      %v796 = vunpack.c.l.b16 %v439
      %v797 = vunpack.c.h.b16 %v439
      %v798 = vunpack.c.l.b16 %v440
      %v799 = vunpack.c.h.b16 %v440
      %v800 = vunpack.c.l.b16 %v441
      %v801 = vunpack.c.h.b16 %v441
      %v802 = vunpack.c.l.b16 %v442
      %v803 = vunpack.c.h.b16 %v442
      %v804 = vunpack.c.l.b16 %v443
      %v805 = vunpack.c.h.b16 %v443
      %v806 = vunpack.c.l.b16 %v444
      %v807 = vunpack.c.h.b16 %v444
      %v808 = vunpack.c.l.b16 %v445
      %v809 = vunpack.c.h.b16 %v445
      %v810 = vunpack.c.l.b16 %v446
      %v811 = vunpack.c.h.b16 %v446
      %v812 = vunpack.c.l.b16 %v447
      %v813 = vunpack.c.h.b16 %v447
      %v814 = vunpack.c.l.b16 %v448
      %v815 = vunpack.c.h.b16 %v448
      %v816 = vunpack.c.l.b16 %v449
      %v817 = vunpack.c.h.b16 %v449
      %v818 = vunpack.c.l.b16 %v450
      %v819 = vunpack.c.h.b16 %v450
      %v820 = vunpack.c.l.b16 %v451
      %v821 = vunpack.c.h.b16 %v451
      %v822 = vunpack.c.l.b16 %v452
      %v823 = vunpack.c.h.b16 %v452
      %v824 = vunpack.c.l.b16 %v453
      %v825 = vunpack.c.h.b16 %v453
      %v826 = vunpack.c.l.b16 %v454
      %v827 = vunpack.c.h.b16 %v454
      %v828 = vunpack.c.l.b16 %v455
      %v829 = vunpack.c.h.b16 %v455
      %v830 = vunpack.c.l.b16 %v456
      %v831 = vunpack.c.h.b16 %v456
      %v832 = vunpack.c.l.b16 %v457
      %v833 = vunpack.c.h.b16 %v457
      %v834 = vunpack.c.l.b16 %v458
      %v835 = vunpack.c.h.b16 %v458
      %v836 = vunpack.c.l.b16 %v459
      %v837 = vunpack.c.h.b16 %v459
      %v838 = vunpack.c.l.b16 %v460
      %v839 = vunpack.c.h.b16 %v460
      %v840 = vunpack.c.l.b16 %v461
      %v841 = vunpack.c.h.b16 %v461
      %v842 = vunpack.c.l.b16 %v462
      %v843 = vunpack.c.h.b16 %v462
      %v844 = vunpack.c.l.b16 %v463
      %v845 = vunpack.c.h.b16 %v463
      %v846 = vunpack.c.l.b16 %v464
      %v847 = vunpack.c.h.b16 %v464
      %v848 = vunpack.c.l.b16 %v465
      %v849 = vunpack.c.h.b16 %v465
      %v850 = vpack.c.b16 %v602, %v594
      %v851 = vpack.c.b16 %v603, %v595
      %v852 = vpack.c.b16 %v604, %v596
      %v853 = vpack.c.b16 %v605, %v597
      %v854 = vpack.c.b16 %v606, %v598
      %v855 = vpack.c.b16 %v607, %v599
      %v856 = vpack.c.b16 %v608, %v600
      %v857 = vpack.c.b16 %v609, %v601
      %v858 = vpack.c.b16 %v618, %v610
      %v859 = vpack.c.b16 %v619, %v611
      %v860 = vpack.c.b16 %v620, %v612
      %v861 = vpack.c.b16 %v621, %v613
      %v862 = vpack.c.b16 %v622, %v614
      %v863 = vpack.c.b16 %v623, %v615
      %v864 = vpack.c.b16 %v624, %v616
      %v865 = vpack.c.b16 %v625, %v617
      %v866 = vpack.c.b16 %v634, %v626
      %v867 = vpack.c.b16 %v635, %v627
      %v868 = vpack.c.b16 %v636, %v628
      %v869 = vpack.c.b16 %v637, %v629
      %v870 = vpack.c.b16 %v638, %v630
      %v871 = vpack.c.b16 %v639, %v631
      %v872 = vpack.c.b16 %v640, %v632
      %v873 = vpack.c.b16 %v641, %v633
      %v874 = vpack.c.b16 %v650, %v642
      %v875 = vpack.c.b16 %v651, %v643
      %v876 = vpack.c.b16 %v652, %v644
      %v877 = vpack.c.b16 %v653, %v645
      %v878 = vpack.c.b16 %v654, %v646
      %v879 = vpack.c.b16 %v655, %v647
      %v880 = vpack.c.b16 %v656, %v648
      %v881 = vpack.c.b16 %v657, %v649
      %v882 = vpack.c.b16 %v666, %v658
      %v883 = vpack.c.b16 %v667, %v659
      %v884 = vpack.c.b16 %v668, %v660
      %v885 = vpack.c.b16 %v669, %v661
      %v886 = vpack.c.b16 %v670, %v662
      %v887 = vpack.c.b16 %v671, %v663
      %v888 = vpack.c.b16 %v672, %v664
      %v889 = vpack.c.b16 %v673, %v665
      %v890 = vpack.c.b16 %v682, %v674
      %v891 = vpack.c.b16 %v683, %v675
      %v892 = vpack.c.b16 %v684, %v676
      %v893 = vpack.c.b16 %v685, %v677
      %v894 = vpack.c.b16 %v686, %v678
      %v895 = vpack.c.b16 %v687, %v679
      %v896 = vpack.c.b16 %v688, %v680
      %v897 = vpack.c.b16 %v689, %v681
      %v898 = vpack.c.b16 %v698, %v690
      %v899 = vpack.c.b16 %v699, %v691
      %v900 = vpack.c.b16 %v700, %v692
      %v901 = vpack.c.b16 %v701, %v693
      %v902 = vpack.c.b16 %v702, %v694
      %v903 = vpack.c.b16 %v703, %v695
      %v904 = vpack.c.b16 %v704, %v696
      %v905 = vpack.c.b16 %v705, %v697
      %v906 = vpack.c.b16 %v714, %v706
      %v907 = vpack.c.b16 %v715, %v707
      %v908 = vpack.c.b16 %v716, %v708
      %v909 = vpack.c.b16 %v717, %v709
      %v910 = vpack.c.b16 %v718, %v710
      %v911 = vpack.c.b16 %v719, %v711
      %v912 = vpack.c.b16 %v720, %v712
      %v913 = vpack.c.b16 %v721, %v713
      %v914 = vpack.c.b16 %v730, %v722
      %v915 = vpack.c.b16 %v731, %v723
      %v916 = vpack.c.b16 %v732, %v724
      %v917 = vpack.c.b16 %v733, %v725
      %v918 = vpack.c.b16 %v734, %v726
      %v919 = vpack.c.b16 %v735, %v727
      %v920 = vpack.c.b16 %v736, %v728
      %v921 = vpack.c.b16 %v737, %v729
      %v922 = vpack.c.b16 %v746, %v738
      %v923 = vpack.c.b16 %v747, %v739
      %v924 = vpack.c.b16 %v748, %v740
      %v925 = vpack.c.b16 %v749, %v741
      %v926 = vpack.c.b16 %v750, %v742
      %v927 = vpack.c.b16 %v751, %v743
      %v928 = vpack.c.b16 %v752, %v744
      %v929 = vpack.c.b16 %v753, %v745
      %v930 = vpack.c.b16 %v762, %v754
      %v931 = vpack.c.b16 %v763, %v755
      %v932 = vpack.c.b16 %v764, %v756
      %v933 = vpack.c.b16 %v765, %v757
      %v934 = vpack.c.b16 %v766, %v758
      %v935 = vpack.c.b16 %v767, %v759
      %v936 = vpack.c.b16 %v768, %v760
      %v937 = vpack.c.b16 %v769, %v761
      %v938 = vpack.c.b16 %v778, %v770
      %v939 = vpack.c.b16 %v779, %v771
      %v940 = vpack.c.b16 %v780, %v772
      %v941 = vpack.c.b16 %v781, %v773
      %v942 = vpack.c.b16 %v782, %v774
      %v943 = vpack.c.b16 %v783, %v775
      %v944 = vpack.c.b16 %v784, %v776
      %v945 = vpack.c.b16 %v785, %v777
      %v946 = vpack.c.b16 %v794, %v786
      %v947 = vpack.c.b16 %v795, %v787
      %v948 = vpack.c.b16 %v796, %v788
      %v949 = vpack.c.b16 %v797, %v789
      %v950 = vpack.c.b16 %v798, %v790
      %v951 = vpack.c.b16 %v799, %v791
      %v952 = vpack.c.b16 %v800, %v792
      %v953 = vpack.c.b16 %v801, %v793
      %v954 = vpack.c.b16 %v810, %v802
      %v955 = vpack.c.b16 %v811, %v803
      %v956 = vpack.c.b16 %v812, %v804
      %v957 = vpack.c.b16 %v813, %v805
      %v958 = vpack.c.b16 %v814, %v806
      %v959 = vpack.c.b16 %v815, %v807
      %v960 = vpack.c.b16 %v816, %v808
      %v961 = vpack.c.b16 %v817, %v809
      %v962 = vpack.c.b16 %v826, %v818
      %v963 = vpack.c.b16 %v827, %v819
      %v964 = vpack.c.b16 %v828, %v820
      %v965 = vpack.c.b16 %v829, %v821
      %v966 = vpack.c.b16 %v830, %v822
      %v967 = vpack.c.b16 %v831, %v823
      %v968 = vpack.c.b16 %v832, %v824
      %v969 = vpack.c.b16 %v833, %v825
      %v970 = vpack.c.b16 %v842, %v834
      %v971 = vpack.c.b16 %v843, %v835
      %v972 = vpack.c.b16 %v844, %v836
      %v973 = vpack.c.b16 %v845, %v837
      %v974 = vpack.c.b16 %v846, %v838
      %v975 = vpack.c.b16 %v847, %v839
      %v976 = vpack.c.b16 %v848, %v840
      %v977 = vpack.c.b16 %v849, %v841
      %1106 = vmatpush.bf16.msra.mxu0 %v906
      %1107 = vmatpush.bf16.msra.mxu0 %v898
      %1108 = vmatpush.bf16.msra.mxu0 %v890
      %1109 = vmatpush.bf16.msra.mxu0 %v882
      %1110 = vmatpush.bf16.msra.mxu0 %v874
      %1111 = vmatpush.bf16.msra.mxu0 %v866
      %1112 = vmatpush.bf16.msra.mxu0 %v858
      %1113 = vmatpush.bf16.msra.mxu0 %v850
      %1114 = vmatmul.bf16.gmra.mxu0 %v336
      %v1115 = vpop.f32.mrf.mxu0
      %v1116 = vadd.f32 0.0, %v1115
      %v1117 = vpop.f32.mrf.mxu0
      %1118 = vdwg.mxu0
      %1119 = vmatpush.bf16.msra.mxu0 %v970
      %1120 = vmatpush.bf16.msra.mxu0 %v962
      %1121 = vmatpush.bf16.msra.mxu0 %v954
      %1122 = vmatpush.bf16.msra.mxu0 %v946
      %1123 = vmatpush.bf16.msra.mxu0 %v938
      %1124 = vmatpush.bf16.msra.mxu0 %v930
      %1125 = vmatpush.bf16.msra.mxu0 %v922
      %1126 = vmatpush.bf16.msra.mxu0 %v914
      %1127 = vmatmul.bf16.gmra.mxu0 %v337
      %v1128 = vpop.f32.mrf.mxu0
      %v1129 = vadd.f32 %v1116, %v1128
      %v1130 = vpop.f32.mrf.mxu0
      %1131 = vdwg.mxu0
      %1132 = vmatpush.bf16.msra.mxu0 %v907
      %1133 = vmatpush.bf16.msra.mxu0 %v899
      %1134 = vmatpush.bf16.msra.mxu0 %v891
      %1135 = vmatpush.bf16.msra.mxu0 %v883
      %1136 = vmatpush.bf16.msra.mxu0 %v875
      %1137 = vmatpush.bf16.msra.mxu0 %v867
      %1138 = vmatpush.bf16.msra.mxu0 %v859
      %1139 = vmatpush.bf16.msra.mxu0 %v851
      %1140 = vmatmul.bf16.gmra.mxu0 %v336
      %v1141 = vpop.f32.mrf.mxu0
      %v1142 = vadd.f32 0.0, %v1141
      %v1143 = vpop.f32.mrf.mxu0
      %1144 = vdwg.mxu0
      %1145 = vmatpush.bf16.msra.mxu0 %v971
      %1146 = vmatpush.bf16.msra.mxu0 %v963
      %1147 = vmatpush.bf16.msra.mxu0 %v955
      %1148 = vmatpush.bf16.msra.mxu0 %v947
      %1149 = vmatpush.bf16.msra.mxu0 %v939
      %1150 = vmatpush.bf16.msra.mxu0 %v931
      %1151 = vmatpush.bf16.msra.mxu0 %v923
      %1152 = vmatpush.bf16.msra.mxu0 %v915
      %1153 = vmatmul.bf16.gmra.mxu0 %v337
      %v1154 = vpop.f32.mrf.mxu0
      %v1155 = vadd.f32 %v1142, %v1154
      %v1156 = vpop.f32.mrf.mxu0
      %1157 = vdwg.mxu0
      %1158 = vmatpush.bf16.msra.mxu0 %v908
      %1159 = vmatpush.bf16.msra.mxu0 %v900
      %1160 = vmatpush.bf16.msra.mxu0 %v892
      %1161 = vmatpush.bf16.msra.mxu0 %v884
      %1162 = vmatpush.bf16.msra.mxu0 %v876
      %1163 = vmatpush.bf16.msra.mxu0 %v868
      %1164 = vmatpush.bf16.msra.mxu0 %v860
      %1165 = vmatpush.bf16.msra.mxu0 %v852
      %1166 = vmatmul.bf16.gmra.mxu0 %v336
      %v1167 = vpop.f32.mrf.mxu0
      %v1168 = vadd.f32 0.0, %v1167
      %v1169 = vpop.f32.mrf.mxu0
      %1170 = vdwg.mxu0
      %1171 = vmatpush.bf16.msra.mxu0 %v972
      %1172 = vmatpush.bf16.msra.mxu0 %v964
      %1173 = vmatpush.bf16.msra.mxu0 %v956
      %1174 = vmatpush.bf16.msra.mxu0 %v948
      %1175 = vmatpush.bf16.msra.mxu0 %v940
      %1176 = vmatpush.bf16.msra.mxu0 %v932
      %1177 = vmatpush.bf16.msra.mxu0 %v924
      %1178 = vmatpush.bf16.msra.mxu0 %v916
      %1179 = vmatmul.bf16.gmra.mxu0 %v337
      %v1180 = vpop.f32.mrf.mxu0
      %v1181 = vadd.f32 %v1168, %v1180
      %v1182 = vpop.f32.mrf.mxu0
      %1183 = vdwg.mxu0
      %1184 = vmatpush.bf16.msra.mxu0 %v909
      %1185 = vmatpush.bf16.msra.mxu0 %v901
      %1186 = vmatpush.bf16.msra.mxu0 %v893
      %1187 = vmatpush.bf16.msra.mxu0 %v885
      %1188 = vmatpush.bf16.msra.mxu0 %v877
      %1189 = vmatpush.bf16.msra.mxu0 %v869
      %1190 = vmatpush.bf16.msra.mxu0 %v861
      %1191 = vmatpush.bf16.msra.mxu0 %v853
      %1192 = vmatmul.bf16.gmra.mxu0 %v336
      %v1193 = vpop.f32.mrf.mxu0
      %v1194 = vadd.f32 0.0, %v1193
      %v1195 = vpop.f32.mrf.mxu0
      %1196 = vdwg.mxu0
      %1197 = vmatpush.bf16.msra.mxu0 %v973
      %1198 = vmatpush.bf16.msra.mxu0 %v965
      %1199 = vmatpush.bf16.msra.mxu0 %v957
      %1200 = vmatpush.bf16.msra.mxu0 %v949
      %1201 = vmatpush.bf16.msra.mxu0 %v941
      %1202 = vmatpush.bf16.msra.mxu0 %v933
      %1203 = vmatpush.bf16.msra.mxu0 %v925
      %1204 = vmatpush.bf16.msra.mxu0 %v917
      %1205 = vmatmul.bf16.gmra.mxu0 %v337
      %v1206 = vpop.f32.mrf.mxu0
      %v1207 = vadd.f32 %v1194, %v1206
      %v1208 = vpop.f32.mrf.mxu0
      %1209 = vdwg.mxu0
      %1210 = vmatpush.bf16.msra.mxu0 %v910
      %1211 = vmatpush.bf16.msra.mxu0 %v902
      %1212 = vmatpush.bf16.msra.mxu0 %v894
      %1213 = vmatpush.bf16.msra.mxu0 %v886
      %1214 = vmatpush.bf16.msra.mxu0 %v878
      %1215 = vmatpush.bf16.msra.mxu0 %v870
      %1216 = vmatpush.bf16.msra.mxu0 %v862
      %1217 = vmatpush.bf16.msra.mxu0 %v854
      %1218 = vmatmul.bf16.gmra.mxu0 %v336
      %v1219 = vpop.f32.mrf.mxu0
      %v1220 = vadd.f32 0.0, %v1219
      %v1221 = vpop.f32.mrf.mxu0
      %1222 = vdwg.mxu0
      %1223 = vmatpush.bf16.msra.mxu0 %v974
      %1224 = vmatpush.bf16.msra.mxu0 %v966
      %1225 = vmatpush.bf16.msra.mxu0 %v958
      %1226 = vmatpush.bf16.msra.mxu0 %v950
      %1227 = vmatpush.bf16.msra.mxu0 %v942
      %1228 = vmatpush.bf16.msra.mxu0 %v934
      %1229 = vmatpush.bf16.msra.mxu0 %v926
      %1230 = vmatpush.bf16.msra.mxu0 %v918
      %1231 = vmatmul.bf16.gmra.mxu0 %v337
      %v1232 = vpop.f32.mrf.mxu0
      %v1233 = vadd.f32 %v1220, %v1232
      %v1234 = vpop.f32.mrf.mxu0
      %1235 = vdwg.mxu0
      %1236 = vmatpush.bf16.msra.mxu0 %v911
      %1237 = vmatpush.bf16.msra.mxu0 %v903
      %1238 = vmatpush.bf16.msra.mxu0 %v895
      %1239 = vmatpush.bf16.msra.mxu0 %v887
      %1240 = vmatpush.bf16.msra.mxu0 %v879
      %1241 = vmatpush.bf16.msra.mxu0 %v871
      %1242 = vmatpush.bf16.msra.mxu0 %v863
      %1243 = vmatpush.bf16.msra.mxu0 %v855
      %1244 = vmatmul.bf16.gmra.mxu0 %v336
      %v1245 = vpop.f32.mrf.mxu0
      %v1246 = vadd.f32 0.0, %v1245
      %v1247 = vpop.f32.mrf.mxu0
      %1248 = vdwg.mxu0
      %1249 = vmatpush.bf16.msra.mxu0 %v975
      %1250 = vmatpush.bf16.msra.mxu0 %v967
      %1251 = vmatpush.bf16.msra.mxu0 %v959
      %1252 = vmatpush.bf16.msra.mxu0 %v951
      %1253 = vmatpush.bf16.msra.mxu0 %v943
      %1254 = vmatpush.bf16.msra.mxu0 %v935
      %1255 = vmatpush.bf16.msra.mxu0 %v927
      %1256 = vmatpush.bf16.msra.mxu0 %v919
      %1257 = vmatmul.bf16.gmra.mxu0 %v337
      %v1258 = vpop.f32.mrf.mxu0
      %v1259 = vadd.f32 %v1246, %v1258
      %v1260 = vpop.f32.mrf.mxu0
      %1261 = vdwg.mxu0
      %1262 = vmatpush.bf16.msra.mxu0 %v912
      %1263 = vmatpush.bf16.msra.mxu0 %v904
      %1264 = vmatpush.bf16.msra.mxu0 %v896
      %1265 = vmatpush.bf16.msra.mxu0 %v888
      %1266 = vmatpush.bf16.msra.mxu0 %v880
      %1267 = vmatpush.bf16.msra.mxu0 %v872
      %1268 = vmatpush.bf16.msra.mxu0 %v864
      %1269 = vmatpush.bf16.msra.mxu0 %v856
      %1270 = vmatmul.bf16.gmra.mxu0 %v336
      %v1271 = vpop.f32.mrf.mxu0
      %v1272 = vadd.f32 0.0, %v1271
      %v1273 = vpop.f32.mrf.mxu0
      %1274 = vdwg.mxu0
      %1275 = vmatpush.bf16.msra.mxu0 %v976
      %1276 = vmatpush.bf16.msra.mxu0 %v968
      %1277 = vmatpush.bf16.msra.mxu0 %v960
      %1278 = vmatpush.bf16.msra.mxu0 %v952
      %1279 = vmatpush.bf16.msra.mxu0 %v944
      %1280 = vmatpush.bf16.msra.mxu0 %v936
      %1281 = vmatpush.bf16.msra.mxu0 %v928
      %1282 = vmatpush.bf16.msra.mxu0 %v920
      %1283 = vmatmul.bf16.gmra.mxu0 %v337
      %v1284 = vpop.f32.mrf.mxu0
      %v1285 = vadd.f32 %v1272, %v1284
      %v1286 = vpop.f32.mrf.mxu0
      %1287 = vdwg.mxu0
      %1288 = vmatpush.bf16.msra.mxu0 %v913
      %1289 = vmatpush.bf16.msra.mxu0 %v905
      %1290 = vmatpush.bf16.msra.mxu0 %v897
      %1291 = vmatpush.bf16.msra.mxu0 %v889
      %1292 = vmatpush.bf16.msra.mxu0 %v881
      %1293 = vmatpush.bf16.msra.mxu0 %v873
      %1294 = vmatpush.bf16.msra.mxu0 %v865
      %1295 = vmatpush.bf16.msra.mxu0 %v857
      %1296 = vmatmul.bf16.gmra.mxu0 %v336
      %v1297 = vpop.f32.mrf.mxu0
      %v1298 = vadd.f32 0.0, %v1297
      %v1299 = vpop.f32.mrf.mxu0
      %1300 = vdwg.mxu0
      %1301 = vmatpush.bf16.msra.mxu0 %v977
      %1302 = vmatpush.bf16.msra.mxu0 %v969
      %1303 = vmatpush.bf16.msra.mxu0 %v961
      %1304 = vmatpush.bf16.msra.mxu0 %v953
      %1305 = vmatpush.bf16.msra.mxu0 %v945
      %1306 = vmatpush.bf16.msra.mxu0 %v937
      %1307 = vmatpush.bf16.msra.mxu0 %v929
      %1308 = vmatpush.bf16.msra.mxu0 %v921
      %1309 = vmatmul.bf16.gmra.mxu0 %v337
      %v1310 = vpop.f32.mrf.mxu0
      %v1311 = vadd.f32 %v1298, %v1310
      %v1312 = vpop.f32.mrf.mxu0
      %1313 = vdwg.mxu0
      %v1378 = vunpack.c.l.b16 %v272
      %v1379 = vunpack.c.h.b16 %v272
      %v1380 = vunpack.c.l.b16 %v273
      %v1381 = vunpack.c.h.b16 %v273
      %v1382 = vunpack.c.l.b16 %v274
      %v1383 = vunpack.c.h.b16 %v274
      %v1384 = vunpack.c.l.b16 %v275
      %v1385 = vunpack.c.h.b16 %v275
      %v1386 = vunpack.c.l.b16 %v276
      %v1387 = vunpack.c.h.b16 %v276
      %v1388 = vunpack.c.l.b16 %v277
      %v1389 = vunpack.c.h.b16 %v277
      %v1390 = vunpack.c.l.b16 %v278
      %v1391 = vunpack.c.h.b16 %v278
      %v1392 = vunpack.c.l.b16 %v279
      %v1393 = vunpack.c.h.b16 %v279
      %v1394 = vunpack.c.l.b16 %v280
      %v1395 = vunpack.c.h.b16 %v280
      %v1396 = vunpack.c.l.b16 %v281
      %v1397 = vunpack.c.h.b16 %v281
      %v1398 = vunpack.c.l.b16 %v282
      %v1399 = vunpack.c.h.b16 %v282
      %v1400 = vunpack.c.l.b16 %v283
      %v1401 = vunpack.c.h.b16 %v283
      %v1402 = vunpack.c.l.b16 %v284
      %v1403 = vunpack.c.h.b16 %v284
      %v1404 = vunpack.c.l.b16 %v285
      %v1405 = vunpack.c.h.b16 %v285
      %v1406 = vunpack.c.l.b16 %v286
      %v1407 = vunpack.c.h.b16 %v286
      %v1408 = vunpack.c.l.b16 %v287
      %v1409 = vunpack.c.h.b16 %v287
      %v1410 = vunpack.c.l.b16 %v288
      %v1411 = vunpack.c.h.b16 %v288
      %v1412 = vunpack.c.l.b16 %v289
      %v1413 = vunpack.c.h.b16 %v289
      %v1414 = vunpack.c.l.b16 %v290
      %v1415 = vunpack.c.h.b16 %v290
      %v1416 = vunpack.c.l.b16 %v291
      %v1417 = vunpack.c.h.b16 %v291
      %v1418 = vunpack.c.l.b16 %v292
      %v1419 = vunpack.c.h.b16 %v292
      %v1420 = vunpack.c.l.b16 %v293
      %v1421 = vunpack.c.h.b16 %v293
      %v1422 = vunpack.c.l.b16 %v294
      %v1423 = vunpack.c.h.b16 %v294
      %v1424 = vunpack.c.l.b16 %v295
      %v1425 = vunpack.c.h.b16 %v295
      %v1426 = vunpack.c.l.b16 %v296
      %v1427 = vunpack.c.h.b16 %v296
      %v1428 = vunpack.c.l.b16 %v297
      %v1429 = vunpack.c.h.b16 %v297
      %v1430 = vunpack.c.l.b16 %v298
      %v1431 = vunpack.c.h.b16 %v298
      %v1432 = vunpack.c.l.b16 %v299
      %v1433 = vunpack.c.h.b16 %v299
      %v1434 = vunpack.c.l.b16 %v300
      %v1435 = vunpack.c.h.b16 %v300
      %v1436 = vunpack.c.l.b16 %v301
      %v1437 = vunpack.c.h.b16 %v301
      %v1438 = vunpack.c.l.b16 %v302
      %v1439 = vunpack.c.h.b16 %v302
      %v1440 = vunpack.c.l.b16 %v303
      %v1441 = vunpack.c.h.b16 %v303
      %v1442 = vunpack.c.l.b16 %v304
      %v1443 = vunpack.c.h.b16 %v304
      %v1444 = vunpack.c.l.b16 %v305
      %v1445 = vunpack.c.h.b16 %v305
      %v1446 = vunpack.c.l.b16 %v306
      %v1447 = vunpack.c.h.b16 %v306
      %v1448 = vunpack.c.l.b16 %v307
      %v1449 = vunpack.c.h.b16 %v307
      %v1450 = vunpack.c.l.b16 %v308
      %v1451 = vunpack.c.h.b16 %v308
      %v1452 = vunpack.c.l.b16 %v309
      %v1453 = vunpack.c.h.b16 %v309
      %v1454 = vunpack.c.l.b16 %v310
      %v1455 = vunpack.c.h.b16 %v310
      %v1456 = vunpack.c.l.b16 %v311
      %v1457 = vunpack.c.h.b16 %v311
      %v1458 = vunpack.c.l.b16 %v312
      %v1459 = vunpack.c.h.b16 %v312
      %v1460 = vunpack.c.l.b16 %v313
      %v1461 = vunpack.c.h.b16 %v313
      %v1462 = vunpack.c.l.b16 %v314
      %v1463 = vunpack.c.h.b16 %v314
      %v1464 = vunpack.c.l.b16 %v315
      %v1465 = vunpack.c.h.b16 %v315
      %v1466 = vunpack.c.l.b16 %v316
      %v1467 = vunpack.c.h.b16 %v316
      %v1468 = vunpack.c.l.b16 %v317
      %v1469 = vunpack.c.h.b16 %v317
      %v1470 = vunpack.c.l.b16 %v318
      %v1471 = vunpack.c.h.b16 %v318
      %v1472 = vunpack.c.l.b16 %v319
      %v1473 = vunpack.c.h.b16 %v319
      %v1474 = vunpack.c.l.b16 %v320
      %v1475 = vunpack.c.h.b16 %v320
      %v1476 = vunpack.c.l.b16 %v321
      %v1477 = vunpack.c.h.b16 %v321
      %v1478 = vunpack.c.l.b16 %v322
      %v1479 = vunpack.c.h.b16 %v322
      %v1480 = vunpack.c.l.b16 %v323
      %v1481 = vunpack.c.h.b16 %v323
      %v1482 = vunpack.c.l.b16 %v324
      %v1483 = vunpack.c.h.b16 %v324
      %v1484 = vunpack.c.l.b16 %v325
      %v1485 = vunpack.c.h.b16 %v325
      %v1486 = vunpack.c.l.b16 %v326
      %v1487 = vunpack.c.h.b16 %v326
      %v1488 = vunpack.c.l.b16 %v327
      %v1489 = vunpack.c.h.b16 %v327
      %v1490 = vunpack.c.l.b16 %v328
      %v1491 = vunpack.c.h.b16 %v328
      %v1492 = vunpack.c.l.b16 %v329
      %v1493 = vunpack.c.h.b16 %v329
      %v1494 = vunpack.c.l.b16 %v330
      %v1495 = vunpack.c.h.b16 %v330
      %v1496 = vunpack.c.l.b16 %v331
      %v1497 = vunpack.c.h.b16 %v331
      %v1498 = vunpack.c.l.b16 %v332
      %v1499 = vunpack.c.h.b16 %v332
      %v1500 = vunpack.c.l.b16 %v333
      %v1501 = vunpack.c.h.b16 %v333
      %v1502 = vunpack.c.l.b16 %v334
      %v1503 = vunpack.c.h.b16 %v334
      %v1504 = vunpack.c.l.b16 %v335
      %v1505 = vunpack.c.h.b16 %v335
      %v1506 = vpack.c.b16 %v1386, %v1378
      %v1507 = vpack.c.b16 %v1387, %v1379
      %v1508 = vpack.c.b16 %v1388, %v1380
      %v1509 = vpack.c.b16 %v1389, %v1381
      %v1510 = vpack.c.b16 %v1390, %v1382
      %v1511 = vpack.c.b16 %v1391, %v1383
      %v1512 = vpack.c.b16 %v1392, %v1384
      %v1513 = vpack.c.b16 %v1393, %v1385
      %v1514 = vpack.c.b16 %v1402, %v1394
      %v1515 = vpack.c.b16 %v1403, %v1395
      %v1516 = vpack.c.b16 %v1404, %v1396
      %v1517 = vpack.c.b16 %v1405, %v1397
      %v1518 = vpack.c.b16 %v1406, %v1398
      %v1519 = vpack.c.b16 %v1407, %v1399
      %v1520 = vpack.c.b16 %v1408, %v1400
      %v1521 = vpack.c.b16 %v1409, %v1401
      %v1522 = vpack.c.b16 %v1418, %v1410
      %v1523 = vpack.c.b16 %v1419, %v1411
      %v1524 = vpack.c.b16 %v1420, %v1412
      %v1525 = vpack.c.b16 %v1421, %v1413
      %v1526 = vpack.c.b16 %v1422, %v1414
      %v1527 = vpack.c.b16 %v1423, %v1415
      %v1528 = vpack.c.b16 %v1424, %v1416
      %v1529 = vpack.c.b16 %v1425, %v1417
      %v1530 = vpack.c.b16 %v1434, %v1426
      %v1531 = vpack.c.b16 %v1435, %v1427
      %v1532 = vpack.c.b16 %v1436, %v1428
      %v1533 = vpack.c.b16 %v1437, %v1429
      %v1534 = vpack.c.b16 %v1438, %v1430
      %v1535 = vpack.c.b16 %v1439, %v1431
      %v1536 = vpack.c.b16 %v1440, %v1432
      %v1537 = vpack.c.b16 %v1441, %v1433
      %v1538 = vpack.c.b16 %v1450, %v1442
      %v1539 = vpack.c.b16 %v1451, %v1443
      %v1540 = vpack.c.b16 %v1452, %v1444
      %v1541 = vpack.c.b16 %v1453, %v1445
      %v1542 = vpack.c.b16 %v1454, %v1446
      %v1543 = vpack.c.b16 %v1455, %v1447
      %v1544 = vpack.c.b16 %v1456, %v1448
      %v1545 = vpack.c.b16 %v1457, %v1449
      %v1546 = vpack.c.b16 %v1466, %v1458
      %v1547 = vpack.c.b16 %v1467, %v1459
      %v1548 = vpack.c.b16 %v1468, %v1460
      %v1549 = vpack.c.b16 %v1469, %v1461
      %v1550 = vpack.c.b16 %v1470, %v1462
      %v1551 = vpack.c.b16 %v1471, %v1463
      %v1552 = vpack.c.b16 %v1472, %v1464
      %v1553 = vpack.c.b16 %v1473, %v1465
      %v1554 = vpack.c.b16 %v1482, %v1474
      %v1555 = vpack.c.b16 %v1483, %v1475
      %v1556 = vpack.c.b16 %v1484, %v1476
      %v1557 = vpack.c.b16 %v1485, %v1477
      %v1558 = vpack.c.b16 %v1486, %v1478
      %v1559 = vpack.c.b16 %v1487, %v1479
      %v1560 = vpack.c.b16 %v1488, %v1480
      %v1561 = vpack.c.b16 %v1489, %v1481
      %v1562 = vpack.c.b16 %v1498, %v1490
      %v1563 = vpack.c.b16 %v1499, %v1491
      %v1564 = vpack.c.b16 %v1500, %v1492
      %v1565 = vpack.c.b16 %v1501, %v1493
      %v1566 = vpack.c.b16 %v1502, %v1494
      %v1567 = vpack.c.b16 %v1503, %v1495
      %v1568 = vpack.c.b16 %v1504, %v1496
      %v1569 = vpack.c.b16 %v1505, %v1497
      %1634 = vmatpush.bf16.msra.mxu0 %v1562
      %1635 = vmatpush.bf16.msra.mxu0 %v1554
      %1636 = vmatpush.bf16.msra.mxu0 %v1546
      %1637 = vmatpush.bf16.msra.mxu0 %v1538
      %1638 = vmatpush.bf16.msra.mxu0 %v1530
      %1639 = vmatpush.bf16.msra.mxu0 %v1522
      %1640 = vmatpush.bf16.msra.mxu0 %v1514
      %1641 = vmatpush.bf16.msra.mxu0 %v1506
      %1642 = vmatmul.bf16.gmra.mxu0 %v259
      %v1643 = vpop.f32.mrf.mxu0
      %v1644 = vadd.f32 %v1129, %v1643
      %v1645 = vpop.f32.mrf.mxu0
      %1646 = vdwg.mxu0
      %1647 = vmatpush.bf16.msra.mxu0 %v1563
      %1648 = vmatpush.bf16.msra.mxu0 %v1555
      %1649 = vmatpush.bf16.msra.mxu0 %v1547
      %1650 = vmatpush.bf16.msra.mxu0 %v1539
      %1651 = vmatpush.bf16.msra.mxu0 %v1531
      %1652 = vmatpush.bf16.msra.mxu0 %v1523
      %1653 = vmatpush.bf16.msra.mxu0 %v1515
      %1654 = vmatpush.bf16.msra.mxu0 %v1507
      %1655 = vmatmul.bf16.gmra.mxu0 %v259
      %v1656 = vpop.f32.mrf.mxu0
      %v1657 = vadd.f32 %v1155, %v1656
      %v1658 = vpop.f32.mrf.mxu0
      %1659 = vdwg.mxu0
      %1660 = vmatpush.bf16.msra.mxu0 %v1564
      %1661 = vmatpush.bf16.msra.mxu0 %v1556
      %1662 = vmatpush.bf16.msra.mxu0 %v1548
      %1663 = vmatpush.bf16.msra.mxu0 %v1540
      %1664 = vmatpush.bf16.msra.mxu0 %v1532
      %1665 = vmatpush.bf16.msra.mxu0 %v1524
      %1666 = vmatpush.bf16.msra.mxu0 %v1516
      %1667 = vmatpush.bf16.msra.mxu0 %v1508
      %1668 = vmatmul.bf16.gmra.mxu0 %v259
      %v1669 = vpop.f32.mrf.mxu0
      %v1670 = vadd.f32 %v1181, %v1669
      %v1671 = vpop.f32.mrf.mxu0
      %1672 = vdwg.mxu0
      %1673 = vmatpush.bf16.msra.mxu0 %v1565
      %1674 = vmatpush.bf16.msra.mxu0 %v1557
      %1675 = vmatpush.bf16.msra.mxu0 %v1549
      %1676 = vmatpush.bf16.msra.mxu0 %v1541
      %1677 = vmatpush.bf16.msra.mxu0 %v1533
      %1678 = vmatpush.bf16.msra.mxu0 %v1525
      %1679 = vmatpush.bf16.msra.mxu0 %v1517
      %1680 = vmatpush.bf16.msra.mxu0 %v1509
      %1681 = vmatmul.bf16.gmra.mxu0 %v259
      %v1682 = vpop.f32.mrf.mxu0
      %v1683 = vadd.f32 %v1207, %v1682
      %v1684 = vpop.f32.mrf.mxu0
      %1685 = vdwg.mxu0
      %1686 = vmatpush.bf16.msra.mxu0 %v1566
      %1687 = vmatpush.bf16.msra.mxu0 %v1558
      %1688 = vmatpush.bf16.msra.mxu0 %v1550
      %1689 = vmatpush.bf16.msra.mxu0 %v1542
      %1690 = vmatpush.bf16.msra.mxu0 %v1534
      %1691 = vmatpush.bf16.msra.mxu0 %v1526
      %1692 = vmatpush.bf16.msra.mxu0 %v1518
      %1693 = vmatpush.bf16.msra.mxu0 %v1510
      %1694 = vmatmul.bf16.gmra.mxu0 %v259
      %v1695 = vpop.f32.mrf.mxu0
      %v1696 = vadd.f32 %v1233, %v1695
      %v1697 = vpop.f32.mrf.mxu0
      %1698 = vdwg.mxu0
      %1699 = vmatpush.bf16.msra.mxu0 %v1567
      %1700 = vmatpush.bf16.msra.mxu0 %v1559
      %1701 = vmatpush.bf16.msra.mxu0 %v1551
      %1702 = vmatpush.bf16.msra.mxu0 %v1543
      %1703 = vmatpush.bf16.msra.mxu0 %v1535
      %1704 = vmatpush.bf16.msra.mxu0 %v1527
      %1705 = vmatpush.bf16.msra.mxu0 %v1519
      %1706 = vmatpush.bf16.msra.mxu0 %v1511
      %1707 = vmatmul.bf16.gmra.mxu0 %v259
      %v1708 = vpop.f32.mrf.mxu0
      %v1709 = vadd.f32 %v1259, %v1708
      %v1710 = vpop.f32.mrf.mxu0
      %1711 = vdwg.mxu0
      %1712 = vmatpush.bf16.msra.mxu0 %v1568
      %1713 = vmatpush.bf16.msra.mxu0 %v1560
      %1714 = vmatpush.bf16.msra.mxu0 %v1552
      %1715 = vmatpush.bf16.msra.mxu0 %v1544
      %1716 = vmatpush.bf16.msra.mxu0 %v1536
      %1717 = vmatpush.bf16.msra.mxu0 %v1528
      %1718 = vmatpush.bf16.msra.mxu0 %v1520
      %1719 = vmatpush.bf16.msra.mxu0 %v1512
      %1720 = vmatmul.bf16.gmra.mxu0 %v259
      %v1721 = vpop.f32.mrf.mxu0
      %v1722 = vadd.f32 %v1285, %v1721
      %v1723 = vpop.f32.mrf.mxu0
      %1724 = vdwg.mxu0
      %1725 = vmatpush.bf16.msra.mxu0 %v1569
      %1726 = vmatpush.bf16.msra.mxu0 %v1561
      %1727 = vmatpush.bf16.msra.mxu0 %v1553
      %1728 = vmatpush.bf16.msra.mxu0 %v1545
      %1729 = vmatpush.bf16.msra.mxu0 %v1537
      %1730 = vmatpush.bf16.msra.mxu0 %v1529
      %1731 = vmatpush.bf16.msra.mxu0 %v1521
      %1732 = vmatpush.bf16.msra.mxu0 %v1513
      %1733 = vmatmul.bf16.gmra.mxu0 %v259
      %v1734 = vpop.f32.mrf.mxu0
      %v1735 = vadd.f32 %v1311, %v1734
      %v1736 = vpop.f32.mrf.mxu0
      %1737 = vdwg.mxu0
      %v1738 = vadd.f32 %v1644, %v164
      %v1739 = vadd.f32 %v1657, %v165
      %v1740 = vadd.f32 %v1670, %v166
      %v1741 = vadd.f32 %v1683, %v167
      %v1742 = vadd.f32 %v1696, %v168
      %v1743 = vadd.f32 %v1709, %v169
      %v1744 = vadd.f32 %v1722, %v170
      %v1745 = vadd.f32 %v1735, %v171
      %v1746 = vxor.u32 %v1738, 2147483648
      %v1747 = vxor.u32 %v1739, 2147483648
      %v1748 = vxor.u32 %v1740, 2147483648
      %v1749 = vxor.u32 %v1741, 2147483648
      %v1750 = vxor.u32 %v1742, 2147483648
      %v1751 = vxor.u32 %v1743, 2147483648
      %v1752 = vmul.f32 %v1746, 1.442695
      %v1753 = vpow.pop %v1752
      %v1754 = vmul.f32 %v1747, 1.442695
      %v1755 = vpow.pop %v1754
      %v1756 = vmul.f32 %v1748, 1.442695
      %v1757 = vpow.pop %v1756
      %v1758 = vmul.f32 %v1749, 1.442695
      %v1759 = vpow.pop %v1758
      %v1760 = vmul.f32 %v1750, 1.442695
      %v1761 = vpow.pop %v1760
      %v1762 = vmul.f32 %v1751, 1.442695
      %v1763 = vpow.pop %v1762
      %v1764 = vadd.f32 %v1753, 1.0
      %v1765 = vadd.f32 %v1755, 1.0
      %v1766 = vadd.f32 %v1757, 1.0
      %v1767 = vadd.f32 %v1759, 1.0
      %v1768 = vadd.f32 %v1761, 1.0
      %v1769 = vadd.f32 %v1763, 1.0
      %v1770 = vrcp.pop %v1764
      %v1771 = vmul.f32 %v1764, %v1770
      %v1772 = vsub.f32 1.0, %v1771
      %v1773 = vmul.f32 %v1770, %v1772
      %v1774 = vadd.f32 %v1770, %v1773
      %vm1775 = vweird.f32 %v1764
      %vm1776 = vweird.f32 %v1770
      %vm1777 = vmor %vm1775, %vm1776
      %v1778 = vsel %vm1777, %v1770, %v1774
      %v1779 = vand.u32 2147483647, %v1764
      %vm1780 = vcmp.eq.f32.partialorder %v1779, 8.507059e+37
      %v1781 = vand.u32 %v1764, 2147483648
      %v1782 = vor.u32 1.1754944e-38, %v1781
      %v1783 = vsel %vm1780, %v1782, %v1778
      %v1784 = vmul.f32 1.0, %v1783
      %v1785 = vrcp.pop %v1765
      %v1786 = vmul.f32 %v1765, %v1785
      %v1787 = vsub.f32 1.0, %v1786
      %v1788 = vmul.f32 %v1785, %v1787
      %v1789 = vadd.f32 %v1785, %v1788
      %vm1790 = vweird.f32 %v1765
      %vm1791 = vweird.f32 %v1785
      %vm1792 = vmor %vm1790, %vm1791
      %v1793 = vsel %vm1792, %v1785, %v1789
      %v1794 = vand.u32 2147483647, %v1765
      %vm1795 = vcmp.eq.f32.partialorder %v1794, 8.507059e+37
      %v1796 = vand.u32 %v1765, 2147483648
      %v1797 = vor.u32 1.1754944e-38, %v1796
      %v1798 = vsel %vm1795, %v1797, %v1793
      %v1799 = vmul.f32 1.0, %v1798
      %v1800 = vrcp.pop %v1766
      %v1801 = vmul.f32 %v1766, %v1800
      %v1802 = vsub.f32 1.0, %v1801
      %v1803 = vmul.f32 %v1800, %v1802
      %v1804 = vadd.f32 %v1800, %v1803
      %vm1805 = vweird.f32 %v1766
      %vm1806 = vweird.f32 %v1800
      %vm1807 = vmor %vm1805, %vm1806
      %v1808 = vsel %vm1807, %v1800, %v1804
      %v1809 = vand.u32 2147483647, %v1766
      %vm1810 = vcmp.eq.f32.partialorder %v1809, 8.507059e+37
      %v1811 = vand.u32 %v1766, 2147483648
      %v1812 = vor.u32 1.1754944e-38, %v1811
      %v1813 = vsel %vm1810, %v1812, %v1808
      %v1814 = vmul.f32 1.0, %v1813
      %v1815 = vrcp.pop %v1767
      %v1816 = vmul.f32 %v1767, %v1815
      %v1817 = vsub.f32 1.0, %v1816
      %v1818 = vmul.f32 %v1815, %v1817
      %v1819 = vadd.f32 %v1815, %v1818
      %vm1820 = vweird.f32 %v1767
      %vm1821 = vweird.f32 %v1815
      %vm1822 = vmor %vm1820, %vm1821
      %v1823 = vsel %vm1822, %v1815, %v1819
      %v1824 = vand.u32 2147483647, %v1767
      %vm1825 = vcmp.eq.f32.partialorder %v1824, 8.507059e+37
      %v1826 = vand.u32 %v1767, 2147483648
      %v1827 = vor.u32 1.1754944e-38, %v1826
      %v1828 = vsel %vm1825, %v1827, %v1823
      %v1829 = vmul.f32 1.0, %v1828
      %v1830 = vrcp.pop %v1768
      %v1831 = vmul.f32 %v1768, %v1830
      %v1832 = vsub.f32 1.0, %v1831
      %v1833 = vmul.f32 %v1830, %v1832
      %v1834 = vadd.f32 %v1830, %v1833
      %vm1835 = vweird.f32 %v1768
      %vm1836 = vweird.f32 %v1830
      %vm1837 = vmor %vm1835, %vm1836
      %v1838 = vsel %vm1837, %v1830, %v1834
      %v1839 = vand.u32 2147483647, %v1768
      %vm1840 = vcmp.eq.f32.partialorder %v1839, 8.507059e+37
      %v1841 = vand.u32 %v1768, 2147483648
      %v1842 = vor.u32 1.1754944e-38, %v1841
      %v1843 = vsel %vm1840, %v1842, %v1838
      %v1844 = vmul.f32 1.0, %v1843
      %v1845 = vrcp.pop %v1769
      %v1846 = vmul.f32 %v1769, %v1845
      %v1847 = vsub.f32 1.0, %v1846
      %v1848 = vmul.f32 %v1845, %v1847
      %v1849 = vadd.f32 %v1845, %v1848
      %vm1850 = vweird.f32 %v1769
      %vm1851 = vweird.f32 %v1845
      %vm1852 = vmor %vm1850, %vm1851
      %v1853 = vsel %vm1852, %v1845, %v1849
      %v1854 = vand.u32 2147483647, %v1769
      %vm1855 = vcmp.eq.f32.partialorder %v1854, 8.507059e+37
      %v1856 = vand.u32 %v1769, 2147483648
      %v1857 = vor.u32 1.1754944e-38, %v1856
      %v1858 = vsel %vm1855, %v1857, %v1853
      %v1859 = vmul.f32 1.0, %v1858
      %v1860 = vtanh.pop %v1744
      %v1861 = vtanh.pop %v1745
      %v1862 = vmul.f32 %v1814, %v262
      %v1863 = vmul.f32 %v1829, %v263
      %v1864 = vmul.f32 %v1784, %v1860
      %v1865 = vmul.f32 %v1799, %v1861
      %v1866 = vadd.f32 %v1862, %v1864
      %v1867 = vadd.f32 %v1863, %v1865
      %v1868 = vtanh.pop %v1866
      %v1869 = vtanh.pop %v1867
      %v1870 = vmul.f32 %v1844, %v1868
      %v1871 = vmul.f32 %v1859, %v1869
      %v1872 = vpack.c.bf16 %v1870, %v1870
      %v1873 = vpack.c.bf16 %v1871, %v1871
      %v1874 = vld [vmem:[#allocation7] sm:$0xff]
      %v1875 = vld [vmem:[#allocation7 + $0x8] sm:$0xff]
      %v1876 = vld [vmem:[#allocation7 + $0x10] sm:$0xff]
      %v1877 = vld [vmem:[#allocation7 + $0x18] sm:$0xff]
      %v1878 = vld [vmem:[#allocation7 + $0x20] sm:$0xff]
      %v1879 = vld [vmem:[#allocation7 + $0x28] sm:$0xff]
      %v1880 = vld [vmem:[#allocation7 + $0x30] sm:$0xff]
      %v1881 = vld [vmem:[#allocation7 + $0x38] sm:$0xff]
      %v1882 = vld [vmem:[#allocation7 + $0x40] sm:$0xff]
      %v1883 = vld [vmem:[#allocation7 + $0x48] sm:$0xff]
      %v1884 = vld [vmem:[#allocation7 + $0x50] sm:$0xff]
      %v1885 = vld [vmem:[#allocation7 + $0x58] sm:$0xff]
      %v1886 = vld [vmem:[#allocation7 + $0x60] sm:$0xff]
      %v1887 = vld [vmem:[#allocation7 + $0x68] sm:$0xff]
      %v1888 = vld [vmem:[#allocation7 + $0x70] sm:$0xff]
      %v1889 = vld [vmem:[#allocation7 + $0x78] sm:$0xff]
      %v1890 = vld [vmem:[#allocation7 + $0x80] sm:$0xff]
      %v1891 = vld [vmem:[#allocation7 + $0x88] sm:$0xff]
      %v1892 = vld [vmem:[#allocation7 + $0x90] sm:$0xff]
      %v1893 = vld [vmem:[#allocation7 + $0x98] sm:$0xff]
      %v1894 = vld [vmem:[#allocation7 + $0xa0] sm:$0xff]
      %v1895 = vld [vmem:[#allocation7 + $0xa8] sm:$0xff]
      %v1896 = vld [vmem:[#allocation7 + $0xb0] sm:$0xff]
      %v1897 = vld [vmem:[#allocation7 + $0xb8] sm:$0xff]
      %v1898 = vld [vmem:[#allocation7 + $0xc0] sm:$0xff]
      %v1899 = vld [vmem:[#allocation7 + $0xc8] sm:$0xff]
      %v1900 = vld [vmem:[#allocation7 + $0xd0] sm:$0xff]
      %v1901 = vld [vmem:[#allocation7 + $0xd8] sm:$0xff]
      %v1902 = vld [vmem:[#allocation7 + $0xe0] sm:$0xff]
      %v1903 = vld [vmem:[#allocation7 + $0xe8] sm:$0xff]
      %v1904 = vld [vmem:[#allocation7 + $0xf0] sm:$0xff]
      %v1905 = vld [vmem:[#allocation7 + $0xf8] sm:$0xff]
      %v1906 = vld [vmem:[#allocation7 + $0x100] sm:$0xff]
      %v1907 = vld [vmem:[#allocation7 + $0x108] sm:$0xff]
      %v1908 = vld [vmem:[#allocation7 + $0x110] sm:$0xff]
      %v1909 = vld [vmem:[#allocation7 + $0x118] sm:$0xff]
      %v1910 = vld [vmem:[#allocation7 + $0x120] sm:$0xff]
      %v1911 = vld [vmem:[#allocation7 + $0x128] sm:$0xff]
      %v1912 = vld [vmem:[#allocation7 + $0x130] sm:$0xff]
      %v1913 = vld [vmem:[#allocation7 + $0x138] sm:$0xff]
      %v1914 = vld [vmem:[#allocation7 + $0x140] sm:$0xff]
      %v1915 = vld [vmem:[#allocation7 + $0x148] sm:$0xff]
      %v1916 = vld [vmem:[#allocation7 + $0x150] sm:$0xff]
      %v1917 = vld [vmem:[#allocation7 + $0x158] sm:$0xff]
      %v1918 = vld [vmem:[#allocation7 + $0x160] sm:$0xff]
      %v1919 = vld [vmem:[#allocation7 + $0x168] sm:$0xff]
      %v1920 = vld [vmem:[#allocation7 + $0x170] sm:$0xff]
      %v1921 = vld [vmem:[#allocation7 + $0x178] sm:$0xff]
      %v1922 = vld [vmem:[#allocation7 + $0x180] sm:$0xff]
      %v1923 = vld [vmem:[#allocation7 + $0x188] sm:$0xff]
      %v1924 = vld [vmem:[#allocation7 + $0x190] sm:$0xff]
      %v1925 = vld [vmem:[#allocation7 + $0x198] sm:$0xff]
      %v1926 = vld [vmem:[#allocation7 + $0x1a0] sm:$0xff]
      %v1927 = vld [vmem:[#allocation7 + $0x1a8] sm:$0xff]
      %v1928 = vld [vmem:[#allocation7 + $0x1b0] sm:$0xff]
      %v1929 = vld [vmem:[#allocation7 + $0x1b8] sm:$0xff]
      %v1930 = vld [vmem:[#allocation7 + $0x1c0] sm:$0xff]
      %v1931 = vld [vmem:[#allocation7 + $0x1c8] sm:$0xff]
      %v1932 = vld [vmem:[#allocation7 + $0x1d0] sm:$0xff]
      %v1933 = vld [vmem:[#allocation7 + $0x1d8] sm:$0xff]
      %v1934 = vld [vmem:[#allocation7 + $0x1e0] sm:$0xff]
      %v1935 = vld [vmem:[#allocation7 + $0x1e8] sm:$0xff]
      %v1936 = vld [vmem:[#allocation7 + $0x1f0] sm:$0xff]
      %v1937 = vld [vmem:[#allocation7 + $0x1f8] sm:$0xff]
      %v1938 = vld [vmem:[#allocation7 + $0x200] sm:$0xff]
      %v1939 = vld [vmem:[#allocation7 + $0x208] sm:$0xff]
      %v1940 = vld [vmem:[#allocation7 + $0x210] sm:$0xff]
      %v1941 = vld [vmem:[#allocation7 + $0x218] sm:$0xff]
      %v1942 = vld [vmem:[#allocation7 + $0x220] sm:$0xff]
      %v1943 = vld [vmem:[#allocation7 + $0x228] sm:$0xff]
      %v1944 = vld [vmem:[#allocation7 + $0x230] sm:$0xff]
      %v1945 = vld [vmem:[#allocation7 + $0x238] sm:$0xff]
      %v1946 = vld [vmem:[#allocation7 + $0x240] sm:$0xff]
      %v1947 = vld [vmem:[#allocation7 + $0x248] sm:$0xff]
      %v1948 = vld [vmem:[#allocation7 + $0x250] sm:$0xff]
      %v1949 = vld [vmem:[#allocation7 + $0x258] sm:$0xff]
      %v1950 = vld [vmem:[#allocation7 + $0x260] sm:$0xff]
      %v1951 = vld [vmem:[#allocation7 + $0x268] sm:$0xff]
      %v1952 = vld [vmem:[#allocation7 + $0x270] sm:$0xff]
      %v1953 = vld [vmem:[#allocation7 + $0x278] sm:$0xff]
      %v1954 = vld [vmem:[#allocation7 + $0x280] sm:$0xff]
      %v1955 = vld [vmem:[#allocation7 + $0x288] sm:$0xff]
      %v1956 = vld [vmem:[#allocation7 + $0x290] sm:$0xff]
      %v1957 = vld [vmem:[#allocation7 + $0x298] sm:$0xff]
      %v1958 = vld [vmem:[#allocation7 + $0x2a0] sm:$0xff]
      %v1959 = vld [vmem:[#allocation7 + $0x2a8] sm:$0xff]
      %v1960 = vld [vmem:[#allocation7 + $0x2b0] sm:$0xff]
      %v1961 = vld [vmem:[#allocation7 + $0x2b8] sm:$0xff]
      %v1962 = vld [vmem:[#allocation7 + $0x2c0] sm:$0xff]
      %v1963 = vld [vmem:[#allocation7 + $0x2c8] sm:$0xff]
      %v1964 = vld [vmem:[#allocation7 + $0x2d0] sm:$0xff]
      %v1965 = vld [vmem:[#allocation7 + $0x2d8] sm:$0xff]
      %v1966 = vld [vmem:[#allocation7 + $0x2e0] sm:$0xff]
      %v1967 = vld [vmem:[#allocation7 + $0x2e8] sm:$0xff]
      %v1968 = vld [vmem:[#allocation7 + $0x2f0] sm:$0xff]
      %v1969 = vld [vmem:[#allocation7 + $0x2f8] sm:$0xff]
      %v1970 = vld [vmem:[#allocation7 + $0x300] sm:$0xff]
      %v1971 = vld [vmem:[#allocation7 + $0x308] sm:$0xff]
      %v1972 = vld [vmem:[#allocation7 + $0x310] sm:$0xff]
      %v1973 = vld [vmem:[#allocation7 + $0x318] sm:$0xff]
      %v1974 = vld [vmem:[#allocation7 + $0x320] sm:$0xff]
      %v1975 = vld [vmem:[#allocation7 + $0x328] sm:$0xff]
      %v1976 = vld [vmem:[#allocation7 + $0x330] sm:$0xff]
      %v1977 = vld [vmem:[#allocation7 + $0x338] sm:$0xff]
      %v1978 = vld [vmem:[#allocation7 + $0x340] sm:$0xff]
      %v1979 = vld [vmem:[#allocation7 + $0x348] sm:$0xff]
      %v1980 = vld [vmem:[#allocation7 + $0x350] sm:$0xff]
      %v1981 = vld [vmem:[#allocation7 + $0x358] sm:$0xff]
      %v1982 = vld [vmem:[#allocation7 + $0x360] sm:$0xff]
      %v1983 = vld [vmem:[#allocation7 + $0x368] sm:$0xff]
      %v1984 = vld [vmem:[#allocation7 + $0x370] sm:$0xff]
      %v1985 = vld [vmem:[#allocation7 + $0x378] sm:$0xff]
      %v1986 = vld [vmem:[#allocation7 + $0x380] sm:$0xff]
      %v1987 = vld [vmem:[#allocation7 + $0x388] sm:$0xff]
      %v1988 = vld [vmem:[#allocation7 + $0x390] sm:$0xff]
      %v1989 = vld [vmem:[#allocation7 + $0x398] sm:$0xff]
      %v1990 = vld [vmem:[#allocation7 + $0x3a0] sm:$0xff]
      %v1991 = vld [vmem:[#allocation7 + $0x3a8] sm:$0xff]
      %v1992 = vld [vmem:[#allocation7 + $0x3b0] sm:$0xff]
      %v1993 = vld [vmem:[#allocation7 + $0x3b8] sm:$0xff]
      %v1994 = vld [vmem:[#allocation7 + $0x3c0] sm:$0xff]
      %v1995 = vld [vmem:[#allocation7 + $0x3c8] sm:$0xff]
      %v1996 = vld [vmem:[#allocation7 + $0x3d0] sm:$0xff]
      %v1997 = vld [vmem:[#allocation7 + $0x3d8] sm:$0xff]
      %v1998 = vld [vmem:[#allocation7 + $0x3e0] sm:$0xff]
      %v1999 = vld [vmem:[#allocation7 + $0x3e8] sm:$0xff]
      %v2000 = vld [vmem:[#allocation7 + $0x3f0] sm:$0xff]
      %v2001 = vld [vmem:[#allocation7 + $0x3f8] sm:$0xff]
      %v2002 = vpack.c.bf16 %v264, %v264
      %v2003 = vpack.c.bf16 %v265, %v265
      %v2004 = vld [vmem:[#allocation9] sm:$0xff]
      %v2005 = vld [vmem:[#allocation9 + $0x8] sm:$0xff]
      %v2006 = vld [vmem:[#allocation9 + $0x10] sm:$0xff]
      %v2007 = vld [vmem:[#allocation9 + $0x18] sm:$0xff]
      %v2008 = vld [vmem:[#allocation9 + $0x20] sm:$0xff]
      %v2009 = vld [vmem:[#allocation9 + $0x28] sm:$0xff]
      %v2010 = vld [vmem:[#allocation9 + $0x30] sm:$0xff]
      %v2011 = vld [vmem:[#allocation9 + $0x38] sm:$0xff]
      %v2012 = vld [vmem:[#allocation9 + $0x40] sm:$0xff]
      %v2013 = vld [vmem:[#allocation9 + $0x48] sm:$0xff]
      %v2014 = vld [vmem:[#allocation9 + $0x50] sm:$0xff]
      %v2015 = vld [vmem:[#allocation9 + $0x58] sm:$0xff]
      %v2016 = vld [vmem:[#allocation9 + $0x60] sm:$0xff]
      %v2017 = vld [vmem:[#allocation9 + $0x68] sm:$0xff]
      %v2018 = vld [vmem:[#allocation9 + $0x70] sm:$0xff]
      %v2019 = vld [vmem:[#allocation9 + $0x78] sm:$0xff]
      %v2020 = vld [vmem:[#allocation9 + $0x80] sm:$0xff]
      %v2021 = vld [vmem:[#allocation9 + $0x88] sm:$0xff]
      %v2022 = vld [vmem:[#allocation9 + $0x90] sm:$0xff]
      %v2023 = vld [vmem:[#allocation9 + $0x98] sm:$0xff]
      %v2024 = vld [vmem:[#allocation9 + $0xa0] sm:$0xff]
      %v2025 = vld [vmem:[#allocation9 + $0xa8] sm:$0xff]
      %v2026 = vld [vmem:[#allocation9 + $0xb0] sm:$0xff]
      %v2027 = vld [vmem:[#allocation9 + $0xb8] sm:$0xff]
      %v2028 = vld [vmem:[#allocation9 + $0xc0] sm:$0xff]
      %v2029 = vld [vmem:[#allocation9 + $0xc8] sm:$0xff]
      %v2030 = vld [vmem:[#allocation9 + $0xd0] sm:$0xff]
      %v2031 = vld [vmem:[#allocation9 + $0xd8] sm:$0xff]
      %v2032 = vld [vmem:[#allocation9 + $0xe0] sm:$0xff]
      %v2033 = vld [vmem:[#allocation9 + $0xe8] sm:$0xff]
      %v2034 = vld [vmem:[#allocation9 + $0xf0] sm:$0xff]
      %v2035 = vld [vmem:[#allocation9 + $0xf8] sm:$0xff]
      %v2036 = vld [vmem:[#allocation9 + $0x100] sm:$0xff]
      %v2037 = vld [vmem:[#allocation9 + $0x108] sm:$0xff]
      %v2038 = vld [vmem:[#allocation9 + $0x110] sm:$0xff]
      %v2039 = vld [vmem:[#allocation9 + $0x118] sm:$0xff]
      %v2040 = vld [vmem:[#allocation9 + $0x120] sm:$0xff]
      %v2041 = vld [vmem:[#allocation9 + $0x128] sm:$0xff]
      %v2042 = vld [vmem:[#allocation9 + $0x130] sm:$0xff]
      %v2043 = vld [vmem:[#allocation9 + $0x138] sm:$0xff]
      %v2044 = vld [vmem:[#allocation9 + $0x140] sm:$0xff]
      %v2045 = vld [vmem:[#allocation9 + $0x148] sm:$0xff]
      %v2046 = vld [vmem:[#allocation9 + $0x150] sm:$0xff]
      %v2047 = vld [vmem:[#allocation9 + $0x158] sm:$0xff]
      %v2048 = vld [vmem:[#allocation9 + $0x160] sm:$0xff]
      %v2049 = vld [vmem:[#allocation9 + $0x168] sm:$0xff]
      %v2050 = vld [vmem:[#allocation9 + $0x170] sm:$0xff]
      %v2051 = vld [vmem:[#allocation9 + $0x178] sm:$0xff]
      %v2052 = vld [vmem:[#allocation9 + $0x180] sm:$0xff]
      %v2053 = vld [vmem:[#allocation9 + $0x188] sm:$0xff]
      %v2054 = vld [vmem:[#allocation9 + $0x190] sm:$0xff]
      %v2055 = vld [vmem:[#allocation9 + $0x198] sm:$0xff]
      %v2056 = vld [vmem:[#allocation9 + $0x1a0] sm:$0xff]
      %v2057 = vld [vmem:[#allocation9 + $0x1a8] sm:$0xff]
      %v2058 = vld [vmem:[#allocation9 + $0x1b0] sm:$0xff]
      %v2059 = vld [vmem:[#allocation9 + $0x1b8] sm:$0xff]
      %v2060 = vld [vmem:[#allocation9 + $0x1c0] sm:$0xff]
      %v2061 = vld [vmem:[#allocation9 + $0x1c8] sm:$0xff]
      %v2062 = vld [vmem:[#allocation9 + $0x1d0] sm:$0xff]
      %v2063 = vld [vmem:[#allocation9 + $0x1d8] sm:$0xff]
      %v2064 = vld [vmem:[#allocation9 + $0x1e0] sm:$0xff]
      %v2065 = vld [vmem:[#allocation9 + $0x1e8] sm:$0xff]
      %v2066 = vld [vmem:[#allocation9 + $0x1f0] sm:$0xff]
      %v2067 = vld [vmem:[#allocation9 + $0x1f8] sm:$0xff]
      %v2068 = vld [vmem:[#allocation9 + $0x200] sm:$0xff]
      %v2069 = vld [vmem:[#allocation9 + $0x208] sm:$0xff]
      %v2070 = vld [vmem:[#allocation9 + $0x210] sm:$0xff]
      %v2071 = vld [vmem:[#allocation9 + $0x218] sm:$0xff]
      %v2072 = vld [vmem:[#allocation9 + $0x220] sm:$0xff]
      %v2073 = vld [vmem:[#allocation9 + $0x228] sm:$0xff]
      %v2074 = vld [vmem:[#allocation9 + $0x230] sm:$0xff]
      %v2075 = vld [vmem:[#allocation9 + $0x238] sm:$0xff]
      %v2076 = vld [vmem:[#allocation9 + $0x240] sm:$0xff]
      %v2077 = vld [vmem:[#allocation9 + $0x248] sm:$0xff]
      %v2078 = vld [vmem:[#allocation9 + $0x250] sm:$0xff]
      %v2079 = vld [vmem:[#allocation9 + $0x258] sm:$0xff]
      %v2080 = vld [vmem:[#allocation9 + $0x260] sm:$0xff]
      %v2081 = vld [vmem:[#allocation9 + $0x268] sm:$0xff]
      %v2082 = vld [vmem:[#allocation9 + $0x270] sm:$0xff]
      %v2083 = vld [vmem:[#allocation9 + $0x278] sm:$0xff]
      %v2084 = vld [vmem:[#allocation9 + $0x280] sm:$0xff]
      %v2085 = vld [vmem:[#allocation9 + $0x288] sm:$0xff]
      %v2086 = vld [vmem:[#allocation9 + $0x290] sm:$0xff]
      %v2087 = vld [vmem:[#allocation9 + $0x298] sm:$0xff]
      %v2088 = vld [vmem:[#allocation9 + $0x2a0] sm:$0xff]
      %v2089 = vld [vmem:[#allocation9 + $0x2a8] sm:$0xff]
      %v2090 = vld [vmem:[#allocation9 + $0x2b0] sm:$0xff]
      %v2091 = vld [vmem:[#allocation9 + $0x2b8] sm:$0xff]
      %v2092 = vld [vmem:[#allocation9 + $0x2c0] sm:$0xff]
      %v2093 = vld [vmem:[#allocation9 + $0x2c8] sm:$0xff]
      %v2094 = vld [vmem:[#allocation9 + $0x2d0] sm:$0xff]
      %v2095 = vld [vmem:[#allocation9 + $0x2d8] sm:$0xff]
      %v2096 = vld [vmem:[#allocation9 + $0x2e0] sm:$0xff]
      %v2097 = vld [vmem:[#allocation9 + $0x2e8] sm:$0xff]
      %v2098 = vld [vmem:[#allocation9 + $0x2f0] sm:$0xff]
      %v2099 = vld [vmem:[#allocation9 + $0x2f8] sm:$0xff]
      %v2100 = vld [vmem:[#allocation9 + $0x300] sm:$0xff]
      %v2101 = vld [vmem:[#allocation9 + $0x308] sm:$0xff]
      %v2102 = vld [vmem:[#allocation9 + $0x310] sm:$0xff]
      %v2103 = vld [vmem:[#allocation9 + $0x318] sm:$0xff]
      %v2104 = vld [vmem:[#allocation9 + $0x320] sm:$0xff]
      %v2105 = vld [vmem:[#allocation9 + $0x328] sm:$0xff]
      %v2106 = vld [vmem:[#allocation9 + $0x330] sm:$0xff]
      %v2107 = vld [vmem:[#allocation9 + $0x338] sm:$0xff]
      %v2108 = vld [vmem:[#allocation9 + $0x340] sm:$0xff]
      %v2109 = vld [vmem:[#allocation9 + $0x348] sm:$0xff]
      %v2110 = vld [vmem:[#allocation9 + $0x350] sm:$0xff]
      %v2111 = vld [vmem:[#allocation9 + $0x358] sm:$0xff]
      %v2112 = vld [vmem:[#allocation9 + $0x360] sm:$0xff]
      %v2113 = vld [vmem:[#allocation9 + $0x368] sm:$0xff]
      %v2114 = vld [vmem:[#allocation9 + $0x370] sm:$0xff]
      %v2115 = vld [vmem:[#allocation9 + $0x378] sm:$0xff]
      %v2116 = vld [vmem:[#allocation9 + $0x380] sm:$0xff]
      %v2117 = vld [vmem:[#allocation9 + $0x388] sm:$0xff]
      %v2118 = vld [vmem:[#allocation9 + $0x390] sm:$0xff]
      %v2119 = vld [vmem:[#allocation9 + $0x398] sm:$0xff]
      %v2120 = vld [vmem:[#allocation9 + $0x3a0] sm:$0xff]
      %v2121 = vld [vmem:[#allocation9 + $0x3a8] sm:$0xff]
      %v2122 = vld [vmem:[#allocation9 + $0x3b0] sm:$0xff]
      %v2123 = vld [vmem:[#allocation9 + $0x3b8] sm:$0xff]
      %v2124 = vld [vmem:[#allocation9 + $0x3c0] sm:$0xff]
      %v2125 = vld [vmem:[#allocation9 + $0x3c8] sm:$0xff]
      %v2126 = vld [vmem:[#allocation9 + $0x3d0] sm:$0xff]
      %v2127 = vld [vmem:[#allocation9 + $0x3d8] sm:$0xff]
      %v2128 = vld [vmem:[#allocation9 + $0x3e0] sm:$0xff]
      %v2129 = vld [vmem:[#allocation9 + $0x3e8] sm:$0xff]
      %v2130 = vld [vmem:[#allocation9 + $0x3f0] sm:$0xff]
      %v2131 = vld [vmem:[#allocation9 + $0x3f8] sm:$0xff]
      %v2260 = vunpack.c.l.b16 %v2004
      %v2261 = vunpack.c.h.b16 %v2004
      %v2262 = vunpack.c.l.b16 %v2005
      %v2263 = vunpack.c.h.b16 %v2005
      %v2264 = vunpack.c.l.b16 %v2006
      %v2265 = vunpack.c.h.b16 %v2006
      %v2266 = vunpack.c.l.b16 %v2007
      %v2267 = vunpack.c.h.b16 %v2007
      %v2268 = vunpack.c.l.b16 %v2008
      %v2269 = vunpack.c.h.b16 %v2008
      %v2270 = vunpack.c.l.b16 %v2009
      %v2271 = vunpack.c.h.b16 %v2009
      %v2272 = vunpack.c.l.b16 %v2010
      %v2273 = vunpack.c.h.b16 %v2010
      %v2274 = vunpack.c.l.b16 %v2011
      %v2275 = vunpack.c.h.b16 %v2011
      %v2276 = vunpack.c.l.b16 %v2012
      %v2277 = vunpack.c.h.b16 %v2012
      %v2278 = vunpack.c.l.b16 %v2013
      %v2279 = vunpack.c.h.b16 %v2013
      %v2280 = vunpack.c.l.b16 %v2014
      %v2281 = vunpack.c.h.b16 %v2014
      %v2282 = vunpack.c.l.b16 %v2015
      %v2283 = vunpack.c.h.b16 %v2015
      %v2284 = vunpack.c.l.b16 %v2016
      %v2285 = vunpack.c.h.b16 %v2016
      %v2286 = vunpack.c.l.b16 %v2017
      %v2287 = vunpack.c.h.b16 %v2017
      %v2288 = vunpack.c.l.b16 %v2018
      %v2289 = vunpack.c.h.b16 %v2018
      %v2290 = vunpack.c.l.b16 %v2019
      %v2291 = vunpack.c.h.b16 %v2019
      %v2292 = vunpack.c.l.b16 %v2020
      %v2293 = vunpack.c.h.b16 %v2020
      %v2294 = vunpack.c.l.b16 %v2021
      %v2295 = vunpack.c.h.b16 %v2021
      %v2296 = vunpack.c.l.b16 %v2022
      %v2297 = vunpack.c.h.b16 %v2022
      %v2298 = vunpack.c.l.b16 %v2023
      %v2299 = vunpack.c.h.b16 %v2023
      %v2300 = vunpack.c.l.b16 %v2024
      %v2301 = vunpack.c.h.b16 %v2024
      %v2302 = vunpack.c.l.b16 %v2025
      %v2303 = vunpack.c.h.b16 %v2025
      %v2304 = vunpack.c.l.b16 %v2026
      %v2305 = vunpack.c.h.b16 %v2026
      %v2306 = vunpack.c.l.b16 %v2027
      %v2307 = vunpack.c.h.b16 %v2027
      %v2308 = vunpack.c.l.b16 %v2028
      %v2309 = vunpack.c.h.b16 %v2028
      %v2310 = vunpack.c.l.b16 %v2029
      %v2311 = vunpack.c.h.b16 %v2029
      %v2312 = vunpack.c.l.b16 %v2030
      %v2313 = vunpack.c.h.b16 %v2030
      %v2314 = vunpack.c.l.b16 %v2031
      %v2315 = vunpack.c.h.b16 %v2031
      %v2316 = vunpack.c.l.b16 %v2032
      %v2317 = vunpack.c.h.b16 %v2032
      %v2318 = vunpack.c.l.b16 %v2033
      %v2319 = vunpack.c.h.b16 %v2033
      %v2320 = vunpack.c.l.b16 %v2034
      %v2321 = vunpack.c.h.b16 %v2034
      %v2322 = vunpack.c.l.b16 %v2035
      %v2323 = vunpack.c.h.b16 %v2035
      %v2324 = vunpack.c.l.b16 %v2036
      %v2325 = vunpack.c.h.b16 %v2036
      %v2326 = vunpack.c.l.b16 %v2037
      %v2327 = vunpack.c.h.b16 %v2037
      %v2328 = vunpack.c.l.b16 %v2038
      %v2329 = vunpack.c.h.b16 %v2038
      %v2330 = vunpack.c.l.b16 %v2039
      %v2331 = vunpack.c.h.b16 %v2039
      %v2332 = vunpack.c.l.b16 %v2040
      %v2333 = vunpack.c.h.b16 %v2040
      %v2334 = vunpack.c.l.b16 %v2041
      %v2335 = vunpack.c.h.b16 %v2041
      %v2336 = vunpack.c.l.b16 %v2042
      %v2337 = vunpack.c.h.b16 %v2042
      %v2338 = vunpack.c.l.b16 %v2043
      %v2339 = vunpack.c.h.b16 %v2043
      %v2340 = vunpack.c.l.b16 %v2044
      %v2341 = vunpack.c.h.b16 %v2044
      %v2342 = vunpack.c.l.b16 %v2045
      %v2343 = vunpack.c.h.b16 %v2045
      %v2344 = vunpack.c.l.b16 %v2046
      %v2345 = vunpack.c.h.b16 %v2046
      %v2346 = vunpack.c.l.b16 %v2047
      %v2347 = vunpack.c.h.b16 %v2047
      %v2348 = vunpack.c.l.b16 %v2048
      %v2349 = vunpack.c.h.b16 %v2048
      %v2350 = vunpack.c.l.b16 %v2049
      %v2351 = vunpack.c.h.b16 %v2049
      %v2352 = vunpack.c.l.b16 %v2050
      %v2353 = vunpack.c.h.b16 %v2050
      %v2354 = vunpack.c.l.b16 %v2051
      %v2355 = vunpack.c.h.b16 %v2051
      %v2356 = vunpack.c.l.b16 %v2052
      %v2357 = vunpack.c.h.b16 %v2052
      %v2358 = vunpack.c.l.b16 %v2053
      %v2359 = vunpack.c.h.b16 %v2053
      %v2360 = vunpack.c.l.b16 %v2054
      %v2361 = vunpack.c.h.b16 %v2054
      %v2362 = vunpack.c.l.b16 %v2055
      %v2363 = vunpack.c.h.b16 %v2055
      %v2364 = vunpack.c.l.b16 %v2056
      %v2365 = vunpack.c.h.b16 %v2056
      %v2366 = vunpack.c.l.b16 %v2057
      %v2367 = vunpack.c.h.b16 %v2057
      %v2368 = vunpack.c.l.b16 %v2058
      %v2369 = vunpack.c.h.b16 %v2058
      %v2370 = vunpack.c.l.b16 %v2059
      %v2371 = vunpack.c.h.b16 %v2059
      %v2372 = vunpack.c.l.b16 %v2060
      %v2373 = vunpack.c.h.b16 %v2060
      %v2374 = vunpack.c.l.b16 %v2061
      %v2375 = vunpack.c.h.b16 %v2061
      %v2376 = vunpack.c.l.b16 %v2062
      %v2377 = vunpack.c.h.b16 %v2062
      %v2378 = vunpack.c.l.b16 %v2063
      %v2379 = vunpack.c.h.b16 %v2063
      %v2380 = vunpack.c.l.b16 %v2064
      %v2381 = vunpack.c.h.b16 %v2064
      %v2382 = vunpack.c.l.b16 %v2065
      %v2383 = vunpack.c.h.b16 %v2065
      %v2384 = vunpack.c.l.b16 %v2066
      %v2385 = vunpack.c.h.b16 %v2066
      %v2386 = vunpack.c.l.b16 %v2067
      %v2387 = vunpack.c.h.b16 %v2067
      %v2388 = vunpack.c.l.b16 %v2068
      %v2389 = vunpack.c.h.b16 %v2068
      %v2390 = vunpack.c.l.b16 %v2069
      %v2391 = vunpack.c.h.b16 %v2069
      %v2392 = vunpack.c.l.b16 %v2070
      %v2393 = vunpack.c.h.b16 %v2070
      %v2394 = vunpack.c.l.b16 %v2071
      %v2395 = vunpack.c.h.b16 %v2071
      %v2396 = vunpack.c.l.b16 %v2072
      %v2397 = vunpack.c.h.b16 %v2072
      %v2398 = vunpack.c.l.b16 %v2073
      %v2399 = vunpack.c.h.b16 %v2073
      %v2400 = vunpack.c.l.b16 %v2074
      %v2401 = vunpack.c.h.b16 %v2074
      %v2402 = vunpack.c.l.b16 %v2075
      %v2403 = vunpack.c.h.b16 %v2075
      %v2404 = vunpack.c.l.b16 %v2076
      %v2405 = vunpack.c.h.b16 %v2076
      %v2406 = vunpack.c.l.b16 %v2077
      %v2407 = vunpack.c.h.b16 %v2077
      %v2408 = vunpack.c.l.b16 %v2078
      %v2409 = vunpack.c.h.b16 %v2078
      %v2410 = vunpack.c.l.b16 %v2079
      %v2411 = vunpack.c.h.b16 %v2079
      %v2412 = vunpack.c.l.b16 %v2080
      %v2413 = vunpack.c.h.b16 %v2080
      %v2414 = vunpack.c.l.b16 %v2081
      %v2415 = vunpack.c.h.b16 %v2081
      %v2416 = vunpack.c.l.b16 %v2082
      %v2417 = vunpack.c.h.b16 %v2082
      %v2418 = vunpack.c.l.b16 %v2083
      %v2419 = vunpack.c.h.b16 %v2083
      %v2420 = vunpack.c.l.b16 %v2084
      %v2421 = vunpack.c.h.b16 %v2084
      %v2422 = vunpack.c.l.b16 %v2085
      %v2423 = vunpack.c.h.b16 %v2085
      %v2424 = vunpack.c.l.b16 %v2086
      %v2425 = vunpack.c.h.b16 %v2086
      %v2426 = vunpack.c.l.b16 %v2087
      %v2427 = vunpack.c.h.b16 %v2087
      %v2428 = vunpack.c.l.b16 %v2088
      %v2429 = vunpack.c.h.b16 %v2088
      %v2430 = vunpack.c.l.b16 %v2089
      %v2431 = vunpack.c.h.b16 %v2089
      %v2432 = vunpack.c.l.b16 %v2090
      %v2433 = vunpack.c.h.b16 %v2090
      %v2434 = vunpack.c.l.b16 %v2091
      %v2435 = vunpack.c.h.b16 %v2091
      %v2436 = vunpack.c.l.b16 %v2092
      %v2437 = vunpack.c.h.b16 %v2092
      %v2438 = vunpack.c.l.b16 %v2093
      %v2439 = vunpack.c.h.b16 %v2093
      %v2440 = vunpack.c.l.b16 %v2094
      %v2441 = vunpack.c.h.b16 %v2094
      %v2442 = vunpack.c.l.b16 %v2095
      %v2443 = vunpack.c.h.b16 %v2095
      %v2444 = vunpack.c.l.b16 %v2096
      %v2445 = vunpack.c.h.b16 %v2096
      %v2446 = vunpack.c.l.b16 %v2097
      %v2447 = vunpack.c.h.b16 %v2097
      %v2448 = vunpack.c.l.b16 %v2098
      %v2449 = vunpack.c.h.b16 %v2098
      %v2450 = vunpack.c.l.b16 %v2099
      %v2451 = vunpack.c.h.b16 %v2099
      %v2452 = vunpack.c.l.b16 %v2100
      %v2453 = vunpack.c.h.b16 %v2100
      %v2454 = vunpack.c.l.b16 %v2101
      %v2455 = vunpack.c.h.b16 %v2101
      %v2456 = vunpack.c.l.b16 %v2102
      %v2457 = vunpack.c.h.b16 %v2102
      %v2458 = vunpack.c.l.b16 %v2103
      %v2459 = vunpack.c.h.b16 %v2103
      %v2460 = vunpack.c.l.b16 %v2104
      %v2461 = vunpack.c.h.b16 %v2104
      %v2462 = vunpack.c.l.b16 %v2105
      %v2463 = vunpack.c.h.b16 %v2105
      %v2464 = vunpack.c.l.b16 %v2106
      %v2465 = vunpack.c.h.b16 %v2106
      %v2466 = vunpack.c.l.b16 %v2107
      %v2467 = vunpack.c.h.b16 %v2107
      %v2468 = vunpack.c.l.b16 %v2108
      %v2469 = vunpack.c.h.b16 %v2108
      %v2470 = vunpack.c.l.b16 %v2109
      %v2471 = vunpack.c.h.b16 %v2109
      %v2472 = vunpack.c.l.b16 %v2110
      %v2473 = vunpack.c.h.b16 %v2110
      %v2474 = vunpack.c.l.b16 %v2111
      %v2475 = vunpack.c.h.b16 %v2111
      %v2476 = vunpack.c.l.b16 %v2112
      %v2477 = vunpack.c.h.b16 %v2112
      %v2478 = vunpack.c.l.b16 %v2113
      %v2479 = vunpack.c.h.b16 %v2113
      %v2480 = vunpack.c.l.b16 %v2114
      %v2481 = vunpack.c.h.b16 %v2114
      %v2482 = vunpack.c.l.b16 %v2115
      %v2483 = vunpack.c.h.b16 %v2115
      %v2484 = vunpack.c.l.b16 %v2116
      %v2485 = vunpack.c.h.b16 %v2116
      %v2486 = vunpack.c.l.b16 %v2117
      %v2487 = vunpack.c.h.b16 %v2117
      %v2488 = vunpack.c.l.b16 %v2118
      %v2489 = vunpack.c.h.b16 %v2118
      %v2490 = vunpack.c.l.b16 %v2119
      %v2491 = vunpack.c.h.b16 %v2119
      %v2492 = vunpack.c.l.b16 %v2120
      %v2493 = vunpack.c.h.b16 %v2120
      %v2494 = vunpack.c.l.b16 %v2121
      %v2495 = vunpack.c.h.b16 %v2121
      %v2496 = vunpack.c.l.b16 %v2122
      %v2497 = vunpack.c.h.b16 %v2122
      %v2498 = vunpack.c.l.b16 %v2123
      %v2499 = vunpack.c.h.b16 %v2123
      %v2500 = vunpack.c.l.b16 %v2124
      %v2501 = vunpack.c.h.b16 %v2124
      %v2502 = vunpack.c.l.b16 %v2125
      %v2503 = vunpack.c.h.b16 %v2125
      %v2504 = vunpack.c.l.b16 %v2126
      %v2505 = vunpack.c.h.b16 %v2126
      %v2506 = vunpack.c.l.b16 %v2127
      %v2507 = vunpack.c.h.b16 %v2127
      %v2508 = vunpack.c.l.b16 %v2128
      %v2509 = vunpack.c.h.b16 %v2128
      %v2510 = vunpack.c.l.b16 %v2129
      %v2511 = vunpack.c.h.b16 %v2129
      %v2512 = vunpack.c.l.b16 %v2130
      %v2513 = vunpack.c.h.b16 %v2130
      %v2514 = vunpack.c.l.b16 %v2131
      %v2515 = vunpack.c.h.b16 %v2131
      %v2516 = vpack.c.b16 %v2268, %v2260
      %v2517 = vpack.c.b16 %v2269, %v2261
      %v2518 = vpack.c.b16 %v2270, %v2262
      %v2519 = vpack.c.b16 %v2271, %v2263
      %v2520 = vpack.c.b16 %v2272, %v2264
      %v2521 = vpack.c.b16 %v2273, %v2265
      %v2522 = vpack.c.b16 %v2274, %v2266
      %v2523 = vpack.c.b16 %v2275, %v2267
      %v2524 = vpack.c.b16 %v2284, %v2276
      %v2525 = vpack.c.b16 %v2285, %v2277
      %v2526 = vpack.c.b16 %v2286, %v2278
      %v2527 = vpack.c.b16 %v2287, %v2279
      %v2528 = vpack.c.b16 %v2288, %v2280
      %v2529 = vpack.c.b16 %v2289, %v2281
      %v2530 = vpack.c.b16 %v2290, %v2282
      %v2531 = vpack.c.b16 %v2291, %v2283
      %v2532 = vpack.c.b16 %v2300, %v2292
      %v2533 = vpack.c.b16 %v2301, %v2293
      %v2534 = vpack.c.b16 %v2302, %v2294
      %v2535 = vpack.c.b16 %v2303, %v2295
      %v2536 = vpack.c.b16 %v2304, %v2296
      %v2537 = vpack.c.b16 %v2305, %v2297
      %v2538 = vpack.c.b16 %v2306, %v2298
      %v2539 = vpack.c.b16 %v2307, %v2299
      %v2540 = vpack.c.b16 %v2316, %v2308
      %v2541 = vpack.c.b16 %v2317, %v2309
      %v2542 = vpack.c.b16 %v2318, %v2310
      %v2543 = vpack.c.b16 %v2319, %v2311
      %v2544 = vpack.c.b16 %v2320, %v2312
      %v2545 = vpack.c.b16 %v2321, %v2313
      %v2546 = vpack.c.b16 %v2322, %v2314
      %v2547 = vpack.c.b16 %v2323, %v2315
      %v2548 = vpack.c.b16 %v2332, %v2324
      %v2549 = vpack.c.b16 %v2333, %v2325
      %v2550 = vpack.c.b16 %v2334, %v2326
      %v2551 = vpack.c.b16 %v2335, %v2327
      %v2552 = vpack.c.b16 %v2336, %v2328
      %v2553 = vpack.c.b16 %v2337, %v2329
      %v2554 = vpack.c.b16 %v2338, %v2330
      %v2555 = vpack.c.b16 %v2339, %v2331
      %v2556 = vpack.c.b16 %v2348, %v2340
      %v2557 = vpack.c.b16 %v2349, %v2341
      %v2558 = vpack.c.b16 %v2350, %v2342
      %v2559 = vpack.c.b16 %v2351, %v2343
      %v2560 = vpack.c.b16 %v2352, %v2344
      %v2561 = vpack.c.b16 %v2353, %v2345
      %v2562 = vpack.c.b16 %v2354, %v2346
      %v2563 = vpack.c.b16 %v2355, %v2347
      %v2564 = vpack.c.b16 %v2364, %v2356
      %v2565 = vpack.c.b16 %v2365, %v2357
      %v2566 = vpack.c.b16 %v2366, %v2358
      %v2567 = vpack.c.b16 %v2367, %v2359
      %v2568 = vpack.c.b16 %v2368, %v2360
      %v2569 = vpack.c.b16 %v2369, %v2361
      %v2570 = vpack.c.b16 %v2370, %v2362
      %v2571 = vpack.c.b16 %v2371, %v2363
      %v2572 = vpack.c.b16 %v2380, %v2372
      %v2573 = vpack.c.b16 %v2381, %v2373
      %v2574 = vpack.c.b16 %v2382, %v2374
      %v2575 = vpack.c.b16 %v2383, %v2375
      %v2576 = vpack.c.b16 %v2384, %v2376
      %v2577 = vpack.c.b16 %v2385, %v2377
      %v2578 = vpack.c.b16 %v2386, %v2378
      %v2579 = vpack.c.b16 %v2387, %v2379
      %v2580 = vpack.c.b16 %v2396, %v2388
      %v2581 = vpack.c.b16 %v2397, %v2389
      %v2582 = vpack.c.b16 %v2398, %v2390
      %v2583 = vpack.c.b16 %v2399, %v2391
      %v2584 = vpack.c.b16 %v2400, %v2392
      %v2585 = vpack.c.b16 %v2401, %v2393
      %v2586 = vpack.c.b16 %v2402, %v2394
      %v2587 = vpack.c.b16 %v2403, %v2395
      %v2588 = vpack.c.b16 %v2412, %v2404
      %v2589 = vpack.c.b16 %v2413, %v2405
      %v2590 = vpack.c.b16 %v2414, %v2406
      %v2591 = vpack.c.b16 %v2415, %v2407
      %v2592 = vpack.c.b16 %v2416, %v2408
      %v2593 = vpack.c.b16 %v2417, %v2409
      %v2594 = vpack.c.b16 %v2418, %v2410
      %v2595 = vpack.c.b16 %v2419, %v2411
      %v2596 = vpack.c.b16 %v2428, %v2420
      %v2597 = vpack.c.b16 %v2429, %v2421
      %v2598 = vpack.c.b16 %v2430, %v2422
      %v2599 = vpack.c.b16 %v2431, %v2423
      %v2600 = vpack.c.b16 %v2432, %v2424
      %v2601 = vpack.c.b16 %v2433, %v2425
      %v2602 = vpack.c.b16 %v2434, %v2426
      %v2603 = vpack.c.b16 %v2435, %v2427
      %v2604 = vpack.c.b16 %v2444, %v2436
      %v2605 = vpack.c.b16 %v2445, %v2437
      %v2606 = vpack.c.b16 %v2446, %v2438
      %v2607 = vpack.c.b16 %v2447, %v2439
      %v2608 = vpack.c.b16 %v2448, %v2440
      %v2609 = vpack.c.b16 %v2449, %v2441
      %v2610 = vpack.c.b16 %v2450, %v2442
      %v2611 = vpack.c.b16 %v2451, %v2443
      %v2612 = vpack.c.b16 %v2460, %v2452
      %v2613 = vpack.c.b16 %v2461, %v2453
      %v2614 = vpack.c.b16 %v2462, %v2454
      %v2615 = vpack.c.b16 %v2463, %v2455
      %v2616 = vpack.c.b16 %v2464, %v2456
      %v2617 = vpack.c.b16 %v2465, %v2457
      %v2618 = vpack.c.b16 %v2466, %v2458
      %v2619 = vpack.c.b16 %v2467, %v2459
      %v2620 = vpack.c.b16 %v2476, %v2468
      %v2621 = vpack.c.b16 %v2477, %v2469
      %v2622 = vpack.c.b16 %v2478, %v2470
      %v2623 = vpack.c.b16 %v2479, %v2471
      %v2624 = vpack.c.b16 %v2480, %v2472
      %v2625 = vpack.c.b16 %v2481, %v2473
      %v2626 = vpack.c.b16 %v2482, %v2474
      %v2627 = vpack.c.b16 %v2483, %v2475
      %v2628 = vpack.c.b16 %v2492, %v2484
      %v2629 = vpack.c.b16 %v2493, %v2485
      %v2630 = vpack.c.b16 %v2494, %v2486
      %v2631 = vpack.c.b16 %v2495, %v2487
      %v2632 = vpack.c.b16 %v2496, %v2488
      %v2633 = vpack.c.b16 %v2497, %v2489
      %v2634 = vpack.c.b16 %v2498, %v2490
      %v2635 = vpack.c.b16 %v2499, %v2491
      %v2636 = vpack.c.b16 %v2508, %v2500
      %v2637 = vpack.c.b16 %v2509, %v2501
      %v2638 = vpack.c.b16 %v2510, %v2502
      %v2639 = vpack.c.b16 %v2511, %v2503
      %v2640 = vpack.c.b16 %v2512, %v2504
      %v2641 = vpack.c.b16 %v2513, %v2505
      %v2642 = vpack.c.b16 %v2514, %v2506
      %v2643 = vpack.c.b16 %v2515, %v2507
      %2772 = vmatpush.bf16.msra.mxu0 %v2572
      %2773 = vmatpush.bf16.msra.mxu0 %v2564
      %2774 = vmatpush.bf16.msra.mxu0 %v2556
      %2775 = vmatpush.bf16.msra.mxu0 %v2548
      %2776 = vmatpush.bf16.msra.mxu0 %v2540
      %2777 = vmatpush.bf16.msra.mxu0 %v2532
      %2778 = vmatpush.bf16.msra.mxu0 %v2524
      %2779 = vmatpush.bf16.msra.mxu0 %v2516
      %2780 = vmatmul.bf16.gmra.mxu0 %v2002
      %v2781 = vpop.f32.mrf.mxu0
      %v2782 = vadd.f32 0.0, %v2781
      %v2783 = vpop.f32.mrf.mxu0
      %2784 = vdwg.mxu0
      %2785 = vmatpush.bf16.msra.mxu0 %v2636
      %2786 = vmatpush.bf16.msra.mxu0 %v2628
      %2787 = vmatpush.bf16.msra.mxu0 %v2620
      %2788 = vmatpush.bf16.msra.mxu0 %v2612
      %2789 = vmatpush.bf16.msra.mxu0 %v2604
      %2790 = vmatpush.bf16.msra.mxu0 %v2596
      %2791 = vmatpush.bf16.msra.mxu0 %v2588
      %2792 = vmatpush.bf16.msra.mxu0 %v2580
      %2793 = vmatmul.bf16.gmra.mxu0 %v2003
      %v2794 = vpop.f32.mrf.mxu0
      %v2795 = vadd.f32 %v2782, %v2794
      %v2796 = vpop.f32.mrf.mxu0
      %2797 = vdwg.mxu0
      %2798 = vmatpush.bf16.msra.mxu0 %v2573
      %2799 = vmatpush.bf16.msra.mxu0 %v2565
      %2800 = vmatpush.bf16.msra.mxu0 %v2557
      %2801 = vmatpush.bf16.msra.mxu0 %v2549
      %2802 = vmatpush.bf16.msra.mxu0 %v2541
      %2803 = vmatpush.bf16.msra.mxu0 %v2533
      %2804 = vmatpush.bf16.msra.mxu0 %v2525
      %2805 = vmatpush.bf16.msra.mxu0 %v2517
      %2806 = vmatmul.bf16.gmra.mxu0 %v2002
      %v2807 = vpop.f32.mrf.mxu0
      %v2808 = vadd.f32 0.0, %v2807
      %v2809 = vpop.f32.mrf.mxu0
      %2810 = vdwg.mxu0
      %2811 = vmatpush.bf16.msra.mxu0 %v2637
      %2812 = vmatpush.bf16.msra.mxu0 %v2629
      %2813 = vmatpush.bf16.msra.mxu0 %v2621
      %2814 = vmatpush.bf16.msra.mxu0 %v2613
      %2815 = vmatpush.bf16.msra.mxu0 %v2605
      %2816 = vmatpush.bf16.msra.mxu0 %v2597
      %2817 = vmatpush.bf16.msra.mxu0 %v2589
      %2818 = vmatpush.bf16.msra.mxu0 %v2581
      %2819 = vmatmul.bf16.gmra.mxu0 %v2003
      %v2820 = vpop.f32.mrf.mxu0
      %v2821 = vadd.f32 %v2808, %v2820
      %v2822 = vpop.f32.mrf.mxu0
      %2823 = vdwg.mxu0
      %2824 = vmatpush.bf16.msra.mxu0 %v2574
      %2825 = vmatpush.bf16.msra.mxu0 %v2566
      %2826 = vmatpush.bf16.msra.mxu0 %v2558
      %2827 = vmatpush.bf16.msra.mxu0 %v2550
      %2828 = vmatpush.bf16.msra.mxu0 %v2542
      %2829 = vmatpush.bf16.msra.mxu0 %v2534
      %2830 = vmatpush.bf16.msra.mxu0 %v2526
      %2831 = vmatpush.bf16.msra.mxu0 %v2518
      %2832 = vmatmul.bf16.gmra.mxu0 %v2002
      %v2833 = vpop.f32.mrf.mxu0
      %v2834 = vadd.f32 0.0, %v2833
      %v2835 = vpop.f32.mrf.mxu0
      %2836 = vdwg.mxu0
      %2837 = vmatpush.bf16.msra.mxu0 %v2638
      %2838 = vmatpush.bf16.msra.mxu0 %v2630
      %2839 = vmatpush.bf16.msra.mxu0 %v2622
      %2840 = vmatpush.bf16.msra.mxu0 %v2614
      %2841 = vmatpush.bf16.msra.mxu0 %v2606
      %2842 = vmatpush.bf16.msra.mxu0 %v2598
      %2843 = vmatpush.bf16.msra.mxu0 %v2590
      %2844 = vmatpush.bf16.msra.mxu0 %v2582
      %2845 = vmatmul.bf16.gmra.mxu0 %v2003
      %v2846 = vpop.f32.mrf.mxu0
      %v2847 = vadd.f32 %v2834, %v2846
      %v2848 = vpop.f32.mrf.mxu0
      %2849 = vdwg.mxu0
      %2850 = vmatpush.bf16.msra.mxu0 %v2575
      %2851 = vmatpush.bf16.msra.mxu0 %v2567
      %2852 = vmatpush.bf16.msra.mxu0 %v2559
      %2853 = vmatpush.bf16.msra.mxu0 %v2551
      %2854 = vmatpush.bf16.msra.mxu0 %v2543
      %2855 = vmatpush.bf16.msra.mxu0 %v2535
      %2856 = vmatpush.bf16.msra.mxu0 %v2527
      %2857 = vmatpush.bf16.msra.mxu0 %v2519
      %2858 = vmatmul.bf16.gmra.mxu0 %v2002
      %v2859 = vpop.f32.mrf.mxu0
      %v2860 = vadd.f32 0.0, %v2859
      %v2861 = vpop.f32.mrf.mxu0
      %2862 = vdwg.mxu0
      %2863 = vmatpush.bf16.msra.mxu0 %v2639
      %2864 = vmatpush.bf16.msra.mxu0 %v2631
      %2865 = vmatpush.bf16.msra.mxu0 %v2623
      %2866 = vmatpush.bf16.msra.mxu0 %v2615
      %2867 = vmatpush.bf16.msra.mxu0 %v2607
      %2868 = vmatpush.bf16.msra.mxu0 %v2599
      %2869 = vmatpush.bf16.msra.mxu0 %v2591
      %2870 = vmatpush.bf16.msra.mxu0 %v2583
      %2871 = vmatmul.bf16.gmra.mxu0 %v2003
      %v2872 = vpop.f32.mrf.mxu0
      %v2873 = vadd.f32 %v2860, %v2872
      %v2874 = vpop.f32.mrf.mxu0
      %2875 = vdwg.mxu0
      %2876 = vmatpush.bf16.msra.mxu0 %v2576
      %2877 = vmatpush.bf16.msra.mxu0 %v2568
      %2878 = vmatpush.bf16.msra.mxu0 %v2560
      %2879 = vmatpush.bf16.msra.mxu0 %v2552
      %2880 = vmatpush.bf16.msra.mxu0 %v2544
      %2881 = vmatpush.bf16.msra.mxu0 %v2536
      %2882 = vmatpush.bf16.msra.mxu0 %v2528
      %2883 = vmatpush.bf16.msra.mxu0 %v2520
      %2884 = vmatmul.bf16.gmra.mxu0 %v2002
      %v2885 = vpop.f32.mrf.mxu0
      %v2886 = vadd.f32 0.0, %v2885
      %v2887 = vpop.f32.mrf.mxu0
      %2888 = vdwg.mxu0
      %2889 = vmatpush.bf16.msra.mxu0 %v2640
      %2890 = vmatpush.bf16.msra.mxu0 %v2632
      %2891 = vmatpush.bf16.msra.mxu0 %v2624
      %2892 = vmatpush.bf16.msra.mxu0 %v2616
      %2893 = vmatpush.bf16.msra.mxu0 %v2608
      %2894 = vmatpush.bf16.msra.mxu0 %v2600
      %2895 = vmatpush.bf16.msra.mxu0 %v2592
      %2896 = vmatpush.bf16.msra.mxu0 %v2584
      %2897 = vmatmul.bf16.gmra.mxu0 %v2003
      %v2898 = vpop.f32.mrf.mxu0
      %v2899 = vadd.f32 %v2886, %v2898
      %v2900 = vpop.f32.mrf.mxu0
      %2901 = vdwg.mxu0
      %2902 = vmatpush.bf16.msra.mxu0 %v2577
      %2903 = vmatpush.bf16.msra.mxu0 %v2569
      %2904 = vmatpush.bf16.msra.mxu0 %v2561
      %2905 = vmatpush.bf16.msra.mxu0 %v2553
      %2906 = vmatpush.bf16.msra.mxu0 %v2545
      %2907 = vmatpush.bf16.msra.mxu0 %v2537
      %2908 = vmatpush.bf16.msra.mxu0 %v2529
      %2909 = vmatpush.bf16.msra.mxu0 %v2521
      %2910 = vmatmul.bf16.gmra.mxu0 %v2002
      %v2911 = vpop.f32.mrf.mxu0
      %v2912 = vadd.f32 0.0, %v2911
      %v2913 = vpop.f32.mrf.mxu0
      %2914 = vdwg.mxu0
      %2915 = vmatpush.bf16.msra.mxu0 %v2641
      %2916 = vmatpush.bf16.msra.mxu0 %v2633
      %2917 = vmatpush.bf16.msra.mxu0 %v2625
      %2918 = vmatpush.bf16.msra.mxu0 %v2617
      %2919 = vmatpush.bf16.msra.mxu0 %v2609
      %2920 = vmatpush.bf16.msra.mxu0 %v2601
      %2921 = vmatpush.bf16.msra.mxu0 %v2593
      %2922 = vmatpush.bf16.msra.mxu0 %v2585
      %2923 = vmatmul.bf16.gmra.mxu0 %v2003
      %v2924 = vpop.f32.mrf.mxu0
      %v2925 = vadd.f32 %v2912, %v2924
      %v2926 = vpop.f32.mrf.mxu0
      %2927 = vdwg.mxu0
      %2928 = vmatpush.bf16.msra.mxu0 %v2578
      %2929 = vmatpush.bf16.msra.mxu0 %v2570
      %2930 = vmatpush.bf16.msra.mxu0 %v2562
      %2931 = vmatpush.bf16.msra.mxu0 %v2554
      %2932 = vmatpush.bf16.msra.mxu0 %v2546
      %2933 = vmatpush.bf16.msra.mxu0 %v2538
      %2934 = vmatpush.bf16.msra.mxu0 %v2530
      %2935 = vmatpush.bf16.msra.mxu0 %v2522
      %2936 = vmatmul.bf16.gmra.mxu0 %v2002
      %v2937 = vpop.f32.mrf.mxu0
      %v2938 = vadd.f32 0.0, %v2937
      %v2939 = vpop.f32.mrf.mxu0
      %2940 = vdwg.mxu0
      %2941 = vmatpush.bf16.msra.mxu0 %v2642
      %2942 = vmatpush.bf16.msra.mxu0 %v2634
      %2943 = vmatpush.bf16.msra.mxu0 %v2626
      %2944 = vmatpush.bf16.msra.mxu0 %v2618
      %2945 = vmatpush.bf16.msra.mxu0 %v2610
      %2946 = vmatpush.bf16.msra.mxu0 %v2602
      %2947 = vmatpush.bf16.msra.mxu0 %v2594
      %2948 = vmatpush.bf16.msra.mxu0 %v2586
      %2949 = vmatmul.bf16.gmra.mxu0 %v2003
      %v2950 = vpop.f32.mrf.mxu0
      %v2951 = vadd.f32 %v2938, %v2950
      %v2952 = vpop.f32.mrf.mxu0
      %2953 = vdwg.mxu0
      %2954 = vmatpush.bf16.msra.mxu0 %v2579
      %2955 = vmatpush.bf16.msra.mxu0 %v2571
      %2956 = vmatpush.bf16.msra.mxu0 %v2563
      %2957 = vmatpush.bf16.msra.mxu0 %v2555
      %2958 = vmatpush.bf16.msra.mxu0 %v2547
      %2959 = vmatpush.bf16.msra.mxu0 %v2539
      %2960 = vmatpush.bf16.msra.mxu0 %v2531
      %2961 = vmatpush.bf16.msra.mxu0 %v2523
      %2962 = vmatmul.bf16.gmra.mxu0 %v2002
      %v2963 = vpop.f32.mrf.mxu0
      %v2964 = vadd.f32 0.0, %v2963
      %v2965 = vpop.f32.mrf.mxu0
      %2966 = vdwg.mxu0
      %2967 = vmatpush.bf16.msra.mxu0 %v2643
      %2968 = vmatpush.bf16.msra.mxu0 %v2635
      %2969 = vmatpush.bf16.msra.mxu0 %v2627
      %2970 = vmatpush.bf16.msra.mxu0 %v2619
      %2971 = vmatpush.bf16.msra.mxu0 %v2611
      %2972 = vmatpush.bf16.msra.mxu0 %v2603
      %2973 = vmatpush.bf16.msra.mxu0 %v2595
      %2974 = vmatpush.bf16.msra.mxu0 %v2587
      %2975 = vmatmul.bf16.gmra.mxu0 %v2003
      %v2976 = vpop.f32.mrf.mxu0
      %v2977 = vadd.f32 %v2964, %v2976
      %v2978 = vpop.f32.mrf.mxu0
      %2979 = vdwg.mxu0
      %v3108 = vunpack.c.l.b16 %v1874
      %v3109 = vunpack.c.h.b16 %v1874
      %v3110 = vunpack.c.l.b16 %v1875
      %v3111 = vunpack.c.h.b16 %v1875
      %v3112 = vunpack.c.l.b16 %v1876
      %v3113 = vunpack.c.h.b16 %v1876
      %v3114 = vunpack.c.l.b16 %v1877
      %v3115 = vunpack.c.h.b16 %v1877
      %v3116 = vunpack.c.l.b16 %v1878
      %v3117 = vunpack.c.h.b16 %v1878
      %v3118 = vunpack.c.l.b16 %v1879
      %v3119 = vunpack.c.h.b16 %v1879
      %v3120 = vunpack.c.l.b16 %v1880
      %v3121 = vunpack.c.h.b16 %v1880
      %v3122 = vunpack.c.l.b16 %v1881
      %v3123 = vunpack.c.h.b16 %v1881
      %v3124 = vunpack.c.l.b16 %v1882
      %v3125 = vunpack.c.h.b16 %v1882
      %v3126 = vunpack.c.l.b16 %v1883
      %v3127 = vunpack.c.h.b16 %v1883
      %v3128 = vunpack.c.l.b16 %v1884
      %v3129 = vunpack.c.h.b16 %v1884
      %v3130 = vunpack.c.l.b16 %v1885
      %v3131 = vunpack.c.h.b16 %v1885
      %v3132 = vunpack.c.l.b16 %v1886
      %v3133 = vunpack.c.h.b16 %v1886
      %v3134 = vunpack.c.l.b16 %v1887
      %v3135 = vunpack.c.h.b16 %v1887
      %v3136 = vunpack.c.l.b16 %v1888
      %v3137 = vunpack.c.h.b16 %v1888
      %v3138 = vunpack.c.l.b16 %v1889
      %v3139 = vunpack.c.h.b16 %v1889
      %v3140 = vunpack.c.l.b16 %v1890
      %v3141 = vunpack.c.h.b16 %v1890
      %v3142 = vunpack.c.l.b16 %v1891
      %v3143 = vunpack.c.h.b16 %v1891
      %v3144 = vunpack.c.l.b16 %v1892
      %v3145 = vunpack.c.h.b16 %v1892
      %v3146 = vunpack.c.l.b16 %v1893
      %v3147 = vunpack.c.h.b16 %v1893
      %v3148 = vunpack.c.l.b16 %v1894
      %v3149 = vunpack.c.h.b16 %v1894
      %v3150 = vunpack.c.l.b16 %v1895
      %v3151 = vunpack.c.h.b16 %v1895
      %v3152 = vunpack.c.l.b16 %v1896
      %v3153 = vunpack.c.h.b16 %v1896
      %v3154 = vunpack.c.l.b16 %v1897
      %v3155 = vunpack.c.h.b16 %v1897
      %v3156 = vunpack.c.l.b16 %v1898
      %v3157 = vunpack.c.h.b16 %v1898
      %v3158 = vunpack.c.l.b16 %v1899
      %v3159 = vunpack.c.h.b16 %v1899
      %v3160 = vunpack.c.l.b16 %v1900
      %v3161 = vunpack.c.h.b16 %v1900
      %v3162 = vunpack.c.l.b16 %v1901
      %v3163 = vunpack.c.h.b16 %v1901
      %v3164 = vunpack.c.l.b16 %v1902
      %v3165 = vunpack.c.h.b16 %v1902
      %v3166 = vunpack.c.l.b16 %v1903
      %v3167 = vunpack.c.h.b16 %v1903
      %v3168 = vunpack.c.l.b16 %v1904
      %v3169 = vunpack.c.h.b16 %v1904
      %v3170 = vunpack.c.l.b16 %v1905
      %v3171 = vunpack.c.h.b16 %v1905
      %v3172 = vunpack.c.l.b16 %v1906
      %v3173 = vunpack.c.h.b16 %v1906
      %v3174 = vunpack.c.l.b16 %v1907
      %v3175 = vunpack.c.h.b16 %v1907
      %v3176 = vunpack.c.l.b16 %v1908
      %v3177 = vunpack.c.h.b16 %v1908
      %v3178 = vunpack.c.l.b16 %v1909
      %v3179 = vunpack.c.h.b16 %v1909
      %v3180 = vunpack.c.l.b16 %v1910
      %v3181 = vunpack.c.h.b16 %v1910
      %v3182 = vunpack.c.l.b16 %v1911
      %v3183 = vunpack.c.h.b16 %v1911
      %v3184 = vunpack.c.l.b16 %v1912
      %v3185 = vunpack.c.h.b16 %v1912
      %v3186 = vunpack.c.l.b16 %v1913
      %v3187 = vunpack.c.h.b16 %v1913
      %v3188 = vunpack.c.l.b16 %v1914
      %v3189 = vunpack.c.h.b16 %v1914
      %v3190 = vunpack.c.l.b16 %v1915
      %v3191 = vunpack.c.h.b16 %v1915
      %v3192 = vunpack.c.l.b16 %v1916
      %v3193 = vunpack.c.h.b16 %v1916
      %v3194 = vunpack.c.l.b16 %v1917
      %v3195 = vunpack.c.h.b16 %v1917
      %v3196 = vunpack.c.l.b16 %v1918
      %v3197 = vunpack.c.h.b16 %v1918
      %v3198 = vunpack.c.l.b16 %v1919
      %v3199 = vunpack.c.h.b16 %v1919
      %v3200 = vunpack.c.l.b16 %v1920
      %v3201 = vunpack.c.h.b16 %v1920
      %v3202 = vunpack.c.l.b16 %v1921
      %v3203 = vunpack.c.h.b16 %v1921
      %v3204 = vunpack.c.l.b16 %v1922
      %v3205 = vunpack.c.h.b16 %v1922
      %v3206 = vunpack.c.l.b16 %v1923
      %v3207 = vunpack.c.h.b16 %v1923
      %v3208 = vunpack.c.l.b16 %v1924
      %v3209 = vunpack.c.h.b16 %v1924
      %v3210 = vunpack.c.l.b16 %v1925
      %v3211 = vunpack.c.h.b16 %v1925
      %v3212 = vunpack.c.l.b16 %v1926
      %v3213 = vunpack.c.h.b16 %v1926
      %v3214 = vunpack.c.l.b16 %v1927
      %v3215 = vunpack.c.h.b16 %v1927
      %v3216 = vunpack.c.l.b16 %v1928
      %v3217 = vunpack.c.h.b16 %v1928
      %v3218 = vunpack.c.l.b16 %v1929
      %v3219 = vunpack.c.h.b16 %v1929
      %v3220 = vunpack.c.l.b16 %v1930
      %v3221 = vunpack.c.h.b16 %v1930
      %v3222 = vunpack.c.l.b16 %v1931
      %v3223 = vunpack.c.h.b16 %v1931
      %v3224 = vunpack.c.l.b16 %v1932
      %v3225 = vunpack.c.h.b16 %v1932
      %v3226 = vunpack.c.l.b16 %v1933
      %v3227 = vunpack.c.h.b16 %v1933
      %v3228 = vunpack.c.l.b16 %v1934
      %v3229 = vunpack.c.h.b16 %v1934
      %v3230 = vunpack.c.l.b16 %v1935
      %v3231 = vunpack.c.h.b16 %v1935
      %v3232 = vunpack.c.l.b16 %v1936
      %v3233 = vunpack.c.h.b16 %v1936
      %v3234 = vunpack.c.l.b16 %v1937
      %v3235 = vunpack.c.h.b16 %v1937
      %v3236 = vunpack.c.l.b16 %v1938
      %v3237 = vunpack.c.h.b16 %v1938
      %v3238 = vunpack.c.l.b16 %v1939
      %v3239 = vunpack.c.h.b16 %v1939
      %v3240 = vunpack.c.l.b16 %v1940
      %v3241 = vunpack.c.h.b16 %v1940
      %v3242 = vunpack.c.l.b16 %v1941
      %v3243 = vunpack.c.h.b16 %v1941
      %v3244 = vunpack.c.l.b16 %v1942
      %v3245 = vunpack.c.h.b16 %v1942
      %v3246 = vunpack.c.l.b16 %v1943
      %v3247 = vunpack.c.h.b16 %v1943
      %v3248 = vunpack.c.l.b16 %v1944
      %v3249 = vunpack.c.h.b16 %v1944
      %v3250 = vunpack.c.l.b16 %v1945
      %v3251 = vunpack.c.h.b16 %v1945
      %v3252 = vunpack.c.l.b16 %v1946
      %v3253 = vunpack.c.h.b16 %v1946
      %v3254 = vunpack.c.l.b16 %v1947
      %v3255 = vunpack.c.h.b16 %v1947
      %v3256 = vunpack.c.l.b16 %v1948
      %v3257 = vunpack.c.h.b16 %v1948
      %v3258 = vunpack.c.l.b16 %v1949
      %v3259 = vunpack.c.h.b16 %v1949
      %v3260 = vunpack.c.l.b16 %v1950
      %v3261 = vunpack.c.h.b16 %v1950
      %v3262 = vunpack.c.l.b16 %v1951
      %v3263 = vunpack.c.h.b16 %v1951
      %v3264 = vunpack.c.l.b16 %v1952
      %v3265 = vunpack.c.h.b16 %v1952
      %v3266 = vunpack.c.l.b16 %v1953
      %v3267 = vunpack.c.h.b16 %v1953
      %v3268 = vunpack.c.l.b16 %v1954
      %v3269 = vunpack.c.h.b16 %v1954
      %v3270 = vunpack.c.l.b16 %v1955
      %v3271 = vunpack.c.h.b16 %v1955
      %v3272 = vunpack.c.l.b16 %v1956
      %v3273 = vunpack.c.h.b16 %v1956
      %v3274 = vunpack.c.l.b16 %v1957
      %v3275 = vunpack.c.h.b16 %v1957
      %v3276 = vunpack.c.l.b16 %v1958
      %v3277 = vunpack.c.h.b16 %v1958
      %v3278 = vunpack.c.l.b16 %v1959
      %v3279 = vunpack.c.h.b16 %v1959
      %v3280 = vunpack.c.l.b16 %v1960
      %v3281 = vunpack.c.h.b16 %v1960
      %v3282 = vunpack.c.l.b16 %v1961
      %v3283 = vunpack.c.h.b16 %v1961
      %v3284 = vunpack.c.l.b16 %v1962
      %v3285 = vunpack.c.h.b16 %v1962
      %v3286 = vunpack.c.l.b16 %v1963
      %v3287 = vunpack.c.h.b16 %v1963
      %v3288 = vunpack.c.l.b16 %v1964
      %v3289 = vunpack.c.h.b16 %v1964
      %v3290 = vunpack.c.l.b16 %v1965
      %v3291 = vunpack.c.h.b16 %v1965
      %v3292 = vunpack.c.l.b16 %v1966
      %v3293 = vunpack.c.h.b16 %v1966
      %v3294 = vunpack.c.l.b16 %v1967
      %v3295 = vunpack.c.h.b16 %v1967
      %v3296 = vunpack.c.l.b16 %v1968
      %v3297 = vunpack.c.h.b16 %v1968
      %v3298 = vunpack.c.l.b16 %v1969
      %v3299 = vunpack.c.h.b16 %v1969
      %v3300 = vunpack.c.l.b16 %v1970
      %v3301 = vunpack.c.h.b16 %v1970
      %v3302 = vunpack.c.l.b16 %v1971
      %v3303 = vunpack.c.h.b16 %v1971
      %v3304 = vunpack.c.l.b16 %v1972
      %v3305 = vunpack.c.h.b16 %v1972
      %v3306 = vunpack.c.l.b16 %v1973
      %v3307 = vunpack.c.h.b16 %v1973
      %v3308 = vunpack.c.l.b16 %v1974
      %v3309 = vunpack.c.h.b16 %v1974
      %v3310 = vunpack.c.l.b16 %v1975
      %v3311 = vunpack.c.h.b16 %v1975
      %v3312 = vunpack.c.l.b16 %v1976
      %v3313 = vunpack.c.h.b16 %v1976
      %v3314 = vunpack.c.l.b16 %v1977
      %v3315 = vunpack.c.h.b16 %v1977
      %v3316 = vunpack.c.l.b16 %v1978
      %v3317 = vunpack.c.h.b16 %v1978
      %v3318 = vunpack.c.l.b16 %v1979
      %v3319 = vunpack.c.h.b16 %v1979
      %v3320 = vunpack.c.l.b16 %v1980
      %v3321 = vunpack.c.h.b16 %v1980
      %v3322 = vunpack.c.l.b16 %v1981
      %v3323 = vunpack.c.h.b16 %v1981
      %v3324 = vunpack.c.l.b16 %v1982
      %v3325 = vunpack.c.h.b16 %v1982
      %v3326 = vunpack.c.l.b16 %v1983
      %v3327 = vunpack.c.h.b16 %v1983
      %v3328 = vunpack.c.l.b16 %v1984
      %v3329 = vunpack.c.h.b16 %v1984
      %v3330 = vunpack.c.l.b16 %v1985
      %v3331 = vunpack.c.h.b16 %v1985
      %v3332 = vunpack.c.l.b16 %v1986
      %v3333 = vunpack.c.h.b16 %v1986
      %v3334 = vunpack.c.l.b16 %v1987
      %v3335 = vunpack.c.h.b16 %v1987
      %v3336 = vunpack.c.l.b16 %v1988
      %v3337 = vunpack.c.h.b16 %v1988
      %v3338 = vunpack.c.l.b16 %v1989
      %v3339 = vunpack.c.h.b16 %v1989
      %v3340 = vunpack.c.l.b16 %v1990
      %v3341 = vunpack.c.h.b16 %v1990
      %v3342 = vunpack.c.l.b16 %v1991
      %v3343 = vunpack.c.h.b16 %v1991
      %v3344 = vunpack.c.l.b16 %v1992
      %v3345 = vunpack.c.h.b16 %v1992
      %v3346 = vunpack.c.l.b16 %v1993
      %v3347 = vunpack.c.h.b16 %v1993
      %v3348 = vunpack.c.l.b16 %v1994
      %v3349 = vunpack.c.h.b16 %v1994
      %v3350 = vunpack.c.l.b16 %v1995
      %v3351 = vunpack.c.h.b16 %v1995
      %v3352 = vunpack.c.l.b16 %v1996
      %v3353 = vunpack.c.h.b16 %v1996
      %v3354 = vunpack.c.l.b16 %v1997
      %v3355 = vunpack.c.h.b16 %v1997
      %v3356 = vunpack.c.l.b16 %v1998
      %v3357 = vunpack.c.h.b16 %v1998
      %v3358 = vunpack.c.l.b16 %v1999
      %v3359 = vunpack.c.h.b16 %v1999
      %v3360 = vunpack.c.l.b16 %v2000
      %v3361 = vunpack.c.h.b16 %v2000
      %v3362 = vunpack.c.l.b16 %v2001
      %v3363 = vunpack.c.h.b16 %v2001
      %v3364 = vpack.c.b16 %v3116, %v3108
      %v3365 = vpack.c.b16 %v3117, %v3109
      %v3366 = vpack.c.b16 %v3118, %v3110
      %v3367 = vpack.c.b16 %v3119, %v3111
      %v3368 = vpack.c.b16 %v3120, %v3112
      %v3369 = vpack.c.b16 %v3121, %v3113
      %v3370 = vpack.c.b16 %v3122, %v3114
      %v3371 = vpack.c.b16 %v3123, %v3115
      %v3372 = vpack.c.b16 %v3132, %v3124
      %v3373 = vpack.c.b16 %v3133, %v3125
      %v3374 = vpack.c.b16 %v3134, %v3126
      %v3375 = vpack.c.b16 %v3135, %v3127
      %v3376 = vpack.c.b16 %v3136, %v3128
      %v3377 = vpack.c.b16 %v3137, %v3129
      %v3378 = vpack.c.b16 %v3138, %v3130
      %v3379 = vpack.c.b16 %v3139, %v3131
      %v3380 = vpack.c.b16 %v3148, %v3140
      %v3381 = vpack.c.b16 %v3149, %v3141
      %v3382 = vpack.c.b16 %v3150, %v3142
      %v3383 = vpack.c.b16 %v3151, %v3143
      %v3384 = vpack.c.b16 %v3152, %v3144
      %v3385 = vpack.c.b16 %v3153, %v3145
      %v3386 = vpack.c.b16 %v3154, %v3146
      %v3387 = vpack.c.b16 %v3155, %v3147
      %v3388 = vpack.c.b16 %v3164, %v3156
      %v3389 = vpack.c.b16 %v3165, %v3157
      %v3390 = vpack.c.b16 %v3166, %v3158
      %v3391 = vpack.c.b16 %v3167, %v3159
      %v3392 = vpack.c.b16 %v3168, %v3160
      %v3393 = vpack.c.b16 %v3169, %v3161
      %v3394 = vpack.c.b16 %v3170, %v3162
      %v3395 = vpack.c.b16 %v3171, %v3163
      %v3396 = vpack.c.b16 %v3180, %v3172
      %v3397 = vpack.c.b16 %v3181, %v3173
      %v3398 = vpack.c.b16 %v3182, %v3174
      %v3399 = vpack.c.b16 %v3183, %v3175
      %v3400 = vpack.c.b16 %v3184, %v3176
      %v3401 = vpack.c.b16 %v3185, %v3177
      %v3402 = vpack.c.b16 %v3186, %v3178
      %v3403 = vpack.c.b16 %v3187, %v3179
      %v3404 = vpack.c.b16 %v3196, %v3188
      %v3405 = vpack.c.b16 %v3197, %v3189
      %v3406 = vpack.c.b16 %v3198, %v3190
      %v3407 = vpack.c.b16 %v3199, %v3191
      %v3408 = vpack.c.b16 %v3200, %v3192
      %v3409 = vpack.c.b16 %v3201, %v3193
      %v3410 = vpack.c.b16 %v3202, %v3194
      %v3411 = vpack.c.b16 %v3203, %v3195
      %v3412 = vpack.c.b16 %v3212, %v3204
      %v3413 = vpack.c.b16 %v3213, %v3205
      %v3414 = vpack.c.b16 %v3214, %v3206
      %v3415 = vpack.c.b16 %v3215, %v3207
      %v3416 = vpack.c.b16 %v3216, %v3208
      %v3417 = vpack.c.b16 %v3217, %v3209
      %v3418 = vpack.c.b16 %v3218, %v3210
      %v3419 = vpack.c.b16 %v3219, %v3211
      %v3420 = vpack.c.b16 %v3228, %v3220
      %v3421 = vpack.c.b16 %v3229, %v3221
      %v3422 = vpack.c.b16 %v3230, %v3222
      %v3423 = vpack.c.b16 %v3231, %v3223
      %v3424 = vpack.c.b16 %v3232, %v3224
      %v3425 = vpack.c.b16 %v3233, %v3225
      %v3426 = vpack.c.b16 %v3234, %v3226
      %v3427 = vpack.c.b16 %v3235, %v3227
      %v3428 = vpack.c.b16 %v3244, %v3236
      %v3429 = vpack.c.b16 %v3245, %v3237
      %v3430 = vpack.c.b16 %v3246, %v3238
      %v3431 = vpack.c.b16 %v3247, %v3239
      %v3432 = vpack.c.b16 %v3248, %v3240
      %v3433 = vpack.c.b16 %v3249, %v3241
      %v3434 = vpack.c.b16 %v3250, %v3242
      %v3435 = vpack.c.b16 %v3251, %v3243
      %v3436 = vpack.c.b16 %v3260, %v3252
      %v3437 = vpack.c.b16 %v3261, %v3253
      %v3438 = vpack.c.b16 %v3262, %v3254
      %v3439 = vpack.c.b16 %v3263, %v3255
      %v3440 = vpack.c.b16 %v3264, %v3256
      %v3441 = vpack.c.b16 %v3265, %v3257
      %v3442 = vpack.c.b16 %v3266, %v3258
      %v3443 = vpack.c.b16 %v3267, %v3259
      %v3444 = vpack.c.b16 %v3276, %v3268
      %v3445 = vpack.c.b16 %v3277, %v3269
      %v3446 = vpack.c.b16 %v3278, %v3270
      %v3447 = vpack.c.b16 %v3279, %v3271
      %v3448 = vpack.c.b16 %v3280, %v3272
      %v3449 = vpack.c.b16 %v3281, %v3273
      %v3450 = vpack.c.b16 %v3282, %v3274
      %v3451 = vpack.c.b16 %v3283, %v3275
      %v3452 = vpack.c.b16 %v3292, %v3284
      %v3453 = vpack.c.b16 %v3293, %v3285
      %v3454 = vpack.c.b16 %v3294, %v3286
      %v3455 = vpack.c.b16 %v3295, %v3287
      %v3456 = vpack.c.b16 %v3296, %v3288
      %v3457 = vpack.c.b16 %v3297, %v3289
      %v3458 = vpack.c.b16 %v3298, %v3290
      %v3459 = vpack.c.b16 %v3299, %v3291
      %v3460 = vpack.c.b16 %v3308, %v3300
      %v3461 = vpack.c.b16 %v3309, %v3301
      %v3462 = vpack.c.b16 %v3310, %v3302
      %v3463 = vpack.c.b16 %v3311, %v3303
      %v3464 = vpack.c.b16 %v3312, %v3304
      %v3465 = vpack.c.b16 %v3313, %v3305
      %v3466 = vpack.c.b16 %v3314, %v3306
      %v3467 = vpack.c.b16 %v3315, %v3307
      %v3468 = vpack.c.b16 %v3324, %v3316
      %v3469 = vpack.c.b16 %v3325, %v3317
      %v3470 = vpack.c.b16 %v3326, %v3318
      %v3471 = vpack.c.b16 %v3327, %v3319
      %v3472 = vpack.c.b16 %v3328, %v3320
      %v3473 = vpack.c.b16 %v3329, %v3321
      %v3474 = vpack.c.b16 %v3330, %v3322
      %v3475 = vpack.c.b16 %v3331, %v3323
      %v3476 = vpack.c.b16 %v3340, %v3332
      %v3477 = vpack.c.b16 %v3341, %v3333
      %v3478 = vpack.c.b16 %v3342, %v3334
      %v3479 = vpack.c.b16 %v3343, %v3335
      %v3480 = vpack.c.b16 %v3344, %v3336
      %v3481 = vpack.c.b16 %v3345, %v3337
      %v3482 = vpack.c.b16 %v3346, %v3338
      %v3483 = vpack.c.b16 %v3347, %v3339
      %v3484 = vpack.c.b16 %v3356, %v3348
      %v3485 = vpack.c.b16 %v3357, %v3349
      %v3486 = vpack.c.b16 %v3358, %v3350
      %v3487 = vpack.c.b16 %v3359, %v3351
      %v3488 = vpack.c.b16 %v3360, %v3352
      %v3489 = vpack.c.b16 %v3361, %v3353
      %v3490 = vpack.c.b16 %v3362, %v3354
      %v3491 = vpack.c.b16 %v3363, %v3355
      %3620 = vmatpush.bf16.msra.mxu0 %v3420
      %3621 = vmatpush.bf16.msra.mxu0 %v3412
      %3622 = vmatpush.bf16.msra.mxu0 %v3404
      %3623 = vmatpush.bf16.msra.mxu0 %v3396
      %3624 = vmatpush.bf16.msra.mxu0 %v3388
      %3625 = vmatpush.bf16.msra.mxu0 %v3380
      %3626 = vmatpush.bf16.msra.mxu0 %v3372
      %3627 = vmatpush.bf16.msra.mxu0 %v3364
      %3628 = vmatmul.bf16.gmra.mxu0 %v1872
      %v3629 = vpop.f32.mrf.mxu0
      %v3630 = vadd.f32 %v2795, %v3629
      %v3631 = vpop.f32.mrf.mxu0
      %3632 = vdwg.mxu0
      %3633 = vmatpush.bf16.msra.mxu0 %v3484
      %3634 = vmatpush.bf16.msra.mxu0 %v3476
      %3635 = vmatpush.bf16.msra.mxu0 %v3468
      %3636 = vmatpush.bf16.msra.mxu0 %v3460
      %3637 = vmatpush.bf16.msra.mxu0 %v3452
      %3638 = vmatpush.bf16.msra.mxu0 %v3444
      %3639 = vmatpush.bf16.msra.mxu0 %v3436
      %3640 = vmatpush.bf16.msra.mxu0 %v3428
      %3641 = vmatmul.bf16.gmra.mxu0 %v1873
      %v3642 = vpop.f32.mrf.mxu0
      %v3643 = vadd.f32 %v3630, %v3642
      %v3644 = vpop.f32.mrf.mxu0
      %3645 = vdwg.mxu0
      %3646 = vmatpush.bf16.msra.mxu0 %v3421
      %3647 = vmatpush.bf16.msra.mxu0 %v3413
      %3648 = vmatpush.bf16.msra.mxu0 %v3405
      %3649 = vmatpush.bf16.msra.mxu0 %v3397
      %3650 = vmatpush.bf16.msra.mxu0 %v3389
      %3651 = vmatpush.bf16.msra.mxu0 %v3381
      %3652 = vmatpush.bf16.msra.mxu0 %v3373
      %3653 = vmatpush.bf16.msra.mxu0 %v3365
      %3654 = vmatmul.bf16.gmra.mxu0 %v1872
      %v3655 = vpop.f32.mrf.mxu0
      %v3656 = vadd.f32 %v2821, %v3655
      %v3657 = vpop.f32.mrf.mxu0
      %3658 = vdwg.mxu0
      %3659 = vmatpush.bf16.msra.mxu0 %v3485
      %3660 = vmatpush.bf16.msra.mxu0 %v3477
      %3661 = vmatpush.bf16.msra.mxu0 %v3469
      %3662 = vmatpush.bf16.msra.mxu0 %v3461
      %3663 = vmatpush.bf16.msra.mxu0 %v3453
      %3664 = vmatpush.bf16.msra.mxu0 %v3445
      %3665 = vmatpush.bf16.msra.mxu0 %v3437
      %3666 = vmatpush.bf16.msra.mxu0 %v3429
      %3667 = vmatmul.bf16.gmra.mxu0 %v1873
      %v3668 = vpop.f32.mrf.mxu0
      %v3669 = vadd.f32 %v3656, %v3668
      %v3670 = vpop.f32.mrf.mxu0
      %3671 = vdwg.mxu0
      %3672 = vmatpush.bf16.msra.mxu0 %v3422
      %3673 = vmatpush.bf16.msra.mxu0 %v3414
      %3674 = vmatpush.bf16.msra.mxu0 %v3406
      %3675 = vmatpush.bf16.msra.mxu0 %v3398
      %3676 = vmatpush.bf16.msra.mxu0 %v3390
      %3677 = vmatpush.bf16.msra.mxu0 %v3382
      %3678 = vmatpush.bf16.msra.mxu0 %v3374
      %3679 = vmatpush.bf16.msra.mxu0 %v3366
      %3680 = vmatmul.bf16.gmra.mxu0 %v1872
      %v3681 = vpop.f32.mrf.mxu0
      %v3682 = vadd.f32 %v2847, %v3681
      %v3683 = vpop.f32.mrf.mxu0
      %3684 = vdwg.mxu0
      %3685 = vmatpush.bf16.msra.mxu0 %v3486
      %3686 = vmatpush.bf16.msra.mxu0 %v3478
      %3687 = vmatpush.bf16.msra.mxu0 %v3470
      %3688 = vmatpush.bf16.msra.mxu0 %v3462
      %3689 = vmatpush.bf16.msra.mxu0 %v3454
      %3690 = vmatpush.bf16.msra.mxu0 %v3446
      %3691 = vmatpush.bf16.msra.mxu0 %v3438
      %3692 = vmatpush.bf16.msra.mxu0 %v3430
      %3693 = vmatmul.bf16.gmra.mxu0 %v1873
      %v3694 = vpop.f32.mrf.mxu0
      %v3695 = vadd.f32 %v3682, %v3694
      %v3696 = vpop.f32.mrf.mxu0
      %3697 = vdwg.mxu0
      %3698 = vmatpush.bf16.msra.mxu0 %v3423
      %3699 = vmatpush.bf16.msra.mxu0 %v3415
      %3700 = vmatpush.bf16.msra.mxu0 %v3407
      %3701 = vmatpush.bf16.msra.mxu0 %v3399
      %3702 = vmatpush.bf16.msra.mxu0 %v3391
      %3703 = vmatpush.bf16.msra.mxu0 %v3383
      %3704 = vmatpush.bf16.msra.mxu0 %v3375
      %3705 = vmatpush.bf16.msra.mxu0 %v3367
      %3706 = vmatmul.bf16.gmra.mxu0 %v1872
      %v3707 = vpop.f32.mrf.mxu0
      %v3708 = vadd.f32 %v2873, %v3707
      %v3709 = vpop.f32.mrf.mxu0
      %3710 = vdwg.mxu0
      %3711 = vmatpush.bf16.msra.mxu0 %v3487
      %3712 = vmatpush.bf16.msra.mxu0 %v3479
      %3713 = vmatpush.bf16.msra.mxu0 %v3471
      %3714 = vmatpush.bf16.msra.mxu0 %v3463
      %3715 = vmatpush.bf16.msra.mxu0 %v3455
      %3716 = vmatpush.bf16.msra.mxu0 %v3447
      %3717 = vmatpush.bf16.msra.mxu0 %v3439
      %3718 = vmatpush.bf16.msra.mxu0 %v3431
      %3719 = vmatmul.bf16.gmra.mxu0 %v1873
      %v3720 = vpop.f32.mrf.mxu0
      %v3721 = vadd.f32 %v3708, %v3720
      %v3722 = vpop.f32.mrf.mxu0
      %3723 = vdwg.mxu0
      %3724 = vmatpush.bf16.msra.mxu0 %v3424
      %3725 = vmatpush.bf16.msra.mxu0 %v3416
      %3726 = vmatpush.bf16.msra.mxu0 %v3408
      %3727 = vmatpush.bf16.msra.mxu0 %v3400
      %3728 = vmatpush.bf16.msra.mxu0 %v3392
      %3729 = vmatpush.bf16.msra.mxu0 %v3384
      %3730 = vmatpush.bf16.msra.mxu0 %v3376
      %3731 = vmatpush.bf16.msra.mxu0 %v3368
      %3732 = vmatmul.bf16.gmra.mxu0 %v1872
      %v3733 = vpop.f32.mrf.mxu0
      %v3734 = vadd.f32 %v2899, %v3733
      %v3735 = vpop.f32.mrf.mxu0
      %3736 = vdwg.mxu0
      %3737 = vmatpush.bf16.msra.mxu0 %v3488
      %3738 = vmatpush.bf16.msra.mxu0 %v3480
      %3739 = vmatpush.bf16.msra.mxu0 %v3472
      %3740 = vmatpush.bf16.msra.mxu0 %v3464
      %3741 = vmatpush.bf16.msra.mxu0 %v3456
      %3742 = vmatpush.bf16.msra.mxu0 %v3448
      %3743 = vmatpush.bf16.msra.mxu0 %v3440
      %3744 = vmatpush.bf16.msra.mxu0 %v3432
      %3745 = vmatmul.bf16.gmra.mxu0 %v1873
      %v3746 = vpop.f32.mrf.mxu0
      %v3747 = vadd.f32 %v3734, %v3746
      %v3748 = vpop.f32.mrf.mxu0
      %3749 = vdwg.mxu0
      %3750 = vmatpush.bf16.msra.mxu0 %v3425
      %3751 = vmatpush.bf16.msra.mxu0 %v3417
      %3752 = vmatpush.bf16.msra.mxu0 %v3409
      %3753 = vmatpush.bf16.msra.mxu0 %v3401
      %3754 = vmatpush.bf16.msra.mxu0 %v3393
      %3755 = vmatpush.bf16.msra.mxu0 %v3385
      %3756 = vmatpush.bf16.msra.mxu0 %v3377
      %3757 = vmatpush.bf16.msra.mxu0 %v3369
      %3758 = vmatmul.bf16.gmra.mxu0 %v1872
      %v3759 = vpop.f32.mrf.mxu0
      %v3760 = vadd.f32 %v2925, %v3759
      %v3761 = vpop.f32.mrf.mxu0
      %3762 = vdwg.mxu0
      %3763 = vmatpush.bf16.msra.mxu0 %v3489
      %3764 = vmatpush.bf16.msra.mxu0 %v3481
      %3765 = vmatpush.bf16.msra.mxu0 %v3473
      %3766 = vmatpush.bf16.msra.mxu0 %v3465
      %3767 = vmatpush.bf16.msra.mxu0 %v3457
      %3768 = vmatpush.bf16.msra.mxu0 %v3449
      %3769 = vmatpush.bf16.msra.mxu0 %v3441
      %3770 = vmatpush.bf16.msra.mxu0 %v3433
      %3771 = vmatmul.bf16.gmra.mxu0 %v1873
      %v3772 = vpop.f32.mrf.mxu0
      %v3773 = vadd.f32 %v3760, %v3772
      %v3774 = vpop.f32.mrf.mxu0
      %3775 = vdwg.mxu0
      %3776 = vmatpush.bf16.msra.mxu0 %v3426
      %3777 = vmatpush.bf16.msra.mxu0 %v3418
      %3778 = vmatpush.bf16.msra.mxu0 %v3410
      %3779 = vmatpush.bf16.msra.mxu0 %v3402
      %3780 = vmatpush.bf16.msra.mxu0 %v3394
      %3781 = vmatpush.bf16.msra.mxu0 %v3386
      %3782 = vmatpush.bf16.msra.mxu0 %v3378
      %3783 = vmatpush.bf16.msra.mxu0 %v3370
      %3784 = vmatmul.bf16.gmra.mxu0 %v1872
      %v3785 = vpop.f32.mrf.mxu0
      %v3786 = vadd.f32 %v2951, %v3785
      %v3787 = vpop.f32.mrf.mxu0
      %3788 = vdwg.mxu0
      %3789 = vmatpush.bf16.msra.mxu0 %v3490
      %3790 = vmatpush.bf16.msra.mxu0 %v3482
      %3791 = vmatpush.bf16.msra.mxu0 %v3474
      %3792 = vmatpush.bf16.msra.mxu0 %v3466
      %3793 = vmatpush.bf16.msra.mxu0 %v3458
      %3794 = vmatpush.bf16.msra.mxu0 %v3450
      %3795 = vmatpush.bf16.msra.mxu0 %v3442
      %3796 = vmatpush.bf16.msra.mxu0 %v3434
      %3797 = vmatmul.bf16.gmra.mxu0 %v1873
      %v3798 = vpop.f32.mrf.mxu0
      %v3799 = vadd.f32 %v3786, %v3798
      %v3800 = vpop.f32.mrf.mxu0
      %3801 = vdwg.mxu0
      %3802 = vmatpush.bf16.msra.mxu0 %v3427
      %3803 = vmatpush.bf16.msra.mxu0 %v3419
      %3804 = vmatpush.bf16.msra.mxu0 %v3411
      %3805 = vmatpush.bf16.msra.mxu0 %v3403
      %3806 = vmatpush.bf16.msra.mxu0 %v3395
      %3807 = vmatpush.bf16.msra.mxu0 %v3387
      %3808 = vmatpush.bf16.msra.mxu0 %v3379
      %3809 = vmatpush.bf16.msra.mxu0 %v3371
      %3810 = vmatmul.bf16.gmra.mxu0 %v1872
      %v3811 = vpop.f32.mrf.mxu0
      %v3812 = vadd.f32 %v2977, %v3811
      %v3813 = vpop.f32.mrf.mxu0
      %3814 = vdwg.mxu0
      %3815 = vmatpush.bf16.msra.mxu0 %v3491
      %3816 = vmatpush.bf16.msra.mxu0 %v3483
      %3817 = vmatpush.bf16.msra.mxu0 %v3475
      %3818 = vmatpush.bf16.msra.mxu0 %v3467
      %3819 = vmatpush.bf16.msra.mxu0 %v3459
      %3820 = vmatpush.bf16.msra.mxu0 %v3451
      %3821 = vmatpush.bf16.msra.mxu0 %v3443
      %3822 = vmatpush.bf16.msra.mxu0 %v3435
      %3823 = vmatmul.bf16.gmra.mxu0 %v1873
      %v3824 = vpop.f32.mrf.mxu0
      %v3825 = vadd.f32 %v3812, %v3824
      %v3826 = vpop.f32.mrf.mxu0
      %3827 = vdwg.mxu0
      %v3828 = vadd.f32 %v3643, %v182
      %v3829 = vadd.f32 %v3669, %v183
      %v3830 = vadd.f32 %v3695, %v184
      %v3831 = vadd.f32 %v3721, %v185
      %v3832 = vadd.f32 %v3747, %v186
      %v3833 = vadd.f32 %v3773, %v187
      %v3834 = vadd.f32 %v3799, %v188
      %v3835 = vadd.f32 %v3825, %v189
      %v3836 = vxor.u32 %v3828, 2147483648
      %v3837 = vxor.u32 %v3829, 2147483648
      %v3838 = vxor.u32 %v3830, 2147483648
      %v3839 = vxor.u32 %v3831, 2147483648
      %v3840 = vxor.u32 %v3832, 2147483648
      %v3841 = vxor.u32 %v3833, 2147483648
      %v3842 = vmul.f32 %v3836, 1.442695
      %v3843 = vpow.pop %v3842
      %v3844 = vmul.f32 %v3837, 1.442695
      %v3845 = vpow.pop %v3844
      %v3846 = vmul.f32 %v3838, 1.442695
      %v3847 = vpow.pop %v3846
      %v3848 = vmul.f32 %v3839, 1.442695
      %v3849 = vpow.pop %v3848
      %v3850 = vmul.f32 %v3840, 1.442695
      %v3851 = vpow.pop %v3850
      %v3852 = vmul.f32 %v3841, 1.442695
      %v3853 = vpow.pop %v3852
      %v3854 = vadd.f32 %v3843, 1.0
      %v3855 = vadd.f32 %v3845, 1.0
      %v3856 = vadd.f32 %v3847, 1.0
      %v3857 = vadd.f32 %v3849, 1.0
      %v3858 = vadd.f32 %v3851, 1.0
      %v3859 = vadd.f32 %v3853, 1.0
      %v3860 = vrcp.pop %v3854
      %v3861 = vmul.f32 %v3854, %v3860
      %v3862 = vsub.f32 1.0, %v3861
      %v3863 = vmul.f32 %v3860, %v3862
      %v3864 = vadd.f32 %v3860, %v3863
      %vm3865 = vweird.f32 %v3854
      %vm3866 = vweird.f32 %v3860
      %vm3867 = vmor %vm3865, %vm3866
      %v3868 = vsel %vm3867, %v3860, %v3864
      %v3869 = vand.u32 2147483647, %v3854
      %vm3870 = vcmp.eq.f32.partialorder %v3869, 8.507059e+37
      %v3871 = vand.u32 %v3854, 2147483648
      %v3872 = vor.u32 1.1754944e-38, %v3871
      %v3873 = vsel %vm3870, %v3872, %v3868
      %v3874 = vmul.f32 1.0, %v3873
      %v3875 = vrcp.pop %v3855
      %v3876 = vmul.f32 %v3855, %v3875
      %v3877 = vsub.f32 1.0, %v3876
      %v3878 = vmul.f32 %v3875, %v3877
      %v3879 = vadd.f32 %v3875, %v3878
      %vm3880 = vweird.f32 %v3855
      %vm3881 = vweird.f32 %v3875
      %vm3882 = vmor %vm3880, %vm3881
      %v3883 = vsel %vm3882, %v3875, %v3879
      %v3884 = vand.u32 2147483647, %v3855
      %vm3885 = vcmp.eq.f32.partialorder %v3884, 8.507059e+37
      %v3886 = vand.u32 %v3855, 2147483648
      %v3887 = vor.u32 1.1754944e-38, %v3886
      %v3888 = vsel %vm3885, %v3887, %v3883
      %v3889 = vmul.f32 1.0, %v3888
      %v3890 = vrcp.pop %v3856
      %v3891 = vmul.f32 %v3856, %v3890
      %v3892 = vsub.f32 1.0, %v3891
      %v3893 = vmul.f32 %v3890, %v3892
      %v3894 = vadd.f32 %v3890, %v3893
      %vm3895 = vweird.f32 %v3856
      %vm3896 = vweird.f32 %v3890
      %vm3897 = vmor %vm3895, %vm3896
      %v3898 = vsel %vm3897, %v3890, %v3894
      %v3899 = vand.u32 2147483647, %v3856
      %vm3900 = vcmp.eq.f32.partialorder %v3899, 8.507059e+37
      %v3901 = vand.u32 %v3856, 2147483648
      %v3902 = vor.u32 1.1754944e-38, %v3901
      %v3903 = vsel %vm3900, %v3902, %v3898
      %v3904 = vmul.f32 1.0, %v3903
      %v3905 = vrcp.pop %v3857
      %v3906 = vmul.f32 %v3857, %v3905
      %v3907 = vsub.f32 1.0, %v3906
      %v3908 = vmul.f32 %v3905, %v3907
      %v3909 = vadd.f32 %v3905, %v3908
      %vm3910 = vweird.f32 %v3857
      %vm3911 = vweird.f32 %v3905
      %vm3912 = vmor %vm3910, %vm3911
      %v3913 = vsel %vm3912, %v3905, %v3909
      %v3914 = vand.u32 2147483647, %v3857
      %vm3915 = vcmp.eq.f32.partialorder %v3914, 8.507059e+37
      %v3916 = vand.u32 %v3857, 2147483648
      %v3917 = vor.u32 1.1754944e-38, %v3916
      %v3918 = vsel %vm3915, %v3917, %v3913
      %v3919 = vmul.f32 1.0, %v3918
      %v3920 = vrcp.pop %v3858
      %v3921 = vmul.f32 %v3858, %v3920
      %v3922 = vsub.f32 1.0, %v3921
      %v3923 = vmul.f32 %v3920, %v3922
      %v3924 = vadd.f32 %v3920, %v3923
      %vm3925 = vweird.f32 %v3858
      %vm3926 = vweird.f32 %v3920
      %vm3927 = vmor %vm3925, %vm3926
      %v3928 = vsel %vm3927, %v3920, %v3924
      %v3929 = vand.u32 2147483647, %v3858
      %vm3930 = vcmp.eq.f32.partialorder %v3929, 8.507059e+37
      %v3931 = vand.u32 %v3858, 2147483648
      %v3932 = vor.u32 1.1754944e-38, %v3931
      %v3933 = vsel %vm3930, %v3932, %v3928
      %v3934 = vmul.f32 1.0, %v3933
      %v3935 = vrcp.pop %v3859
      %v3936 = vmul.f32 %v3859, %v3935
      %v3937 = vsub.f32 1.0, %v3936
      %v3938 = vmul.f32 %v3935, %v3937
      %v3939 = vadd.f32 %v3935, %v3938
      %vm3940 = vweird.f32 %v3859
      %vm3941 = vweird.f32 %v3935
      %vm3942 = vmor %vm3940, %vm3941
      %v3943 = vsel %vm3942, %v3935, %v3939
      %v3944 = vand.u32 2147483647, %v3859
      %vm3945 = vcmp.eq.f32.partialorder %v3944, 8.507059e+37
      %v3946 = vand.u32 %v3859, 2147483648
      %v3947 = vor.u32 1.1754944e-38, %v3946
      %v3948 = vsel %vm3945, %v3947, %v3943
      %v3949 = vmul.f32 1.0, %v3948
      %v3950 = vtanh.pop %v3834
      %v3951 = vtanh.pop %v3835
      %v3952 = vmul.f32 %v3904, %v266
      %v3953 = vmul.f32 %v3919, %v267
      %v3954 = vmul.f32 %v3874, %v3950
      %v3955 = vmul.f32 %v3889, %v3951
      %v3956 = vadd.f32 %v3952, %v3954
      %v3957 = vadd.f32 %v3953, %v3955
      %v3958 = vtanh.pop %v3956
      %v3959 = vtanh.pop %v3957
      %v3960 = vmul.f32 %v3934, %v3958
      %v3961 = vmul.f32 %v3949, %v3959
      %v3962 = vpack.c.bf16 %v3960, %v3960
      %v3963 = vpack.c.bf16 %v3961, %v3961
      %v3964 = vld [vmem:[#allocation10] sm:$0xff]
      %v3965 = vld [vmem:[#allocation10 + $0x8] sm:$0xff]
      %v3966 = vld [vmem:[#allocation10 + $0x10] sm:$0xff]
      %v3967 = vld [vmem:[#allocation10 + $0x18] sm:$0xff]
      %v3968 = vld [vmem:[#allocation10 + $0x20] sm:$0xff]
      %v3969 = vld [vmem:[#allocation10 + $0x28] sm:$0xff]
      %v3970 = vld [vmem:[#allocation10 + $0x30] sm:$0xff]
      %v3971 = vld [vmem:[#allocation10 + $0x38] sm:$0xff]
      %v3972 = vld [vmem:[#allocation10 + $0x40] sm:$0xff]
      %v3973 = vld [vmem:[#allocation10 + $0x48] sm:$0xff]
      %v3974 = vld [vmem:[#allocation10 + $0x50] sm:$0xff]
      %v3975 = vld [vmem:[#allocation10 + $0x58] sm:$0xff]
      %v3976 = vld [vmem:[#allocation10 + $0x60] sm:$0xff]
      %v3977 = vld [vmem:[#allocation10 + $0x68] sm:$0xff]
      %v3978 = vld [vmem:[#allocation10 + $0x70] sm:$0xff]
      %v3979 = vld [vmem:[#allocation10 + $0x78] sm:$0xff]
      %v3980 = vld [vmem:[#allocation10 + $0x80] sm:$0xff]
      %v3981 = vld [vmem:[#allocation10 + $0x88] sm:$0xff]
      %v3982 = vld [vmem:[#allocation10 + $0x90] sm:$0xff]
      %v3983 = vld [vmem:[#allocation10 + $0x98] sm:$0xff]
      %v3984 = vld [vmem:[#allocation10 + $0xa0] sm:$0xff]
      %v3985 = vld [vmem:[#allocation10 + $0xa8] sm:$0xff]
      %v3986 = vld [vmem:[#allocation10 + $0xb0] sm:$0xff]
      %v3987 = vld [vmem:[#allocation10 + $0xb8] sm:$0xff]
      %v3988 = vld [vmem:[#allocation10 + $0xc0] sm:$0xff]
      %v3989 = vld [vmem:[#allocation10 + $0xc8] sm:$0xff]
      %v3990 = vld [vmem:[#allocation10 + $0xd0] sm:$0xff]
      %v3991 = vld [vmem:[#allocation10 + $0xd8] sm:$0xff]
      %v3992 = vld [vmem:[#allocation10 + $0xe0] sm:$0xff]
      %v3993 = vld [vmem:[#allocation10 + $0xe8] sm:$0xff]
      %v3994 = vld [vmem:[#allocation10 + $0xf0] sm:$0xff]
      %v3995 = vld [vmem:[#allocation10 + $0xf8] sm:$0xff]
      %v3996 = vld [vmem:[#allocation10 + $0x100] sm:$0xff]
      %v3997 = vld [vmem:[#allocation10 + $0x108] sm:$0xff]
      %v3998 = vld [vmem:[#allocation10 + $0x110] sm:$0xff]
      %v3999 = vld [vmem:[#allocation10 + $0x118] sm:$0xff]
      %v4000 = vld [vmem:[#allocation10 + $0x120] sm:$0xff]
      %v4001 = vld [vmem:[#allocation10 + $0x128] sm:$0xff]
      %v4002 = vld [vmem:[#allocation10 + $0x130] sm:$0xff]
      %v4003 = vld [vmem:[#allocation10 + $0x138] sm:$0xff]
      %v4004 = vld [vmem:[#allocation10 + $0x140] sm:$0xff]
      %v4005 = vld [vmem:[#allocation10 + $0x148] sm:$0xff]
      %v4006 = vld [vmem:[#allocation10 + $0x150] sm:$0xff]
      %v4007 = vld [vmem:[#allocation10 + $0x158] sm:$0xff]
      %v4008 = vld [vmem:[#allocation10 + $0x160] sm:$0xff]
      %v4009 = vld [vmem:[#allocation10 + $0x168] sm:$0xff]
      %v4010 = vld [vmem:[#allocation10 + $0x170] sm:$0xff]
      %v4011 = vld [vmem:[#allocation10 + $0x178] sm:$0xff]
      %v4012 = vld [vmem:[#allocation10 + $0x180] sm:$0xff]
      %v4013 = vld [vmem:[#allocation10 + $0x188] sm:$0xff]
      %v4014 = vld [vmem:[#allocation10 + $0x190] sm:$0xff]
      %v4015 = vld [vmem:[#allocation10 + $0x198] sm:$0xff]
      %v4016 = vld [vmem:[#allocation10 + $0x1a0] sm:$0xff]
      %v4017 = vld [vmem:[#allocation10 + $0x1a8] sm:$0xff]
      %v4018 = vld [vmem:[#allocation10 + $0x1b0] sm:$0xff]
      %v4019 = vld [vmem:[#allocation10 + $0x1b8] sm:$0xff]
      %v4020 = vld [vmem:[#allocation10 + $0x1c0] sm:$0xff]
      %v4021 = vld [vmem:[#allocation10 + $0x1c8] sm:$0xff]
      %v4022 = vld [vmem:[#allocation10 + $0x1d0] sm:$0xff]
      %v4023 = vld [vmem:[#allocation10 + $0x1d8] sm:$0xff]
      %v4024 = vld [vmem:[#allocation10 + $0x1e0] sm:$0xff]
      %v4025 = vld [vmem:[#allocation10 + $0x1e8] sm:$0xff]
      %v4026 = vld [vmem:[#allocation10 + $0x1f0] sm:$0xff]
      %v4027 = vld [vmem:[#allocation10 + $0x1f8] sm:$0xff]
      %v4028 = vld [vmem:[#allocation10 + $0x200] sm:$0xff]
      %v4029 = vld [vmem:[#allocation10 + $0x208] sm:$0xff]
      %v4030 = vld [vmem:[#allocation10 + $0x210] sm:$0xff]
      %v4031 = vld [vmem:[#allocation10 + $0x218] sm:$0xff]
      %v4032 = vld [vmem:[#allocation10 + $0x220] sm:$0xff]
      %v4033 = vld [vmem:[#allocation10 + $0x228] sm:$0xff]
      %v4034 = vld [vmem:[#allocation10 + $0x230] sm:$0xff]
      %v4035 = vld [vmem:[#allocation10 + $0x238] sm:$0xff]
      %v4036 = vld [vmem:[#allocation10 + $0x240] sm:$0xff]
      %v4037 = vld [vmem:[#allocation10 + $0x248] sm:$0xff]
      %v4038 = vld [vmem:[#allocation10 + $0x250] sm:$0xff]
      %v4039 = vld [vmem:[#allocation10 + $0x258] sm:$0xff]
      %v4040 = vld [vmem:[#allocation10 + $0x260] sm:$0xff]
      %v4041 = vld [vmem:[#allocation10 + $0x268] sm:$0xff]
      %v4042 = vld [vmem:[#allocation10 + $0x270] sm:$0xff]
      %v4043 = vld [vmem:[#allocation10 + $0x278] sm:$0xff]
      %v4044 = vld [vmem:[#allocation10 + $0x280] sm:$0xff]
      %v4045 = vld [vmem:[#allocation10 + $0x288] sm:$0xff]
      %v4046 = vld [vmem:[#allocation10 + $0x290] sm:$0xff]
      %v4047 = vld [vmem:[#allocation10 + $0x298] sm:$0xff]
      %v4048 = vld [vmem:[#allocation10 + $0x2a0] sm:$0xff]
      %v4049 = vld [vmem:[#allocation10 + $0x2a8] sm:$0xff]
      %v4050 = vld [vmem:[#allocation10 + $0x2b0] sm:$0xff]
      %v4051 = vld [vmem:[#allocation10 + $0x2b8] sm:$0xff]
      %v4052 = vld [vmem:[#allocation10 + $0x2c0] sm:$0xff]
      %v4053 = vld [vmem:[#allocation10 + $0x2c8] sm:$0xff]
      %v4054 = vld [vmem:[#allocation10 + $0x2d0] sm:$0xff]
      %v4055 = vld [vmem:[#allocation10 + $0x2d8] sm:$0xff]
      %v4056 = vld [vmem:[#allocation10 + $0x2e0] sm:$0xff]
      %v4057 = vld [vmem:[#allocation10 + $0x2e8] sm:$0xff]
      %v4058 = vld [vmem:[#allocation10 + $0x2f0] sm:$0xff]
      %v4059 = vld [vmem:[#allocation10 + $0x2f8] sm:$0xff]
      %v4060 = vld [vmem:[#allocation10 + $0x300] sm:$0xff]
      %v4061 = vld [vmem:[#allocation10 + $0x308] sm:$0xff]
      %v4062 = vld [vmem:[#allocation10 + $0x310] sm:$0xff]
      %v4063 = vld [vmem:[#allocation10 + $0x318] sm:$0xff]
      %v4064 = vld [vmem:[#allocation10 + $0x320] sm:$0xff]
      %v4065 = vld [vmem:[#allocation10 + $0x328] sm:$0xff]
      %v4066 = vld [vmem:[#allocation10 + $0x330] sm:$0xff]
      %v4067 = vld [vmem:[#allocation10 + $0x338] sm:$0xff]
      %v4068 = vld [vmem:[#allocation10 + $0x340] sm:$0xff]
      %v4069 = vld [vmem:[#allocation10 + $0x348] sm:$0xff]
      %v4070 = vld [vmem:[#allocation10 + $0x350] sm:$0xff]
      %v4071 = vld [vmem:[#allocation10 + $0x358] sm:$0xff]
      %v4072 = vld [vmem:[#allocation10 + $0x360] sm:$0xff]
      %v4073 = vld [vmem:[#allocation10 + $0x368] sm:$0xff]
      %v4074 = vld [vmem:[#allocation10 + $0x370] sm:$0xff]
      %v4075 = vld [vmem:[#allocation10 + $0x378] sm:$0xff]
      %v4076 = vld [vmem:[#allocation10 + $0x380] sm:$0xff]
      %v4077 = vld [vmem:[#allocation10 + $0x388] sm:$0xff]
      %v4078 = vld [vmem:[#allocation10 + $0x390] sm:$0xff]
      %v4079 = vld [vmem:[#allocation10 + $0x398] sm:$0xff]
      %v4080 = vld [vmem:[#allocation10 + $0x3a0] sm:$0xff]
      %v4081 = vld [vmem:[#allocation10 + $0x3a8] sm:$0xff]
      %v4082 = vld [vmem:[#allocation10 + $0x3b0] sm:$0xff]
      %v4083 = vld [vmem:[#allocation10 + $0x3b8] sm:$0xff]
      %v4084 = vld [vmem:[#allocation10 + $0x3c0] sm:$0xff]
      %v4085 = vld [vmem:[#allocation10 + $0x3c8] sm:$0xff]
      %v4086 = vld [vmem:[#allocation10 + $0x3d0] sm:$0xff]
      %v4087 = vld [vmem:[#allocation10 + $0x3d8] sm:$0xff]
      %v4088 = vld [vmem:[#allocation10 + $0x3e0] sm:$0xff]
      %v4089 = vld [vmem:[#allocation10 + $0x3e8] sm:$0xff]
      %v4090 = vld [vmem:[#allocation10 + $0x3f0] sm:$0xff]
      %v4091 = vld [vmem:[#allocation10 + $0x3f8] sm:$0xff]
      %v4092 = vpack.c.bf16 %v268, %v268
      %v4093 = vpack.c.bf16 %v269, %v269
      %v4094 = vld [vmem:[#allocation12] sm:$0xff]
      %v4095 = vld [vmem:[#allocation12 + $0x8] sm:$0xff]
      %v4096 = vld [vmem:[#allocation12 + $0x10] sm:$0xff]
      %v4097 = vld [vmem:[#allocation12 + $0x18] sm:$0xff]
      %v4098 = vld [vmem:[#allocation12 + $0x20] sm:$0xff]
      %v4099 = vld [vmem:[#allocation12 + $0x28] sm:$0xff]
      %v4100 = vld [vmem:[#allocation12 + $0x30] sm:$0xff]
      %v4101 = vld [vmem:[#allocation12 + $0x38] sm:$0xff]
      %v4102 = vld [vmem:[#allocation12 + $0x40] sm:$0xff]
      %v4103 = vld [vmem:[#allocation12 + $0x48] sm:$0xff]
      %v4104 = vld [vmem:[#allocation12 + $0x50] sm:$0xff]
      %v4105 = vld [vmem:[#allocation12 + $0x58] sm:$0xff]
      %v4106 = vld [vmem:[#allocation12 + $0x60] sm:$0xff]
      %v4107 = vld [vmem:[#allocation12 + $0x68] sm:$0xff]
      %v4108 = vld [vmem:[#allocation12 + $0x70] sm:$0xff]
      %v4109 = vld [vmem:[#allocation12 + $0x78] sm:$0xff]
      %v4110 = vld [vmem:[#allocation12 + $0x80] sm:$0xff]
      %v4111 = vld [vmem:[#allocation12 + $0x88] sm:$0xff]
      %v4112 = vld [vmem:[#allocation12 + $0x90] sm:$0xff]
      %v4113 = vld [vmem:[#allocation12 + $0x98] sm:$0xff]
      %v4114 = vld [vmem:[#allocation12 + $0xa0] sm:$0xff]
      %v4115 = vld [vmem:[#allocation12 + $0xa8] sm:$0xff]
      %v4116 = vld [vmem:[#allocation12 + $0xb0] sm:$0xff]
      %v4117 = vld [vmem:[#allocation12 + $0xb8] sm:$0xff]
      %v4118 = vld [vmem:[#allocation12 + $0xc0] sm:$0xff]
      %v4119 = vld [vmem:[#allocation12 + $0xc8] sm:$0xff]
      %v4120 = vld [vmem:[#allocation12 + $0xd0] sm:$0xff]
      %v4121 = vld [vmem:[#allocation12 + $0xd8] sm:$0xff]
      %v4122 = vld [vmem:[#allocation12 + $0xe0] sm:$0xff]
      %v4123 = vld [vmem:[#allocation12 + $0xe8] sm:$0xff]
      %v4124 = vld [vmem:[#allocation12 + $0xf0] sm:$0xff]
      %v4125 = vld [vmem:[#allocation12 + $0xf8] sm:$0xff]
      %v4126 = vld [vmem:[#allocation12 + $0x100] sm:$0xff]
      %v4127 = vld [vmem:[#allocation12 + $0x108] sm:$0xff]
      %v4128 = vld [vmem:[#allocation12 + $0x110] sm:$0xff]
      %v4129 = vld [vmem:[#allocation12 + $0x118] sm:$0xff]
      %v4130 = vld [vmem:[#allocation12 + $0x120] sm:$0xff]
      %v4131 = vld [vmem:[#allocation12 + $0x128] sm:$0xff]
      %v4132 = vld [vmem:[#allocation12 + $0x130] sm:$0xff]
      %v4133 = vld [vmem:[#allocation12 + $0x138] sm:$0xff]
      %v4134 = vld [vmem:[#allocation12 + $0x140] sm:$0xff]
      %v4135 = vld [vmem:[#allocation12 + $0x148] sm:$0xff]
      %v4136 = vld [vmem:[#allocation12 + $0x150] sm:$0xff]
      %v4137 = vld [vmem:[#allocation12 + $0x158] sm:$0xff]
      %v4138 = vld [vmem:[#allocation12 + $0x160] sm:$0xff]
      %v4139 = vld [vmem:[#allocation12 + $0x168] sm:$0xff]
      %v4140 = vld [vmem:[#allocation12 + $0x170] sm:$0xff]
      %v4141 = vld [vmem:[#allocation12 + $0x178] sm:$0xff]
      %v4142 = vld [vmem:[#allocation12 + $0x180] sm:$0xff]
      %v4143 = vld [vmem:[#allocation12 + $0x188] sm:$0xff]
      %v4144 = vld [vmem:[#allocation12 + $0x190] sm:$0xff]
      %v4145 = vld [vmem:[#allocation12 + $0x198] sm:$0xff]
      %v4146 = vld [vmem:[#allocation12 + $0x1a0] sm:$0xff]
      %v4147 = vld [vmem:[#allocation12 + $0x1a8] sm:$0xff]
      %v4148 = vld [vmem:[#allocation12 + $0x1b0] sm:$0xff]
      %v4149 = vld [vmem:[#allocation12 + $0x1b8] sm:$0xff]
      %v4150 = vld [vmem:[#allocation12 + $0x1c0] sm:$0xff]
      %v4151 = vld [vmem:[#allocation12 + $0x1c8] sm:$0xff]
      %v4152 = vld [vmem:[#allocation12 + $0x1d0] sm:$0xff]
      %v4153 = vld [vmem:[#allocation12 + $0x1d8] sm:$0xff]
      %v4154 = vld [vmem:[#allocation12 + $0x1e0] sm:$0xff]
      %v4155 = vld [vmem:[#allocation12 + $0x1e8] sm:$0xff]
      %v4156 = vld [vmem:[#allocation12 + $0x1f0] sm:$0xff]
      %v4157 = vld [vmem:[#allocation12 + $0x1f8] sm:$0xff]
      %v4158 = vld [vmem:[#allocation12 + $0x200] sm:$0xff]
      %v4159 = vld [vmem:[#allocation12 + $0x208] sm:$0xff]
      %v4160 = vld [vmem:[#allocation12 + $0x210] sm:$0xff]
      %v4161 = vld [vmem:[#allocation12 + $0x218] sm:$0xff]
      %v4162 = vld [vmem:[#allocation12 + $0x220] sm:$0xff]
      %v4163 = vld [vmem:[#allocation12 + $0x228] sm:$0xff]
      %v4164 = vld [vmem:[#allocation12 + $0x230] sm:$0xff]
      %v4165 = vld [vmem:[#allocation12 + $0x238] sm:$0xff]
      %v4166 = vld [vmem:[#allocation12 + $0x240] sm:$0xff]
      %v4167 = vld [vmem:[#allocation12 + $0x248] sm:$0xff]
      %v4168 = vld [vmem:[#allocation12 + $0x250] sm:$0xff]
      %v4169 = vld [vmem:[#allocation12 + $0x258] sm:$0xff]
      %v4170 = vld [vmem:[#allocation12 + $0x260] sm:$0xff]
      %v4171 = vld [vmem:[#allocation12 + $0x268] sm:$0xff]
      %v4172 = vld [vmem:[#allocation12 + $0x270] sm:$0xff]
      %v4173 = vld [vmem:[#allocation12 + $0x278] sm:$0xff]
      %v4174 = vld [vmem:[#allocation12 + $0x280] sm:$0xff]
      %v4175 = vld [vmem:[#allocation12 + $0x288] sm:$0xff]
      %v4176 = vld [vmem:[#allocation12 + $0x290] sm:$0xff]
      %v4177 = vld [vmem:[#allocation12 + $0x298] sm:$0xff]
      %v4178 = vld [vmem:[#allocation12 + $0x2a0] sm:$0xff]
      %v4179 = vld [vmem:[#allocation12 + $0x2a8] sm:$0xff]
      %v4180 = vld [vmem:[#allocation12 + $0x2b0] sm:$0xff]
      %v4181 = vld [vmem:[#allocation12 + $0x2b8] sm:$0xff]
      %v4182 = vld [vmem:[#allocation12 + $0x2c0] sm:$0xff]
      %v4183 = vld [vmem:[#allocation12 + $0x2c8] sm:$0xff]
      %v4184 = vld [vmem:[#allocation12 + $0x2d0] sm:$0xff]
      %v4185 = vld [vmem:[#allocation12 + $0x2d8] sm:$0xff]
      %v4186 = vld [vmem:[#allocation12 + $0x2e0] sm:$0xff]
      %v4187 = vld [vmem:[#allocation12 + $0x2e8] sm:$0xff]
      %v4188 = vld [vmem:[#allocation12 + $0x2f0] sm:$0xff]
      %v4189 = vld [vmem:[#allocation12 + $0x2f8] sm:$0xff]
      %v4190 = vld [vmem:[#allocation12 + $0x300] sm:$0xff]
      %v4191 = vld [vmem:[#allocation12 + $0x308] sm:$0xff]
      %v4192 = vld [vmem:[#allocation12 + $0x310] sm:$0xff]
      %v4193 = vld [vmem:[#allocation12 + $0x318] sm:$0xff]
      %v4194 = vld [vmem:[#allocation12 + $0x320] sm:$0xff]
      %v4195 = vld [vmem:[#allocation12 + $0x328] sm:$0xff]
      %v4196 = vld [vmem:[#allocation12 + $0x330] sm:$0xff]
      %v4197 = vld [vmem:[#allocation12 + $0x338] sm:$0xff]
      %v4198 = vld [vmem:[#allocation12 + $0x340] sm:$0xff]
      %v4199 = vld [vmem:[#allocation12 + $0x348] sm:$0xff]
      %v4200 = vld [vmem:[#allocation12 + $0x350] sm:$0xff]
      %v4201 = vld [vmem:[#allocation12 + $0x358] sm:$0xff]
      %v4202 = vld [vmem:[#allocation12 + $0x360] sm:$0xff]
      %v4203 = vld [vmem:[#allocation12 + $0x368] sm:$0xff]
      %v4204 = vld [vmem:[#allocation12 + $0x370] sm:$0xff]
      %v4205 = vld [vmem:[#allocation12 + $0x378] sm:$0xff]
      %v4206 = vld [vmem:[#allocation12 + $0x380] sm:$0xff]
      %v4207 = vld [vmem:[#allocation12 + $0x388] sm:$0xff]
      %v4208 = vld [vmem:[#allocation12 + $0x390] sm:$0xff]
      %v4209 = vld [vmem:[#allocation12 + $0x398] sm:$0xff]
      %v4210 = vld [vmem:[#allocation12 + $0x3a0] sm:$0xff]
      %v4211 = vld [vmem:[#allocation12 + $0x3a8] sm:$0xff]
      %v4212 = vld [vmem:[#allocation12 + $0x3b0] sm:$0xff]
      %v4213 = vld [vmem:[#allocation12 + $0x3b8] sm:$0xff]
      %v4214 = vld [vmem:[#allocation12 + $0x3c0] sm:$0xff]
      %v4215 = vld [vmem:[#allocation12 + $0x3c8] sm:$0xff]
      %v4216 = vld [vmem:[#allocation12 + $0x3d0] sm:$0xff]
      %v4217 = vld [vmem:[#allocation12 + $0x3d8] sm:$0xff]
      %v4218 = vld [vmem:[#allocation12 + $0x3e0] sm:$0xff]
      %v4219 = vld [vmem:[#allocation12 + $0x3e8] sm:$0xff]
      %v4220 = vld [vmem:[#allocation12 + $0x3f0] sm:$0xff]
      %v4221 = vld [vmem:[#allocation12 + $0x3f8] sm:$0xff]
      %v4350 = vunpack.c.l.b16 %v4094
      %v4351 = vunpack.c.h.b16 %v4094
      %v4352 = vunpack.c.l.b16 %v4095
      %v4353 = vunpack.c.h.b16 %v4095
      %v4354 = vunpack.c.l.b16 %v4096
      %v4355 = vunpack.c.h.b16 %v4096
      %v4356 = vunpack.c.l.b16 %v4097
      %v4357 = vunpack.c.h.b16 %v4097
      %v4358 = vunpack.c.l.b16 %v4098
      %v4359 = vunpack.c.h.b16 %v4098
      %v4360 = vunpack.c.l.b16 %v4099
      %v4361 = vunpack.c.h.b16 %v4099
      %v4362 = vunpack.c.l.b16 %v4100
      %v4363 = vunpack.c.h.b16 %v4100
      %v4364 = vunpack.c.l.b16 %v4101
      %v4365 = vunpack.c.h.b16 %v4101
      %v4366 = vunpack.c.l.b16 %v4102
      %v4367 = vunpack.c.h.b16 %v4102
      %v4368 = vunpack.c.l.b16 %v4103
      %v4369 = vunpack.c.h.b16 %v4103
      %v4370 = vunpack.c.l.b16 %v4104
      %v4371 = vunpack.c.h.b16 %v4104
      %v4372 = vunpack.c.l.b16 %v4105
      %v4373 = vunpack.c.h.b16 %v4105
      %v4374 = vunpack.c.l.b16 %v4106
      %v4375 = vunpack.c.h.b16 %v4106
      %v4376 = vunpack.c.l.b16 %v4107
      %v4377 = vunpack.c.h.b16 %v4107
      %v4378 = vunpack.c.l.b16 %v4108
      %v4379 = vunpack.c.h.b16 %v4108
      %v4380 = vunpack.c.l.b16 %v4109
      %v4381 = vunpack.c.h.b16 %v4109
      %v4382 = vunpack.c.l.b16 %v4110
      %v4383 = vunpack.c.h.b16 %v4110
      %v4384 = vunpack.c.l.b16 %v4111
      %v4385 = vunpack.c.h.b16 %v4111
      %v4386 = vunpack.c.l.b16 %v4112
      %v4387 = vunpack.c.h.b16 %v4112
      %v4388 = vunpack.c.l.b16 %v4113
      %v4389 = vunpack.c.h.b16 %v4113
      %v4390 = vunpack.c.l.b16 %v4114
      %v4391 = vunpack.c.h.b16 %v4114
      %v4392 = vunpack.c.l.b16 %v4115
      %v4393 = vunpack.c.h.b16 %v4115
      %v4394 = vunpack.c.l.b16 %v4116
      %v4395 = vunpack.c.h.b16 %v4116
      %v4396 = vunpack.c.l.b16 %v4117
      %v4397 = vunpack.c.h.b16 %v4117
      %v4398 = vunpack.c.l.b16 %v4118
      %v4399 = vunpack.c.h.b16 %v4118
      %v4400 = vunpack.c.l.b16 %v4119
      %v4401 = vunpack.c.h.b16 %v4119
      %v4402 = vunpack.c.l.b16 %v4120
      %v4403 = vunpack.c.h.b16 %v4120
      %v4404 = vunpack.c.l.b16 %v4121
      %v4405 = vunpack.c.h.b16 %v4121
      %v4406 = vunpack.c.l.b16 %v4122
      %v4407 = vunpack.c.h.b16 %v4122
      %v4408 = vunpack.c.l.b16 %v4123
      %v4409 = vunpack.c.h.b16 %v4123
      %v4410 = vunpack.c.l.b16 %v4124
      %v4411 = vunpack.c.h.b16 %v4124
      %v4412 = vunpack.c.l.b16 %v4125
      %v4413 = vunpack.c.h.b16 %v4125
      %v4414 = vunpack.c.l.b16 %v4126
      %v4415 = vunpack.c.h.b16 %v4126
      %v4416 = vunpack.c.l.b16 %v4127
      %v4417 = vunpack.c.h.b16 %v4127
      %v4418 = vunpack.c.l.b16 %v4128
      %v4419 = vunpack.c.h.b16 %v4128
      %v4420 = vunpack.c.l.b16 %v4129
      %v4421 = vunpack.c.h.b16 %v4129
      %v4422 = vunpack.c.l.b16 %v4130
      %v4423 = vunpack.c.h.b16 %v4130
      %v4424 = vunpack.c.l.b16 %v4131
      %v4425 = vunpack.c.h.b16 %v4131
      %v4426 = vunpack.c.l.b16 %v4132
      %v4427 = vunpack.c.h.b16 %v4132
      %v4428 = vunpack.c.l.b16 %v4133
      %v4429 = vunpack.c.h.b16 %v4133
      %v4430 = vunpack.c.l.b16 %v4134
      %v4431 = vunpack.c.h.b16 %v4134
      %v4432 = vunpack.c.l.b16 %v4135
      %v4433 = vunpack.c.h.b16 %v4135
      %v4434 = vunpack.c.l.b16 %v4136
      %v4435 = vunpack.c.h.b16 %v4136
      %v4436 = vunpack.c.l.b16 %v4137
      %v4437 = vunpack.c.h.b16 %v4137
      %v4438 = vunpack.c.l.b16 %v4138
      %v4439 = vunpack.c.h.b16 %v4138
      %v4440 = vunpack.c.l.b16 %v4139
      %v4441 = vunpack.c.h.b16 %v4139
      %v4442 = vunpack.c.l.b16 %v4140
      %v4443 = vunpack.c.h.b16 %v4140
      %v4444 = vunpack.c.l.b16 %v4141
      %v4445 = vunpack.c.h.b16 %v4141
      %v4446 = vunpack.c.l.b16 %v4142
      %v4447 = vunpack.c.h.b16 %v4142
      %v4448 = vunpack.c.l.b16 %v4143
      %v4449 = vunpack.c.h.b16 %v4143
      %v4450 = vunpack.c.l.b16 %v4144
      %v4451 = vunpack.c.h.b16 %v4144
      %v4452 = vunpack.c.l.b16 %v4145
      %v4453 = vunpack.c.h.b16 %v4145
      %v4454 = vunpack.c.l.b16 %v4146
      %v4455 = vunpack.c.h.b16 %v4146
      %v4456 = vunpack.c.l.b16 %v4147
      %v4457 = vunpack.c.h.b16 %v4147
      %v4458 = vunpack.c.l.b16 %v4148
      %v4459 = vunpack.c.h.b16 %v4148
      %v4460 = vunpack.c.l.b16 %v4149
      %v4461 = vunpack.c.h.b16 %v4149
      %v4462 = vunpack.c.l.b16 %v4150
      %v4463 = vunpack.c.h.b16 %v4150
      %v4464 = vunpack.c.l.b16 %v4151
      %v4465 = vunpack.c.h.b16 %v4151
      %v4466 = vunpack.c.l.b16 %v4152
      %v4467 = vunpack.c.h.b16 %v4152
      %v4468 = vunpack.c.l.b16 %v4153
      %v4469 = vunpack.c.h.b16 %v4153
      %v4470 = vunpack.c.l.b16 %v4154
      %v4471 = vunpack.c.h.b16 %v4154
      %v4472 = vunpack.c.l.b16 %v4155
      %v4473 = vunpack.c.h.b16 %v4155
      %v4474 = vunpack.c.l.b16 %v4156
      %v4475 = vunpack.c.h.b16 %v4156
      %v4476 = vunpack.c.l.b16 %v4157
      %v4477 = vunpack.c.h.b16 %v4157
      %v4478 = vunpack.c.l.b16 %v4158
      %v4479 = vunpack.c.h.b16 %v4158
      %v4480 = vunpack.c.l.b16 %v4159
      %v4481 = vunpack.c.h.b16 %v4159
      %v4482 = vunpack.c.l.b16 %v4160
      %v4483 = vunpack.c.h.b16 %v4160
      %v4484 = vunpack.c.l.b16 %v4161
      %v4485 = vunpack.c.h.b16 %v4161
      %v4486 = vunpack.c.l.b16 %v4162
      %v4487 = vunpack.c.h.b16 %v4162
      %v4488 = vunpack.c.l.b16 %v4163
      %v4489 = vunpack.c.h.b16 %v4163
      %v4490 = vunpack.c.l.b16 %v4164
      %v4491 = vunpack.c.h.b16 %v4164
      %v4492 = vunpack.c.l.b16 %v4165
      %v4493 = vunpack.c.h.b16 %v4165
      %v4494 = vunpack.c.l.b16 %v4166
      %v4495 = vunpack.c.h.b16 %v4166
      %v4496 = vunpack.c.l.b16 %v4167
      %v4497 = vunpack.c.h.b16 %v4167
      %v4498 = vunpack.c.l.b16 %v4168
      %v4499 = vunpack.c.h.b16 %v4168
      %v4500 = vunpack.c.l.b16 %v4169
      %v4501 = vunpack.c.h.b16 %v4169
      %v4502 = vunpack.c.l.b16 %v4170
      %v4503 = vunpack.c.h.b16 %v4170
      %v4504 = vunpack.c.l.b16 %v4171
      %v4505 = vunpack.c.h.b16 %v4171
      %v4506 = vunpack.c.l.b16 %v4172
      %v4507 = vunpack.c.h.b16 %v4172
      %v4508 = vunpack.c.l.b16 %v4173
      %v4509 = vunpack.c.h.b16 %v4173
      %v4510 = vunpack.c.l.b16 %v4174
      %v4511 = vunpack.c.h.b16 %v4174
      %v4512 = vunpack.c.l.b16 %v4175
      %v4513 = vunpack.c.h.b16 %v4175
      %v4514 = vunpack.c.l.b16 %v4176
      %v4515 = vunpack.c.h.b16 %v4176
      %v4516 = vunpack.c.l.b16 %v4177
      %v4517 = vunpack.c.h.b16 %v4177
      %v4518 = vunpack.c.l.b16 %v4178
      %v4519 = vunpack.c.h.b16 %v4178
      %v4520 = vunpack.c.l.b16 %v4179
      %v4521 = vunpack.c.h.b16 %v4179
      %v4522 = vunpack.c.l.b16 %v4180
      %v4523 = vunpack.c.h.b16 %v4180
      %v4524 = vunpack.c.l.b16 %v4181
      %v4525 = vunpack.c.h.b16 %v4181
      %v4526 = vunpack.c.l.b16 %v4182
      %v4527 = vunpack.c.h.b16 %v4182
      %v4528 = vunpack.c.l.b16 %v4183
      %v4529 = vunpack.c.h.b16 %v4183
      %v4530 = vunpack.c.l.b16 %v4184
      %v4531 = vunpack.c.h.b16 %v4184
      %v4532 = vunpack.c.l.b16 %v4185
      %v4533 = vunpack.c.h.b16 %v4185
      %v4534 = vunpack.c.l.b16 %v4186
      %v4535 = vunpack.c.h.b16 %v4186
      %v4536 = vunpack.c.l.b16 %v4187
      %v4537 = vunpack.c.h.b16 %v4187
      %v4538 = vunpack.c.l.b16 %v4188
      %v4539 = vunpack.c.h.b16 %v4188
      %v4540 = vunpack.c.l.b16 %v4189
      %v4541 = vunpack.c.h.b16 %v4189
      %v4542 = vunpack.c.l.b16 %v4190
      %v4543 = vunpack.c.h.b16 %v4190
      %v4544 = vunpack.c.l.b16 %v4191
      %v4545 = vunpack.c.h.b16 %v4191
      %v4546 = vunpack.c.l.b16 %v4192
      %v4547 = vunpack.c.h.b16 %v4192
      %v4548 = vunpack.c.l.b16 %v4193
      %v4549 = vunpack.c.h.b16 %v4193
      %v4550 = vunpack.c.l.b16 %v4194
      %v4551 = vunpack.c.h.b16 %v4194
      %v4552 = vunpack.c.l.b16 %v4195
      %v4553 = vunpack.c.h.b16 %v4195
      %v4554 = vunpack.c.l.b16 %v4196
      %v4555 = vunpack.c.h.b16 %v4196
      %v4556 = vunpack.c.l.b16 %v4197
      %v4557 = vunpack.c.h.b16 %v4197
      %v4558 = vunpack.c.l.b16 %v4198
      %v4559 = vunpack.c.h.b16 %v4198
      %v4560 = vunpack.c.l.b16 %v4199
      %v4561 = vunpack.c.h.b16 %v4199
      %v4562 = vunpack.c.l.b16 %v4200
      %v4563 = vunpack.c.h.b16 %v4200
      %v4564 = vunpack.c.l.b16 %v4201
      %v4565 = vunpack.c.h.b16 %v4201
      %v4566 = vunpack.c.l.b16 %v4202
      %v4567 = vunpack.c.h.b16 %v4202
      %v4568 = vunpack.c.l.b16 %v4203
      %v4569 = vunpack.c.h.b16 %v4203
      %v4570 = vunpack.c.l.b16 %v4204
      %v4571 = vunpack.c.h.b16 %v4204
      %v4572 = vunpack.c.l.b16 %v4205
      %v4573 = vunpack.c.h.b16 %v4205
      %v4574 = vunpack.c.l.b16 %v4206
      %v4575 = vunpack.c.h.b16 %v4206
      %v4576 = vunpack.c.l.b16 %v4207
      %v4577 = vunpack.c.h.b16 %v4207
      %v4578 = vunpack.c.l.b16 %v4208
      %v4579 = vunpack.c.h.b16 %v4208
      %v4580 = vunpack.c.l.b16 %v4209
      %v4581 = vunpack.c.h.b16 %v4209
      %v4582 = vunpack.c.l.b16 %v4210
      %v4583 = vunpack.c.h.b16 %v4210
      %v4584 = vunpack.c.l.b16 %v4211
      %v4585 = vunpack.c.h.b16 %v4211
      %v4586 = vunpack.c.l.b16 %v4212
      %v4587 = vunpack.c.h.b16 %v4212
      %v4588 = vunpack.c.l.b16 %v4213
      %v4589 = vunpack.c.h.b16 %v4213
      %v4590 = vunpack.c.l.b16 %v4214
      %v4591 = vunpack.c.h.b16 %v4214
      %v4592 = vunpack.c.l.b16 %v4215
      %v4593 = vunpack.c.h.b16 %v4215
      %v4594 = vunpack.c.l.b16 %v4216
      %v4595 = vunpack.c.h.b16 %v4216
      %v4596 = vunpack.c.l.b16 %v4217
      %v4597 = vunpack.c.h.b16 %v4217
      %v4598 = vunpack.c.l.b16 %v4218
      %v4599 = vunpack.c.h.b16 %v4218
      %v4600 = vunpack.c.l.b16 %v4219
      %v4601 = vunpack.c.h.b16 %v4219
      %v4602 = vunpack.c.l.b16 %v4220
      %v4603 = vunpack.c.h.b16 %v4220
      %v4604 = vunpack.c.l.b16 %v4221
      %v4605 = vunpack.c.h.b16 %v4221
      %v4606 = vpack.c.b16 %v4358, %v4350
      %v4607 = vpack.c.b16 %v4359, %v4351
      %v4608 = vpack.c.b16 %v4360, %v4352
      %v4609 = vpack.c.b16 %v4361, %v4353
      %v4610 = vpack.c.b16 %v4362, %v4354
      %v4611 = vpack.c.b16 %v4363, %v4355
      %v4612 = vpack.c.b16 %v4364, %v4356
      %v4613 = vpack.c.b16 %v4365, %v4357
      %v4614 = vpack.c.b16 %v4374, %v4366
      %v4615 = vpack.c.b16 %v4375, %v4367
      %v4616 = vpack.c.b16 %v4376, %v4368
      %v4617 = vpack.c.b16 %v4377, %v4369
      %v4618 = vpack.c.b16 %v4378, %v4370
      %v4619 = vpack.c.b16 %v4379, %v4371
      %v4620 = vpack.c.b16 %v4380, %v4372
      %v4621 = vpack.c.b16 %v4381, %v4373
      %v4622 = vpack.c.b16 %v4390, %v4382
      %v4623 = vpack.c.b16 %v4391, %v4383
      %v4624 = vpack.c.b16 %v4392, %v4384
      %v4625 = vpack.c.b16 %v4393, %v4385
      %v4626 = vpack.c.b16 %v4394, %v4386
      %v4627 = vpack.c.b16 %v4395, %v4387
      %v4628 = vpack.c.b16 %v4396, %v4388
      %v4629 = vpack.c.b16 %v4397, %v4389
      %v4630 = vpack.c.b16 %v4406, %v4398
      %v4631 = vpack.c.b16 %v4407, %v4399
      %v4632 = vpack.c.b16 %v4408, %v4400
      %v4633 = vpack.c.b16 %v4409, %v4401
      %v4634 = vpack.c.b16 %v4410, %v4402
      %v4635 = vpack.c.b16 %v4411, %v4403
      %v4636 = vpack.c.b16 %v4412, %v4404
      %v4637 = vpack.c.b16 %v4413, %v4405
      %v4638 = vpack.c.b16 %v4422, %v4414
      %v4639 = vpack.c.b16 %v4423, %v4415
      %v4640 = vpack.c.b16 %v4424, %v4416
      %v4641 = vpack.c.b16 %v4425, %v4417
      %v4642 = vpack.c.b16 %v4426, %v4418
      %v4643 = vpack.c.b16 %v4427, %v4419
      %v4644 = vpack.c.b16 %v4428, %v4420
      %v4645 = vpack.c.b16 %v4429, %v4421
      %v4646 = vpack.c.b16 %v4438, %v4430
      %v4647 = vpack.c.b16 %v4439, %v4431
      %v4648 = vpack.c.b16 %v4440, %v4432
      %v4649 = vpack.c.b16 %v4441, %v4433
      %v4650 = vpack.c.b16 %v4442, %v4434
      %v4651 = vpack.c.b16 %v4443, %v4435
      %v4652 = vpack.c.b16 %v4444, %v4436
      %v4653 = vpack.c.b16 %v4445, %v4437
      %v4654 = vpack.c.b16 %v4454, %v4446
      %v4655 = vpack.c.b16 %v4455, %v4447
      %v4656 = vpack.c.b16 %v4456, %v4448
      %v4657 = vpack.c.b16 %v4457, %v4449
      %v4658 = vpack.c.b16 %v4458, %v4450
      %v4659 = vpack.c.b16 %v4459, %v4451
      %v4660 = vpack.c.b16 %v4460, %v4452
      %v4661 = vpack.c.b16 %v4461, %v4453
      %v4662 = vpack.c.b16 %v4470, %v4462
      %v4663 = vpack.c.b16 %v4471, %v4463
      %v4664 = vpack.c.b16 %v4472, %v4464
      %v4665 = vpack.c.b16 %v4473, %v4465
      %v4666 = vpack.c.b16 %v4474, %v4466
      %v4667 = vpack.c.b16 %v4475, %v4467
      %v4668 = vpack.c.b16 %v4476, %v4468
      %v4669 = vpack.c.b16 %v4477, %v4469
      %v4670 = vpack.c.b16 %v4486, %v4478
      %v4671 = vpack.c.b16 %v4487, %v4479
      %v4672 = vpack.c.b16 %v4488, %v4480
      %v4673 = vpack.c.b16 %v4489, %v4481
      %v4674 = vpack.c.b16 %v4490, %v4482
      %v4675 = vpack.c.b16 %v4491, %v4483
      %v4676 = vpack.c.b16 %v4492, %v4484
      %v4677 = vpack.c.b16 %v4493, %v4485
      %v4678 = vpack.c.b16 %v4502, %v4494
      %v4679 = vpack.c.b16 %v4503, %v4495
      %v4680 = vpack.c.b16 %v4504, %v4496
      %v4681 = vpack.c.b16 %v4505, %v4497
      %v4682 = vpack.c.b16 %v4506, %v4498
      %v4683 = vpack.c.b16 %v4507, %v4499
      %v4684 = vpack.c.b16 %v4508, %v4500
      %v4685 = vpack.c.b16 %v4509, %v4501
      %v4686 = vpack.c.b16 %v4518, %v4510
      %v4687 = vpack.c.b16 %v4519, %v4511
      %v4688 = vpack.c.b16 %v4520, %v4512
      %v4689 = vpack.c.b16 %v4521, %v4513
      %v4690 = vpack.c.b16 %v4522, %v4514
      %v4691 = vpack.c.b16 %v4523, %v4515
      %v4692 = vpack.c.b16 %v4524, %v4516
      %v4693 = vpack.c.b16 %v4525, %v4517
      %v4694 = vpack.c.b16 %v4534, %v4526
      %v4695 = vpack.c.b16 %v4535, %v4527
      %v4696 = vpack.c.b16 %v4536, %v4528
      %v4697 = vpack.c.b16 %v4537, %v4529
      %v4698 = vpack.c.b16 %v4538, %v4530
      %v4699 = vpack.c.b16 %v4539, %v4531
      %v4700 = vpack.c.b16 %v4540, %v4532
      %v4701 = vpack.c.b16 %v4541, %v4533
      %v4702 = vpack.c.b16 %v4550, %v4542
      %v4703 = vpack.c.b16 %v4551, %v4543
      %v4704 = vpack.c.b16 %v4552, %v4544
      %v4705 = vpack.c.b16 %v4553, %v4545
      %v4706 = vpack.c.b16 %v4554, %v4546
      %v4707 = vpack.c.b16 %v4555, %v4547
      %v4708 = vpack.c.b16 %v4556, %v4548
      %v4709 = vpack.c.b16 %v4557, %v4549
      %v4710 = vpack.c.b16 %v4566, %v4558
      %v4711 = vpack.c.b16 %v4567, %v4559
      %v4712 = vpack.c.b16 %v4568, %v4560
      %v4713 = vpack.c.b16 %v4569, %v4561
      %v4714 = vpack.c.b16 %v4570, %v4562
      %v4715 = vpack.c.b16 %v4571, %v4563
      %v4716 = vpack.c.b16 %v4572, %v4564
      %v4717 = vpack.c.b16 %v4573, %v4565
      %v4718 = vpack.c.b16 %v4582, %v4574
      %v4719 = vpack.c.b16 %v4583, %v4575
      %v4720 = vpack.c.b16 %v4584, %v4576
      %v4721 = vpack.c.b16 %v4585, %v4577
      %v4722 = vpack.c.b16 %v4586, %v4578
      %v4723 = vpack.c.b16 %v4587, %v4579
      %v4724 = vpack.c.b16 %v4588, %v4580
      %v4725 = vpack.c.b16 %v4589, %v4581
      %v4726 = vpack.c.b16 %v4598, %v4590
      %v4727 = vpack.c.b16 %v4599, %v4591
      %v4728 = vpack.c.b16 %v4600, %v4592
      %v4729 = vpack.c.b16 %v4601, %v4593
      %v4730 = vpack.c.b16 %v4602, %v4594
      %v4731 = vpack.c.b16 %v4603, %v4595
      %v4732 = vpack.c.b16 %v4604, %v4596
      %v4733 = vpack.c.b16 %v4605, %v4597
      %4862 = vmatpush.bf16.msra.mxu0 %v4662
      %4863 = vmatpush.bf16.msra.mxu0 %v4654
      %4864 = vmatpush.bf16.msra.mxu0 %v4646
      %4865 = vmatpush.bf16.msra.mxu0 %v4638
      %4866 = vmatpush.bf16.msra.mxu0 %v4630
      %4867 = vmatpush.bf16.msra.mxu0 %v4622
      %4868 = vmatpush.bf16.msra.mxu0 %v4614
      %4869 = vmatpush.bf16.msra.mxu0 %v4606
      %4870 = vmatmul.bf16.gmra.mxu0 %v4092
      %v4871 = vpop.f32.mrf.mxu0
      %v4872 = vadd.f32 0.0, %v4871
      %v4873 = vpop.f32.mrf.mxu0
      %4874 = vdwg.mxu0
      %4875 = vmatpush.bf16.msra.mxu0 %v4726
      %4876 = vmatpush.bf16.msra.mxu0 %v4718
      %4877 = vmatpush.bf16.msra.mxu0 %v4710
      %4878 = vmatpush.bf16.msra.mxu0 %v4702
      %4879 = vmatpush.bf16.msra.mxu0 %v4694
      %4880 = vmatpush.bf16.msra.mxu0 %v4686
      %4881 = vmatpush.bf16.msra.mxu0 %v4678
      %4882 = vmatpush.bf16.msra.mxu0 %v4670
      %4883 = vmatmul.bf16.gmra.mxu0 %v4093
      %v4884 = vpop.f32.mrf.mxu0
      %v4885 = vadd.f32 %v4872, %v4884
      %v4886 = vpop.f32.mrf.mxu0
      %4887 = vdwg.mxu0
      %4888 = vmatpush.bf16.msra.mxu0 %v4663
      %4889 = vmatpush.bf16.msra.mxu0 %v4655
      %4890 = vmatpush.bf16.msra.mxu0 %v4647
      %4891 = vmatpush.bf16.msra.mxu0 %v4639
      %4892 = vmatpush.bf16.msra.mxu0 %v4631
      %4893 = vmatpush.bf16.msra.mxu0 %v4623
      %4894 = vmatpush.bf16.msra.mxu0 %v4615
      %4895 = vmatpush.bf16.msra.mxu0 %v4607
      %4896 = vmatmul.bf16.gmra.mxu0 %v4092
      %v4897 = vpop.f32.mrf.mxu0
      %v4898 = vadd.f32 0.0, %v4897
      %v4899 = vpop.f32.mrf.mxu0
      %4900 = vdwg.mxu0
      %4901 = vmatpush.bf16.msra.mxu0 %v4727
      %4902 = vmatpush.bf16.msra.mxu0 %v4719
      %4903 = vmatpush.bf16.msra.mxu0 %v4711
      %4904 = vmatpush.bf16.msra.mxu0 %v4703
      %4905 = vmatpush.bf16.msra.mxu0 %v4695
      %4906 = vmatpush.bf16.msra.mxu0 %v4687
      %4907 = vmatpush.bf16.msra.mxu0 %v4679
      %4908 = vmatpush.bf16.msra.mxu0 %v4671
      %4909 = vmatmul.bf16.gmra.mxu0 %v4093
      %v4910 = vpop.f32.mrf.mxu0
      %v4911 = vadd.f32 %v4898, %v4910
      %v4912 = vpop.f32.mrf.mxu0
      %4913 = vdwg.mxu0
      %4914 = vmatpush.bf16.msra.mxu0 %v4664
      %4915 = vmatpush.bf16.msra.mxu0 %v4656
      %4916 = vmatpush.bf16.msra.mxu0 %v4648
      %4917 = vmatpush.bf16.msra.mxu0 %v4640
      %4918 = vmatpush.bf16.msra.mxu0 %v4632
      %4919 = vmatpush.bf16.msra.mxu0 %v4624
      %4920 = vmatpush.bf16.msra.mxu0 %v4616
      %4921 = vmatpush.bf16.msra.mxu0 %v4608
      %4922 = vmatmul.bf16.gmra.mxu0 %v4092
      %v4923 = vpop.f32.mrf.mxu0
      %v4924 = vadd.f32 0.0, %v4923
      %v4925 = vpop.f32.mrf.mxu0
      %4926 = vdwg.mxu0
      %4927 = vmatpush.bf16.msra.mxu0 %v4728
      %4928 = vmatpush.bf16.msra.mxu0 %v4720
      %4929 = vmatpush.bf16.msra.mxu0 %v4712
      %4930 = vmatpush.bf16.msra.mxu0 %v4704
      %4931 = vmatpush.bf16.msra.mxu0 %v4696
      %4932 = vmatpush.bf16.msra.mxu0 %v4688
      %4933 = vmatpush.bf16.msra.mxu0 %v4680
      %4934 = vmatpush.bf16.msra.mxu0 %v4672
      %4935 = vmatmul.bf16.gmra.mxu0 %v4093
      %v4936 = vpop.f32.mrf.mxu0
      %v4937 = vadd.f32 %v4924, %v4936
      %v4938 = vpop.f32.mrf.mxu0
      %4939 = vdwg.mxu0
      %4940 = vmatpush.bf16.msra.mxu0 %v4665
      %4941 = vmatpush.bf16.msra.mxu0 %v4657
      %4942 = vmatpush.bf16.msra.mxu0 %v4649
      %4943 = vmatpush.bf16.msra.mxu0 %v4641
      %4944 = vmatpush.bf16.msra.mxu0 %v4633
      %4945 = vmatpush.bf16.msra.mxu0 %v4625
      %4946 = vmatpush.bf16.msra.mxu0 %v4617
      %4947 = vmatpush.bf16.msra.mxu0 %v4609
      %4948 = vmatmul.bf16.gmra.mxu0 %v4092
      %v4949 = vpop.f32.mrf.mxu0
      %v4950 = vadd.f32 0.0, %v4949
      %v4951 = vpop.f32.mrf.mxu0
      %4952 = vdwg.mxu0
      %4953 = vmatpush.bf16.msra.mxu0 %v4729
      %4954 = vmatpush.bf16.msra.mxu0 %v4721
      %4955 = vmatpush.bf16.msra.mxu0 %v4713
      %4956 = vmatpush.bf16.msra.mxu0 %v4705
      %4957 = vmatpush.bf16.msra.mxu0 %v4697
      %4958 = vmatpush.bf16.msra.mxu0 %v4689
      %4959 = vmatpush.bf16.msra.mxu0 %v4681
      %4960 = vmatpush.bf16.msra.mxu0 %v4673
      %4961 = vmatmul.bf16.gmra.mxu0 %v4093
      %v4962 = vpop.f32.mrf.mxu0
      %v4963 = vadd.f32 %v4950, %v4962
      %v4964 = vpop.f32.mrf.mxu0
      %4965 = vdwg.mxu0
      %4966 = vmatpush.bf16.msra.mxu0 %v4666
      %4967 = vmatpush.bf16.msra.mxu0 %v4658
      %4968 = vmatpush.bf16.msra.mxu0 %v4650
      %4969 = vmatpush.bf16.msra.mxu0 %v4642
      %4970 = vmatpush.bf16.msra.mxu0 %v4634
      %4971 = vmatpush.bf16.msra.mxu0 %v4626
      %4972 = vmatpush.bf16.msra.mxu0 %v4618
      %4973 = vmatpush.bf16.msra.mxu0 %v4610
      %4974 = vmatmul.bf16.gmra.mxu0 %v4092
      %v4975 = vpop.f32.mrf.mxu0
      %v4976 = vadd.f32 0.0, %v4975
      %v4977 = vpop.f32.mrf.mxu0
      %4978 = vdwg.mxu0
      %4979 = vmatpush.bf16.msra.mxu0 %v4730
      %4980 = vmatpush.bf16.msra.mxu0 %v4722
      %4981 = vmatpush.bf16.msra.mxu0 %v4714
      %4982 = vmatpush.bf16.msra.mxu0 %v4706
      %4983 = vmatpush.bf16.msra.mxu0 %v4698
      %4984 = vmatpush.bf16.msra.mxu0 %v4690
      %4985 = vmatpush.bf16.msra.mxu0 %v4682
      %4986 = vmatpush.bf16.msra.mxu0 %v4674
      %4987 = vmatmul.bf16.gmra.mxu0 %v4093
      %v4988 = vpop.f32.mrf.mxu0
      %v4989 = vadd.f32 %v4976, %v4988
      %v4990 = vpop.f32.mrf.mxu0
      %4991 = vdwg.mxu0
      %4992 = vmatpush.bf16.msra.mxu0 %v4667
      %4993 = vmatpush.bf16.msra.mxu0 %v4659
      %4994 = vmatpush.bf16.msra.mxu0 %v4651
      %4995 = vmatpush.bf16.msra.mxu0 %v4643
      %4996 = vmatpush.bf16.msra.mxu0 %v4635
      %4997 = vmatpush.bf16.msra.mxu0 %v4627
      %4998 = vmatpush.bf16.msra.mxu0 %v4619
      %4999 = vmatpush.bf16.msra.mxu0 %v4611
      %5000 = vmatmul.bf16.gmra.mxu0 %v4092
      %v5001 = vpop.f32.mrf.mxu0
      %v5002 = vadd.f32 0.0, %v5001
      %v5003 = vpop.f32.mrf.mxu0
      %5004 = vdwg.mxu0
      %5005 = vmatpush.bf16.msra.mxu0 %v4731
      %5006 = vmatpush.bf16.msra.mxu0 %v4723
      %5007 = vmatpush.bf16.msra.mxu0 %v4715
      %5008 = vmatpush.bf16.msra.mxu0 %v4707
      %5009 = vmatpush.bf16.msra.mxu0 %v4699
      %5010 = vmatpush.bf16.msra.mxu0 %v4691
      %5011 = vmatpush.bf16.msra.mxu0 %v4683
      %5012 = vmatpush.bf16.msra.mxu0 %v4675
      %5013 = vmatmul.bf16.gmra.mxu0 %v4093
      %v5014 = vpop.f32.mrf.mxu0
      %v5015 = vadd.f32 %v5002, %v5014
      %v5016 = vpop.f32.mrf.mxu0
      %5017 = vdwg.mxu0
      %5018 = vmatpush.bf16.msra.mxu0 %v4668
      %5019 = vmatpush.bf16.msra.mxu0 %v4660
      %5020 = vmatpush.bf16.msra.mxu0 %v4652
      %5021 = vmatpush.bf16.msra.mxu0 %v4644
      %5022 = vmatpush.bf16.msra.mxu0 %v4636
      %5023 = vmatpush.bf16.msra.mxu0 %v4628
      %5024 = vmatpush.bf16.msra.mxu0 %v4620
      %5025 = vmatpush.bf16.msra.mxu0 %v4612
      %5026 = vmatmul.bf16.gmra.mxu0 %v4092
      %v5027 = vpop.f32.mrf.mxu0
      %v5028 = vadd.f32 0.0, %v5027
      %v5029 = vpop.f32.mrf.mxu0
      %5030 = vdwg.mxu0
      %5031 = vmatpush.bf16.msra.mxu0 %v4732
      %5032 = vmatpush.bf16.msra.mxu0 %v4724
      %5033 = vmatpush.bf16.msra.mxu0 %v4716
      %5034 = vmatpush.bf16.msra.mxu0 %v4708
      %5035 = vmatpush.bf16.msra.mxu0 %v4700
      %5036 = vmatpush.bf16.msra.mxu0 %v4692
      %5037 = vmatpush.bf16.msra.mxu0 %v4684
      %5038 = vmatpush.bf16.msra.mxu0 %v4676
      %5039 = vmatmul.bf16.gmra.mxu0 %v4093
      %v5040 = vpop.f32.mrf.mxu0
      %v5041 = vadd.f32 %v5028, %v5040
      %v5042 = vpop.f32.mrf.mxu0
      %5043 = vdwg.mxu0
      %5044 = vmatpush.bf16.msra.mxu0 %v4669
      %5045 = vmatpush.bf16.msra.mxu0 %v4661
      %5046 = vmatpush.bf16.msra.mxu0 %v4653
      %5047 = vmatpush.bf16.msra.mxu0 %v4645
      %5048 = vmatpush.bf16.msra.mxu0 %v4637
      %5049 = vmatpush.bf16.msra.mxu0 %v4629
      %5050 = vmatpush.bf16.msra.mxu0 %v4621
      %5051 = vmatpush.bf16.msra.mxu0 %v4613
      %5052 = vmatmul.bf16.gmra.mxu0 %v4092
      %v5053 = vpop.f32.mrf.mxu0
      %v5054 = vadd.f32 0.0, %v5053
      %v5055 = vpop.f32.mrf.mxu0
      %5056 = vdwg.mxu0
      %5057 = vmatpush.bf16.msra.mxu0 %v4733
      %5058 = vmatpush.bf16.msra.mxu0 %v4725
      %5059 = vmatpush.bf16.msra.mxu0 %v4717
      %5060 = vmatpush.bf16.msra.mxu0 %v4709
      %5061 = vmatpush.bf16.msra.mxu0 %v4701
      %5062 = vmatpush.bf16.msra.mxu0 %v4693
      %5063 = vmatpush.bf16.msra.mxu0 %v4685
      %5064 = vmatpush.bf16.msra.mxu0 %v4677
      %5065 = vmatmul.bf16.gmra.mxu0 %v4093
      %v5066 = vpop.f32.mrf.mxu0
      %v5067 = vadd.f32 %v5054, %v5066
      %v5068 = vpop.f32.mrf.mxu0
      %5069 = vdwg.mxu0
      %v5198 = vunpack.c.l.b16 %v3964
      %v5199 = vunpack.c.h.b16 %v3964
      %v5200 = vunpack.c.l.b16 %v3965
      %v5201 = vunpack.c.h.b16 %v3965
      %v5202 = vunpack.c.l.b16 %v3966
      %v5203 = vunpack.c.h.b16 %v3966
      %v5204 = vunpack.c.l.b16 %v3967
      %v5205 = vunpack.c.h.b16 %v3967
      %v5206 = vunpack.c.l.b16 %v3968
      %v5207 = vunpack.c.h.b16 %v3968
      %v5208 = vunpack.c.l.b16 %v3969
      %v5209 = vunpack.c.h.b16 %v3969
      %v5210 = vunpack.c.l.b16 %v3970
      %v5211 = vunpack.c.h.b16 %v3970
      %v5212 = vunpack.c.l.b16 %v3971
      %v5213 = vunpack.c.h.b16 %v3971
      %v5214 = vunpack.c.l.b16 %v3972
      %v5215 = vunpack.c.h.b16 %v3972
      %v5216 = vunpack.c.l.b16 %v3973
      %v5217 = vunpack.c.h.b16 %v3973
      %v5218 = vunpack.c.l.b16 %v3974
      %v5219 = vunpack.c.h.b16 %v3974
      %v5220 = vunpack.c.l.b16 %v3975
      %v5221 = vunpack.c.h.b16 %v3975
      %v5222 = vunpack.c.l.b16 %v3976
      %v5223 = vunpack.c.h.b16 %v3976
      %v5224 = vunpack.c.l.b16 %v3977
      %v5225 = vunpack.c.h.b16 %v3977
      %v5226 = vunpack.c.l.b16 %v3978
      %v5227 = vunpack.c.h.b16 %v3978
      %v5228 = vunpack.c.l.b16 %v3979
      %v5229 = vunpack.c.h.b16 %v3979
      %v5230 = vunpack.c.l.b16 %v3980
      %v5231 = vunpack.c.h.b16 %v3980
      %v5232 = vunpack.c.l.b16 %v3981
      %v5233 = vunpack.c.h.b16 %v3981
      %v5234 = vunpack.c.l.b16 %v3982
      %v5235 = vunpack.c.h.b16 %v3982
      %v5236 = vunpack.c.l.b16 %v3983
      %v5237 = vunpack.c.h.b16 %v3983
      %v5238 = vunpack.c.l.b16 %v3984
      %v5239 = vunpack.c.h.b16 %v3984
      %v5240 = vunpack.c.l.b16 %v3985
      %v5241 = vunpack.c.h.b16 %v3985
      %v5242 = vunpack.c.l.b16 %v3986
      %v5243 = vunpack.c.h.b16 %v3986
      %v5244 = vunpack.c.l.b16 %v3987
      %v5245 = vunpack.c.h.b16 %v3987
      %v5246 = vunpack.c.l.b16 %v3988
      %v5247 = vunpack.c.h.b16 %v3988
      %v5248 = vunpack.c.l.b16 %v3989
      %v5249 = vunpack.c.h.b16 %v3989
      %v5250 = vunpack.c.l.b16 %v3990
      %v5251 = vunpack.c.h.b16 %v3990
      %v5252 = vunpack.c.l.b16 %v3991
      %v5253 = vunpack.c.h.b16 %v3991
      %v5254 = vunpack.c.l.b16 %v3992
      %v5255 = vunpack.c.h.b16 %v3992
      %v5256 = vunpack.c.l.b16 %v3993
      %v5257 = vunpack.c.h.b16 %v3993
      %v5258 = vunpack.c.l.b16 %v3994
      %v5259 = vunpack.c.h.b16 %v3994
      %v5260 = vunpack.c.l.b16 %v3995
      %v5261 = vunpack.c.h.b16 %v3995
      %v5262 = vunpack.c.l.b16 %v3996
      %v5263 = vunpack.c.h.b16 %v3996
      %v5264 = vunpack.c.l.b16 %v3997
      %v5265 = vunpack.c.h.b16 %v3997
      %v5266 = vunpack.c.l.b16 %v3998
      %v5267 = vunpack.c.h.b16 %v3998
      %v5268 = vunpack.c.l.b16 %v3999
      %v5269 = vunpack.c.h.b16 %v3999
      %v5270 = vunpack.c.l.b16 %v4000
      %v5271 = vunpack.c.h.b16 %v4000
      %v5272 = vunpack.c.l.b16 %v4001
      %v5273 = vunpack.c.h.b16 %v4001
      %v5274 = vunpack.c.l.b16 %v4002
      %v5275 = vunpack.c.h.b16 %v4002
      %v5276 = vunpack.c.l.b16 %v4003
      %v5277 = vunpack.c.h.b16 %v4003
      %v5278 = vunpack.c.l.b16 %v4004
      %v5279 = vunpack.c.h.b16 %v4004
      %v5280 = vunpack.c.l.b16 %v4005
      %v5281 = vunpack.c.h.b16 %v4005
      %v5282 = vunpack.c.l.b16 %v4006
      %v5283 = vunpack.c.h.b16 %v4006
      %v5284 = vunpack.c.l.b16 %v4007
      %v5285 = vunpack.c.h.b16 %v4007
      %v5286 = vunpack.c.l.b16 %v4008
      %v5287 = vunpack.c.h.b16 %v4008
      %v5288 = vunpack.c.l.b16 %v4009
      %v5289 = vunpack.c.h.b16 %v4009
      %v5290 = vunpack.c.l.b16 %v4010
      %v5291 = vunpack.c.h.b16 %v4010
      %v5292 = vunpack.c.l.b16 %v4011
      %v5293 = vunpack.c.h.b16 %v4011
      %v5294 = vunpack.c.l.b16 %v4012
      %v5295 = vunpack.c.h.b16 %v4012
      %v5296 = vunpack.c.l.b16 %v4013
      %v5297 = vunpack.c.h.b16 %v4013
      %v5298 = vunpack.c.l.b16 %v4014
      %v5299 = vunpack.c.h.b16 %v4014
      %v5300 = vunpack.c.l.b16 %v4015
      %v5301 = vunpack.c.h.b16 %v4015
      %v5302 = vunpack.c.l.b16 %v4016
      %v5303 = vunpack.c.h.b16 %v4016
      %v5304 = vunpack.c.l.b16 %v4017
      %v5305 = vunpack.c.h.b16 %v4017
      %v5306 = vunpack.c.l.b16 %v4018
      %v5307 = vunpack.c.h.b16 %v4018
      %v5308 = vunpack.c.l.b16 %v4019
      %v5309 = vunpack.c.h.b16 %v4019
      %v5310 = vunpack.c.l.b16 %v4020
      %v5311 = vunpack.c.h.b16 %v4020
      %v5312 = vunpack.c.l.b16 %v4021
      %v5313 = vunpack.c.h.b16 %v4021
      %v5314 = vunpack.c.l.b16 %v4022
      %v5315 = vunpack.c.h.b16 %v4022
      %v5316 = vunpack.c.l.b16 %v4023
      %v5317 = vunpack.c.h.b16 %v4023
      %v5318 = vunpack.c.l.b16 %v4024
      %v5319 = vunpack.c.h.b16 %v4024
      %v5320 = vunpack.c.l.b16 %v4025
      %v5321 = vunpack.c.h.b16 %v4025
      %v5322 = vunpack.c.l.b16 %v4026
      %v5323 = vunpack.c.h.b16 %v4026
      %v5324 = vunpack.c.l.b16 %v4027
      %v5325 = vunpack.c.h.b16 %v4027
      %v5326 = vunpack.c.l.b16 %v4028
      %v5327 = vunpack.c.h.b16 %v4028
      %v5328 = vunpack.c.l.b16 %v4029
      %v5329 = vunpack.c.h.b16 %v4029
      %v5330 = vunpack.c.l.b16 %v4030
      %v5331 = vunpack.c.h.b16 %v4030
      %v5332 = vunpack.c.l.b16 %v4031
      %v5333 = vunpack.c.h.b16 %v4031
      %v5334 = vunpack.c.l.b16 %v4032
      %v5335 = vunpack.c.h.b16 %v4032
      %v5336 = vunpack.c.l.b16 %v4033
      %v5337 = vunpack.c.h.b16 %v4033
      %v5338 = vunpack.c.l.b16 %v4034
      %v5339 = vunpack.c.h.b16 %v4034
      %v5340 = vunpack.c.l.b16 %v4035
      %v5341 = vunpack.c.h.b16 %v4035
      %v5342 = vunpack.c.l.b16 %v4036
      %v5343 = vunpack.c.h.b16 %v4036
      %v5344 = vunpack.c.l.b16 %v4037
      %v5345 = vunpack.c.h.b16 %v4037
      %v5346 = vunpack.c.l.b16 %v4038
      %v5347 = vunpack.c.h.b16 %v4038
      %v5348 = vunpack.c.l.b16 %v4039
      %v5349 = vunpack.c.h.b16 %v4039
      %v5350 = vunpack.c.l.b16 %v4040
      %v5351 = vunpack.c.h.b16 %v4040
      %v5352 = vunpack.c.l.b16 %v4041
      %v5353 = vunpack.c.h.b16 %v4041
      %v5354 = vunpack.c.l.b16 %v4042
      %v5355 = vunpack.c.h.b16 %v4042
      %v5356 = vunpack.c.l.b16 %v4043
      %v5357 = vunpack.c.h.b16 %v4043
      %v5358 = vunpack.c.l.b16 %v4044
      %v5359 = vunpack.c.h.b16 %v4044
      %v5360 = vunpack.c.l.b16 %v4045
      %v5361 = vunpack.c.h.b16 %v4045
      %v5362 = vunpack.c.l.b16 %v4046
      %v5363 = vunpack.c.h.b16 %v4046
      %v5364 = vunpack.c.l.b16 %v4047
      %v5365 = vunpack.c.h.b16 %v4047
      %v5366 = vunpack.c.l.b16 %v4048
      %v5367 = vunpack.c.h.b16 %v4048
      %v5368 = vunpack.c.l.b16 %v4049
      %v5369 = vunpack.c.h.b16 %v4049
      %v5370 = vunpack.c.l.b16 %v4050
      %v5371 = vunpack.c.h.b16 %v4050
      %v5372 = vunpack.c.l.b16 %v4051
      %v5373 = vunpack.c.h.b16 %v4051
      %v5374 = vunpack.c.l.b16 %v4052
      %v5375 = vunpack.c.h.b16 %v4052
      %v5376 = vunpack.c.l.b16 %v4053
      %v5377 = vunpack.c.h.b16 %v4053
      %v5378 = vunpack.c.l.b16 %v4054
      %v5379 = vunpack.c.h.b16 %v4054
      %v5380 = vunpack.c.l.b16 %v4055
      %v5381 = vunpack.c.h.b16 %v4055
      %v5382 = vunpack.c.l.b16 %v4056
      %v5383 = vunpack.c.h.b16 %v4056
      %v5384 = vunpack.c.l.b16 %v4057
      %v5385 = vunpack.c.h.b16 %v4057
      %v5386 = vunpack.c.l.b16 %v4058
      %v5387 = vunpack.c.h.b16 %v4058
      %v5388 = vunpack.c.l.b16 %v4059
      %v5389 = vunpack.c.h.b16 %v4059
      %v5390 = vunpack.c.l.b16 %v4060
      %v5391 = vunpack.c.h.b16 %v4060
      %v5392 = vunpack.c.l.b16 %v4061
      %v5393 = vunpack.c.h.b16 %v4061
      %v5394 = vunpack.c.l.b16 %v4062
      %v5395 = vunpack.c.h.b16 %v4062
      %v5396 = vunpack.c.l.b16 %v4063
      %v5397 = vunpack.c.h.b16 %v4063
      %v5398 = vunpack.c.l.b16 %v4064
      %v5399 = vunpack.c.h.b16 %v4064
      %v5400 = vunpack.c.l.b16 %v4065
      %v5401 = vunpack.c.h.b16 %v4065
      %v5402 = vunpack.c.l.b16 %v4066
      %v5403 = vunpack.c.h.b16 %v4066
      %v5404 = vunpack.c.l.b16 %v4067
      %v5405 = vunpack.c.h.b16 %v4067
      %v5406 = vunpack.c.l.b16 %v4068
      %v5407 = vunpack.c.h.b16 %v4068
      %v5408 = vunpack.c.l.b16 %v4069
      %v5409 = vunpack.c.h.b16 %v4069
      %v5410 = vunpack.c.l.b16 %v4070
      %v5411 = vunpack.c.h.b16 %v4070
      %v5412 = vunpack.c.l.b16 %v4071
      %v5413 = vunpack.c.h.b16 %v4071
      %v5414 = vunpack.c.l.b16 %v4072
      %v5415 = vunpack.c.h.b16 %v4072
      %v5416 = vunpack.c.l.b16 %v4073
      %v5417 = vunpack.c.h.b16 %v4073
      %v5418 = vunpack.c.l.b16 %v4074
      %v5419 = vunpack.c.h.b16 %v4074
      %v5420 = vunpack.c.l.b16 %v4075
      %v5421 = vunpack.c.h.b16 %v4075
      %v5422 = vunpack.c.l.b16 %v4076
      %v5423 = vunpack.c.h.b16 %v4076
      %v5424 = vunpack.c.l.b16 %v4077
      %v5425 = vunpack.c.h.b16 %v4077
      %v5426 = vunpack.c.l.b16 %v4078
      %v5427 = vunpack.c.h.b16 %v4078
      %v5428 = vunpack.c.l.b16 %v4079
      %v5429 = vunpack.c.h.b16 %v4079
      %v5430 = vunpack.c.l.b16 %v4080
      %v5431 = vunpack.c.h.b16 %v4080
      %v5432 = vunpack.c.l.b16 %v4081
      %v5433 = vunpack.c.h.b16 %v4081
      %v5434 = vunpack.c.l.b16 %v4082
      %v5435 = vunpack.c.h.b16 %v4082
      %v5436 = vunpack.c.l.b16 %v4083
      %v5437 = vunpack.c.h.b16 %v4083
      %v5438 = vunpack.c.l.b16 %v4084
      %v5439 = vunpack.c.h.b16 %v4084
      %v5440 = vunpack.c.l.b16 %v4085
      %v5441 = vunpack.c.h.b16 %v4085
      %v5442 = vunpack.c.l.b16 %v4086
      %v5443 = vunpack.c.h.b16 %v4086
      %v5444 = vunpack.c.l.b16 %v4087
      %v5445 = vunpack.c.h.b16 %v4087
      %v5446 = vunpack.c.l.b16 %v4088
      %v5447 = vunpack.c.h.b16 %v4088
      %v5448 = vunpack.c.l.b16 %v4089
      %v5449 = vunpack.c.h.b16 %v4089
      %v5450 = vunpack.c.l.b16 %v4090
      %v5451 = vunpack.c.h.b16 %v4090
      %v5452 = vunpack.c.l.b16 %v4091
      %v5453 = vunpack.c.h.b16 %v4091
      %v5454 = vpack.c.b16 %v5206, %v5198
      %v5455 = vpack.c.b16 %v5207, %v5199
      %v5456 = vpack.c.b16 %v5208, %v5200
      %v5457 = vpack.c.b16 %v5209, %v5201
      %v5458 = vpack.c.b16 %v5210, %v5202
      %v5459 = vpack.c.b16 %v5211, %v5203
      %v5460 = vpack.c.b16 %v5212, %v5204
      %v5461 = vpack.c.b16 %v5213, %v5205
      %v5462 = vpack.c.b16 %v5222, %v5214
      %v5463 = vpack.c.b16 %v5223, %v5215
      %v5464 = vpack.c.b16 %v5224, %v5216
      %v5465 = vpack.c.b16 %v5225, %v5217
      %v5466 = vpack.c.b16 %v5226, %v5218
      %v5467 = vpack.c.b16 %v5227, %v5219
      %v5468 = vpack.c.b16 %v5228, %v5220
      %v5469 = vpack.c.b16 %v5229, %v5221
      %v5470 = vpack.c.b16 %v5238, %v5230
      %v5471 = vpack.c.b16 %v5239, %v5231
      %v5472 = vpack.c.b16 %v5240, %v5232
      %v5473 = vpack.c.b16 %v5241, %v5233
      %v5474 = vpack.c.b16 %v5242, %v5234
      %v5475 = vpack.c.b16 %v5243, %v5235
      %v5476 = vpack.c.b16 %v5244, %v5236
      %v5477 = vpack.c.b16 %v5245, %v5237
      %v5478 = vpack.c.b16 %v5254, %v5246
      %v5479 = vpack.c.b16 %v5255, %v5247
      %v5480 = vpack.c.b16 %v5256, %v5248
      %v5481 = vpack.c.b16 %v5257, %v5249
      %v5482 = vpack.c.b16 %v5258, %v5250
      %v5483 = vpack.c.b16 %v5259, %v5251
      %v5484 = vpack.c.b16 %v5260, %v5252
      %v5485 = vpack.c.b16 %v5261, %v5253
      %v5486 = vpack.c.b16 %v5270, %v5262
      %v5487 = vpack.c.b16 %v5271, %v5263
      %v5488 = vpack.c.b16 %v5272, %v5264
      %v5489 = vpack.c.b16 %v5273, %v5265
      %v5490 = vpack.c.b16 %v5274, %v5266
      %v5491 = vpack.c.b16 %v5275, %v5267
      %v5492 = vpack.c.b16 %v5276, %v5268
      %v5493 = vpack.c.b16 %v5277, %v5269
      %v5494 = vpack.c.b16 %v5286, %v5278
      %v5495 = vpack.c.b16 %v5287, %v5279
      %v5496 = vpack.c.b16 %v5288, %v5280
      %v5497 = vpack.c.b16 %v5289, %v5281
      %v5498 = vpack.c.b16 %v5290, %v5282
      %v5499 = vpack.c.b16 %v5291, %v5283
      %v5500 = vpack.c.b16 %v5292, %v5284
      %v5501 = vpack.c.b16 %v5293, %v5285
      %v5502 = vpack.c.b16 %v5302, %v5294
      %v5503 = vpack.c.b16 %v5303, %v5295
      %v5504 = vpack.c.b16 %v5304, %v5296
      %v5505 = vpack.c.b16 %v5305, %v5297
      %v5506 = vpack.c.b16 %v5306, %v5298
      %v5507 = vpack.c.b16 %v5307, %v5299
      %v5508 = vpack.c.b16 %v5308, %v5300
      %v5509 = vpack.c.b16 %v5309, %v5301
      %v5510 = vpack.c.b16 %v5318, %v5310
      %v5511 = vpack.c.b16 %v5319, %v5311
      %v5512 = vpack.c.b16 %v5320, %v5312
      %v5513 = vpack.c.b16 %v5321, %v5313
      %v5514 = vpack.c.b16 %v5322, %v5314
      %v5515 = vpack.c.b16 %v5323, %v5315
      %v5516 = vpack.c.b16 %v5324, %v5316
      %v5517 = vpack.c.b16 %v5325, %v5317
      %v5518 = vpack.c.b16 %v5334, %v5326
      %v5519 = vpack.c.b16 %v5335, %v5327
      %v5520 = vpack.c.b16 %v5336, %v5328
      %v5521 = vpack.c.b16 %v5337, %v5329
      %v5522 = vpack.c.b16 %v5338, %v5330
      %v5523 = vpack.c.b16 %v5339, %v5331
      %v5524 = vpack.c.b16 %v5340, %v5332
      %v5525 = vpack.c.b16 %v5341, %v5333
      %v5526 = vpack.c.b16 %v5350, %v5342
      %v5527 = vpack.c.b16 %v5351, %v5343
      %v5528 = vpack.c.b16 %v5352, %v5344
      %v5529 = vpack.c.b16 %v5353, %v5345
      %v5530 = vpack.c.b16 %v5354, %v5346
      %v5531 = vpack.c.b16 %v5355, %v5347
      %v5532 = vpack.c.b16 %v5356, %v5348
      %v5533 = vpack.c.b16 %v5357, %v5349
      %v5534 = vpack.c.b16 %v5366, %v5358
      %v5535 = vpack.c.b16 %v5367, %v5359
      %v5536 = vpack.c.b16 %v5368, %v5360
      %v5537 = vpack.c.b16 %v5369, %v5361
      %v5538 = vpack.c.b16 %v5370, %v5362
      %v5539 = vpack.c.b16 %v5371, %v5363
      %v5540 = vpack.c.b16 %v5372, %v5364
      %v5541 = vpack.c.b16 %v5373, %v5365
      %v5542 = vpack.c.b16 %v5382, %v5374
      %v5543 = vpack.c.b16 %v5383, %v5375
      %v5544 = vpack.c.b16 %v5384, %v5376
      %v5545 = vpack.c.b16 %v5385, %v5377
      %v5546 = vpack.c.b16 %v5386, %v5378
      %v5547 = vpack.c.b16 %v5387, %v5379
      %v5548 = vpack.c.b16 %v5388, %v5380
      %v5549 = vpack.c.b16 %v5389, %v5381
      %v5550 = vpack.c.b16 %v5398, %v5390
      %v5551 = vpack.c.b16 %v5399, %v5391
      %v5552 = vpack.c.b16 %v5400, %v5392
      %v5553 = vpack.c.b16 %v5401, %v5393
      %v5554 = vpack.c.b16 %v5402, %v5394
      %v5555 = vpack.c.b16 %v5403, %v5395
      %v5556 = vpack.c.b16 %v5404, %v5396
      %v5557 = vpack.c.b16 %v5405, %v5397
      %v5558 = vpack.c.b16 %v5414, %v5406
      %v5559 = vpack.c.b16 %v5415, %v5407
      %v5560 = vpack.c.b16 %v5416, %v5408
      %v5561 = vpack.c.b16 %v5417, %v5409
      %v5562 = vpack.c.b16 %v5418, %v5410
      %v5563 = vpack.c.b16 %v5419, %v5411
      %v5564 = vpack.c.b16 %v5420, %v5412
      %v5565 = vpack.c.b16 %v5421, %v5413
      %v5566 = vpack.c.b16 %v5430, %v5422
      %v5567 = vpack.c.b16 %v5431, %v5423
      %v5568 = vpack.c.b16 %v5432, %v5424
      %v5569 = vpack.c.b16 %v5433, %v5425
      %v5570 = vpack.c.b16 %v5434, %v5426
      %v5571 = vpack.c.b16 %v5435, %v5427
      %v5572 = vpack.c.b16 %v5436, %v5428
      %v5573 = vpack.c.b16 %v5437, %v5429
      %v5574 = vpack.c.b16 %v5446, %v5438
      %v5575 = vpack.c.b16 %v5447, %v5439
      %v5576 = vpack.c.b16 %v5448, %v5440
      %v5577 = vpack.c.b16 %v5449, %v5441
      %v5578 = vpack.c.b16 %v5450, %v5442
      %v5579 = vpack.c.b16 %v5451, %v5443
      %v5580 = vpack.c.b16 %v5452, %v5444
      %v5581 = vpack.c.b16 %v5453, %v5445
      %5710 = vmatpush.bf16.msra.mxu0 %v5510
      %5711 = vmatpush.bf16.msra.mxu0 %v5502
      %5712 = vmatpush.bf16.msra.mxu0 %v5494
      %5713 = vmatpush.bf16.msra.mxu0 %v5486
      %5714 = vmatpush.bf16.msra.mxu0 %v5478
      %5715 = vmatpush.bf16.msra.mxu0 %v5470
      %5716 = vmatpush.bf16.msra.mxu0 %v5462
      %5717 = vmatpush.bf16.msra.mxu0 %v5454
      %5718 = vmatmul.bf16.gmra.mxu0 %v3962
      %v5719 = vpop.f32.mrf.mxu0
      %v5720 = vadd.f32 %v4885, %v5719
      %v5721 = vpop.f32.mrf.mxu0
      %5722 = vdwg.mxu0
      %5723 = vmatpush.bf16.msra.mxu0 %v5574
      %5724 = vmatpush.bf16.msra.mxu0 %v5566
      %5725 = vmatpush.bf16.msra.mxu0 %v5558
      %5726 = vmatpush.bf16.msra.mxu0 %v5550
      %5727 = vmatpush.bf16.msra.mxu0 %v5542
      %5728 = vmatpush.bf16.msra.mxu0 %v5534
      %5729 = vmatpush.bf16.msra.mxu0 %v5526
      %5730 = vmatpush.bf16.msra.mxu0 %v5518
      %5731 = vmatmul.bf16.gmra.mxu0 %v3963
      %v5732 = vpop.f32.mrf.mxu0
      %v5733 = vadd.f32 %v5720, %v5732
      %v5734 = vpop.f32.mrf.mxu0
      %5735 = vdwg.mxu0
      %5736 = vmatpush.bf16.msra.mxu0 %v5511
      %5737 = vmatpush.bf16.msra.mxu0 %v5503
      %5738 = vmatpush.bf16.msra.mxu0 %v5495
      %5739 = vmatpush.bf16.msra.mxu0 %v5487
      %5740 = vmatpush.bf16.msra.mxu0 %v5479
      %5741 = vmatpush.bf16.msra.mxu0 %v5471
      %5742 = vmatpush.bf16.msra.mxu0 %v5463
      %5743 = vmatpush.bf16.msra.mxu0 %v5455
      %5744 = vmatmul.bf16.gmra.mxu0 %v3962
      %v5745 = vpop.f32.mrf.mxu0
      %v5746 = vadd.f32 %v4911, %v5745
      %v5747 = vpop.f32.mrf.mxu0
      %5748 = vdwg.mxu0
      %5749 = vmatpush.bf16.msra.mxu0 %v5575
      %5750 = vmatpush.bf16.msra.mxu0 %v5567
      %5751 = vmatpush.bf16.msra.mxu0 %v5559
      %5752 = vmatpush.bf16.msra.mxu0 %v5551
      %5753 = vmatpush.bf16.msra.mxu0 %v5543
      %5754 = vmatpush.bf16.msra.mxu0 %v5535
      %5755 = vmatpush.bf16.msra.mxu0 %v5527
      %5756 = vmatpush.bf16.msra.mxu0 %v5519
      %5757 = vmatmul.bf16.gmra.mxu0 %v3963
      %v5758 = vpop.f32.mrf.mxu0
      %v5759 = vadd.f32 %v5746, %v5758
      %v5760 = vpop.f32.mrf.mxu0
      %5761 = vdwg.mxu0
      %5762 = vmatpush.bf16.msra.mxu0 %v5512
      %5763 = vmatpush.bf16.msra.mxu0 %v5504
      %5764 = vmatpush.bf16.msra.mxu0 %v5496
      %5765 = vmatpush.bf16.msra.mxu0 %v5488
      %5766 = vmatpush.bf16.msra.mxu0 %v5480
      %5767 = vmatpush.bf16.msra.mxu0 %v5472
      %5768 = vmatpush.bf16.msra.mxu0 %v5464
      %5769 = vmatpush.bf16.msra.mxu0 %v5456
      %5770 = vmatmul.bf16.gmra.mxu0 %v3962
      %v5771 = vpop.f32.mrf.mxu0
      %v5772 = vadd.f32 %v4937, %v5771
      %v5773 = vpop.f32.mrf.mxu0
      %5774 = vdwg.mxu0
      %5775 = vmatpush.bf16.msra.mxu0 %v5576
      %5776 = vmatpush.bf16.msra.mxu0 %v5568
      %5777 = vmatpush.bf16.msra.mxu0 %v5560
      %5778 = vmatpush.bf16.msra.mxu0 %v5552
      %5779 = vmatpush.bf16.msra.mxu0 %v5544
      %5780 = vmatpush.bf16.msra.mxu0 %v5536
      %5781 = vmatpush.bf16.msra.mxu0 %v5528
      %5782 = vmatpush.bf16.msra.mxu0 %v5520
      %5783 = vmatmul.bf16.gmra.mxu0 %v3963
      %v5784 = vpop.f32.mrf.mxu0
      %v5785 = vadd.f32 %v5772, %v5784
      %v5786 = vpop.f32.mrf.mxu0
      %5787 = vdwg.mxu0
      %5788 = vmatpush.bf16.msra.mxu0 %v5513
      %5789 = vmatpush.bf16.msra.mxu0 %v5505
      %5790 = vmatpush.bf16.msra.mxu0 %v5497
      %5791 = vmatpush.bf16.msra.mxu0 %v5489
      %5792 = vmatpush.bf16.msra.mxu0 %v5481
      %5793 = vmatpush.bf16.msra.mxu0 %v5473
      %5794 = vmatpush.bf16.msra.mxu0 %v5465
      %5795 = vmatpush.bf16.msra.mxu0 %v5457
      %5796 = vmatmul.bf16.gmra.mxu0 %v3962
      %v5797 = vpop.f32.mrf.mxu0
      %v5798 = vadd.f32 %v4963, %v5797
      %v5799 = vpop.f32.mrf.mxu0
      %5800 = vdwg.mxu0
      %5801 = vmatpush.bf16.msra.mxu0 %v5577
      %5802 = vmatpush.bf16.msra.mxu0 %v5569
      %5803 = vmatpush.bf16.msra.mxu0 %v5561
      %5804 = vmatpush.bf16.msra.mxu0 %v5553
      %5805 = vmatpush.bf16.msra.mxu0 %v5545
      %5806 = vmatpush.bf16.msra.mxu0 %v5537
      %5807 = vmatpush.bf16.msra.mxu0 %v5529
      %5808 = vmatpush.bf16.msra.mxu0 %v5521
      %5809 = vmatmul.bf16.gmra.mxu0 %v3963
      %v5810 = vpop.f32.mrf.mxu0
      %v5811 = vadd.f32 %v5798, %v5810
      %v5812 = vpop.f32.mrf.mxu0
      %5813 = vdwg.mxu0
      %5814 = vmatpush.bf16.msra.mxu0 %v5514
      %5815 = vmatpush.bf16.msra.mxu0 %v5506
      %5816 = vmatpush.bf16.msra.mxu0 %v5498
      %5817 = vmatpush.bf16.msra.mxu0 %v5490
      %5818 = vmatpush.bf16.msra.mxu0 %v5482
      %5819 = vmatpush.bf16.msra.mxu0 %v5474
      %5820 = vmatpush.bf16.msra.mxu0 %v5466
      %5821 = vmatpush.bf16.msra.mxu0 %v5458
      %5822 = vmatmul.bf16.gmra.mxu0 %v3962
      %v5823 = vpop.f32.mrf.mxu0
      %v5824 = vadd.f32 %v4989, %v5823
      %v5825 = vpop.f32.mrf.mxu0
      %5826 = vdwg.mxu0
      %5827 = vmatpush.bf16.msra.mxu0 %v5578
      %5828 = vmatpush.bf16.msra.mxu0 %v5570
      %5829 = vmatpush.bf16.msra.mxu0 %v5562
      %5830 = vmatpush.bf16.msra.mxu0 %v5554
      %5831 = vmatpush.bf16.msra.mxu0 %v5546
      %5832 = vmatpush.bf16.msra.mxu0 %v5538
      %5833 = vmatpush.bf16.msra.mxu0 %v5530
      %5834 = vmatpush.bf16.msra.mxu0 %v5522
      %5835 = vmatmul.bf16.gmra.mxu0 %v3963
      %v5836 = vpop.f32.mrf.mxu0
      %v5837 = vadd.f32 %v5824, %v5836
      %v5838 = vpop.f32.mrf.mxu0
      %5839 = vdwg.mxu0
      %5840 = vmatpush.bf16.msra.mxu0 %v5515
      %5841 = vmatpush.bf16.msra.mxu0 %v5507
      %5842 = vmatpush.bf16.msra.mxu0 %v5499
      %5843 = vmatpush.bf16.msra.mxu0 %v5491
      %5844 = vmatpush.bf16.msra.mxu0 %v5483
      %5845 = vmatpush.bf16.msra.mxu0 %v5475
      %5846 = vmatpush.bf16.msra.mxu0 %v5467
      %5847 = vmatpush.bf16.msra.mxu0 %v5459
      %5848 = vmatmul.bf16.gmra.mxu0 %v3962
      %v5849 = vpop.f32.mrf.mxu0
      %v5850 = vadd.f32 %v5015, %v5849
      %v5851 = vpop.f32.mrf.mxu0
      %5852 = vdwg.mxu0
      %5853 = vmatpush.bf16.msra.mxu0 %v5579
      %5854 = vmatpush.bf16.msra.mxu0 %v5571
      %5855 = vmatpush.bf16.msra.mxu0 %v5563
      %5856 = vmatpush.bf16.msra.mxu0 %v5555
      %5857 = vmatpush.bf16.msra.mxu0 %v5547
      %5858 = vmatpush.bf16.msra.mxu0 %v5539
      %5859 = vmatpush.bf16.msra.mxu0 %v5531
      %5860 = vmatpush.bf16.msra.mxu0 %v5523
      %5861 = vmatmul.bf16.gmra.mxu0 %v3963
      %v5862 = vpop.f32.mrf.mxu0
      %v5863 = vadd.f32 %v5850, %v5862
      %v5864 = vpop.f32.mrf.mxu0
      %5865 = vdwg.mxu0
      %5866 = vmatpush.bf16.msra.mxu0 %v5516
      %5867 = vmatpush.bf16.msra.mxu0 %v5508
      %5868 = vmatpush.bf16.msra.mxu0 %v5500
      %5869 = vmatpush.bf16.msra.mxu0 %v5492
      %5870 = vmatpush.bf16.msra.mxu0 %v5484
      %5871 = vmatpush.bf16.msra.mxu0 %v5476
      %5872 = vmatpush.bf16.msra.mxu0 %v5468
      %5873 = vmatpush.bf16.msra.mxu0 %v5460
      %5874 = vmatmul.bf16.gmra.mxu0 %v3962
      %v5875 = vpop.f32.mrf.mxu0
      %v5876 = vadd.f32 %v5041, %v5875
      %v5877 = vpop.f32.mrf.mxu0
      %5878 = vdwg.mxu0
      %5879 = vmatpush.bf16.msra.mxu0 %v5580
      %5880 = vmatpush.bf16.msra.mxu0 %v5572
      %5881 = vmatpush.bf16.msra.mxu0 %v5564
      %5882 = vmatpush.bf16.msra.mxu0 %v5556
      %5883 = vmatpush.bf16.msra.mxu0 %v5548
      %5884 = vmatpush.bf16.msra.mxu0 %v5540
      %5885 = vmatpush.bf16.msra.mxu0 %v5532
      %5886 = vmatpush.bf16.msra.mxu0 %v5524
      %5887 = vmatmul.bf16.gmra.mxu0 %v3963
      %v5888 = vpop.f32.mrf.mxu0
      %v5889 = vadd.f32 %v5876, %v5888
      %v5890 = vpop.f32.mrf.mxu0
      %5891 = vdwg.mxu0
      %5892 = vmatpush.bf16.msra.mxu0 %v5517
      %5893 = vmatpush.bf16.msra.mxu0 %v5509
      %5894 = vmatpush.bf16.msra.mxu0 %v5501
      %5895 = vmatpush.bf16.msra.mxu0 %v5493
      %5896 = vmatpush.bf16.msra.mxu0 %v5485
      %5897 = vmatpush.bf16.msra.mxu0 %v5477
      %5898 = vmatpush.bf16.msra.mxu0 %v5469
      %5899 = vmatpush.bf16.msra.mxu0 %v5461
      %5900 = vmatmul.bf16.gmra.mxu0 %v3962
      %v5901 = vpop.f32.mrf.mxu0
      %v5902 = vadd.f32 %v5067, %v5901
      %v5903 = vpop.f32.mrf.mxu0
      %5904 = vdwg.mxu0
      %5905 = vmatpush.bf16.msra.mxu0 %v5581
      %5906 = vmatpush.bf16.msra.mxu0 %v5573
      %5907 = vmatpush.bf16.msra.mxu0 %v5565
      %5908 = vmatpush.bf16.msra.mxu0 %v5557
      %5909 = vmatpush.bf16.msra.mxu0 %v5549
      %5910 = vmatpush.bf16.msra.mxu0 %v5541
      %5911 = vmatpush.bf16.msra.mxu0 %v5533
      %5912 = vmatpush.bf16.msra.mxu0 %v5525
      %5913 = vmatmul.bf16.gmra.mxu0 %v3963
      %v5914 = vpop.f32.mrf.mxu0
      %v5915 = vadd.f32 %v5902, %v5914
      %v5916 = vpop.f32.mrf.mxu0
      %5917 = vdwg.mxu0
      %v5918 = vadd.f32 %v5733, %v200
      %v5919 = vadd.f32 %v5759, %v201
      %v5920 = vadd.f32 %v5785, %v202
      %v5921 = vadd.f32 %v5811, %v203
      %v5922 = vadd.f32 %v5837, %v204
      %v5923 = vadd.f32 %v5863, %v205
      %v5924 = vadd.f32 %v5889, %v206
      %v5925 = vadd.f32 %v5915, %v207
      %v5926 = vxor.u32 %v5918, 2147483648
      %v5927 = vxor.u32 %v5919, 2147483648
      %v5928 = vxor.u32 %v5920, 2147483648
      %v5929 = vxor.u32 %v5921, 2147483648
      %v5930 = vxor.u32 %v5922, 2147483648
      %v5931 = vxor.u32 %v5923, 2147483648
      %v5932 = vmul.f32 %v5926, 1.442695
      %v5933 = vpow.pop %v5932
      %v5934 = vmul.f32 %v5927, 1.442695
      %v5935 = vpow.pop %v5934
      %v5936 = vmul.f32 %v5928, 1.442695
      %v5937 = vpow.pop %v5936
      %v5938 = vmul.f32 %v5929, 1.442695
      %v5939 = vpow.pop %v5938
      %v5940 = vmul.f32 %v5930, 1.442695
      %v5941 = vpow.pop %v5940
      %v5942 = vmul.f32 %v5931, 1.442695
      %v5943 = vpow.pop %v5942
      %v5944 = vadd.f32 %v5933, 1.0
      %v5945 = vadd.f32 %v5935, 1.0
      %v5946 = vadd.f32 %v5937, 1.0
      %v5947 = vadd.f32 %v5939, 1.0
      %v5948 = vadd.f32 %v5941, 1.0
      %v5949 = vadd.f32 %v5943, 1.0
      %v5950 = vrcp.pop %v5944
      %v5951 = vmul.f32 %v5944, %v5950
      %v5952 = vsub.f32 1.0, %v5951
      %v5953 = vmul.f32 %v5950, %v5952
      %v5954 = vadd.f32 %v5950, %v5953
      %vm5955 = vweird.f32 %v5944
      %vm5956 = vweird.f32 %v5950
      %vm5957 = vmor %vm5955, %vm5956
      %v5958 = vsel %vm5957, %v5950, %v5954
      %v5959 = vand.u32 2147483647, %v5944
      %vm5960 = vcmp.eq.f32.partialorder %v5959, 8.507059e+37
      %v5961 = vand.u32 %v5944, 2147483648
      %v5962 = vor.u32 1.1754944e-38, %v5961
      %v5963 = vsel %vm5960, %v5962, %v5958
      %v5964 = vmul.f32 1.0, %v5963
      %v5965 = vrcp.pop %v5945
      %v5966 = vmul.f32 %v5945, %v5965
      %v5967 = vsub.f32 1.0, %v5966
      %v5968 = vmul.f32 %v5965, %v5967
      %v5969 = vadd.f32 %v5965, %v5968
      %vm5970 = vweird.f32 %v5945
      %vm5971 = vweird.f32 %v5965
      %vm5972 = vmor %vm5970, %vm5971
      %v5973 = vsel %vm5972, %v5965, %v5969
      %v5974 = vand.u32 2147483647, %v5945
      %vm5975 = vcmp.eq.f32.partialorder %v5974, 8.507059e+37
      %v5976 = vand.u32 %v5945, 2147483648
      %v5977 = vor.u32 1.1754944e-38, %v5976
      %v5978 = vsel %vm5975, %v5977, %v5973
      %v5979 = vmul.f32 1.0, %v5978
      %v5980 = vrcp.pop %v5946
      %v5981 = vmul.f32 %v5946, %v5980
      %v5982 = vsub.f32 1.0, %v5981
      %v5983 = vmul.f32 %v5980, %v5982
      %v5984 = vadd.f32 %v5980, %v5983
      %vm5985 = vweird.f32 %v5946
      %vm5986 = vweird.f32 %v5980
      %vm5987 = vmor %vm5985, %vm5986
      %v5988 = vsel %vm5987, %v5980, %v5984
      %v5989 = vand.u32 2147483647, %v5946
      %vm5990 = vcmp.eq.f32.partialorder %v5989, 8.507059e+37
      %v5991 = vand.u32 %v5946, 2147483648
      %v5992 = vor.u32 1.1754944e-38, %v5991
      %v5993 = vsel %vm5990, %v5992, %v5988
      %v5994 = vmul.f32 1.0, %v5993
      %v5995 = vrcp.pop %v5947
      %v5996 = vmul.f32 %v5947, %v5995
      %v5997 = vsub.f32 1.0, %v5996
      %v5998 = vmul.f32 %v5995, %v5997
      %v5999 = vadd.f32 %v5995, %v5998
      %vm6000 = vweird.f32 %v5947
      %vm6001 = vweird.f32 %v5995
      %vm6002 = vmor %vm6000, %vm6001
      %v6003 = vsel %vm6002, %v5995, %v5999
      %v6004 = vand.u32 2147483647, %v5947
      %vm6005 = vcmp.eq.f32.partialorder %v6004, 8.507059e+37
      %v6006 = vand.u32 %v5947, 2147483648
      %v6007 = vor.u32 1.1754944e-38, %v6006
      %v6008 = vsel %vm6005, %v6007, %v6003
      %v6009 = vmul.f32 1.0, %v6008
      %v6010 = vrcp.pop %v5948
      %v6011 = vmul.f32 %v5948, %v6010
      %v6012 = vsub.f32 1.0, %v6011
      %v6013 = vmul.f32 %v6010, %v6012
      %v6014 = vadd.f32 %v6010, %v6013
      %vm6015 = vweird.f32 %v5948
      %vm6016 = vweird.f32 %v6010
      %vm6017 = vmor %vm6015, %vm6016
      %v6018 = vsel %vm6017, %v6010, %v6014
      %v6019 = vand.u32 2147483647, %v5948
      %vm6020 = vcmp.eq.f32.partialorder %v6019, 8.507059e+37
      %v6021 = vand.u32 %v5948, 2147483648
      %v6022 = vor.u32 1.1754944e-38, %v6021
      %v6023 = vsel %vm6020, %v6022, %v6018
      %v6024 = vmul.f32 1.0, %v6023
      %v6025 = vrcp.pop %v5949
      %v6026 = vmul.f32 %v5949, %v6025
      %v6027 = vsub.f32 1.0, %v6026
      %v6028 = vmul.f32 %v6025, %v6027
      %v6029 = vadd.f32 %v6025, %v6028
      %vm6030 = vweird.f32 %v5949
      %vm6031 = vweird.f32 %v6025
      %vm6032 = vmor %vm6030, %vm6031
      %v6033 = vsel %vm6032, %v6025, %v6029
      %v6034 = vand.u32 2147483647, %v5949
      %vm6035 = vcmp.eq.f32.partialorder %v6034, 8.507059e+37
      %v6036 = vand.u32 %v5949, 2147483648
      %v6037 = vor.u32 1.1754944e-38, %v6036
      %v6038 = vsel %vm6035, %v6037, %v6033
      %v6039 = vmul.f32 1.0, %v6038
      %v6040 = vtanh.pop %v5924
      %v6041 = vtanh.pop %v5925
      %v6042 = vmul.f32 %v5994, %v270
      %v6043 = vmul.f32 %v6009, %v271
      %v6044 = vmul.f32 %v5964, %v6040
      %v6045 = vmul.f32 %v5979, %v6041
      %v6046 = vadd.f32 %v6042, %v6044
      %v6047 = vadd.f32 %v6043, %v6045
      %v6048 = vtanh.pop %v6046
      %v6049 = vtanh.pop %v6047
      %v6050 = vmul.f32 %v6024, %v6048
      %v6051 = vmul.f32 %v6039, %v6049
      %v6052 = vadd.f32 %v6050, %v6051
      %6053 = vadd.xlane.f32.xlu0 %v6052
      %v6054 = vpop.xlane.xlu0 %6053
      %v6055 = vrcp.pop 256.0
      %v6056 = vmul.f32 256.0, %v6055
      %v6057 = vsub.f32 1.0, %v6056
      %v6058 = vmul.f32 %v6055, %v6057
      %v6059 = vadd.f32 %v6055, %v6058
      %vm6060 = vweird.f32 %v6055
      %v6061 = vsel %vm6060, %v6055, %v6059
      %v6062 = vmul.f32 %v6054, %v6061
      %v6063 = vmul.f32 %v6050, %v6050
      %v6064 = vmul.f32 %v6051, %v6051
      %v6065 = vadd.f32 %v6063, %v6064
      %6066 = vadd.xlane.f32.xlu0 %v6065
      %v6067 = vpop.xlane.xlu0 %6066
      %v6068 = vmul.f32 %v6067, %v6061
      %v6069 = vmul.f32 %v6062, %v6062
      %v6070 = vsub.f32 %v6068, %v6069
      %v6071 = vsub.f32 %v6050, %v6062
      %v6072 = vsub.f32 %v6051, %v6062
      %v6073 = vadd.f32 %v6070, 1e-05
      %v6074 = vrsqrt.pop %v6073
      %v6075 = vmul.f32 %v6074, %v6073
      %v6076 = vmul.f32 %v6075, %v6074
      %v6077 = vmul.f32 0.5, %v6076
      %v6078 = vsub.f32 1.5, %v6077
      %v6079 = vmul.f32 %v6074, %v6078
      %vm6080 = vweird.f32 %v6073
      %vm6081 = vweird.f32 %v6074
      %vm6082 = vmor %vm6080, %vm6081
      %v6083 = vsel %vm6082, %v6074, %v6079
      %v6084 = vmul.f32 %v6071, %v6083
      %v6085 = vmul.f32 %v6072, %v6083
      %v6086 = vmul.f32 %v6084, %v218
      %v6087 = vmul.f32 %v6085, %v219
      %v6088 = vadd.f32 %v6086, %v224
      %v6089 = vadd.f32 %v6087, %v225
      %v6090 = vpack.c.bf16 %v6088, %v6088
      %v6091 = vpack.c.bf16 %v6089, %v6089
      %v6092 = vld [vmem:[%s12] sm:$0xf]
      %v6093 = vld [vmem:[%s12 + $0x4] sm:$0xf]
      %v6094 = vld [vmem:[%s12 + $0x8] sm:$0xf]
      %v6095 = vld [vmem:[%s12 + $0xc] sm:$0xf]
      %v6096 = vld [vmem:[%s12 + $0x10] sm:$0xf]
      %v6097 = vld [vmem:[%s12 + $0x14] sm:$0xf]
      %v6098 = vld [vmem:[%s12 + $0x18] sm:$0xf]
      %v6099 = vld [vmem:[%s12 + $0x1c] sm:$0xf]
      %v6100 = vld [vmem:[%s12 + $0x20] sm:$0xf]
      %v6101 = vld [vmem:[%s12 + $0x24] sm:$0xf]
      %v6102 = vld [vmem:[%s12 + $0x28] sm:$0xf]
      %v6103 = vld [vmem:[%s12 + $0x2c] sm:$0xf]
      %v6104 = vld [vmem:[%s12 + $0x30] sm:$0xf]
      %v6105 = vld [vmem:[%s12 + $0x34] sm:$0xf]
      %v6106 = vld [vmem:[%s12 + $0x38] sm:$0xf]
      %v6107 = vld [vmem:[%s12 + $0x3c] sm:$0xf]
      %v6108 = vld [vmem:[%s12 + $0x40] sm:$0xf]
      %v6109 = vld [vmem:[%s12 + $0x44] sm:$0xf]
      %v6110 = vld [vmem:[%s12 + $0x48] sm:$0xf]
      %v6111 = vld [vmem:[%s12 + $0x4c] sm:$0xf]
      %v6112 = vld [vmem:[%s12 + $0x50] sm:$0xf]
      %v6113 = vld [vmem:[%s12 + $0x54] sm:$0xf]
      %v6114 = vld [vmem:[%s12 + $0x58] sm:$0xf]
      %v6115 = vld [vmem:[%s12 + $0x5c] sm:$0xf]
      %v6116 = vld [vmem:[%s12 + $0x60] sm:$0xf]
      %v6117 = vld [vmem:[%s12 + $0x64] sm:$0xf]
      %v6118 = vld [vmem:[%s12 + $0x68] sm:$0xf]
      %v6119 = vld [vmem:[%s12 + $0x6c] sm:$0xf]
      %v6120 = vld [vmem:[%s12 + $0x70] sm:$0xf]
      %v6121 = vld [vmem:[%s12 + $0x74] sm:$0xf]
      %v6122 = vld [vmem:[%s12 + $0x78] sm:$0xf]
      %v6123 = vld [vmem:[%s12 + $0x7c] sm:$0xf]
      %v6156 = vunpack.c.l.b16 %v6092
      %v6157 = vunpack.c.l.b16 %v6093
      %v6158 = vunpack.c.l.b16 %v6094
      %v6159 = vunpack.c.l.b16 %v6095
      %v6160 = vunpack.c.l.b16 %v6096
      %v6161 = vunpack.c.l.b16 %v6097
      %v6162 = vunpack.c.l.b16 %v6098
      %v6163 = vunpack.c.l.b16 %v6099
      %v6164 = vunpack.c.l.b16 %v6100
      %v6165 = vunpack.c.l.b16 %v6101
      %v6166 = vunpack.c.l.b16 %v6102
      %v6167 = vunpack.c.l.b16 %v6103
      %v6168 = vunpack.c.l.b16 %v6104
      %v6169 = vunpack.c.l.b16 %v6105
      %v6170 = vunpack.c.l.b16 %v6106
      %v6171 = vunpack.c.l.b16 %v6107
      %v6172 = vunpack.c.l.b16 %v6108
      %v6173 = vunpack.c.l.b16 %v6109
      %v6174 = vunpack.c.l.b16 %v6110
      %v6175 = vunpack.c.l.b16 %v6111
      %v6176 = vunpack.c.l.b16 %v6112
      %v6177 = vunpack.c.l.b16 %v6113
      %v6178 = vunpack.c.l.b16 %v6114
      %v6179 = vunpack.c.l.b16 %v6115
      %v6180 = vunpack.c.l.b16 %v6116
      %v6181 = vunpack.c.l.b16 %v6117
      %v6182 = vunpack.c.l.b16 %v6118
      %v6183 = vunpack.c.l.b16 %v6119
      %v6184 = vunpack.c.l.b16 %v6120
      %v6185 = vunpack.c.l.b16 %v6121
      %v6186 = vunpack.c.l.b16 %v6122
      %v6187 = vunpack.c.l.b16 %v6123
      %v6188 = vpack.c.b16 %v6157, %v6156
      %v6189 = vpack.c.b16 %v6159, %v6158
      %v6190 = vpack.c.b16 %v6161, %v6160
      %v6191 = vpack.c.b16 %v6163, %v6162
      %v6192 = vpack.c.b16 %v6165, %v6164
      %v6193 = vpack.c.b16 %v6167, %v6166
      %v6194 = vpack.c.b16 %v6169, %v6168
      %v6195 = vpack.c.b16 %v6171, %v6170
      %v6196 = vpack.c.b16 %v6173, %v6172
      %v6197 = vpack.c.b16 %v6175, %v6174
      %v6198 = vpack.c.b16 %v6177, %v6176
      %v6199 = vpack.c.b16 %v6179, %v6178
      %v6200 = vpack.c.b16 %v6181, %v6180
      %v6201 = vpack.c.b16 %v6183, %v6182
      %v6202 = vpack.c.b16 %v6185, %v6184
      %v6203 = vpack.c.b16 %v6187, %v6186
      %6220 = vmatpush.bf16.msra.mxu0 %v6195
      %6221 = vmatpush.bf16.msra.mxu0 %v6194
      %6222 = vmatpush.bf16.msra.mxu0 %v6193
      %6223 = vmatpush.bf16.msra.mxu0 %v6192
      %6224 = vmatpush.bf16.msra.mxu0 %v6191
      %6225 = vmatpush.bf16.msra.mxu0 %v6190
      %6226 = vmatpush.bf16.msra.mxu0 %v6189
      %6227 = vmatpush.bf16.msra.mxu0 %v6188
      %6228 = vmatmul.bf16.gmra.mxu0 %v6090
      %v6229 = vpop.f32.mrf.mxu0
      %v6230 = vadd.f32 %v230, %v6229
      %v6231 = vpop.f32.mrf.mxu0
      %6232 = vdwg.mxu0
      %6233 = vmatpush.bf16.msra.mxu0 %v6203
      %6234 = vmatpush.bf16.msra.mxu0 %v6202
      %6235 = vmatpush.bf16.msra.mxu0 %v6201
      %6236 = vmatpush.bf16.msra.mxu0 %v6200
      %6237 = vmatpush.bf16.msra.mxu0 %v6199
      %6238 = vmatpush.bf16.msra.mxu0 %v6198
      %6239 = vmatpush.bf16.msra.mxu0 %v6197
      %6240 = vmatpush.bf16.msra.mxu0 %v6196
      %6241 = vmatmul.bf16.gmra.mxu0 %v6091
      %v6242 = vpop.f32.mrf.mxu0
      %v6243 = vadd.f32 %v6230, %v6242
      %v6244 = vpop.f32.mrf.mxu0
      %6245 = vdwg.mxu0
      %s6246 = smul.u32 %s254, 8
      %s6247 = scalar_lea.vmem %s16, %s6246
      %6248 = vst [vmem:[%s6247] sm:$0xff] %v6243
      %6249 = vmax.xlane.f32.xlu0 %v6243
      %v6250 = vpop.xlane.xlu0 %6249
      %v6251 = vlaneseq
      %v6252 = vand.u32 %v6251, 127
      %vm6253 = vcmp.eq.f32.partialorder %v6243, %v6250
      %v6254 = vsel %vm6253, %v6252, 128
      %v6255 = vand.u32 %v6254, 65535
      %v6256 = vshra.s32 %v6254, 16
      %v6257 = vcvt.s32.f32 %v6255
      %v6258 = vcvt.s32.f32 %v6256
      %6259 = vmin.xlane.f32.xlu0 %v6258
      %v6260 = vpop.xlane.xlu0 %6259
      %vm6261 = vcmp.eq.f32.partialorder %v6258, %v6260
      %v6262 = vsel %vm6261, %v6257, inf
      %6263 = vmin.xlane.f32.xlu0 %v6262
      %v6264 = vpop.xlane.xlu0 %6263
      %v6265 = vcvt.f32.s32 %v6264
      %v6266 = vcvt.f32.s32 %v6260
      %v6267 = vshll.u32 %v6266, 16
      %v6268 = vadd.s32 %v6267, %v6265
      %vm6269 = vcmp.eq.s32.totalorder %v6252, %v6268
      %v6270 = vsel %vm6269, 1, 0
      %v6271 = vcvt.s32.f32 %v6270
      %v6272 = vpack.c.bf16 %v6271, %v6271
      %v6273 = vld [vmem:[#allocation2] sm:$0xf]
      %v6274 = vld [vmem:[#allocation2 + $0x4] sm:$0xf]
      %v6275 = vld [vmem:[#allocation2 + $0x8] sm:$0xf]
      %v6276 = vld [vmem:[#allocation2 + $0xc] sm:$0xf]
      %v6277 = vld [vmem:[#allocation2 + $0x10] sm:$0xf]
      %v6278 = vld [vmem:[#allocation2 + $0x14] sm:$0xf]
      %v6279 = vld [vmem:[#allocation2 + $0x18] sm:$0xf]
      %v6280 = vld [vmem:[#allocation2 + $0x1c] sm:$0xf]
      %v6281 = vld [vmem:[#allocation2 + $0x20] sm:$0xf]
      %v6282 = vld [vmem:[#allocation2 + $0x24] sm:$0xf]
      %v6283 = vld [vmem:[#allocation2 + $0x28] sm:$0xf]
      %v6284 = vld [vmem:[#allocation2 + $0x2c] sm:$0xf]
      %v6285 = vld [vmem:[#allocation2 + $0x30] sm:$0xf]
      %v6286 = vld [vmem:[#allocation2 + $0x34] sm:$0xf]
      %v6287 = vld [vmem:[#allocation2 + $0x38] sm:$0xf]
      %v6288 = vld [vmem:[#allocation2 + $0x3c] sm:$0xf]
      %v6305 = vunpack.c.l.b16 %v6273
      %v6306 = vunpack.c.l.b16 %v6274
      %v6307 = vunpack.c.l.b16 %v6275
      %v6308 = vunpack.c.l.b16 %v6276
      %v6309 = vunpack.c.l.b16 %v6277
      %v6310 = vunpack.c.l.b16 %v6278
      %v6311 = vunpack.c.l.b16 %v6279
      %v6312 = vunpack.c.l.b16 %v6280
      %v6313 = vunpack.c.l.b16 %v6281
      %v6314 = vunpack.c.l.b16 %v6282
      %v6315 = vunpack.c.l.b16 %v6283
      %v6316 = vunpack.c.l.b16 %v6284
      %v6317 = vunpack.c.l.b16 %v6285
      %v6318 = vunpack.c.l.b16 %v6286
      %v6319 = vunpack.c.l.b16 %v6287
      %v6320 = vunpack.c.l.b16 %v6288
      %v6321 = vpack.c.b16 %v6306, %v6305
      %v6322 = vpack.c.b16 %v6308, %v6307
      %v6323 = vpack.c.b16 %v6310, %v6309
      %v6324 = vpack.c.b16 %v6312, %v6311
      %v6325 = vpack.c.b16 %v6314, %v6313
      %v6326 = vpack.c.b16 %v6316, %v6315
      %v6327 = vpack.c.b16 %v6318, %v6317
      %v6328 = vpack.c.b16 %v6320, %v6319
      %6337 = vmatpush.bf16.msra.mxu0 %v6328
      %6338 = vmatpush.bf16.msra.mxu0 %v6327
      %6339 = vmatpush.bf16.msra.mxu0 %v6326
      %6340 = vmatpush.bf16.msra.mxu0 %v6325
      %6341 = vmatpush.bf16.msra.mxu0 %v6324
      %6342 = vmatpush.bf16.msra.mxu0 %v6323
      %6343 = vmatpush.bf16.msra.mxu0 %v6322
      %6344 = vmatpush.bf16.msra.mxu0 %v6321
      %6345 = vmatmul.bf16.gmra.mxu0 %v6272
      %v6346 = vpop.f32.mrf.mxu0
      %v6347 = vadd.f32 0.0, %v6346
      %v6348 = vpop.f32.mrf.mxu0
      %6349 = vdwg.mxu0
      %v6350 = vpack.c.bf16 %v6347, %v6347
    $region98: #{model_forward.3} parent=1 // loop_footer
      %s258 = sadd.s32 1, %s254
    $region99: #{model_forward.3} parent=1 // loop_footer_branch
      %253 = sbr.rel target = $region95
    $region100: #{model_forward.3} parent=1 // loop_exit
      _
    // Predicated region
    $region101: #{model_forward.3} parent=1 // pred_check
      _
    $region102: #{model_forward.3} parent=1 // pred_check_branch
      %6352 = sbr.rel (0) target = $region104
    $region103: #{model_forward.3} parent=1 // pred_region
      _
    $region104: #{model_forward.3} parent=1 // pred_fallthru
      _
    // Predicated region
    $region105: #{model_forward.3} parent=1 // pred_check
      _
    $region106: #{model_forward.3} parent=1 // pred_check_branch
      %6354 = sbr.rel (0) target = $region108
    $region107: #{model_forward.3} parent=1 // pred_region
      _
    $region108: #{model_forward.3} parent=1 // pred_fallthru
      _
    %6355 = vsyncpa [#allocation3], 1
    %6356 = vsyncpa [#allocation5], 1
    %6357 = vsyncpa [#allocation8], 1
    %6358 = vsyncpa [#allocation11], 1

</llo_original>
